<compile_context>
chip_gen: v6e
topology: v6e:2x2x1
jax: 0.10.0
libtpu: 0.0.40
codegen_flags: <defaults>
</compile_context>

<pallas_src>
import functools

import jax
import jax.numpy as jnp
from jax import lax
from jax.experimental import pallas as pl
from jax.experimental.pallas import tpu as pltpu

_MASK_BIAS = -1e30                      # finite "minus infinity" (avoids NaN rows)
_VMEM_LIMIT = 48 * 1024 * 1024          # leaves headroom under v7x's 64 MiB VMEM


def _qkv_proj_kernel(x_ref, w_ref, q_ref, k_ref, v_ref, *, n_heads, head_dim):
    """Fused QKV projection for one (Tm, C) tile of x.

    x_ref : (1, Tm, C)      bf16 activations
    w_ref : (C, 3C)         bf16, columns are [Wq^T | Wk^T | Wv^T]
    q/k/v : (1, H, Tm, Dh)  bf16 outputs in head-major layout
    """
    c = n_heads * head_dim
    qkv = jnp.dot(x_ref[0], w_ref[...],
                  preferred_element_type=jnp.float32)            # (Tm, 3C) f32 acc
    # Layout split only (the matmul above is already fused); H is small + static.
    for h in range(n_heads):
        lo = h * head_dim
        q_ref[0, h] = qkv[:, lo:lo + head_dim].astype(q_ref.dtype)
        k_ref[0, h] = qkv[:, c + lo:c + lo + head_dim].astype(k_ref.dtype)
        v_ref[0, h] = qkv[:, 2 * c + lo:2 * c + lo + head_dim].astype(v_ref.dtype)


def _flash_attn_kernel(pm_ref, q_ref, k_ref, v_ref, wp_ref, bp_ref, o_ref,
                       m_sc, l_sc, acc_sc, *, scale):
    """Online-softmax attention + output projection for one (b, q-tile, kv-tile)."""
    qi = pl.program_id(1)
    ki = pl.program_id(2)
    tq = q_ref.shape[2]
    tk = k_ref.shape[2]

    @pl.when(ki == 0)
    def _init():
        m_sc[...] = jnp.full_like(m_sc[...], _MASK_BIAS)
        l_sc[...] = jnp.zeros_like(l_sc[...])
        acc_sc[...] = jnp.zeros_like(acc_sc[...])

    # Skip kv tiles that lie entirely above the causal diagonal for this q tile.
    @pl.when(ki * tk <= qi * tq + (tq - 1))
    def _update():
        q = q_ref[0]                                 # (H, Tq, Dh) bf16
        k = k_ref[0]                                 # (H, Tk, Dh) bf16
        v = v_ref[0]                                 # (H, Tk, Dh) bf16

        # Fold 1/sqrt(Dh) into q: O(H*Tq*Dh) mults instead of O(H*Tq*Tk).
        qs = (q.astype(jnp.float32) * scale).astype(jnp.bfloat16)

        # Head-batched score matmul (one MXU batched dot, no per-head loop).
        s = jnp.einsum('hqd,hkd->hqk', qs, k,
                       preferred_element_type=jnp.float32)       # (H, Tq, Tk) f32

        # One additive bias tile (causal + key padding), shared across heads.
        rows = qi * tq + lax.broadcasted_iota(jnp.int32, (tq, tk), 0)
        cols = ki * tk + lax.broadcasted_iota(jnp.int32, (tq, tk), 1)
        keep = (cols <= rows) & (pm_ref[0] != 0.0)               # (Tq,Tk) & (1,Tk)
        bias = jnp.where(keep, 0.0, _MASK_BIAS).astype(jnp.float32)
        s = s + bias[None, :, :]

        # Online softmax update (stats in f32).
        m_prev = m_sc[...]                                       # (H, Tq, 1)
        m_new = jnp.maximum(m_prev, jnp.max(s, axis=-1, keepdims=True))
        alpha = jnp.exp(m_prev - m_new)
        p = jnp.exp(s - m_new)                                   # (H, Tq, Tk)
        l_sc[...] = alpha * l_sc[...] + jnp.sum(p, axis=-1, keepdims=True)
        acc_sc[...] = alpha * acc_sc[...] + jnp.einsum(
            'hqk,hkd->hqd', p.astype(jnp.bfloat16), v,
            preferred_element_type=jnp.float32)                  # (H, Tq, Dh)
        m_sc[...] = m_new

    @pl.when(ki == pl.num_programs(2) - 1)
    def _finalize():
        inv_l = pl.reciprocal(l_sc[...], approx=True)            # EUP slot, ~free
        ctx = (acc_sc[...] * inv_l).astype(jnp.bfloat16)         # (H, Tq, Dh)
        # Fused output projection: out = sum_h ctx_h @ Wp^T[h*Dh:(h+1)*Dh, :] + b.
        head_out = jnp.einsum('hqd,hdc->hqc', ctx, wp_ref[...],
                              preferred_element_type=jnp.float32)  # (H, Tq, C)
        out = jnp.sum(head_out, axis=0) + bp_ref[...]            # (Tq, C) lane-dense
        o_ref[0] = out.astype(o_ref.dtype)


def multi_head_attention(x, padding_mask, wq, wk, wv, wp, bp, *, n_heads,
                         q_block=128, kv_block=128, proj_block=256):
    """Pallas MHA forward.

    x            : (B, T, C)
    padding_mask : (B, T) or None; nonzero = valid key position
    wq/wk/wv/wp  : (C, C) in PyTorch nn.Linear layout (out_features, in_features)
    bp           : (C,) projection bias
    """
    B, T, C = x.shape
    assert C % n_heads == 0, "Embedding dim must be divisible by number of heads"
    head_dim = C // n_heads

    tm = min(proj_block, T)
    tq = min(q_block, T)
    tk = min(kv_block, T)
    assert T % tm == 0 and T % tq == 0 and T % tk == 0, "T must divide the seq tiles"

    if padding_mask is None:
        padding_mask = jnp.ones((B, T), dtype=jnp.float32)
    pm = padding_mask.reshape(B, 1, T).astype(jnp.float32)

    # Pre-transpose to (in, out) so kernels do plain x @ W, fuse Q|K|V into one
    # weight, and cast MXU inputs to bf16 (f32 accumulation inside the kernels).
    w_qkv = jnp.concatenate([wq.T, wk.T, wv.T], axis=1).astype(jnp.bfloat16)  # (C, 3C)
    wp_r = wp.T.reshape(n_heads, head_dim, C).astype(jnp.bfloat16)            # (H, Dh, C)
    bp2 = bp.reshape(1, C).astype(jnp.float32)
    x_bf = x.astype(jnp.bfloat16)

    # ---- Kernel 1: fused QKV projection -> q, k, v in (B, H, T, Dh) bf16 ----
    qkv_shape = jax.ShapeDtypeStruct((B, n_heads, T, head_dim), jnp.bfloat16)
    q, k, v = pl.pallas_call(
        functools.partial(_qkv_proj_kernel, n_heads=n_heads, head_dim=head_dim),
        grid=(B, T // tm),
        in_specs=[
            pl.BlockSpec((1, tm, C), lambda b, m: (b, m, 0)),
            pl.BlockSpec((C, 3 * C), lambda b, m: (0, 0)),
        ],
        out_specs=[
            pl.BlockSpec((1, n_heads, tm, head_dim), lambda b, m: (b, 0, m, 0)),
            pl.BlockSpec((1, n_heads, tm, head_dim), lambda b, m: (b, 0, m, 0)),
            pl.BlockSpec((1, n_heads, tm, head_dim), lambda b, m: (b, 0, m, 0)),
        ],
        out_shape=[qkv_shape, qkv_shape, qkv_shape],
        compiler_params=pltpu.CompilerParams(
            dimension_semantics=("parallel", "parallel"),
            vmem_limit_bytes=_VMEM_LIMIT),
    )(x_bf, w_qkv)

    # ---- Kernel 2: flash attention + output projection ----
    scale = head_dim ** (-0.5)
    out = pl.pallas_call(
        functools.partial(_flash_attn_kernel, scale=scale),
        grid=(B, T // tq, T // tk),
        in_specs=[
            pl.BlockSpec((1, 1, tk), lambda b, i, j: (b, 0, j)),                     # padding mask
            pl.BlockSpec((1, n_heads, tq, head_dim), lambda b, i, j: (b, 0, i, 0)),  # q
            pl.BlockSpec((1, n_heads, tk, head_dim), lambda b, i, j: (b, 0, j, 0)),  # k
            pl.BlockSpec((1, n_heads, tk, head_dim), lambda b, i, j: (b, 0, j, 0)),  # v
            pl.BlockSpec((n_heads, head_dim, C), lambda b, i, j: (0, 0, 0)),         # Wp^T (H,Dh,C)
            pl.BlockSpec((1, C), lambda b, i, j: (0, 0)),                            # proj bias
        ],
        out_specs=pl.BlockSpec((1, tq, C), lambda b, i, j: (b, i, 0)),
        out_shape=jax.ShapeDtypeStruct((B, T, C), x.dtype),
        scratch_shapes=[
            pltpu.VMEM((n_heads, tq, 1), jnp.float32),          # m: running max
            pltpu.VMEM((n_heads, tq, 1), jnp.float32),          # l: running denom
            pltpu.VMEM((n_heads, tq, head_dim), jnp.float32),   # acc: unnormalized ctx
        ],
        compiler_params=pltpu.CompilerParams(
            dimension_semantics=("parallel", "parallel", "arbitrary"),
            vmem_limit_bytes=_VMEM_LIMIT),
    )(pm, q, k, v, wp_r, bp2)
    return out


# ----------------------------- references (tests) -----------------------------

def _reference_mha_f32(x, padding_mask, wq, wk, wv, wp, bp, *, n_heads):
    """Pure-JAX mirror of the PyTorch forward (eval mode)."""
    B, T, C = x.shape
    Dh = C // n_heads
    q = (x @ wq.T).reshape(B, T, n_heads, Dh).transpose(0, 2, 1, 3)
    k = (x @ wk.T).reshape(B, T, n_heads, Dh).transpose(0, 2, 1, 3)
    v = (x @ wv.T).reshape(B, T, n_heads, Dh).transpose(0, 2, 1, 3)
    s = jnp.einsum('bhqd,bhkd->bhqk', q, k) * (Dh ** -0.5)
    if padding_mask is not None:
        s = jnp.where(padding_mask[:, None, None, :] != 0, s, -jnp.inf)
    causal = jnp.tril(jnp.ones((T, T)))
    s = jnp.where(causal != 0, s, -jnp.inf)
    w = jax.nn.softmax(s, axis=-1)
    ctx = jnp.einsum('bhqk,bhkd->bhqd', w, v).transpose(0, 2, 1, 3).reshape(B, T, C)
    return ctx @ wp.T + bp


def _reference_mha_bf16(x, padding_mask, wq, wk, wv, wp, bp, *, n_heads):
    """Numerics-matched reference: same math with bf16 MXU inputs / f32 accumulation,
    mirroring the kernel's mixed-precision choices (exact softmax divide)."""
    B, T, C = x.shape
    Dh = C // n_heads
    bf, f32 = jnp.bfloat16, jnp.float32
    xw = x.astype(bf)

    def proj(w):
        y = jnp.einsum('btc,co->bto', xw, w.T.astype(bf), preferred_element_type=f32)
        return y.astype(bf)                       # kernel 1 stores q/k/v in bf16

    q = proj(wq).reshape(B, T, n_heads, Dh).transpose(0, 2, 1, 3)
    k = proj(wk).reshape(B, T, n_heads, Dh).transpose(0, 2, 1, 3)
    v = proj(wv).reshape(B, T, n_heads, Dh).transpose(0, 2, 1, 3)

    qs = (q.astype(f32) * (Dh ** -0.5)).astype(bf)
    s = jnp.einsum('bhqd,bhkd->bhqk', qs, k, preferred_element_type=f32)
    keep = jnp.tril(jnp.ones((T, T), dtype=bool))[None, None]
    if padding_mask is not None:
        keep = keep & (padding_mask[:, None, None, :] != 0)
    s = jnp.where(keep, s, _MASK_BIAS)
    p = jax.nn.softmax(s, axis=-1)
    ctx = jnp.einsum('bhqk,bhkd->bhqd', p.astype(bf), v, preferred_element_type=f32)
    ctx = ctx.astype(bf).transpose(0, 2, 1, 3).reshape(B, T, C)
    out = jnp.einsum('btc,co->bto', ctx, wp.T.astype(bf), preferred_element_type=f32)
    return out + bp


if __name__ == "__main__":
    # Small but TPU-friendly shapes (lane dim 128, two kv tiles so the online
    # softmax and cross-tile causal/padding masking are actually exercised).
    B, T, C, H = 2, 256, 128, 4
    key = jax.random.PRNGKey(0)
    kx, kq, kk, kv, kp, kb = jax.random.split(key, 6)

    x = jax.random.normal(kx, (B, T, C), dtype=jnp.float32)
    # PyTorch nn.Linear weight layout: (out_features, in_features)
    wq = jax.random.normal(kq, (C, C), dtype=jnp.float32) * (C ** -0.5)
    wk = jax.random.normal(kk, (C, C), dtype=jnp.float32) * (C ** -0.5)
    wv = jax.random.normal(kv, (C, C), dtype=jnp.float32) * (C ** -0.5)
    wp = jax.random.normal(kp, (C, C), dtype=jnp.float32) * (C ** -0.5)
    bp = jax.random.normal(kb, (C,), dtype=jnp.float32) * 0.1

    # key-padding mask: last 16 tokens of batch element 1 are padding (== 0)
    padding_mask = jnp.ones((B, T), dtype=jnp.float32)
    padding_mask = padding_mask.at[1, -16:].set(0.0)

    mha = jax.jit(functools.partial(multi_head_attention, n_heads=H))
    out = mha(x, padding_mask, wq, wk, wv, wp, bp)
    out = jax.block_until_ready(out)

    assert out.shape == (B, T, C)
    assert not bool(jnp.any(jnp.isnan(out))), "NaNs in kernel output"

    # Tight check against the mixed-precision-matched reference.
    ref_bf = _reference_mha_bf16(x, padding_mask, wq, wk, wv, wp, bp, n_heads=H)
    err_bf = float(jnp.max(jnp.abs(out - ref_bf)))
    assert jnp.allclose(out, ref_bf, atol=2e-2, rtol=2e-2), \
        f"matched-reference max abs err {err_bf}"

    # Coarse semantic check against the full-precision PyTorch-equivalent math
    # (difference is only the intentional bf16 MXU inputs).
    ref_f32 = _reference_mha_f32(x, padding_mask, wq, wk, wv, wp, bp, n_heads=H)
    err_f32 = float(jnp.max(jnp.abs(out - ref_f32)))
    assert jnp.allclose(out, ref_f32, atol=2e-1, rtol=2e-1), \
        f"f32-reference max abs err {err_f32}"

    print("KERNEL_OK")
</pallas_src>

<mosaic_0001>
module attributes {stable_mosaic.version = 11 : i64} {
  func.func @_flash_attn_kernel(%arg0: i32, %arg1: i32, %arg2: i32, %arg3: memref<1x1x128xf32, #tpu.memory_space<vmem>>, %arg4: memref<1x4x128x32xbf16, #tpu.memory_space<vmem>>, %arg5: memref<1x4x128x32xbf16, #tpu.memory_space<vmem>>, %arg6: memref<1x4x128x32xbf16, #tpu.memory_space<vmem>>, %arg7: memref<4x32x128xbf16, #tpu.memory_space<vmem>>, %arg8: memref<1x128xf32, #tpu.memory_space<vmem>>, %arg9: memref<1x128x128xf32, #tpu.memory_space<vmem>>, %arg10: memref<4x128x1xf32, #tpu.memory_space<vmem>>, %arg11: memref<4x128x1xf32, #tpu.memory_space<vmem>>, %arg12: memref<4x128x32xf32, #tpu.memory_space<vmem>>) attributes {dimension_semantics = [#tpu.dimension_semantics<parallel>, #tpu.dimension_semantics<parallel>, #tpu.dimension_semantics<arbitrary>], iteration_bounds = array<i64: 2, 2, 2>, scalar_prefetch = 0 : i64, scratch_operands = 3 : i64, tpu.core_type = #tpu.core_type<tc>, window_params = [{transform_indices = @transform_0, window_bounds = array<i64: 1, 1, 128>}, {transform_indices = @transform_1, window_bounds = array<i64: 1, 4, 128, 32>}, {transform_indices = @transform_2, window_bounds = array<i64: 1, 4, 128, 32>}, {transform_indices = @transform_3, window_bounds = array<i64: 1, 4, 128, 32>}, {pipeline_mode = #tpu.pipeline_mode<synchronous>, transform_indices = @transform_4, window_bounds = array<i64: 4, 32, 128>}, {pipeline_mode = #tpu.pipeline_mode<synchronous>, transform_indices = @transform_5, window_bounds = array<i64: 1, 128>}, {transform_indices = @transform_6, window_bounds = array<i64: 1, 128, 128>}]} {
    %c0_i32 = arith.constant 0 : i32
    %0 = arith.cmpi eq, %arg2, %c0_i32 : i32
    %1 = arith.extui %0 : i1 to i32
    %c0_i32_0 = arith.constant 0 : i32
    %2 = arith.cmpi ne, %1, %c0_i32_0 : i32
    scf.if %2 {
      %cst = arith.constant -1.000000e+30 : f32
      %12 = vector.broadcast %cst : f32 to vector<4x128x1xf32>
      %c0 = arith.constant 0 : index
      %c0_4 = arith.constant 0 : index
      %c0_5 = arith.constant 0 : index
      %13 = vector.load %arg10[%c0, %c0_4, %c0_5] : memref<4x128x1xf32, #tpu.memory_space<vmem>>, vector<4x128x1xf32>
      tpu.vector_store %arg10[%c0, %c0_4, %c0_5], %12 {strides = array<i32>} : memref<4x128x1xf32, #tpu.memory_space<vmem>>, vector<4x128x1xf32>,
      %cst_6 = arith.constant 0.000000e+00 : f32
      %14 = vector.broadcast %cst_6 : f32 to vector<4x128x1xf32>
      %c0_7 = arith.constant 0 : index
      %c0_8 = arith.constant 0 : index
      %c0_9 = arith.constant 0 : index
      %15 = vector.load %arg11[%c0_7, %c0_8, %c0_9] : memref<4x128x1xf32, #tpu.memory_space<vmem>>, vector<4x128x1xf32>
      tpu.vector_store %arg11[%c0_7, %c0_8, %c0_9], %14 {strides = array<i32>} : memref<4x128x1xf32, #tpu.memory_space<vmem>>, vector<4x128x1xf32>,
      %cst_10 = arith.constant 0.000000e+00 : f32
      %16 = vector.broadcast %cst_10 : f32 to vector<4x128x32xf32>
      %c0_11 = arith.constant 0 : index
      %c0_12 = arith.constant 0 : index
      %c0_13 = arith.constant 0 : index
      %17 = vector.load %arg12[%c0_11, %c0_12, %c0_13] : memref<4x128x32xf32, #tpu.memory_space<vmem>>, vector<4x128x32xf32>
      tpu.vector_store %arg12[%c0_11, %c0_12, %c0_13], %16 {strides = array<i32>} : memref<4x128x32xf32, #tpu.memory_space<vmem>>, vector<4x128x32xf32>,
    } else {
    }
    %c128_i32 = arith.constant 128 : i32
    %3 = arith.muli %arg2, %c128_i32 : i32
    %c128_i32_1 = arith.constant 128 : i32
    %4 = arith.muli %arg1, %c128_i32_1 : i32
    %c127_i32 = arith.constant 127 : i32
    %5 = arith.addi %4, %c127_i32 : i32
    %6 = arith.cmpi sle, %3, %5 : i32
    %7 = arith.extui %6 : i1 to i32
    %c0_i32_2 = arith.constant 0 : i32
    %8 = arith.cmpi ne, %7, %c0_i32_2 : i32
    scf.if %8 {
      %c0 = arith.constant 0 : index
      %c0_4 = arith.constant 0 : index
      %c0_5 = arith.constant 0 : index
      %c0_6 = arith.constant 0 : index
      %12 = vector.load %arg4[%c0, %c0_4, %c0_5, %c0_6] : memref<1x4x128x32xbf16, #tpu.memory_space<vmem>>, vector<1x4x128x32xbf16>
      %13 = vector.shape_cast %12 : vector<1x4x128x32xbf16> to vector<4x128x32xbf16>
      %c0_7 = arith.constant 0 : index
      %c0_8 = arith.constant 0 : index
      %c0_9 = arith.constant 0 : index
      %c0_10 = arith.constant 0 : index
      %14 = vector.load %arg5[%c0_7, %c0_8, %c0_9, %c0_10] : memref<1x4x128x32xbf16, #tpu.memory_space<vmem>>, vector<1x4x128x32xbf16>
      %15 = vector.shape_cast %14 : vector<1x4x128x32xbf16> to vector<4x128x32xbf16>
      %c0_11 = arith.constant 0 : index
      %c0_12 = arith.constant 0 : index
      %c0_13 = arith.constant 0 : index
      %c0_14 = arith.constant 0 : index
      %16 = vector.load %arg6[%c0_11, %c0_12, %c0_13, %c0_14] : memref<1x4x128x32xbf16, #tpu.memory_space<vmem>>, vector<1x4x128x32xbf16>
      %17 = vector.shape_cast %16 : vector<1x4x128x32xbf16> to vector<4x128x32xbf16>
      %18 = arith.extf %13 : vector<4x128x32xbf16> to vector<4x128x32xf32>
      %cst = arith.constant 0.176776692 : f32
      %19 = vector.broadcast %cst : f32 to vector<4x128x32xf32>
      %20 = arith.mulf %18, %19 : vector<4x128x32xf32>
      %21 = arith.truncf %20 : vector<4x128x32xf32> to vector<4x128x32xbf16>
      "tpu.trace_start"() <{level = 10 : i32, message = "hqd,hkd->hqk"}> : () -> ()
      %cst_15 = arith.constant dense<0.000000e+00> : vector<4x128x128xf32>
      %22 = tpu.matmul %21, %15, %cst_15 {dimension_numbers = #tpu.dot_dimension_numbers<[2], [2], [1], [1], [0, 0, 0, 1, 1, 1], [0], [0]>} : vector<4x128x32xbf16>, vector<4x128x32xbf16>, vector<4x128x128xf32> -> vector<4x128x128xf32>
      "tpu.trace_stop"() : () -> ()
      %c128_i32_16 = arith.constant 128 : i32
      %23 = arith.muli %arg1, %c128_i32_16 : i32
      %24 = tpu.iota {dimensions = array<i32: 0>} : vector<128x128xi32>
      %25 = vector.broadcast %23 : i32 to vector<128x128xi32>
      %26 = arith.addi %25, %24 : vector<128x128xi32>
      %c128_i32_17 = arith.constant 128 : i32
      %27 = arith.muli %arg2, %c128_i32_17 : i32
      %28 = tpu.iota {dimensions = array<i32: 1>} : vector<128x128xi32>
      %29 = vector.broadcast %27 : i32 to vector<128x128xi32>
      %30 = arith.addi %29, %28 : vector<128x128xi32>
      %31 = arith.cmpi sle, %30, %26 : vector<128x128xi32>
      %c0_18 = arith.constant 0 : index
      %c0_19 = arith.constant 0 : index
      %c0_20 = arith.constant 0 : index
      %32 = vector.load %arg3[%c0_18, %c0_19, %c0_20] : memref<1x1x128xf32, #tpu.memory_space<vmem>>, vector<1x1x128xf32>
      %33 = vector.shape_cast %32 : vector<1x1x128xf32> to vector<1x128xf32>
      %cst_21 = arith.constant 0.000000e+00 : f32
      %34 = vector.broadcast %cst_21 : f32 to vector<1x128xf32>
      %35 = arith.cmpf one, %33, %34 : vector<1x128xf32>
      %36 = vector.broadcast %35 : vector<1x128xi1> to vector<128x128xi1>
      %37 = arith.andi %31, %36 : vector<128x128xi1>
      %cst_22 = arith.constant 0.000000e+00 : f32
      %cst_23 = arith.constant -1.000000e+30 : f32
      %38 = vector.broadcast %cst_22 : f32 to vector<128x128xf32>
      %39 = vector.broadcast %cst_23 : f32 to vector<128x128xf32>
      %40 = arith.select %37, %38, %39 : vector<128x128xi1>, vector<128x128xf32>
      %41 = vector.shape_cast %40 : vector<128x128xf32> to vector<1x128x128xf32>
      %42 = vector.broadcast %41 : vector<1x128x128xf32> to vector<4x128x128xf32>
      %43 = arith.addf %22, %42 : vector<4x128x128xf32>
      %c0_24 = arith.constant 0 : index
      %c0_25 = arith.constant 0 : index
      %c0_26 = arith.constant 0 : index
      %44 = vector.load %arg10[%c0_24, %c0_25, %c0_26] : memref<4x128x1xf32, #tpu.memory_space<vmem>>, vector<4x128x1xf32>
      %cst_27 = arith.constant dense<0xFF800000> : vector<4x128xf32>
      %45 = vector.multi_reduction <maximumf>, %43, %cst_27 [2] : vector<4x128x128xf32> to vector<4x128xf32>
      %46 = vector.shape_cast %45 : vector<4x128xf32> to vector<4x128x1xf32>
      %47 = arith.maximumf %44, %46 : vector<4x128x1xf32>
      %48 = arith.subf %44, %47 : vector<4x128x1xf32>
      %49 = math.exp %48 : vector<4x128x1xf32>
      %50 = vector.broadcast %47 : vector<4x128x1xf32> to vector<4x128x128xf32>
      %51 = arith.subf %43, %50 : vector<4x128x128xf32>
      %52 = math.exp %51 : vector<4x128x128xf32>
      %c0_28 = arith.constant 0 : index
      %c0_29 = arith.constant 0 : index
      %c0_30 = arith.constant 0 : index
      %53 = vector.load %arg11[%c0_28, %c0_29, %c0_30] : memref<4x128x1xf32, #tpu.memory_space<vmem>>, vector<4x128x1xf32>
      %54 = arith.mulf %49, %53 : vector<4x128x1xf32>
      %cst_31 = arith.constant dense<0.000000e+00> : vector<4x128xf32>
      %55 = vector.multi_reduction <add>, %52, %cst_31 [2] : vector<4x128x128xf32> to vector<4x128xf32>
      %56 = vector.shape_cast %55 : vector<4x128xf32> to vector<4x128x1xf32>
      %57 = arith.addf %54, %56 : vector<4x128x1xf32>
      %c0_32 = arith.constant 0 : index
      %c0_33 = arith.constant 0 : index
      %c0_34 = arith.constant 0 : index
      %58 = vector.load %arg11[%c0_32, %c0_33, %c0_34] : memref<4x128x1xf32, #tpu.memory_space<vmem>>, vector<4x128x1xf32>
      tpu.vector_store %arg11[%c0_32, %c0_33, %c0_34], %57 {strides = array<i32>} : memref<4x128x1xf32, #tpu.memory_space<vmem>>, vector<4x128x1xf32>,
      %c0_35 = arith.constant 0 : index
      %c0_36 = arith.constant 0 : index
      %c0_37 = arith.constant 0 : index
      %59 = vector.load %arg12[%c0_35, %c0_36, %c0_37] : memref<4x128x32xf32, #tpu.memory_space<vmem>>, vector<4x128x32xf32>
      %60 = vector.broadcast %49 : vector<4x128x1xf32> to vector<4x128x32xf32>
      %61 = arith.mulf %60, %59 : vector<4x128x32xf32>
      %62 = arith.truncf %52 : vector<4x128x128xf32> to vector<4x128x128xbf16>
      "tpu.trace_start"() <{level = 10 : i32, message = "hqk,hkd->hqd"}> : () -> ()
      %cst_38 = arith.constant dense<0.000000e+00> : vector<4x128x32xf32>
      %63 = tpu.matmul %62, %17, %cst_38 {dimension_numbers = #tpu.dot_dimension_numbers<[2], [1], [1], [2], [0, 0, 0, 1, 1, 2], [0], [0]>} : vector<4x128x128xbf16>, vector<4x128x32xbf16>, vector<4x128x32xf32> -> vector<4x128x32xf32>
      "tpu.trace_stop"() : () -> ()
      %64 = arith.addf %61, %63 : vector<4x128x32xf32>
      %c0_39 = arith.constant 0 : index
      %c0_40 = arith.constant 0 : index
      %c0_41 = arith.constant 0 : index
      %65 = vector.load %arg12[%c0_39, %c0_40, %c0_41] : memref<4x128x32xf32, #tpu.memory_space<vmem>>, vector<4x128x32xf32>
      tpu.vector_store %arg12[%c0_39, %c0_40, %c0_41], %64 {strides = array<i32>} : memref<4x128x32xf32, #tpu.memory_space<vmem>>, vector<4x128x32xf32>,
      %c0_42 = arith.constant 0 : index
      %c0_43 = arith.constant 0 : index
      %c0_44 = arith.constant 0 : index
      %66 = vector.load %arg10[%c0_42, %c0_43, %c0_44] : memref<4x128x1xf32, #tpu.memory_space<vmem>>, vector<4x128x1xf32>
      tpu.vector_store %arg10[%c0_42, %c0_43, %c0_44], %47 {strides = array<i32>} : memref<4x128x1xf32, #tpu.memory_space<vmem>>, vector<4x128x1xf32>,
    } else {
    }
    %c1_i32 = arith.constant 1 : i32
    %9 = arith.cmpi eq, %arg2, %c1_i32 : i32
    %10 = arith.extui %9 : i1 to i32
    %c0_i32_3 = arith.constant 0 : i32
    %11 = arith.cmpi ne, %10, %c0_i32_3 : i32
    scf.if %11 {
      %c0 = arith.constant 0 : index
      %c0_4 = arith.constant 0 : index
      %c0_5 = arith.constant 0 : index
      %12 = vector.load %arg11[%c0, %c0_4, %c0_5] : memref<4x128x1xf32, #tpu.memory_space<vmem>>, vector<4x128x1xf32>
      %13 = tpu.reciprocal %12 {approx = true} : vector<4x128x1xf32> -> vector<4x128x1xf32>
      %c0_6 = arith.constant 0 : index
      %c0_7 = arith.constant 0 : index
      %c0_8 = arith.constant 0 : index
      %14 = vector.load %arg12[%c0_6, %c0_7, %c0_8] : memref<4x128x32xf32, #tpu.memory_space<vmem>>, vector<4x128x32xf32>
      %15 = vector.broadcast %13 : vector<4x128x1xf32> to vector<4x128x32xf32>
      %16 = arith.mulf %14, %15 : vector<4x128x32xf32>
      %17 = arith.truncf %16 : vector<4x128x32xf32> to vector<4x128x32xbf16>
      %c0_9 = arith.constant 0 : index
      %c0_10 = arith.constant 0 : index
      %c0_11 = arith.constant 0 : index
      %18 = vector.load %arg7[%c0_9, %c0_10, %c0_11] : memref<4x32x128xbf16, #tpu.memory_space<vmem>>, vector<4x32x128xbf16>
      "tpu.trace_start"() <{level = 10 : i32, message = "hqd,hdc->hqc"}> : () -> ()
      %cst = arith.constant dense<0.000000e+00> : vector<4x128x128xf32>
      %19 = tpu.matmul %17, %18, %cst {dimension_numbers = #tpu.dot_dimension_numbers<[2], [1], [1], [2], [0, 0, 0, 1, 1, 2], [0], [0]>} : vector<4x128x32xbf16>, vector<4x32x128xbf16>, vector<4x128x128xf32> -> vector<4x128x128xf32>
      "tpu.trace_stop"() : () -> ()
      %cst_12 = arith.constant dense<0.000000e+00> : vector<128x128xf32>
      %20 = vector.multi_reduction <add>, %19, %cst_12 [0] : vector<4x128x128xf32> to vector<128x128xf32>
      %c0_13 = arith.constant 0 : index
      %c0_14 = arith.constant 0 : index
      %21 = vector.load %arg8[%c0_13, %c0_14] : memref<1x128xf32, #tpu.memory_space<vmem>>, vector<1x128xf32>
      %22 = vector.broadcast %21 : vector<1x128xf32> to vector<128x128xf32>
      %23 = arith.addf %20, %22 : vector<128x128xf32>
      %c0_15 = arith.constant 0 : index
      %c0_16 = arith.constant 0 : index
      %c0_17 = arith.constant 0 : index
      %24 = vector.load %arg9[%c0_15, %c0_16, %c0_17] : memref<1x128x128xf32, #tpu.memory_space<vmem>>, vector<1x128x128xf32>
      %25 = vector.shape_cast %24 : vector<1x128x128xf32> to vector<128x128xf32>
      %26 = vector.shape_cast %23 : vector<128x128xf32> to vector<1x128x128xf32>
      tpu.vector_store %arg9[%c0_15, %c0_16, %c0_17], %26 {strides = array<i32>} : memref<1x128x128xf32, #tpu.memory_space<vmem>>, vector<1x128x128xf32>,
    } else {
    }
    return
  }
  func.func @transform_0(%arg0: i32, %arg1: i32, %arg2: i32) -> (i32, i32, i32) {
    %c0_i32 = arith.constant 0 : i32
    %c0_i32_0 = arith.constant 0 : i32
    return %arg0, %c0_i32, %arg2 : i32, i32, i32
  }
  func.func @transform_1(%arg0: i32, %arg1: i32, %arg2: i32) -> (i32, i32, i32, i32) {
    %c0_i32 = arith.constant 0 : i32
    %c0_i32_0 = arith.constant 0 : i32
    %c0_i32_1 = arith.constant 0 : i32
    return %arg0, %c0_i32, %arg1, %c0_i32_0 : i32, i32, i32, i32
  }
  func.func @transform_2(%arg0: i32, %arg1: i32, %arg2: i32) -> (i32, i32, i32, i32) {
    %c0_i32 = arith.constant 0 : i32
    %c0_i32_0 = arith.constant 0 : i32
    %c0_i32_1 = arith.constant 0 : i32
    return %arg0, %c0_i32, %arg2, %c0_i32_0 : i32, i32, i32, i32
  }
  func.func @transform_3(%arg0: i32, %arg1: i32, %arg2: i32) -> (i32, i32, i32, i32) {
    %c0_i32 = arith.constant 0 : i32
    %c0_i32_0 = arith.constant 0 : i32
    %c0_i32_1 = arith.constant 0 : i32
    return %arg0, %c0_i32, %arg2, %c0_i32_0 : i32, i32, i32, i32
  }
  func.func @transform_4(%arg0: i32, %arg1: i32, %arg2: i32) -> (i32, i32, i32) {
    %c0_i32 = arith.constant 0 : i32
    %c0_i32_0 = arith.constant 0 : i32
    %c0_i32_1 = arith.constant 0 : i32
    %c0_i32_2 = arith.constant 0 : i32
    return %c0_i32, %c0_i32_0, %c0_i32_1 : i32, i32, i32
  }
  func.func @transform_5(%arg0: i32, %arg1: i32, %arg2: i32) -> (i32, i32) {
    %c0_i32 = arith.constant 0 : i32
    %c0_i32_0 = arith.constant 0 : i32
    %c0_i32_1 = arith.constant 0 : i32
    return %c0_i32, %c0_i32_0 : i32, i32
  }
  func.func @transform_6(%arg0: i32, %arg1: i32, %arg2: i32) -> (i32, i32, i32) {
    %c0_i32 = arith.constant 0 : i32
    %c0_i32_0 = arith.constant 0 : i32
    return %arg0, %arg1, %c0_i32 : i32, i32, i32
  }
}

module attributes {stable_mosaic.version = 11 : i64} {
  func.func @_qkv_proj_kernel(%arg0: i32, %arg1: i32, %arg2: memref<1x256x128xbf16, #tpu.memory_space<vmem>>, %arg3: memref<128x384xbf16, #tpu.memory_space<vmem>>, %arg4: memref<1x4x256x32xbf16, #tpu.memory_space<vmem>>, %arg5: memref<1x4x256x32xbf16, #tpu.memory_space<vmem>>, %arg6: memref<1x4x256x32xbf16, #tpu.memory_space<vmem>>) attributes {dimension_semantics = [#tpu.dimension_semantics<parallel>, #tpu.dimension_semantics<parallel>], iteration_bounds = array<i64: 2, 1>, scalar_prefetch = 0 : i64, scratch_operands = 0 : i64, tpu.core_type = #tpu.core_type<tc>, window_params = [{transform_indices = @transform_0, window_bounds = array<i64: 1, 256, 128>}, {pipeline_mode = #tpu.pipeline_mode<synchronous>, transform_indices = @transform_1, window_bounds = array<i64: 128, 384>}, {transform_indices = @transform_2, window_bounds = array<i64: 1, 4, 256, 32>}, {transform_indices = @transform_3, window_bounds = array<i64: 1, 4, 256, 32>}, {transform_indices = @transform_4, window_bounds = array<i64: 1, 4, 256, 32>}]} {
    %c0 = arith.constant 0 : index
    %c0_0 = arith.constant 0 : index
    %c0_1 = arith.constant 0 : index
    %0 = vector.load %arg2[%c0, %c0_0, %c0_1] : memref<1x256x128xbf16, #tpu.memory_space<vmem>>, vector<1x256x128xbf16>
    %1 = vector.shape_cast %0 : vector<1x256x128xbf16> to vector<256x128xbf16>
    %c0_2 = arith.constant 0 : index
    %c0_3 = arith.constant 0 : index
    %2 = vector.load %arg3[%c0_2, %c0_3] : memref<128x384xbf16, #tpu.memory_space<vmem>>, vector<128x384xbf16>
    %cst = arith.constant dense<0.000000e+00> : vector<256x384xf32>
    %3 = tpu.matmul %1, %2, %cst {dimension_numbers = #tpu.dot_dimension_numbers<[1], [0], [0], [1], [0, 0, 1, 1], [], []>} : vector<256x128xbf16>, vector<128x384xbf16>, vector<256x384xf32> -> vector<256x384xf32>
    %4 = vector.extract_strided_slice %3 {offsets = [0, 0], sizes = [256, 32], strides = [1, 1]} : vector<256x384xf32> to vector<256x32xf32>
    %5 = arith.truncf %4 : vector<256x32xf32> to vector<256x32xbf16>
    %c0_4 = arith.constant 0 : index
    %c0_5 = arith.constant 0 : index
    %c0_6 = arith.constant 0 : index
    %c0_7 = arith.constant 0 : index
    %6 = vector.load %arg4[%c0_4, %c0_5, %c0_6, %c0_7] : memref<1x4x256x32xbf16, #tpu.memory_space<vmem>>, vector<1x1x256x32xbf16>
    %7 = vector.shape_cast %6 : vector<1x1x256x32xbf16> to vector<256x32xbf16>
    %8 = vector.shape_cast %5 : vector<256x32xbf16> to vector<1x1x256x32xbf16>
    tpu.vector_store %arg4[%c0_4, %c0_5, %c0_6, %c0_7], %8 {strides = array<i32>} : memref<1x4x256x32xbf16, #tpu.memory_space<vmem>>, vector<1x1x256x32xbf16>,
    %9 = vector.extract_strided_slice %3 {offsets = [0, 128], sizes = [256, 32], strides = [1, 1]} : vector<256x384xf32> to vector<256x32xf32>
    %10 = arith.truncf %9 : vector<256x32xf32> to vector<256x32xbf16>
    %c0_8 = arith.constant 0 : index
    %c0_9 = arith.constant 0 : index
    %c0_10 = arith.constant 0 : index
    %c0_11 = arith.constant 0 : index
    %11 = vector.load %arg5[%c0_8, %c0_9, %c0_10, %c0_11] : memref<1x4x256x32xbf16, #tpu.memory_space<vmem>>, vector<1x1x256x32xbf16>
    %12 = vector.shape_cast %11 : vector<1x1x256x32xbf16> to vector<256x32xbf16>
    %13 = vector.shape_cast %10 : vector<256x32xbf16> to vector<1x1x256x32xbf16>
    tpu.vector_store %arg5[%c0_8, %c0_9, %c0_10, %c0_11], %13 {strides = array<i32>} : memref<1x4x256x32xbf16, #tpu.memory_space<vmem>>, vector<1x1x256x32xbf16>,
    %14 = vector.extract_strided_slice %3 {offsets = [0, 256], sizes = [256, 32], strides = [1, 1]} : vector<256x384xf32> to vector<256x32xf32>
    %15 = arith.truncf %14 : vector<256x32xf32> to vector<256x32xbf16>
    %c0_12 = arith.constant 0 : index
    %c0_13 = arith.constant 0 : index
    %c0_14 = arith.constant 0 : index
    %c0_15 = arith.constant 0 : index
    %16 = vector.load %arg6[%c0_12, %c0_13, %c0_14, %c0_15] : memref<1x4x256x32xbf16, #tpu.memory_space<vmem>>, vector<1x1x256x32xbf16>
    %17 = vector.shape_cast %16 : vector<1x1x256x32xbf16> to vector<256x32xbf16>
    %18 = vector.shape_cast %15 : vector<256x32xbf16> to vector<1x1x256x32xbf16>
    tpu.vector_store %arg6[%c0_12, %c0_13, %c0_14, %c0_15], %18 {strides = array<i32>} : memref<1x4x256x32xbf16, #tpu.memory_space<vmem>>, vector<1x1x256x32xbf16>,
    %19 = vector.extract_strided_slice %3 {offsets = [0, 32], sizes = [256, 32], strides = [1, 1]} : vector<256x384xf32> to vector<256x32xf32>
    %20 = arith.truncf %19 : vector<256x32xf32> to vector<256x32xbf16>
    %c0_16 = arith.constant 0 : index
    %c1 = arith.constant 1 : index
    %c0_17 = arith.constant 0 : index
    %c0_18 = arith.constant 0 : index
    %21 = vector.load %arg4[%c0_16, %c1, %c0_17, %c0_18] : memref<1x4x256x32xbf16, #tpu.memory_space<vmem>>, vector<1x1x256x32xbf16>
    %22 = vector.shape_cast %21 : vector<1x1x256x32xbf16> to vector<256x32xbf16>
    %23 = vector.shape_cast %20 : vector<256x32xbf16> to vector<1x1x256x32xbf16>
    tpu.vector_store %arg4[%c0_16, %c1, %c0_17, %c0_18], %23 {strides = array<i32>} : memref<1x4x256x32xbf16, #tpu.memory_space<vmem>>, vector<1x1x256x32xbf16>,
    %24 = vector.extract_strided_slice %3 {offsets = [0, 160], sizes = [256, 32], strides = [1, 1]} : vector<256x384xf32> to vector<256x32xf32>
    %25 = arith.truncf %24 : vector<256x32xf32> to vector<256x32xbf16>
    %c0_19 = arith.constant 0 : index
    %c1_20 = arith.constant 1 : index
    %c0_21 = arith.constant 0 : index
    %c0_22 = arith.constant 0 : index
    %26 = vector.load %arg5[%c0_19, %c1_20, %c0_21, %c0_22] : memref<1x4x256x32xbf16, #tpu.memory_space<vmem>>, vector<1x1x256x32xbf16>
    %27 = vector.shape_cast %26 : vector<1x1x256x32xbf16> to vector<256x32xbf16>
    %28 = vector.shape_cast %25 : vector<256x32xbf16> to vector<1x1x256x32xbf16>
    tpu.vector_store %arg5[%c0_19, %c1_20, %c0_21, %c0_22], %28 {strides = array<i32>} : memref<1x4x256x32xbf16, #tpu.memory_space<vmem>>, vector<1x1x256x32xbf16>,
    %29 = vector.extract_strided_slice %3 {offsets = [0, 288], sizes = [256, 32], strides = [1, 1]} : vector<256x384xf32> to vector<256x32xf32>
    %30 = arith.truncf %29 : vector<256x32xf32> to vector<256x32xbf16>
    %c0_23 = arith.constant 0 : index
    %c1_24 = arith.constant 1 : index
    %c0_25 = arith.constant 0 : index
    %c0_26 = arith.constant 0 : index
    %31 = vector.load %arg6[%c0_23, %c1_24, %c0_25, %c0_26] : memref<1x4x256x32xbf16, #tpu.memory_space<vmem>>, vector<1x1x256x32xbf16>
    %32 = vector.shape_cast %31 : vector<1x1x256x32xbf16> to vector<256x32xbf16>
    %33 = vector.shape_cast %30 : vector<256x32xbf16> to vector<1x1x256x32xbf16>
    tpu.vector_store %arg6[%c0_23, %c1_24, %c0_25, %c0_26], %33 {strides = array<i32>} : memref<1x4x256x32xbf16, #tpu.memory_space<vmem>>, vector<1x1x256x32xbf16>,
    %34 = vector.extract_strided_slice %3 {offsets = [0, 64], sizes = [256, 32], strides = [1, 1]} : vector<256x384xf32> to vector<256x32xf32>
    %35 = arith.truncf %34 : vector<256x32xf32> to vector<256x32xbf16>
    %c0_27 = arith.constant 0 : index
    %c2 = arith.constant 2 : index
    %c0_28 = arith.constant 0 : index
    %c0_29 = arith.constant 0 : index
    %36 = vector.load %arg4[%c0_27, %c2, %c0_28, %c0_29] : memref<1x4x256x32xbf16, #tpu.memory_space<vmem>>, vector<1x1x256x32xbf16>
    %37 = vector.shape_cast %36 : vector<1x1x256x32xbf16> to vector<256x32xbf16>
    %38 = vector.shape_cast %35 : vector<256x32xbf16> to vector<1x1x256x32xbf16>
    tpu.vector_store %arg4[%c0_27, %c2, %c0_28, %c0_29], %38 {strides = array<i32>} : memref<1x4x256x32xbf16, #tpu.memory_space<vmem>>, vector<1x1x256x32xbf16>,
    %39 = vector.extract_strided_slice %3 {offsets = [0, 192], sizes = [256, 32], strides = [1, 1]} : vector<256x384xf32> to vector<256x32xf32>
    %40 = arith.truncf %39 : vector<256x32xf32> to vector<256x32xbf16>
    %c0_30 = arith.constant 0 : index
    %c2_31 = arith.constant 2 : index
    %c0_32 = arith.constant 0 : index
    %c0_33 = arith.constant 0 : index
    %41 = vector.load %arg5[%c0_30, %c2_31, %c0_32, %c0_33] : memref<1x4x256x32xbf16, #tpu.memory_space<vmem>>, vector<1x1x256x32xbf16>
    %42 = vector.shape_cast %41 : vector<1x1x256x32xbf16> to vector<256x32xbf16>
    %43 = vector.shape_cast %40 : vector<256x32xbf16> to vector<1x1x256x32xbf16>
    tpu.vector_store %arg5[%c0_30, %c2_31, %c0_32, %c0_33], %43 {strides = array<i32>} : memref<1x4x256x32xbf16, #tpu.memory_space<vmem>>, vector<1x1x256x32xbf16>,
    %44 = vector.extract_strided_slice %3 {offsets = [0, 320], sizes = [256, 32], strides = [1, 1]} : vector<256x384xf32> to vector<256x32xf32>
    %45 = arith.truncf %44 : vector<256x32xf32> to vector<256x32xbf16>
    %c0_34 = arith.constant 0 : index
    %c2_35 = arith.constant 2 : index
    %c0_36 = arith.constant 0 : index
    %c0_37 = arith.constant 0 : index
    %46 = vector.load %arg6[%c0_34, %c2_35, %c0_36, %c0_37] : memref<1x4x256x32xbf16, #tpu.memory_space<vmem>>, vector<1x1x256x32xbf16>
    %47 = vector.shape_cast %46 : vector<1x1x256x32xbf16> to vector<256x32xbf16>
    %48 = vector.shape_cast %45 : vector<256x32xbf16> to vector<1x1x256x32xbf16>
    tpu.vector_store %arg6[%c0_34, %c2_35, %c0_36, %c0_37], %48 {strides = array<i32>} : memref<1x4x256x32xbf16, #tpu.memory_space<vmem>>, vector<1x1x256x32xbf16>,
    %49 = vector.extract_strided_slice %3 {offsets = [0, 96], sizes = [256, 32], strides = [1, 1]} : vector<256x384xf32> to vector<256x32xf32>
    %50 = arith.truncf %49 : vector<256x32xf32> to vector<256x32xbf16>
    %c0_38 = arith.constant 0 : index
    %c3 = arith.constant 3 : index
    %c0_39 = arith.constant 0 : index
    %c0_40 = arith.constant 0 : index
    %51 = vector.load %arg4[%c0_38, %c3, %c0_39, %c0_40] : memref<1x4x256x32xbf16, #tpu.memory_space<vmem>>, vector<1x1x256x32xbf16>
    %52 = vector.shape_cast %51 : vector<1x1x256x32xbf16> to vector<256x32xbf16>
    %53 = vector.shape_cast %50 : vector<256x32xbf16> to vector<1x1x256x32xbf16>
    tpu.vector_store %arg4[%c0_38, %c3, %c0_39, %c0_40], %53 {strides = array<i32>} : memref<1x4x256x32xbf16, #tpu.memory_space<vmem>>, vector<1x1x256x32xbf16>,
    %54 = vector.extract_strided_slice %3 {offsets = [0, 224], sizes = [256, 32], strides = [1, 1]} : vector<256x384xf32> to vector<256x32xf32>
    %55 = arith.truncf %54 : vector<256x32xf32> to vector<256x32xbf16>
    %c0_41 = arith.constant 0 : index
    %c3_42 = arith.constant 3 : index
    %c0_43 = arith.constant 0 : index
    %c0_44 = arith.constant 0 : index
    %56 = vector.load %arg5[%c0_41, %c3_42, %c0_43, %c0_44] : memref<1x4x256x32xbf16, #tpu.memory_space<vmem>>, vector<1x1x256x32xbf16>
    %57 = vector.shape_cast %56 : vector<1x1x256x32xbf16> to vector<256x32xbf16>
    %58 = vector.shape_cast %55 : vector<256x32xbf16> to vector<1x1x256x32xbf16>
    tpu.vector_store %arg5[%c0_41, %c3_42, %c0_43, %c0_44], %58 {strides = array<i32>} : memref<1x4x256x32xbf16, #tpu.memory_space<vmem>>, vector<1x1x256x32xbf16>,
    %59 = vector.extract_strided_slice %3 {offsets = [0, 352], sizes = [256, 32], strides = [1, 1]} : vector<256x384xf32> to vector<256x32xf32>
    %60 = arith.truncf %59 : vector<256x32xf32> to vector<256x32xbf16>
    %c0_45 = arith.constant 0 : index
    %c3_46 = arith.constant 3 : index
    %c0_47 = arith.constant 0 : index
    %c0_48 = arith.constant 0 : index
    %61 = vector.load %arg6[%c0_45, %c3_46, %c0_47, %c0_48] : memref<1x4x256x32xbf16, #tpu.memory_space<vmem>>, vector<1x1x256x32xbf16>
    %62 = vector.shape_cast %61 : vector<1x1x256x32xbf16> to vector<256x32xbf16>
    %63 = vector.shape_cast %60 : vector<256x32xbf16> to vector<1x1x256x32xbf16>
    tpu.vector_store %arg6[%c0_45, %c3_46, %c0_47, %c0_48], %63 {strides = array<i32>} : memref<1x4x256x32xbf16, #tpu.memory_space<vmem>>, vector<1x1x256x32xbf16>,
    return
  }
  func.func @transform_0(%arg0: i32, %arg1: i32) -> (i32, i32, i32) {
    %c0_i32 = arith.constant 0 : i32
    %c0_i32_0 = arith.constant 0 : i32
    return %arg0, %arg1, %c0_i32 : i32, i32, i32
  }
  func.func @transform_1(%arg0: i32, %arg1: i32) -> (i32, i32) {
    %c0_i32 = arith.constant 0 : i32
    %c0_i32_0 = arith.constant 0 : i32
    %c0_i32_1 = arith.constant 0 : i32
    return %c0_i32, %c0_i32_0 : i32, i32
  }
  func.func @transform_2(%arg0: i32, %arg1: i32) -> (i32, i32, i32, i32) {
    %c0_i32 = arith.constant 0 : i32
    %c0_i32_0 = arith.constant 0 : i32
    %c0_i32_1 = arith.constant 0 : i32
    return %arg0, %c0_i32, %arg1, %c0_i32_0 : i32, i32, i32, i32
  }
  func.func @transform_3(%arg0: i32, %arg1: i32) -> (i32, i32, i32, i32) {
    %c0_i32 = arith.constant 0 : i32
    %c0_i32_0 = arith.constant 0 : i32
    %c0_i32_1 = arith.constant 0 : i32
    return %arg0, %c0_i32, %arg1, %c0_i32_0 : i32, i32, i32, i32
  }
  func.func @transform_4(%arg0: i32, %arg1: i32) -> (i32, i32, i32, i32) {
    %c0_i32 = arith.constant 0 : i32
    %c0_i32_0 = arith.constant 0 : i32
    %c0_i32_1 = arith.constant 0 : i32
    return %arg0, %c0_i32, %arg1, %c0_i32_0 : i32, i32, i32, i32
  }
}

</mosaic_0001>

<llo_original>
// kernel: multi_head_attention.2
$region0: #{multi_head_attention.2}
  #allocation0 [shape = 'u32[]', space=smem, size = 0x4, offset = 0x4, fixed_abs, tag = 'smem constant byte address 0x4 - core index']
  #allocation1 [shape = 'u32[144,128]{1,0:T(1,128)}', space=vmem, size = 0x12000, scoped, tag = 'internal scratch']
  %s0 = inlined_call_operand.vmem [shape: bf16[2,256,128], index: 0, kind: input, shape index: {}]
  %s1 = inlined_call_operand.vmem [shape: bf16[128,384], index: 1, kind: input, shape index: {}]
  %s2 = inlined_call_operand.vmem [shape: bf16[2,4,256,32], index: 2, kind: output, shape index: {0}]
  %s3 = inlined_call_operand.vmem [shape: bf16[2,4,256,32], index: 3, kind: output, shape index: {1}]
  %s4 = inlined_call_operand.vmem [shape: bf16[2,4,256,32], index: 4, kind: output, shape index: {2}]
  %5 = xla_tuple %s2, %s3, %s4
  %s6 = sld [smem:[#allocation0]]
  $region57: #{multi_head_attention.2} parent=0
    _
  %s8 = ssub.s32 1, %s6
  %s9 = scalar_select 0, %s8, %s6
  loop: start=0, step=1, limit=4
  $region2: #{multi_head_attention.2} parent=0 // loop_pre_header
    _
  $region3: #{multi_head_attention.2} parent=0 // loop_header
    %s11 = sphi 0, %s15
    %p12 = scmp.ge.s32.totalorder %s11, 4
    %s18 = sphi 0, %s30
    %s19 = sphi 0, %s26
    %s20 = sphi 0, %s18
    %s21 = sphi 0, %s19
    %s22 = sphi 0, %s20
    %s23 = sphi 0, %s21
    %s35 = sphi 0, %s37
    %s38 = sphi 0, %s35
    %s39 = sphi 0, %s38
    %s55 = sphi 0, %s39
    %s59 = sphi 0, %s59
    %s61 = sphi 0, %s59
    %s62 = sphi 0, %s61
    %s76 = sphi 0, %s62
    %s84 = sphi 0, %s86
    %s87 = sphi 0, %s84
    %s88 = sphi 0, %s87
    %s104 = sphi 0, %s88
    %s112 = sphi 0, %s114
    %s115 = sphi 0, %s112
    %s116 = sphi 0, %s115
    %s132 = sphi 0, %s116
    %s140 = sphi 0, %s142
    %s143 = sphi 0, %s140
    %s144 = sphi 0, %s143
    %s160 = sphi 0, %s144
  $region4: #{multi_head_attention.2} parent=0 // loop_header_branch
    %14 = sbr.rel (%p12) target = $region8
  $region5: #{multi_head_attention.2} parent=0 // loop_body
    %s16 = ssub.s32 %s11, 1
    %s17 = ssub.s32 %s11, 2
    %s24 = sadd.s32 1, %s19
    %p25 = scmp.ge.s32.totalorder %s24, 1
    %s26 = scalar_select %p25, 0, %s24
    %s27 = sadd.s32 1, %s18
    %s28 = scalar_select %p25, %s27, %s18
    %p29 = scmp.ge.s32.totalorder %s28, 2
    %s30 = scalar_select %p29, 0, %s28
    %s31 = ssub.s32 %s18, %s30
    %s32 = ssub.s32 %s19, %s26
    %s33 = sor.u32 %s31, %s32
    %p34 = scmp.eq.s32.totalorder %s33, 0
    %s36 = sadd.s32 %s35, 1
    %s37 = scalar_select %p34, %s35, %s36
    %p40 = pneg %p34
    %p41 = scmp.eq.s32.totalorder %s11, 1
    %p42 = por %p40, %p41
    %p43 = scmp.ne.s32.totalorder %s35, %s38
    %p44 = scmp.eq.s32.totalorder %s11, 0
    %p45 = por %p43, %p44
    %p46 = scmp.ne.s32.totalorder %s35, %s38
    %p47 = scmp.eq.s32.totalorder %s16, 1
    %p48 = por %p46, %p47
    %p49 = scmp.ne.s32.totalorder %s38, %s39
    %p50 = scmp.eq.s32.totalorder %s16, 0
    %p51 = por %p49, %p50
    %p52 = scmp.ne.s32.totalorder %s38, %s39
    %p53 = scmp.eq.s32.totalorder %s17, 1
    %p54 = por %p52, %p53
    %p56 = scmp.ne.s32.totalorder %s39, %s55
    %p57 = scmp.eq.s32.totalorder %s17, 0
    %p58 = por %p56, %p57
    %s60 = sadd.s32 %s59, 1
    %p63 = scmp.eq.s32.totalorder %s11, 1
    %p64 = scmp.ne.s32.totalorder %s59, %s61
    %p65 = scmp.eq.s32.totalorder %s11, 0
    %p66 = por %p64, %p65
    %p67 = scmp.ne.s32.totalorder %s59, %s61
    %p68 = scmp.eq.s32.totalorder %s16, 1
    %p69 = por %p67, %p68
    %p70 = scmp.ne.s32.totalorder %s61, %s62
    %p71 = scmp.eq.s32.totalorder %s16, 0
    %p72 = por %p70, %p71
    %p73 = scmp.ne.s32.totalorder %s61, %s62
    %p74 = scmp.eq.s32.totalorder %s17, 1
    %p75 = por %p73, %p74
    %p77 = scmp.ne.s32.totalorder %s62, %s76
    %p78 = scmp.eq.s32.totalorder %s17, 0
    %p79 = por %p77, %p78
    %s80 = ssub.s32 %s18, %s30
    %s81 = ssub.s32 %s19, %s26
    %s82 = sor.u32 %s80, %s81
    %p83 = scmp.eq.s32.totalorder %s82, 0
    %s85 = sadd.s32 %s84, 1
    %s86 = scalar_select %p83, %s84, %s85
    %p89 = pneg %p83
    %p90 = scmp.eq.s32.totalorder %s11, 1
    %p91 = por %p89, %p90
    %p92 = scmp.ne.s32.totalorder %s84, %s87
    %p93 = scmp.eq.s32.totalorder %s11, 0
    %p94 = por %p92, %p93
    %p95 = scmp.ne.s32.totalorder %s84, %s87
    %p96 = scmp.eq.s32.totalorder %s16, 1
    %p97 = por %p95, %p96
    %p98 = scmp.ne.s32.totalorder %s87, %s88
    %p99 = scmp.eq.s32.totalorder %s16, 0
    %p100 = por %p98, %p99
    %p101 = scmp.ne.s32.totalorder %s87, %s88
    %p102 = scmp.eq.s32.totalorder %s17, 1
    %p103 = por %p101, %p102
    %p105 = scmp.ne.s32.totalorder %s88, %s104
    %p106 = scmp.eq.s32.totalorder %s17, 0
    %p107 = por %p105, %p106
    %s108 = ssub.s32 %s18, %s30
    %s109 = ssub.s32 %s19, %s26
    %s110 = sor.u32 %s108, %s109
    %p111 = scmp.eq.s32.totalorder %s110, 0
    %s113 = sadd.s32 %s112, 1
    %s114 = scalar_select %p111, %s112, %s113
    %p117 = pneg %p111
    %p118 = scmp.eq.s32.totalorder %s11, 1
    %p119 = por %p117, %p118
    %p120 = scmp.ne.s32.totalorder %s112, %s115
    %p121 = scmp.eq.s32.totalorder %s11, 0
    %p122 = por %p120, %p121
    %p123 = scmp.ne.s32.totalorder %s112, %s115
    %p124 = scmp.eq.s32.totalorder %s16, 1
    %p125 = por %p123, %p124
    %p126 = scmp.ne.s32.totalorder %s115, %s116
    %p127 = scmp.eq.s32.totalorder %s16, 0
    %p128 = por %p126, %p127
    %p129 = scmp.ne.s32.totalorder %s115, %s116
    %p130 = scmp.eq.s32.totalorder %s17, 1
    %p131 = por %p129, %p130
    %p133 = scmp.ne.s32.totalorder %s116, %s132
    %p134 = scmp.eq.s32.totalorder %s17, 0
    %p135 = por %p133, %p134
    %s136 = ssub.s32 %s18, %s30
    %s137 = ssub.s32 %s19, %s26
    %s138 = sor.u32 %s136, %s137
    %p139 = scmp.eq.s32.totalorder %s138, 0
    %s141 = sadd.s32 %s140, 1
    %s142 = scalar_select %p139, %s140, %s141
    %p145 = pneg %p139
    %p146 = scmp.eq.s32.totalorder %s11, 1
    %p147 = por %p145, %p146
    %p148 = scmp.ne.s32.totalorder %s140, %s143
    %p149 = scmp.eq.s32.totalorder %s11, 0
    %p150 = por %p148, %p149
    %p151 = scmp.ne.s32.totalorder %s140, %s143
    %p152 = scmp.eq.s32.totalorder %s16, 1
    %p153 = por %p151, %p152
    %p154 = scmp.ne.s32.totalorder %s143, %s144
    %p155 = scmp.eq.s32.totalorder %s16, 0
    %p156 = por %p154, %p155
    %p157 = scmp.ne.s32.totalorder %s143, %s144
    %p158 = scmp.eq.s32.totalorder %s17, 1
    %p159 = por %p157, %p158
    %p161 = scmp.ne.s32.totalorder %s144, %s160
    %p162 = scmp.eq.s32.totalorder %s17, 0
    %p163 = por %p161, %p162
    %p164 = scmp.le.s32.totalorder 1, %s11
    %p165 = scmp.lt.s32.totalorder %s11, 3
    %p166 = pnand %p164, %p165
    %p167 = pneg %p166
    // Predicated region
    $region9: #{multi_head_attention.2} parent=5 // pred_check
      _
    $region10: #{multi_head_attention.2} parent=5 // pred_check_branch
      %169 = sbr.rel (%p166) target = $region12
    $region11: #{multi_head_attention.2} parent=5 // pred_region
      %s170 = ssub.s32 %s11, 1
      // Predicated region
      $region13: #{multi_head_attention.2} parent=11 // pred_check
        %p171 = pneg %p72
      $region14: #{multi_head_attention.2} parent=11 // pred_check_branch
        %173 = sbr.rel (%p171) target = $region16
      $region15: #{multi_head_attention.2} parent=11 // pred_region
        _
      $region16: #{multi_head_attention.2} parent=11 // pred_fallthru
        _
    $region12: #{multi_head_attention.2} parent=5 // pred_fallthru
      _
    %p174 = scmp.lt.s32.totalorder %s11, 2
    // Predicated region
    $region17: #{multi_head_attention.2} parent=5 // pred_check
      %p175 = pneg %p174
    $region18: #{multi_head_attention.2} parent=5 // pred_check_branch
      %177 = sbr.rel (%p175) target = $region20
    $region19: #{multi_head_attention.2} parent=5 // pred_region
      // Predicated region
      $region21: #{multi_head_attention.2} parent=19 // pred_check
        %p178 = pneg %p45
      $region22: #{multi_head_attention.2} parent=19 // pred_check_branch
        %180 = sbr.rel (%p178) target = $region24
      $region23: #{multi_head_attention.2} parent=19 // pred_region
        %s181 = smul.u32 32, %s19
        %p182 = scmp.lt.s32.totalorder %s18, 1
        %s183 = scalar_select %p182, %s18, 1
        %p184 = scmp.lt.s32.totalorder %s181, 31
        %s185 = scalar_select %p184, %s181, 31
        %s186 = smul.addr %s183, 32
        %s187 = sadd.s32 %s185, %s186
        %s188 = smul.addr %s187, 4
        %s189 = scalar_lea.vmem %s0, %s188
        %s190 = smul.u32 32, %s19
      $region24: #{multi_head_attention.2} parent=19 // pred_fallthru
        _
    $region20: #{multi_head_attention.2} parent=5 // pred_fallthru
      _
    %p191 = scmp.le.s32.totalorder 1, %s11
    %p192 = scmp.lt.s32.totalorder %s11, 3
    %p193 = pnand %p191, %p192
    %p194 = pneg %p193
    // Predicated region
    $region25: #{multi_head_attention.2} parent=5 // pred_check
      _
    $region26: #{multi_head_attention.2} parent=5 // pred_check_branch
      %196 = sbr.rel (%p193) target = $region28
    $region27: #{multi_head_attention.2} parent=5 // pred_region
      %s197 = ssub.s32 %s11, 1
      %s198 = smul.u32 32, %s21
      %p199 = scmp.lt.s32.totalorder %s20, 1
      %s200 = scalar_select %p199, %s20, 1
      %p201 = scmp.lt.s32.totalorder %s198, 31
      %s202 = scalar_select %p201, %s198, 31
      %s203 = smul.addr %s200, 32
      %s204 = sadd.s32 %s202, %s203
      %s205 = smul.addr %s204, 4
      %s206 = scalar_lea.vmem %s0, %s205
      %p207 = pneg %p51
      %p208 = pneg %p48
      %p209 = pneg %p72
      %p210 = pneg %p69
      %p211 = pneg %p100
      %p212 = pneg %p97
      %s213 = smul.u32 32, %s21
      %p214 = scmp.lt.s32.totalorder %s20, 1
      %s215 = scalar_select %p214, %s20, 1
      %p216 = scmp.lt.s32.totalorder %s213, 31
      %s217 = scalar_select %p216, %s213, 31
      %s218 = smul.addr %s215, 128
      %s219 = sadd.s32 %s217, %s218
      %s220 = smul.addr %s219, 4
      %s221 = scalar_lea.vmem %s2, %s220
      %p222 = pneg %p128
      %p223 = pneg %p125
      %s224 = smul.u32 32, %s21
      %p225 = scmp.lt.s32.totalorder %s20, 1
      %s226 = scalar_select %p225, %s20, 1
      %p227 = scmp.lt.s32.totalorder %s224, 31
      %s228 = scalar_select %p227, %s224, 31
      %s229 = smul.addr %s226, 128
      %s230 = sadd.s32 %s228, %s229
      %s231 = smul.addr %s230, 4
      %s232 = scalar_lea.vmem %s3, %s231
      %p233 = pneg %p156
      %p234 = pneg %p153
      %s235 = smul.u32 32, %s21
      %p236 = scmp.lt.s32.totalorder %s20, 1
      %s237 = scalar_select %p236, %s20, 1
      %p238 = scmp.lt.s32.totalorder %s235, 31
      %s239 = scalar_select %p238, %s235, 31
      %s240 = smul.addr %s237, 128
      %s241 = sadd.s32 %s239, %s240
      %s242 = smul.addr %s241, 4
      %s243 = scalar_lea.vmem %s4, %s242
      %s244 = smul.u32 32, %s21
      %p245 = scmp.lt.s32.totalorder %s20, 1
      %s246 = scalar_select %p245, %s20, 1
      %p247 = scmp.lt.s32.totalorder %s244, 31
      %s248 = scalar_select %p247, %s244, 31
      %s249 = smul.addr %s246, 32
      %s250 = sadd.s32 %s248, %s249
      %s251 = smul.addr %s250, 4
      %s252 = scalar_lea.vmem %s0, %s251
      %s253 = smul.u32 32, %s21
      %s254 = smul.u32 32, %s21
      %p255 = scmp.lt.s32.totalorder %s20, 1
      %s256 = scalar_select %p255, %s20, 1
      %p257 = scmp.lt.s32.totalorder %s254, 31
      %s258 = scalar_select %p257, %s254, 31
      %s259 = smul.addr %s256, 128
      %s260 = sadd.s32 %s258, %s259
      %s261 = smul.addr %s260, 4
      %s262 = scalar_lea.vmem %s2, %s261
      %s263 = smul.u32 32, %s21
      %s264 = smul.u32 32, %s21
      %p265 = scmp.lt.s32.totalorder %s20, 1
      %s266 = scalar_select %p265, %s20, 1
      %p267 = scmp.lt.s32.totalorder %s264, 31
      %s268 = scalar_select %p267, %s264, 31
      %s269 = smul.addr %s266, 128
      %s270 = sadd.s32 %s268, %s269
      %s271 = smul.addr %s270, 4
      %s272 = scalar_lea.vmem %s3, %s271
      %s273 = smul.u32 32, %s21
      %s274 = smul.u32 32, %s21
      %p275 = scmp.lt.s32.totalorder %s20, 1
      %s276 = scalar_select %p275, %s20, 1
      %p277 = scmp.lt.s32.totalorder %s274, 31
      %s278 = scalar_select %p277, %s274, 31
      %s279 = smul.addr %s276, 128
      %s280 = sadd.s32 %s278, %s279
      %s281 = smul.addr %s280, 4
      %s282 = scalar_lea.vmem %s4, %s281
      %s283 = smul.u32 32, %s21
      %v285 = vld [vmem:[%s252] sm:$0xf]
      %v286 = vld [vmem:[%s252 + $0x4] sm:$0xf]
      %v287 = vld [vmem:[%s252 + $0x8] sm:$0xf]
      %v288 = vld [vmem:[%s252 + $0xc] sm:$0xf]
      %v289 = vld [vmem:[%s252 + $0x10] sm:$0xf]
      %v290 = vld [vmem:[%s252 + $0x14] sm:$0xf]
      %v291 = vld [vmem:[%s252 + $0x18] sm:$0xf]
      %v292 = vld [vmem:[%s252 + $0x1c] sm:$0xf]
      %v293 = vld [vmem:[%s252 + $0x20] sm:$0xf]
      %v294 = vld [vmem:[%s252 + $0x24] sm:$0xf]
      %v295 = vld [vmem:[%s252 + $0x28] sm:$0xf]
      %v296 = vld [vmem:[%s252 + $0x2c] sm:$0xf]
      %v297 = vld [vmem:[%s252 + $0x30] sm:$0xf]
      %v298 = vld [vmem:[%s252 + $0x34] sm:$0xf]
      %v299 = vld [vmem:[%s252 + $0x38] sm:$0xf]
      %v300 = vld [vmem:[%s252 + $0x3c] sm:$0xf]
      %v301 = vld [vmem:[%s252 + $0x40] sm:$0xf]
      %v302 = vld [vmem:[%s252 + $0x44] sm:$0xf]
      %v303 = vld [vmem:[%s252 + $0x48] sm:$0xf]
      %v304 = vld [vmem:[%s252 + $0x4c] sm:$0xf]
      %v305 = vld [vmem:[%s252 + $0x50] sm:$0xf]
      %v306 = vld [vmem:[%s252 + $0x54] sm:$0xf]
      %v307 = vld [vmem:[%s252 + $0x58] sm:$0xf]
      %v308 = vld [vmem:[%s252 + $0x5c] sm:$0xf]
      %v309 = vld [vmem:[%s252 + $0x60] sm:$0xf]
      %v310 = vld [vmem:[%s252 + $0x64] sm:$0xf]
      %v311 = vld [vmem:[%s252 + $0x68] sm:$0xf]
      %v312 = vld [vmem:[%s252 + $0x6c] sm:$0xf]
      %v313 = vld [vmem:[%s252 + $0x70] sm:$0xf]
      %v314 = vld [vmem:[%s252 + $0x74] sm:$0xf]
      %v315 = vld [vmem:[%s252 + $0x78] sm:$0xf]
      %v316 = vld [vmem:[%s252 + $0x7c] sm:$0xf]
      %v317 = vld [vmem:[%s1] sm:$0xff]
      %v318 = vld [vmem:[%s1 + $0x8] sm:$0xf]
      %v319 = vld [vmem:[%s1 + $0xc] sm:$0xff]
      %v320 = vld [vmem:[%s1 + $0x14] sm:$0xf]
      %v321 = vld [vmem:[%s1 + $0x18] sm:$0xff]
      %v322 = vld [vmem:[%s1 + $0x20] sm:$0xf]
      %v323 = vld [vmem:[%s1 + $0x24] sm:$0xff]
      %v324 = vld [vmem:[%s1 + $0x2c] sm:$0xf]
      %v325 = vld [vmem:[%s1 + $0x30] sm:$0xff]
      %v326 = vld [vmem:[%s1 + $0x38] sm:$0xf]
      %v327 = vld [vmem:[%s1 + $0x3c] sm:$0xff]
      %v328 = vld [vmem:[%s1 + $0x44] sm:$0xf]
      %v329 = vld [vmem:[%s1 + $0x48] sm:$0xff]
      %v330 = vld [vmem:[%s1 + $0x50] sm:$0xf]
      %v331 = vld [vmem:[%s1 + $0x54] sm:$0xff]
      %v332 = vld [vmem:[%s1 + $0x5c] sm:$0xf]
      %v333 = vld [vmem:[%s1 + $0x60] sm:$0xff]
      %v334 = vld [vmem:[%s1 + $0x68] sm:$0xf]
      %v335 = vld [vmem:[%s1 + $0x6c] sm:$0xff]
      %v336 = vld [vmem:[%s1 + $0x74] sm:$0xf]
      %v337 = vld [vmem:[%s1 + $0x78] sm:$0xff]
      %v338 = vld [vmem:[%s1 + $0x80] sm:$0xf]
      %v339 = vld [vmem:[%s1 + $0x84] sm:$0xff]
      %v340 = vld [vmem:[%s1 + $0x8c] sm:$0xf]
      %v341 = vld [vmem:[%s1 + $0x90] sm:$0xff]
      %v342 = vld [vmem:[%s1 + $0x98] sm:$0xf]
      %v343 = vld [vmem:[%s1 + $0x9c] sm:$0xff]
      %v344 = vld [vmem:[%s1 + $0xa4] sm:$0xf]
      %v345 = vld [vmem:[%s1 + $0xa8] sm:$0xff]
      %v346 = vld [vmem:[%s1 + $0xb0] sm:$0xf]
      %v347 = vld [vmem:[%s1 + $0xb4] sm:$0xff]
      %v348 = vld [vmem:[%s1 + $0xbc] sm:$0xf]
      %v381 = vunpack.c.l.b16 %v285
      %v382 = vunpack.c.l.b16 %v286
      %v383 = vunpack.c.l.b16 %v287
      %v384 = vunpack.c.l.b16 %v288
      %v385 = vunpack.c.l.b16 %v289
      %v386 = vunpack.c.l.b16 %v290
      %v387 = vunpack.c.l.b16 %v291
      %v388 = vunpack.c.l.b16 %v292
      %v389 = vunpack.c.l.b16 %v293
      %v390 = vunpack.c.l.b16 %v294
      %v391 = vunpack.c.l.b16 %v295
      %v392 = vunpack.c.l.b16 %v296
      %v393 = vunpack.c.l.b16 %v297
      %v394 = vunpack.c.l.b16 %v298
      %v395 = vunpack.c.l.b16 %v299
      %v396 = vunpack.c.l.b16 %v300
      %v397 = vunpack.c.l.b16 %v301
      %v398 = vunpack.c.l.b16 %v302
      %v399 = vunpack.c.l.b16 %v303
      %v400 = vunpack.c.l.b16 %v304
      %v401 = vunpack.c.l.b16 %v305
      %v402 = vunpack.c.l.b16 %v306
      %v403 = vunpack.c.l.b16 %v307
      %v404 = vunpack.c.l.b16 %v308
      %v405 = vunpack.c.l.b16 %v309
      %v406 = vunpack.c.l.b16 %v310
      %v407 = vunpack.c.l.b16 %v311
      %v408 = vunpack.c.l.b16 %v312
      %v409 = vunpack.c.l.b16 %v313
      %v410 = vunpack.c.l.b16 %v314
      %v411 = vunpack.c.l.b16 %v315
      %v412 = vunpack.c.l.b16 %v316
      %v413 = vpack.c.b16 %v382, %v381
      %v414 = vpack.c.b16 %v384, %v383
      %v415 = vpack.c.b16 %v386, %v385
      %v416 = vpack.c.b16 %v388, %v387
      %v417 = vpack.c.b16 %v390, %v389
      %v418 = vpack.c.b16 %v392, %v391
      %v419 = vpack.c.b16 %v394, %v393
      %v420 = vpack.c.b16 %v396, %v395
      %v421 = vpack.c.b16 %v398, %v397
      %v422 = vpack.c.b16 %v400, %v399
      %v423 = vpack.c.b16 %v402, %v401
      %v424 = vpack.c.b16 %v404, %v403
      %v425 = vpack.c.b16 %v406, %v405
      %v426 = vpack.c.b16 %v408, %v407
      %v427 = vpack.c.b16 %v410, %v409
      %v428 = vpack.c.b16 %v412, %v411
      %v477 = vunpack.c.l.b16 %v317
      %v478 = vunpack.c.h.b16 %v317
      %v479 = vunpack.c.l.b16 %v318
      %v480 = vunpack.c.l.b16 %v319
      %v481 = vunpack.c.h.b16 %v319
      %v482 = vunpack.c.l.b16 %v320
      %v483 = vunpack.c.l.b16 %v321
      %v484 = vunpack.c.h.b16 %v321
      %v485 = vunpack.c.l.b16 %v322
      %v486 = vunpack.c.l.b16 %v323
      %v487 = vunpack.c.h.b16 %v323
      %v488 = vunpack.c.l.b16 %v324
      %v489 = vunpack.c.l.b16 %v325
      %v490 = vunpack.c.h.b16 %v325
      %v491 = vunpack.c.l.b16 %v326
      %v492 = vunpack.c.l.b16 %v327
      %v493 = vunpack.c.h.b16 %v327
      %v494 = vunpack.c.l.b16 %v328
      %v495 = vunpack.c.l.b16 %v329
      %v496 = vunpack.c.h.b16 %v329
      %v497 = vunpack.c.l.b16 %v330
      %v498 = vunpack.c.l.b16 %v331
      %v499 = vunpack.c.h.b16 %v331
      %v500 = vunpack.c.l.b16 %v332
      %v501 = vunpack.c.l.b16 %v333
      %v502 = vunpack.c.h.b16 %v333
      %v503 = vunpack.c.l.b16 %v334
      %v504 = vunpack.c.l.b16 %v335
      %v505 = vunpack.c.h.b16 %v335
      %v506 = vunpack.c.l.b16 %v336
      %v507 = vunpack.c.l.b16 %v337
      %v508 = vunpack.c.h.b16 %v337
      %v509 = vunpack.c.l.b16 %v338
      %v510 = vunpack.c.l.b16 %v339
      %v511 = vunpack.c.h.b16 %v339
      %v512 = vunpack.c.l.b16 %v340
      %v513 = vunpack.c.l.b16 %v341
      %v514 = vunpack.c.h.b16 %v341
      %v515 = vunpack.c.l.b16 %v342
      %v516 = vunpack.c.l.b16 %v343
      %v517 = vunpack.c.h.b16 %v343
      %v518 = vunpack.c.l.b16 %v344
      %v519 = vunpack.c.l.b16 %v345
      %v520 = vunpack.c.h.b16 %v345
      %v521 = vunpack.c.l.b16 %v346
      %v522 = vunpack.c.l.b16 %v347
      %v523 = vunpack.c.h.b16 %v347
      %v524 = vunpack.c.l.b16 %v348
      %v525 = vpack.c.b16 %v480, %v477
      %v526 = vpack.c.b16 %v481, %v478
      %v527 = vpack.c.b16 %v482, %v479
      %v528 = vpack.c.b16 %v486, %v483
      %v529 = vpack.c.b16 %v487, %v484
      %v530 = vpack.c.b16 %v488, %v485
      %v531 = vpack.c.b16 %v492, %v489
      %v532 = vpack.c.b16 %v493, %v490
      %v533 = vpack.c.b16 %v494, %v491
      %v534 = vpack.c.b16 %v498, %v495
      %v535 = vpack.c.b16 %v499, %v496
      %v536 = vpack.c.b16 %v500, %v497
      %v537 = vpack.c.b16 %v504, %v501
      %v538 = vpack.c.b16 %v505, %v502
      %v539 = vpack.c.b16 %v506, %v503
      %v540 = vpack.c.b16 %v510, %v507
      %v541 = vpack.c.b16 %v511, %v508
      %v542 = vpack.c.b16 %v512, %v509
      %v543 = vpack.c.b16 %v516, %v513
      %v544 = vpack.c.b16 %v517, %v514
      %v545 = vpack.c.b16 %v518, %v515
      %v546 = vpack.c.b16 %v522, %v519
      %v547 = vpack.c.b16 %v523, %v520
      %v548 = vpack.c.b16 %v524, %v521
      %573 = vmatprep.subr.bf16.mxu0 %v547
      %574 = vmatpush1.bf16.msra.mxu0 %v546
      %575 = vmatprep.subr.bf16.mxu0 %v544
      %576 = vmatpush1.bf16.msra.mxu0 %v543
      %577 = vmatprep.subr.bf16.mxu0 %v541
      %578 = vmatpush1.bf16.msra.mxu0 %v540
      %579 = vmatprep.subr.bf16.mxu0 %v538
      %580 = vmatpush1.bf16.msra.mxu0 %v537
      %581 = vmatprep.subr.bf16.mxu0 %v535
      %582 = vmatpush1.bf16.msra.mxu0 %v534
      %583 = vmatprep.subr.bf16.mxu0 %v532
      %584 = vmatpush1.bf16.msra.mxu0 %v531
      %585 = vmatprep.subr.bf16.mxu0 %v529
      %586 = vmatpush1.bf16.msra.mxu0 %v528
      %587 = vmatprep.subr.bf16.mxu0 %v526
      %588 = vmatpush1.bf16.msra.mxu0 %v525
      %589 = vmatprep.subr.bf16.mxu0 0
      %590 = vmatpush2.bf16.msra.mxu0 0
      %591 = vmatprep.subr.bf16.mxu0 0
      %592 = vmatpush2.bf16.msra.mxu0 0
      %593 = vmatprep.subr.bf16.mxu0 0
      %594 = vmatpush2.bf16.msra.mxu0 0
      %595 = vmatprep.subr.bf16.mxu0 0
      %596 = vmatpush2.bf16.msra.mxu0 0
      %597 = vmatprep.subr.bf16.mxu0 0
      %598 = vmatpush2.bf16.msra.mxu0 0
      %599 = vmatprep.subr.bf16.mxu0 0
      %600 = vmatpush2.bf16.msra.mxu0 0
      %601 = vmatprep.subr.bf16.mxu0 0
      %602 = vmatpush2.bf16.msra.mxu0 0
      %603 = vmatprep.subr.bf16.mxu0 0
      %604 = vmatpush2.bf16.msra.mxu0 0
      %605 = vmatprep.mubr.bf16.mxu0 0
      %606 = vmatmul.mubr.bf16.gmra.mxu0 %v413
      %v607 = vpop.f32.mrf.mxu0
      %v608 = vadd.f32 0.0, %v607
      %v609 = vpop.f32.mrf.mxu0
      %v610 = vadd.f32 0.0, %v609
      %v611 = vpop.f32.mrf.mxu0
      %v612 = vadd.f32 0.0, %v611
      %v613 = vpop.f32.mrf.mxu0
      %v614 = vadd.f32 0.0, %v613
      %615 = vmatprep.mubr.bf16.mxu0 0
      %616 = vmatmul.mubr.bf16.gmra.mxu0 %v414
      %v617 = vpop.f32.mrf.mxu0
      %v618 = vadd.f32 0.0, %v617
      %v619 = vpop.f32.mrf.mxu0
      %v620 = vadd.f32 0.0, %v619
      %v621 = vpop.f32.mrf.mxu0
      %v622 = vadd.f32 0.0, %v621
      %v623 = vpop.f32.mrf.mxu0
      %v624 = vadd.f32 0.0, %v623
      %625 = vmatprep.mubr.bf16.mxu0 0
      %626 = vmatmul.mubr.bf16.gmra.mxu0 %v415
      %v627 = vpop.f32.mrf.mxu0
      %v628 = vadd.f32 0.0, %v627
      %v629 = vpop.f32.mrf.mxu0
      %v630 = vadd.f32 0.0, %v629
      %v631 = vpop.f32.mrf.mxu0
      %v632 = vadd.f32 0.0, %v631
      %v633 = vpop.f32.mrf.mxu0
      %v634 = vadd.f32 0.0, %v633
      %635 = vmatprep.mubr.bf16.mxu0 0
      %636 = vmatmul.mubr.bf16.gmra.mxu0 %v416
      %v637 = vpop.f32.mrf.mxu0
      %v638 = vadd.f32 0.0, %v637
      %v639 = vpop.f32.mrf.mxu0
      %v640 = vadd.f32 0.0, %v639
      %v641 = vpop.f32.mrf.mxu0
      %v642 = vadd.f32 0.0, %v641
      %v643 = vpop.f32.mrf.mxu0
      %v644 = vadd.f32 0.0, %v643
      %645 = vmatprep.mubr.bf16.mxu0 0
      %646 = vmatmul.mubr.bf16.gmra.mxu0 %v417
      %v647 = vpop.f32.mrf.mxu0
      %v648 = vadd.f32 0.0, %v647
      %v649 = vpop.f32.mrf.mxu0
      %v650 = vadd.f32 0.0, %v649
      %v651 = vpop.f32.mrf.mxu0
      %v652 = vadd.f32 0.0, %v651
      %v653 = vpop.f32.mrf.mxu0
      %v654 = vadd.f32 0.0, %v653
      %655 = vmatprep.mubr.bf16.mxu0 0
      %656 = vmatmul.mubr.bf16.gmra.mxu0 %v418
      %v657 = vpop.f32.mrf.mxu0
      %v658 = vadd.f32 0.0, %v657
      %v659 = vpop.f32.mrf.mxu0
      %v660 = vadd.f32 0.0, %v659
      %v661 = vpop.f32.mrf.mxu0
      %v662 = vadd.f32 0.0, %v661
      %v663 = vpop.f32.mrf.mxu0
      %v664 = vadd.f32 0.0, %v663
      %665 = vmatprep.mubr.bf16.mxu0 0
      %666 = vmatmul.mubr.bf16.gmra.mxu0 %v419
      %v667 = vpop.f32.mrf.mxu0
      %v668 = vadd.f32 0.0, %v667
      %v669 = vpop.f32.mrf.mxu0
      %v670 = vadd.f32 0.0, %v669
      %v671 = vpop.f32.mrf.mxu0
      %v672 = vadd.f32 0.0, %v671
      %v673 = vpop.f32.mrf.mxu0
      %v674 = vadd.f32 0.0, %v673
      %675 = vmatprep.mubr.bf16.mxu0 0
      %676 = vmatmul.mubr.bf16.gmra.mxu0 %v420
      %v677 = vpop.f32.mrf.mxu0
      %v678 = vadd.f32 0.0, %v677
      %v679 = vpop.f32.mrf.mxu0
      %v680 = vadd.f32 0.0, %v679
      %v681 = vpop.f32.mrf.mxu0
      %v682 = vadd.f32 0.0, %v681
      %v683 = vpop.f32.mrf.mxu0
      %v684 = vadd.f32 0.0, %v683
      %685 = vmatprep.mubr.bf16.mxu0 0
      %686 = vmatmul.mubr.bf16.gmra.mxu0 %v421
      %v687 = vpop.f32.mrf.mxu0
      %v688 = vadd.f32 0.0, %v687
      %v689 = vpop.f32.mrf.mxu0
      %v690 = vadd.f32 0.0, %v689
      %v691 = vpop.f32.mrf.mxu0
      %v692 = vadd.f32 0.0, %v691
      %v693 = vpop.f32.mrf.mxu0
      %v694 = vadd.f32 0.0, %v693
      %695 = vmatprep.mubr.bf16.mxu0 0
      %696 = vmatmul.mubr.bf16.gmra.mxu0 %v422
      %v697 = vpop.f32.mrf.mxu0
      %v698 = vadd.f32 0.0, %v697
      %v699 = vpop.f32.mrf.mxu0
      %v700 = vadd.f32 0.0, %v699
      %v701 = vpop.f32.mrf.mxu0
      %v702 = vadd.f32 0.0, %v701
      %v703 = vpop.f32.mrf.mxu0
      %v704 = vadd.f32 0.0, %v703
      %705 = vmatprep.mubr.bf16.mxu0 0
      %706 = vmatmul.mubr.bf16.gmra.mxu0 %v423
      %v707 = vpop.f32.mrf.mxu0
      %v708 = vadd.f32 0.0, %v707
      %v709 = vpop.f32.mrf.mxu0
      %v710 = vadd.f32 0.0, %v709
      %v711 = vpop.f32.mrf.mxu0
      %v712 = vadd.f32 0.0, %v711
      %v713 = vpop.f32.mrf.mxu0
      %v714 = vadd.f32 0.0, %v713
      %715 = vmatprep.mubr.bf16.mxu0 0
      %716 = vmatmul.mubr.bf16.gmra.mxu0 %v424
      %v717 = vpop.f32.mrf.mxu0
      %v718 = vadd.f32 0.0, %v717
      %v719 = vpop.f32.mrf.mxu0
      %v720 = vadd.f32 0.0, %v719
      %v721 = vpop.f32.mrf.mxu0
      %v722 = vadd.f32 0.0, %v721
      %v723 = vpop.f32.mrf.mxu0
      %v724 = vadd.f32 0.0, %v723
      %725 = vmatprep.mubr.bf16.mxu0 0
      %726 = vmatmul.mubr.bf16.gmra.mxu0 %v425
      %v727 = vpop.f32.mrf.mxu0
      %v728 = vadd.f32 0.0, %v727
      %v729 = vpop.f32.mrf.mxu0
      %v730 = vadd.f32 0.0, %v729
      %v731 = vpop.f32.mrf.mxu0
      %v732 = vadd.f32 0.0, %v731
      %v733 = vpop.f32.mrf.mxu0
      %v734 = vadd.f32 0.0, %v733
      %735 = vmatprep.mubr.bf16.mxu0 0
      %736 = vmatmul.mubr.bf16.gmra.mxu0 %v426
      %v737 = vpop.f32.mrf.mxu0
      %v738 = vadd.f32 0.0, %v737
      %v739 = vpop.f32.mrf.mxu0
      %v740 = vadd.f32 0.0, %v739
      %v741 = vpop.f32.mrf.mxu0
      %v742 = vadd.f32 0.0, %v741
      %v743 = vpop.f32.mrf.mxu0
      %v744 = vadd.f32 0.0, %v743
      %745 = vmatprep.mubr.bf16.mxu0 0
      %746 = vmatmul.mubr.bf16.gmra.mxu0 %v427
      %v747 = vpop.f32.mrf.mxu0
      %v748 = vadd.f32 0.0, %v747
      %v749 = vpop.f32.mrf.mxu0
      %v750 = vadd.f32 0.0, %v749
      %v751 = vpop.f32.mrf.mxu0
      %v752 = vadd.f32 0.0, %v751
      %v753 = vpop.f32.mrf.mxu0
      %v754 = vadd.f32 0.0, %v753
      %755 = vmatprep.mubr.bf16.mxu0 0
      %756 = vmatmul.mubr.bf16.gmra.mxu0 %v428
      %v757 = vpop.f32.mrf.mxu0
      %v758 = vadd.f32 0.0, %v757
      %v759 = vpop.f32.mrf.mxu0
      %v760 = vadd.f32 0.0, %v759
      %v761 = vpop.f32.mrf.mxu0
      %v762 = vadd.f32 0.0, %v761
      %v763 = vpop.f32.mrf.mxu0
      %v764 = vadd.f32 0.0, %v763
      %765 = vdwg.mxu0
      %766 = vmatprep.subr.bf16.mxu0 0
      %767 = vmatpush1.bf16.msra.mxu0 %v548
      %768 = vmatprep.subr.bf16.mxu0 0
      %769 = vmatpush1.bf16.msra.mxu0 %v545
      %770 = vmatprep.subr.bf16.mxu0 0
      %771 = vmatpush1.bf16.msra.mxu0 %v542
      %772 = vmatprep.subr.bf16.mxu0 0
      %773 = vmatpush1.bf16.msra.mxu0 %v539
      %774 = vmatprep.subr.bf16.mxu0 0
      %775 = vmatpush1.bf16.msra.mxu0 %v536
      %776 = vmatprep.subr.bf16.mxu0 0
      %777 = vmatpush1.bf16.msra.mxu0 %v533
      %778 = vmatprep.subr.bf16.mxu0 0
      %779 = vmatpush1.bf16.msra.mxu0 %v530
      %780 = vmatprep.subr.bf16.mxu0 0
      %781 = vmatpush1.bf16.msra.mxu0 %v527
      %782 = vmatprep.subr.bf16.mxu0 0
      %783 = vmatpush2.bf16.msra.mxu0 0
      %784 = vmatprep.subr.bf16.mxu0 0
      %785 = vmatpush2.bf16.msra.mxu0 0
      %786 = vmatprep.subr.bf16.mxu0 0
      %787 = vmatpush2.bf16.msra.mxu0 0
      %788 = vmatprep.subr.bf16.mxu0 0
      %789 = vmatpush2.bf16.msra.mxu0 0
      %790 = vmatprep.subr.bf16.mxu0 0
      %791 = vmatpush2.bf16.msra.mxu0 0
      %792 = vmatprep.subr.bf16.mxu0 0
      %793 = vmatpush2.bf16.msra.mxu0 0
      %794 = vmatprep.subr.bf16.mxu0 0
      %795 = vmatpush2.bf16.msra.mxu0 0
      %796 = vmatprep.subr.bf16.mxu0 0
      %797 = vmatpush2.bf16.msra.mxu0 0
      %798 = vmatprep.mubr.bf16.mxu0 0
      %799 = vmatmul.mubr.bf16.gmra.mxu0 %v413
      %v800 = vpop.f32.mrf.mxu0
      %v801 = vadd.f32 0.0, %v800
      %v802 = vpop.f32.mrf.mxu0
      %v803 = vpop.f32.mrf.mxu0
      %v804 = vadd.f32 0.0, %v803
      %v805 = vpop.f32.mrf.mxu0
      %806 = vmatprep.mubr.bf16.mxu0 0
      %807 = vmatmul.mubr.bf16.gmra.mxu0 %v414
      %v808 = vpop.f32.mrf.mxu0
      %v809 = vadd.f32 0.0, %v808
      %v810 = vpop.f32.mrf.mxu0
      %v811 = vpop.f32.mrf.mxu0
      %v812 = vadd.f32 0.0, %v811
      %v813 = vpop.f32.mrf.mxu0
      %814 = vmatprep.mubr.bf16.mxu0 0
      %815 = vmatmul.mubr.bf16.gmra.mxu0 %v415
      %v816 = vpop.f32.mrf.mxu0
      %v817 = vadd.f32 0.0, %v816
      %v818 = vpop.f32.mrf.mxu0
      %v819 = vpop.f32.mrf.mxu0
      %v820 = vadd.f32 0.0, %v819
      %v821 = vpop.f32.mrf.mxu0
      %822 = vmatprep.mubr.bf16.mxu0 0
      %823 = vmatmul.mubr.bf16.gmra.mxu0 %v416
      %v824 = vpop.f32.mrf.mxu0
      %v825 = vadd.f32 0.0, %v824
      %v826 = vpop.f32.mrf.mxu0
      %v827 = vpop.f32.mrf.mxu0
      %v828 = vadd.f32 0.0, %v827
      %v829 = vpop.f32.mrf.mxu0
      %830 = vmatprep.mubr.bf16.mxu0 0
      %831 = vmatmul.mubr.bf16.gmra.mxu0 %v417
      %v832 = vpop.f32.mrf.mxu0
      %v833 = vadd.f32 0.0, %v832
      %v834 = vpop.f32.mrf.mxu0
      %v835 = vpop.f32.mrf.mxu0
      %v836 = vadd.f32 0.0, %v835
      %v837 = vpop.f32.mrf.mxu0
      %838 = vmatprep.mubr.bf16.mxu0 0
      %839 = vmatmul.mubr.bf16.gmra.mxu0 %v418
      %v840 = vpop.f32.mrf.mxu0
      %v841 = vadd.f32 0.0, %v840
      %v842 = vpop.f32.mrf.mxu0
      %v843 = vpop.f32.mrf.mxu0
      %v844 = vadd.f32 0.0, %v843
      %v845 = vpop.f32.mrf.mxu0
      %846 = vmatprep.mubr.bf16.mxu0 0
      %847 = vmatmul.mubr.bf16.gmra.mxu0 %v419
      %v848 = vpop.f32.mrf.mxu0
      %v849 = vadd.f32 0.0, %v848
      %v850 = vpop.f32.mrf.mxu0
      %v851 = vpop.f32.mrf.mxu0
      %v852 = vadd.f32 0.0, %v851
      %v853 = vpop.f32.mrf.mxu0
      %854 = vmatprep.mubr.bf16.mxu0 0
      %855 = vmatmul.mubr.bf16.gmra.mxu0 %v420
      %v856 = vpop.f32.mrf.mxu0
      %v857 = vadd.f32 0.0, %v856
      %v858 = vpop.f32.mrf.mxu0
      %v859 = vpop.f32.mrf.mxu0
      %v860 = vadd.f32 0.0, %v859
      %v861 = vpop.f32.mrf.mxu0
      %862 = vmatprep.mubr.bf16.mxu0 0
      %863 = vmatmul.mubr.bf16.gmra.mxu0 %v421
      %v864 = vpop.f32.mrf.mxu0
      %v865 = vadd.f32 0.0, %v864
      %v866 = vpop.f32.mrf.mxu0
      %v867 = vpop.f32.mrf.mxu0
      %v868 = vadd.f32 0.0, %v867
      %v869 = vpop.f32.mrf.mxu0
      %870 = vmatprep.mubr.bf16.mxu0 0
      %871 = vmatmul.mubr.bf16.gmra.mxu0 %v422
      %v872 = vpop.f32.mrf.mxu0
      %v873 = vadd.f32 0.0, %v872
      %v874 = vpop.f32.mrf.mxu0
      %v875 = vpop.f32.mrf.mxu0
      %v876 = vadd.f32 0.0, %v875
      %v877 = vpop.f32.mrf.mxu0
      %878 = vmatprep.mubr.bf16.mxu0 0
      %879 = vmatmul.mubr.bf16.gmra.mxu0 %v423
      %v880 = vpop.f32.mrf.mxu0
      %v881 = vadd.f32 0.0, %v880
      %v882 = vpop.f32.mrf.mxu0
      %v883 = vpop.f32.mrf.mxu0
      %v884 = vadd.f32 0.0, %v883
      %v885 = vpop.f32.mrf.mxu0
      %886 = vmatprep.mubr.bf16.mxu0 0
      %887 = vmatmul.mubr.bf16.gmra.mxu0 %v424
      %v888 = vpop.f32.mrf.mxu0
      %v889 = vadd.f32 0.0, %v888
      %v890 = vpop.f32.mrf.mxu0
      %v891 = vpop.f32.mrf.mxu0
      %v892 = vadd.f32 0.0, %v891
      %v893 = vpop.f32.mrf.mxu0
      %894 = vmatprep.mubr.bf16.mxu0 0
      %895 = vmatmul.mubr.bf16.gmra.mxu0 %v425
      %v896 = vpop.f32.mrf.mxu0
      %v897 = vadd.f32 0.0, %v896
      %v898 = vpop.f32.mrf.mxu0
      %v899 = vpop.f32.mrf.mxu0
      %v900 = vadd.f32 0.0, %v899
      %v901 = vpop.f32.mrf.mxu0
      %902 = vmatprep.mubr.bf16.mxu0 0
      %903 = vmatmul.mubr.bf16.gmra.mxu0 %v426
      %v904 = vpop.f32.mrf.mxu0
      %v905 = vadd.f32 0.0, %v904
      %v906 = vpop.f32.mrf.mxu0
      %v907 = vpop.f32.mrf.mxu0
      %v908 = vadd.f32 0.0, %v907
      %v909 = vpop.f32.mrf.mxu0
      %910 = vmatprep.mubr.bf16.mxu0 0
      %911 = vmatmul.mubr.bf16.gmra.mxu0 %v427
      %v912 = vpop.f32.mrf.mxu0
      %v913 = vadd.f32 0.0, %v912
      %v914 = vpop.f32.mrf.mxu0
      %v915 = vpop.f32.mrf.mxu0
      %v916 = vadd.f32 0.0, %v915
      %v917 = vpop.f32.mrf.mxu0
      %918 = vmatprep.mubr.bf16.mxu0 0
      %919 = vmatmul.mubr.bf16.gmra.mxu0 %v428
      %v920 = vpop.f32.mrf.mxu0
      %v921 = vadd.f32 0.0, %v920
      %v922 = vpop.f32.mrf.mxu0
      %v923 = vpop.f32.mrf.mxu0
      %v924 = vadd.f32 0.0, %v923
      %v925 = vpop.f32.mrf.mxu0
      %926 = vdwg.mxu0
      %v927 = vpack.c.bf16 %v612, %v608
      %v928 = vpack.c.bf16 %v622, %v618
      %v929 = vpack.c.bf16 %v632, %v628
      %v930 = vpack.c.bf16 %v642, %v638
      %v931 = vpack.c.bf16 %v652, %v648
      %v932 = vpack.c.bf16 %v662, %v658
      %v933 = vpack.c.bf16 %v672, %v668
      %v934 = vpack.c.bf16 %v682, %v678
      %v935 = vpack.c.bf16 %v692, %v688
      %v936 = vpack.c.bf16 %v702, %v698
      %v937 = vpack.c.bf16 %v712, %v708
      %v938 = vpack.c.bf16 %v722, %v718
      %v939 = vpack.c.bf16 %v732, %v728
      %v940 = vpack.c.bf16 %v742, %v738
      %v941 = vpack.c.bf16 %v752, %v748
      %v942 = vpack.c.bf16 %v762, %v758
      %v959 = vunpack.c.l.b16 %v927
      %v960 = vunpack.c.h.b16 %v927
      %v961 = vunpack.c.l.b16 %v928
      %v962 = vunpack.c.h.b16 %v928
      %v963 = vunpack.c.l.b16 %v929
      %v964 = vunpack.c.h.b16 %v929
      %v965 = vunpack.c.l.b16 %v930
      %v966 = vunpack.c.h.b16 %v930
      %v967 = vunpack.c.l.b16 %v931
      %v968 = vunpack.c.h.b16 %v931
      %v969 = vunpack.c.l.b16 %v932
      %v970 = vunpack.c.h.b16 %v932
      %v971 = vunpack.c.l.b16 %v933
      %v972 = vunpack.c.h.b16 %v933
      %v973 = vunpack.c.l.b16 %v934
      %v974 = vunpack.c.h.b16 %v934
      %v975 = vunpack.c.l.b16 %v935
      %v976 = vunpack.c.h.b16 %v935
      %v977 = vunpack.c.l.b16 %v936
      %v978 = vunpack.c.h.b16 %v936
      %v979 = vunpack.c.l.b16 %v937
      %v980 = vunpack.c.h.b16 %v937
      %v981 = vunpack.c.l.b16 %v938
      %v982 = vunpack.c.h.b16 %v938
      %v983 = vunpack.c.l.b16 %v939
      %v984 = vunpack.c.h.b16 %v939
      %v985 = vunpack.c.l.b16 %v940
      %v986 = vunpack.c.h.b16 %v940
      %v987 = vunpack.c.l.b16 %v941
      %v988 = vunpack.c.h.b16 %v941
      %v989 = vunpack.c.l.b16 %v942
      %v990 = vunpack.c.h.b16 %v942
      %v991 = vpack.c.b16 %v959, %v959
      %v992 = vpack.c.b16 %v960, %v960
      %v993 = vpack.c.b16 %v961, %v961
      %v994 = vpack.c.b16 %v962, %v962
      %v995 = vpack.c.b16 %v963, %v963
      %v996 = vpack.c.b16 %v964, %v964
      %v997 = vpack.c.b16 %v965, %v965
      %v998 = vpack.c.b16 %v966, %v966
      %v999 = vpack.c.b16 %v967, %v967
      %v1000 = vpack.c.b16 %v968, %v968
      %v1001 = vpack.c.b16 %v969, %v969
      %v1002 = vpack.c.b16 %v970, %v970
      %v1003 = vpack.c.b16 %v971, %v971
      %v1004 = vpack.c.b16 %v972, %v972
      %v1005 = vpack.c.b16 %v973, %v973
      %v1006 = vpack.c.b16 %v974, %v974
      %v1007 = vpack.c.b16 %v975, %v975
      %v1008 = vpack.c.b16 %v976, %v976
      %v1009 = vpack.c.b16 %v977, %v977
      %v1010 = vpack.c.b16 %v978, %v978
      %v1011 = vpack.c.b16 %v979, %v979
      %v1012 = vpack.c.b16 %v980, %v980
      %v1013 = vpack.c.b16 %v981, %v981
      %v1014 = vpack.c.b16 %v982, %v982
      %v1015 = vpack.c.b16 %v983, %v983
      %v1016 = vpack.c.b16 %v984, %v984
      %v1017 = vpack.c.b16 %v985, %v985
      %v1018 = vpack.c.b16 %v986, %v986
      %v1019 = vpack.c.b16 %v987, %v987
      %v1020 = vpack.c.b16 %v988, %v988
      %v1021 = vpack.c.b16 %v989, %v989
      %v1022 = vpack.c.b16 %v990, %v990
      %vm1055 = vcmask 257024
      %1056 = vst.msk [vmem:[%s262] sm:$0xf] %vm1055, %v991
      %1057 = vst.msk [vmem:[%s262 + $0x4] sm:$0xf] %vm1055, %v992
      %1058 = vst.msk [vmem:[%s262 + $0x8] sm:$0xf] %vm1055, %v993
      %1059 = vst.msk [vmem:[%s262 + $0xc] sm:$0xf] %vm1055, %v994
      %1060 = vst.msk [vmem:[%s262 + $0x10] sm:$0xf] %vm1055, %v995
      %1061 = vst.msk [vmem:[%s262 + $0x14] sm:$0xf] %vm1055, %v996
      %1062 = vst.msk [vmem:[%s262 + $0x18] sm:$0xf] %vm1055, %v997
      %1063 = vst.msk [vmem:[%s262 + $0x1c] sm:$0xf] %vm1055, %v998
      %1064 = vst.msk [vmem:[%s262 + $0x20] sm:$0xf] %vm1055, %v999
      %1065 = vst.msk [vmem:[%s262 + $0x24] sm:$0xf] %vm1055, %v1000
      %1066 = vst.msk [vmem:[%s262 + $0x28] sm:$0xf] %vm1055, %v1001
      %1067 = vst.msk [vmem:[%s262 + $0x2c] sm:$0xf] %vm1055, %v1002
      %1068 = vst.msk [vmem:[%s262 + $0x30] sm:$0xf] %vm1055, %v1003
      %1069 = vst.msk [vmem:[%s262 + $0x34] sm:$0xf] %vm1055, %v1004
      %1070 = vst.msk [vmem:[%s262 + $0x38] sm:$0xf] %vm1055, %v1005
      %1071 = vst.msk [vmem:[%s262 + $0x3c] sm:$0xf] %vm1055, %v1006
      %1072 = vst.msk [vmem:[%s262 + $0x40] sm:$0xf] %vm1055, %v1007
      %1073 = vst.msk [vmem:[%s262 + $0x44] sm:$0xf] %vm1055, %v1008
      %1074 = vst.msk [vmem:[%s262 + $0x48] sm:$0xf] %vm1055, %v1009
      %1075 = vst.msk [vmem:[%s262 + $0x4c] sm:$0xf] %vm1055, %v1010
      %1076 = vst.msk [vmem:[%s262 + $0x50] sm:$0xf] %vm1055, %v1011
      %1077 = vst.msk [vmem:[%s262 + $0x54] sm:$0xf] %vm1055, %v1012
      %1078 = vst.msk [vmem:[%s262 + $0x58] sm:$0xf] %vm1055, %v1013
      %1079 = vst.msk [vmem:[%s262 + $0x5c] sm:$0xf] %vm1055, %v1014
      %1080 = vst.msk [vmem:[%s262 + $0x60] sm:$0xf] %vm1055, %v1015
      %1081 = vst.msk [vmem:[%s262 + $0x64] sm:$0xf] %vm1055, %v1016
      %1082 = vst.msk [vmem:[%s262 + $0x68] sm:$0xf] %vm1055, %v1017
      %1083 = vst.msk [vmem:[%s262 + $0x6c] sm:$0xf] %vm1055, %v1018
      %1084 = vst.msk [vmem:[%s262 + $0x70] sm:$0xf] %vm1055, %v1019
      %1085 = vst.msk [vmem:[%s262 + $0x74] sm:$0xf] %vm1055, %v1020
      %1086 = vst.msk [vmem:[%s262 + $0x78] sm:$0xf] %vm1055, %v1021
      %1087 = vst.msk [vmem:[%s262 + $0x7c] sm:$0xf] %vm1055, %v1022
      %v1088 = vpack.c.bf16 %v614, %v610
      %v1089 = vpack.c.bf16 %v624, %v620
      %v1090 = vpack.c.bf16 %v634, %v630
      %v1091 = vpack.c.bf16 %v644, %v640
      %v1092 = vpack.c.bf16 %v654, %v650
      %v1093 = vpack.c.bf16 %v664, %v660
      %v1094 = vpack.c.bf16 %v674, %v670
      %v1095 = vpack.c.bf16 %v684, %v680
      %v1096 = vpack.c.bf16 %v694, %v690
      %v1097 = vpack.c.bf16 %v704, %v700
      %v1098 = vpack.c.bf16 %v714, %v710
      %v1099 = vpack.c.bf16 %v724, %v720
      %v1100 = vpack.c.bf16 %v734, %v730
      %v1101 = vpack.c.bf16 %v744, %v740
      %v1102 = vpack.c.bf16 %v754, %v750
      %v1103 = vpack.c.bf16 %v764, %v760
      %v1120 = vunpack.c.l.b16 %v1088
      %v1121 = vunpack.c.h.b16 %v1088
      %v1122 = vunpack.c.l.b16 %v1089
      %v1123 = vunpack.c.h.b16 %v1089
      %v1124 = vunpack.c.l.b16 %v1090
      %v1125 = vunpack.c.h.b16 %v1090
      %v1126 = vunpack.c.l.b16 %v1091
      %v1127 = vunpack.c.h.b16 %v1091
      %v1128 = vunpack.c.l.b16 %v1092
      %v1129 = vunpack.c.h.b16 %v1092
      %v1130 = vunpack.c.l.b16 %v1093
      %v1131 = vunpack.c.h.b16 %v1093
      %v1132 = vunpack.c.l.b16 %v1094
      %v1133 = vunpack.c.h.b16 %v1094
      %v1134 = vunpack.c.l.b16 %v1095
      %v1135 = vunpack.c.h.b16 %v1095
      %v1136 = vunpack.c.l.b16 %v1096
      %v1137 = vunpack.c.h.b16 %v1096
      %v1138 = vunpack.c.l.b16 %v1097
      %v1139 = vunpack.c.h.b16 %v1097
      %v1140 = vunpack.c.l.b16 %v1098
      %v1141 = vunpack.c.h.b16 %v1098
      %v1142 = vunpack.c.l.b16 %v1099
      %v1143 = vunpack.c.h.b16 %v1099
      %v1144 = vunpack.c.l.b16 %v1100
      %v1145 = vunpack.c.h.b16 %v1100
      %v1146 = vunpack.c.l.b16 %v1101
      %v1147 = vunpack.c.h.b16 %v1101
      %v1148 = vunpack.c.l.b16 %v1102
      %v1149 = vunpack.c.h.b16 %v1102
      %v1150 = vunpack.c.l.b16 %v1103
      %v1151 = vunpack.c.h.b16 %v1103
      %v1152 = vpack.c.b16 %v1120, %v1120
      %v1153 = vpack.c.b16 %v1121, %v1121
      %v1154 = vpack.c.b16 %v1122, %v1122
      %v1155 = vpack.c.b16 %v1123, %v1123
      %v1156 = vpack.c.b16 %v1124, %v1124
      %v1157 = vpack.c.b16 %v1125, %v1125
      %v1158 = vpack.c.b16 %v1126, %v1126
      %v1159 = vpack.c.b16 %v1127, %v1127
      %v1160 = vpack.c.b16 %v1128, %v1128
      %v1161 = vpack.c.b16 %v1129, %v1129
      %v1162 = vpack.c.b16 %v1130, %v1130
      %v1163 = vpack.c.b16 %v1131, %v1131
      %v1164 = vpack.c.b16 %v1132, %v1132
      %v1165 = vpack.c.b16 %v1133, %v1133
      %v1166 = vpack.c.b16 %v1134, %v1134
      %v1167 = vpack.c.b16 %v1135, %v1135
      %v1168 = vpack.c.b16 %v1136, %v1136
      %v1169 = vpack.c.b16 %v1137, %v1137
      %v1170 = vpack.c.b16 %v1138, %v1138
      %v1171 = vpack.c.b16 %v1139, %v1139
      %v1172 = vpack.c.b16 %v1140, %v1140
      %v1173 = vpack.c.b16 %v1141, %v1141
      %v1174 = vpack.c.b16 %v1142, %v1142
      %v1175 = vpack.c.b16 %v1143, %v1143
      %v1176 = vpack.c.b16 %v1144, %v1144
      %v1177 = vpack.c.b16 %v1145, %v1145
      %v1178 = vpack.c.b16 %v1146, %v1146
      %v1179 = vpack.c.b16 %v1147, %v1147
      %v1180 = vpack.c.b16 %v1148, %v1148
      %v1181 = vpack.c.b16 %v1149, %v1149
      %v1182 = vpack.c.b16 %v1150, %v1150
      %v1183 = vpack.c.b16 %v1151, %v1151
      %1216 = vst.msk [vmem:[%s272] sm:$0xf] %vm1055, %v1152
      %1217 = vst.msk [vmem:[%s272 + $0x4] sm:$0xf] %vm1055, %v1153
      %1218 = vst.msk [vmem:[%s272 + $0x8] sm:$0xf] %vm1055, %v1154
      %1219 = vst.msk [vmem:[%s272 + $0xc] sm:$0xf] %vm1055, %v1155
      %1220 = vst.msk [vmem:[%s272 + $0x10] sm:$0xf] %vm1055, %v1156
      %1221 = vst.msk [vmem:[%s272 + $0x14] sm:$0xf] %vm1055, %v1157
      %1222 = vst.msk [vmem:[%s272 + $0x18] sm:$0xf] %vm1055, %v1158
      %1223 = vst.msk [vmem:[%s272 + $0x1c] sm:$0xf] %vm1055, %v1159
      %1224 = vst.msk [vmem:[%s272 + $0x20] sm:$0xf] %vm1055, %v1160
      %1225 = vst.msk [vmem:[%s272 + $0x24] sm:$0xf] %vm1055, %v1161
      %1226 = vst.msk [vmem:[%s272 + $0x28] sm:$0xf] %vm1055, %v1162
      %1227 = vst.msk [vmem:[%s272 + $0x2c] sm:$0xf] %vm1055, %v1163
      %1228 = vst.msk [vmem:[%s272 + $0x30] sm:$0xf] %vm1055, %v1164
      %1229 = vst.msk [vmem:[%s272 + $0x34] sm:$0xf] %vm1055, %v1165
      %1230 = vst.msk [vmem:[%s272 + $0x38] sm:$0xf] %vm1055, %v1166
      %1231 = vst.msk [vmem:[%s272 + $0x3c] sm:$0xf] %vm1055, %v1167
      %1232 = vst.msk [vmem:[%s272 + $0x40] sm:$0xf] %vm1055, %v1168
      %1233 = vst.msk [vmem:[%s272 + $0x44] sm:$0xf] %vm1055, %v1169
      %1234 = vst.msk [vmem:[%s272 + $0x48] sm:$0xf] %vm1055, %v1170
      %1235 = vst.msk [vmem:[%s272 + $0x4c] sm:$0xf] %vm1055, %v1171
      %1236 = vst.msk [vmem:[%s272 + $0x50] sm:$0xf] %vm1055, %v1172
      %1237 = vst.msk [vmem:[%s272 + $0x54] sm:$0xf] %vm1055, %v1173
      %1238 = vst.msk [vmem:[%s272 + $0x58] sm:$0xf] %vm1055, %v1174
      %1239 = vst.msk [vmem:[%s272 + $0x5c] sm:$0xf] %vm1055, %v1175
      %1240 = vst.msk [vmem:[%s272 + $0x60] sm:$0xf] %vm1055, %v1176
      %1241 = vst.msk [vmem:[%s272 + $0x64] sm:$0xf] %vm1055, %v1177
      %1242 = vst.msk [vmem:[%s272 + $0x68] sm:$0xf] %vm1055, %v1178
      %1243 = vst.msk [vmem:[%s272 + $0x6c] sm:$0xf] %vm1055, %v1179
      %1244 = vst.msk [vmem:[%s272 + $0x70] sm:$0xf] %vm1055, %v1180
      %1245 = vst.msk [vmem:[%s272 + $0x74] sm:$0xf] %vm1055, %v1181
      %1246 = vst.msk [vmem:[%s272 + $0x78] sm:$0xf] %vm1055, %v1182
      %1247 = vst.msk [vmem:[%s272 + $0x7c] sm:$0xf] %vm1055, %v1183
      %v1248 = vpack.c.bf16 %v804, %v801
      %v1249 = vpack.c.bf16 %v812, %v809
      %v1250 = vpack.c.bf16 %v820, %v817
      %v1251 = vpack.c.bf16 %v828, %v825
      %v1252 = vpack.c.bf16 %v836, %v833
      %v1253 = vpack.c.bf16 %v844, %v841
      %v1254 = vpack.c.bf16 %v852, %v849
      %v1255 = vpack.c.bf16 %v860, %v857
      %v1256 = vpack.c.bf16 %v868, %v865
      %v1257 = vpack.c.bf16 %v876, %v873
      %v1258 = vpack.c.bf16 %v884, %v881
      %v1259 = vpack.c.bf16 %v892, %v889
      %v1260 = vpack.c.bf16 %v900, %v897
      %v1261 = vpack.c.bf16 %v908, %v905
      %v1262 = vpack.c.bf16 %v916, %v913
      %v1263 = vpack.c.bf16 %v924, %v921
      %v1280 = vunpack.c.l.b16 %v1248
      %v1281 = vunpack.c.h.b16 %v1248
      %v1282 = vunpack.c.l.b16 %v1249
      %v1283 = vunpack.c.h.b16 %v1249
      %v1284 = vunpack.c.l.b16 %v1250
      %v1285 = vunpack.c.h.b16 %v1250
      %v1286 = vunpack.c.l.b16 %v1251
      %v1287 = vunpack.c.h.b16 %v1251
      %v1288 = vunpack.c.l.b16 %v1252
      %v1289 = vunpack.c.h.b16 %v1252
      %v1290 = vunpack.c.l.b16 %v1253
      %v1291 = vunpack.c.h.b16 %v1253
      %v1292 = vunpack.c.l.b16 %v1254
      %v1293 = vunpack.c.h.b16 %v1254
      %v1294 = vunpack.c.l.b16 %v1255
      %v1295 = vunpack.c.h.b16 %v1255
      %v1296 = vunpack.c.l.b16 %v1256
      %v1297 = vunpack.c.h.b16 %v1256
      %v1298 = vunpack.c.l.b16 %v1257
      %v1299 = vunpack.c.h.b16 %v1257
      %v1300 = vunpack.c.l.b16 %v1258
      %v1301 = vunpack.c.h.b16 %v1258
      %v1302 = vunpack.c.l.b16 %v1259
      %v1303 = vunpack.c.h.b16 %v1259
      %v1304 = vunpack.c.l.b16 %v1260
      %v1305 = vunpack.c.h.b16 %v1260
      %v1306 = vunpack.c.l.b16 %v1261
      %v1307 = vunpack.c.h.b16 %v1261
      %v1308 = vunpack.c.l.b16 %v1262
      %v1309 = vunpack.c.h.b16 %v1262
      %v1310 = vunpack.c.l.b16 %v1263
      %v1311 = vunpack.c.h.b16 %v1263
      %v1312 = vpack.c.b16 %v1280, %v1280
      %v1313 = vpack.c.b16 %v1281, %v1281
      %v1314 = vpack.c.b16 %v1282, %v1282
      %v1315 = vpack.c.b16 %v1283, %v1283
      %v1316 = vpack.c.b16 %v1284, %v1284
      %v1317 = vpack.c.b16 %v1285, %v1285
      %v1318 = vpack.c.b16 %v1286, %v1286
      %v1319 = vpack.c.b16 %v1287, %v1287
      %v1320 = vpack.c.b16 %v1288, %v1288
      %v1321 = vpack.c.b16 %v1289, %v1289
      %v1322 = vpack.c.b16 %v1290, %v1290
      %v1323 = vpack.c.b16 %v1291, %v1291
      %v1324 = vpack.c.b16 %v1292, %v1292
      %v1325 = vpack.c.b16 %v1293, %v1293
      %v1326 = vpack.c.b16 %v1294, %v1294
      %v1327 = vpack.c.b16 %v1295, %v1295
      %v1328 = vpack.c.b16 %v1296, %v1296
      %v1329 = vpack.c.b16 %v1297, %v1297
      %v1330 = vpack.c.b16 %v1298, %v1298
      %v1331 = vpack.c.b16 %v1299, %v1299
      %v1332 = vpack.c.b16 %v1300, %v1300
      %v1333 = vpack.c.b16 %v1301, %v1301
      %v1334 = vpack.c.b16 %v1302, %v1302
      %v1335 = vpack.c.b16 %v1303, %v1303
      %v1336 = vpack.c.b16 %v1304, %v1304
      %v1337 = vpack.c.b16 %v1305, %v1305
      %v1338 = vpack.c.b16 %v1306, %v1306
      %v1339 = vpack.c.b16 %v1307, %v1307
      %v1340 = vpack.c.b16 %v1308, %v1308
      %v1341 = vpack.c.b16 %v1309, %v1309
      %v1342 = vpack.c.b16 %v1310, %v1310
      %v1343 = vpack.c.b16 %v1311, %v1311
      %1376 = vst.msk [vmem:[%s282] sm:$0xf] %vm1055, %v1312
      %1377 = vst.msk [vmem:[%s282 + $0x4] sm:$0xf] %vm1055, %v1313
      %1378 = vst.msk [vmem:[%s282 + $0x8] sm:$0xf] %vm1055, %v1314
      %1379 = vst.msk [vmem:[%s282 + $0xc] sm:$0xf] %vm1055, %v1315
      %1380 = vst.msk [vmem:[%s282 + $0x10] sm:$0xf] %vm1055, %v1316
      %1381 = vst.msk [vmem:[%s282 + $0x14] sm:$0xf] %vm1055, %v1317
      %1382 = vst.msk [vmem:[%s282 + $0x18] sm:$0xf] %vm1055, %v1318
      %1383 = vst.msk [vmem:[%s282 + $0x1c] sm:$0xf] %vm1055, %v1319
      %1384 = vst.msk [vmem:[%s282 + $0x20] sm:$0xf] %vm1055, %v1320
      %1385 = vst.msk [vmem:[%s282 + $0x24] sm:$0xf] %vm1055, %v1321
      %1386 = vst.msk [vmem:[%s282 + $0x28] sm:$0xf] %vm1055, %v1322
      %1387 = vst.msk [vmem:[%s282 + $0x2c] sm:$0xf] %vm1055, %v1323
      %1388 = vst.msk [vmem:[%s282 + $0x30] sm:$0xf] %vm1055, %v1324
      %1389 = vst.msk [vmem:[%s282 + $0x34] sm:$0xf] %vm1055, %v1325
      %1390 = vst.msk [vmem:[%s282 + $0x38] sm:$0xf] %vm1055, %v1326
      %1391 = vst.msk [vmem:[%s282 + $0x3c] sm:$0xf] %vm1055, %v1327
      %1392 = vst.msk [vmem:[%s282 + $0x40] sm:$0xf] %vm1055, %v1328
      %1393 = vst.msk [vmem:[%s282 + $0x44] sm:$0xf] %vm1055, %v1329
      %1394 = vst.msk [vmem:[%s282 + $0x48] sm:$0xf] %vm1055, %v1330
      %1395 = vst.msk [vmem:[%s282 + $0x4c] sm:$0xf] %vm1055, %v1331
      %1396 = vst.msk [vmem:[%s282 + $0x50] sm:$0xf] %vm1055, %v1332
      %1397 = vst.msk [vmem:[%s282 + $0x54] sm:$0xf] %vm1055, %v1333
      %1398 = vst.msk [vmem:[%s282 + $0x58] sm:$0xf] %vm1055, %v1334
      %1399 = vst.msk [vmem:[%s282 + $0x5c] sm:$0xf] %vm1055, %v1335
      %1400 = vst.msk [vmem:[%s282 + $0x60] sm:$0xf] %vm1055, %v1336
      %1401 = vst.msk [vmem:[%s282 + $0x64] sm:$0xf] %vm1055, %v1337
      %1402 = vst.msk [vmem:[%s282 + $0x68] sm:$0xf] %vm1055, %v1338
      %1403 = vst.msk [vmem:[%s282 + $0x6c] sm:$0xf] %vm1055, %v1339
      %1404 = vst.msk [vmem:[%s282 + $0x70] sm:$0xf] %vm1055, %v1340
      %1405 = vst.msk [vmem:[%s282 + $0x74] sm:$0xf] %vm1055, %v1341
      %1406 = vst.msk [vmem:[%s282 + $0x78] sm:$0xf] %vm1055, %v1342
      %1407 = vst.msk [vmem:[%s282 + $0x7c] sm:$0xf] %vm1055, %v1343
      %1408 = vrot.lane.b32.xlu0 %v991, 96
      %v1409 = vpop.permute.xlu0 %1408
      %1410 = vrot.lane.b32.xlu0 %v992, 96
      %v1411 = vpop.permute.xlu0 %1410
      %1412 = vrot.lane.b32.xlu0 %v993, 96
      %v1413 = vpop.permute.xlu0 %1412
      %1414 = vrot.lane.b32.xlu0 %v994, 96
      %v1415 = vpop.permute.xlu0 %1414
      %1416 = vrot.lane.b32.xlu0 %v995, 96
      %v1417 = vpop.permute.xlu0 %1416
      %1418 = vrot.lane.b32.xlu0 %v996, 96
      %v1419 = vpop.permute.xlu0 %1418
      %1420 = vrot.lane.b32.xlu0 %v997, 96
      %v1421 = vpop.permute.xlu0 %1420
      %1422 = vrot.lane.b32.xlu0 %v998, 96
      %v1423 = vpop.permute.xlu0 %1422
      %1424 = vrot.lane.b32.xlu0 %v999, 96
      %v1425 = vpop.permute.xlu0 %1424
      %1426 = vrot.lane.b32.xlu0 %v1000, 96
      %v1427 = vpop.permute.xlu0 %1426
      %1428 = vrot.lane.b32.xlu0 %v1001, 96
      %v1429 = vpop.permute.xlu0 %1428
      %1430 = vrot.lane.b32.xlu0 %v1002, 96
      %v1431 = vpop.permute.xlu0 %1430
      %1432 = vrot.lane.b32.xlu0 %v1003, 96
      %v1433 = vpop.permute.xlu0 %1432
      %1434 = vrot.lane.b32.xlu0 %v1004, 96
      %v1435 = vpop.permute.xlu0 %1434
      %1436 = vrot.lane.b32.xlu0 %v1005, 96
      %v1437 = vpop.permute.xlu0 %1436
      %1438 = vrot.lane.b32.xlu0 %v1006, 96
      %v1439 = vpop.permute.xlu0 %1438
      %1440 = vrot.lane.b32.xlu0 %v1007, 96
      %v1441 = vpop.permute.xlu0 %1440
      %1442 = vrot.lane.b32.xlu0 %v1008, 96
      %v1443 = vpop.permute.xlu0 %1442
      %1444 = vrot.lane.b32.xlu0 %v1009, 96
      %v1445 = vpop.permute.xlu0 %1444
      %1446 = vrot.lane.b32.xlu0 %v1010, 96
      %v1447 = vpop.permute.xlu0 %1446
      %1448 = vrot.lane.b32.xlu0 %v1011, 96
      %v1449 = vpop.permute.xlu0 %1448
      %1450 = vrot.lane.b32.xlu0 %v1012, 96
      %v1451 = vpop.permute.xlu0 %1450
      %1452 = vrot.lane.b32.xlu0 %v1013, 96
      %v1453 = vpop.permute.xlu0 %1452
      %1454 = vrot.lane.b32.xlu0 %v1014, 96
      %v1455 = vpop.permute.xlu0 %1454
      %1456 = vrot.lane.b32.xlu0 %v1015, 96
      %v1457 = vpop.permute.xlu0 %1456
      %1458 = vrot.lane.b32.xlu0 %v1016, 96
      %v1459 = vpop.permute.xlu0 %1458
      %1460 = vrot.lane.b32.xlu0 %v1017, 96
      %v1461 = vpop.permute.xlu0 %1460
      %1462 = vrot.lane.b32.xlu0 %v1018, 96
      %v1463 = vpop.permute.xlu0 %1462
      %1464 = vrot.lane.b32.xlu0 %v1019, 96
      %v1465 = vpop.permute.xlu0 %1464
      %1466 = vrot.lane.b32.xlu0 %v1020, 96
      %v1467 = vpop.permute.xlu0 %1466
      %1468 = vrot.lane.b32.xlu0 %v1021, 96
      %v1469 = vpop.permute.xlu0 %1468
      %1470 = vrot.lane.b32.xlu0 %v1022, 96
      %v1471 = vpop.permute.xlu0 %1470
      %s1504 = scalar_lea.vmem %s262, 128
      %1505 = vst.msk [vmem:[%s1504] sm:$0xf] %vm1055, %v1409
      %1506 = vst.msk [vmem:[%s1504 + $0x4] sm:$0xf] %vm1055, %v1411
      %1507 = vst.msk [vmem:[%s1504 + $0x8] sm:$0xf] %vm1055, %v1413
      %1508 = vst.msk [vmem:[%s1504 + $0xc] sm:$0xf] %vm1055, %v1415
      %1509 = vst.msk [vmem:[%s1504 + $0x10] sm:$0xf] %vm1055, %v1417
      %1510 = vst.msk [vmem:[%s1504 + $0x14] sm:$0xf] %vm1055, %v1419
      %1511 = vst.msk [vmem:[%s1504 + $0x18] sm:$0xf] %vm1055, %v1421
      %1512 = vst.msk [vmem:[%s1504 + $0x1c] sm:$0xf] %vm1055, %v1423
      %1513 = vst.msk [vmem:[%s1504 + $0x20] sm:$0xf] %vm1055, %v1425
      %1514 = vst.msk [vmem:[%s1504 + $0x24] sm:$0xf] %vm1055, %v1427
      %1515 = vst.msk [vmem:[%s1504 + $0x28] sm:$0xf] %vm1055, %v1429
      %1516 = vst.msk [vmem:[%s1504 + $0x2c] sm:$0xf] %vm1055, %v1431
      %1517 = vst.msk [vmem:[%s1504 + $0x30] sm:$0xf] %vm1055, %v1433
      %1518 = vst.msk [vmem:[%s1504 + $0x34] sm:$0xf] %vm1055, %v1435
      %1519 = vst.msk [vmem:[%s1504 + $0x38] sm:$0xf] %vm1055, %v1437
      %1520 = vst.msk [vmem:[%s1504 + $0x3c] sm:$0xf] %vm1055, %v1439
      %1521 = vst.msk [vmem:[%s1504 + $0x40] sm:$0xf] %vm1055, %v1441
      %1522 = vst.msk [vmem:[%s1504 + $0x44] sm:$0xf] %vm1055, %v1443
      %1523 = vst.msk [vmem:[%s1504 + $0x48] sm:$0xf] %vm1055, %v1445
      %1524 = vst.msk [vmem:[%s1504 + $0x4c] sm:$0xf] %vm1055, %v1447
      %1525 = vst.msk [vmem:[%s1504 + $0x50] sm:$0xf] %vm1055, %v1449
      %1526 = vst.msk [vmem:[%s1504 + $0x54] sm:$0xf] %vm1055, %v1451
      %1527 = vst.msk [vmem:[%s1504 + $0x58] sm:$0xf] %vm1055, %v1453
      %1528 = vst.msk [vmem:[%s1504 + $0x5c] sm:$0xf] %vm1055, %v1455
      %1529 = vst.msk [vmem:[%s1504 + $0x60] sm:$0xf] %vm1055, %v1457
      %1530 = vst.msk [vmem:[%s1504 + $0x64] sm:$0xf] %vm1055, %v1459
      %1531 = vst.msk [vmem:[%s1504 + $0x68] sm:$0xf] %vm1055, %v1461
      %1532 = vst.msk [vmem:[%s1504 + $0x6c] sm:$0xf] %vm1055, %v1463
      %1533 = vst.msk [vmem:[%s1504 + $0x70] sm:$0xf] %vm1055, %v1465
      %1534 = vst.msk [vmem:[%s1504 + $0x74] sm:$0xf] %vm1055, %v1467
      %1535 = vst.msk [vmem:[%s1504 + $0x78] sm:$0xf] %vm1055, %v1469
      %1536 = vst.msk [vmem:[%s1504 + $0x7c] sm:$0xf] %vm1055, %v1471
      %1537 = vrot.lane.b32.xlu0 %v1152, 96
      %v1538 = vpop.permute.xlu0 %1537
      %1539 = vrot.lane.b32.xlu0 %v1153, 96
      %v1540 = vpop.permute.xlu0 %1539
      %1541 = vrot.lane.b32.xlu0 %v1154, 96
      %v1542 = vpop.permute.xlu0 %1541
      %1543 = vrot.lane.b32.xlu0 %v1155, 96
      %v1544 = vpop.permute.xlu0 %1543
      %1545 = vrot.lane.b32.xlu0 %v1156, 96
      %v1546 = vpop.permute.xlu0 %1545
      %1547 = vrot.lane.b32.xlu0 %v1157, 96
      %v1548 = vpop.permute.xlu0 %1547
      %1549 = vrot.lane.b32.xlu0 %v1158, 96
      %v1550 = vpop.permute.xlu0 %1549
      %1551 = vrot.lane.b32.xlu0 %v1159, 96
      %v1552 = vpop.permute.xlu0 %1551
      %1553 = vrot.lane.b32.xlu0 %v1160, 96
      %v1554 = vpop.permute.xlu0 %1553
      %1555 = vrot.lane.b32.xlu0 %v1161, 96
      %v1556 = vpop.permute.xlu0 %1555
      %1557 = vrot.lane.b32.xlu0 %v1162, 96
      %v1558 = vpop.permute.xlu0 %1557
      %1559 = vrot.lane.b32.xlu0 %v1163, 96
      %v1560 = vpop.permute.xlu0 %1559
      %1561 = vrot.lane.b32.xlu0 %v1164, 96
      %v1562 = vpop.permute.xlu0 %1561
      %1563 = vrot.lane.b32.xlu0 %v1165, 96
      %v1564 = vpop.permute.xlu0 %1563
      %1565 = vrot.lane.b32.xlu0 %v1166, 96
      %v1566 = vpop.permute.xlu0 %1565
      %1567 = vrot.lane.b32.xlu0 %v1167, 96
      %v1568 = vpop.permute.xlu0 %1567
      %1569 = vrot.lane.b32.xlu0 %v1168, 96
      %v1570 = vpop.permute.xlu0 %1569
      %1571 = vrot.lane.b32.xlu0 %v1169, 96
      %v1572 = vpop.permute.xlu0 %1571
      %1573 = vrot.lane.b32.xlu0 %v1170, 96
      %v1574 = vpop.permute.xlu0 %1573
      %1575 = vrot.lane.b32.xlu0 %v1171, 96
      %v1576 = vpop.permute.xlu0 %1575
      %1577 = vrot.lane.b32.xlu0 %v1172, 96
      %v1578 = vpop.permute.xlu0 %1577
      %1579 = vrot.lane.b32.xlu0 %v1173, 96
      %v1580 = vpop.permute.xlu0 %1579
      %1581 = vrot.lane.b32.xlu0 %v1174, 96
      %v1582 = vpop.permute.xlu0 %1581
      %1583 = vrot.lane.b32.xlu0 %v1175, 96
      %v1584 = vpop.permute.xlu0 %1583
      %1585 = vrot.lane.b32.xlu0 %v1176, 96
      %v1586 = vpop.permute.xlu0 %1585
      %1587 = vrot.lane.b32.xlu0 %v1177, 96
      %v1588 = vpop.permute.xlu0 %1587
      %1589 = vrot.lane.b32.xlu0 %v1178, 96
      %v1590 = vpop.permute.xlu0 %1589
      %1591 = vrot.lane.b32.xlu0 %v1179, 96
      %v1592 = vpop.permute.xlu0 %1591
      %1593 = vrot.lane.b32.xlu0 %v1180, 96
      %v1594 = vpop.permute.xlu0 %1593
      %1595 = vrot.lane.b32.xlu0 %v1181, 96
      %v1596 = vpop.permute.xlu0 %1595
      %1597 = vrot.lane.b32.xlu0 %v1182, 96
      %v1598 = vpop.permute.xlu0 %1597
      %1599 = vrot.lane.b32.xlu0 %v1183, 96
      %v1600 = vpop.permute.xlu0 %1599
      %s1633 = scalar_lea.vmem %s272, 128
      %1634 = vst.msk [vmem:[%s1633] sm:$0xf] %vm1055, %v1538
      %1635 = vst.msk [vmem:[%s1633 + $0x4] sm:$0xf] %vm1055, %v1540
      %1636 = vst.msk [vmem:[%s1633 + $0x8] sm:$0xf] %vm1055, %v1542
      %1637 = vst.msk [vmem:[%s1633 + $0xc] sm:$0xf] %vm1055, %v1544
      %1638 = vst.msk [vmem:[%s1633 + $0x10] sm:$0xf] %vm1055, %v1546
      %1639 = vst.msk [vmem:[%s1633 + $0x14] sm:$0xf] %vm1055, %v1548
      %1640 = vst.msk [vmem:[%s1633 + $0x18] sm:$0xf] %vm1055, %v1550
      %1641 = vst.msk [vmem:[%s1633 + $0x1c] sm:$0xf] %vm1055, %v1552
      %1642 = vst.msk [vmem:[%s1633 + $0x20] sm:$0xf] %vm1055, %v1554
      %1643 = vst.msk [vmem:[%s1633 + $0x24] sm:$0xf] %vm1055, %v1556
      %1644 = vst.msk [vmem:[%s1633 + $0x28] sm:$0xf] %vm1055, %v1558
      %1645 = vst.msk [vmem:[%s1633 + $0x2c] sm:$0xf] %vm1055, %v1560
      %1646 = vst.msk [vmem:[%s1633 + $0x30] sm:$0xf] %vm1055, %v1562
      %1647 = vst.msk [vmem:[%s1633 + $0x34] sm:$0xf] %vm1055, %v1564
      %1648 = vst.msk [vmem:[%s1633 + $0x38] sm:$0xf] %vm1055, %v1566
      %1649 = vst.msk [vmem:[%s1633 + $0x3c] sm:$0xf] %vm1055, %v1568
      %1650 = vst.msk [vmem:[%s1633 + $0x40] sm:$0xf] %vm1055, %v1570
      %1651 = vst.msk [vmem:[%s1633 + $0x44] sm:$0xf] %vm1055, %v1572
      %1652 = vst.msk [vmem:[%s1633 + $0x48] sm:$0xf] %vm1055, %v1574
      %1653 = vst.msk [vmem:[%s1633 + $0x4c] sm:$0xf] %vm1055, %v1576
      %1654 = vst.msk [vmem:[%s1633 + $0x50] sm:$0xf] %vm1055, %v1578
      %1655 = vst.msk [vmem:[%s1633 + $0x54] sm:$0xf] %vm1055, %v1580
      %1656 = vst.msk [vmem:[%s1633 + $0x58] sm:$0xf] %vm1055, %v1582
      %1657 = vst.msk [vmem:[%s1633 + $0x5c] sm:$0xf] %vm1055, %v1584
      %1658 = vst.msk [vmem:[%s1633 + $0x60] sm:$0xf] %vm1055, %v1586
      %1659 = vst.msk [vmem:[%s1633 + $0x64] sm:$0xf] %vm1055, %v1588
      %1660 = vst.msk [vmem:[%s1633 + $0x68] sm:$0xf] %vm1055, %v1590
      %1661 = vst.msk [vmem:[%s1633 + $0x6c] sm:$0xf] %vm1055, %v1592
      %1662 = vst.msk [vmem:[%s1633 + $0x70] sm:$0xf] %vm1055, %v1594
      %1663 = vst.msk [vmem:[%s1633 + $0x74] sm:$0xf] %vm1055, %v1596
      %1664 = vst.msk [vmem:[%s1633 + $0x78] sm:$0xf] %vm1055, %v1598
      %1665 = vst.msk [vmem:[%s1633 + $0x7c] sm:$0xf] %vm1055, %v1600
      %1666 = vrot.lane.b32.xlu0 %v1312, 96
      %v1667 = vpop.permute.xlu0 %1666
      %1668 = vrot.lane.b32.xlu0 %v1313, 96
      %v1669 = vpop.permute.xlu0 %1668
      %1670 = vrot.lane.b32.xlu0 %v1314, 96
      %v1671 = vpop.permute.xlu0 %1670
      %1672 = vrot.lane.b32.xlu0 %v1315, 96
      %v1673 = vpop.permute.xlu0 %1672
      %1674 = vrot.lane.b32.xlu0 %v1316, 96
      %v1675 = vpop.permute.xlu0 %1674
      %1676 = vrot.lane.b32.xlu0 %v1317, 96
      %v1677 = vpop.permute.xlu0 %1676
      %1678 = vrot.lane.b32.xlu0 %v1318, 96
      %v1679 = vpop.permute.xlu0 %1678
      %1680 = vrot.lane.b32.xlu0 %v1319, 96
      %v1681 = vpop.permute.xlu0 %1680
      %1682 = vrot.lane.b32.xlu0 %v1320, 96
      %v1683 = vpop.permute.xlu0 %1682
      %1684 = vrot.lane.b32.xlu0 %v1321, 96
      %v1685 = vpop.permute.xlu0 %1684
      %1686 = vrot.lane.b32.xlu0 %v1322, 96
      %v1687 = vpop.permute.xlu0 %1686
      %1688 = vrot.lane.b32.xlu0 %v1323, 96
      %v1689 = vpop.permute.xlu0 %1688
      %1690 = vrot.lane.b32.xlu0 %v1324, 96
      %v1691 = vpop.permute.xlu0 %1690
      %1692 = vrot.lane.b32.xlu0 %v1325, 96
      %v1693 = vpop.permute.xlu0 %1692
      %1694 = vrot.lane.b32.xlu0 %v1326, 96
      %v1695 = vpop.permute.xlu0 %1694
      %1696 = vrot.lane.b32.xlu0 %v1327, 96
      %v1697 = vpop.permute.xlu0 %1696
      %1698 = vrot.lane.b32.xlu0 %v1328, 96
      %v1699 = vpop.permute.xlu0 %1698
      %1700 = vrot.lane.b32.xlu0 %v1329, 96
      %v1701 = vpop.permute.xlu0 %1700
      %1702 = vrot.lane.b32.xlu0 %v1330, 96
      %v1703 = vpop.permute.xlu0 %1702
      %1704 = vrot.lane.b32.xlu0 %v1331, 96
      %v1705 = vpop.permute.xlu0 %1704
      %1706 = vrot.lane.b32.xlu0 %v1332, 96
      %v1707 = vpop.permute.xlu0 %1706
      %1708 = vrot.lane.b32.xlu0 %v1333, 96
      %v1709 = vpop.permute.xlu0 %1708
      %1710 = vrot.lane.b32.xlu0 %v1334, 96
      %v1711 = vpop.permute.xlu0 %1710
      %1712 = vrot.lane.b32.xlu0 %v1335, 96
      %v1713 = vpop.permute.xlu0 %1712
      %1714 = vrot.lane.b32.xlu0 %v1336, 96
      %v1715 = vpop.permute.xlu0 %1714
      %1716 = vrot.lane.b32.xlu0 %v1337, 96
      %v1717 = vpop.permute.xlu0 %1716
      %1718 = vrot.lane.b32.xlu0 %v1338, 96
      %v1719 = vpop.permute.xlu0 %1718
      %1720 = vrot.lane.b32.xlu0 %v1339, 96
      %v1721 = vpop.permute.xlu0 %1720
      %1722 = vrot.lane.b32.xlu0 %v1340, 96
      %v1723 = vpop.permute.xlu0 %1722
      %1724 = vrot.lane.b32.xlu0 %v1341, 96
      %v1725 = vpop.permute.xlu0 %1724
      %1726 = vrot.lane.b32.xlu0 %v1342, 96
      %v1727 = vpop.permute.xlu0 %1726
      %1728 = vrot.lane.b32.xlu0 %v1343, 96
      %v1729 = vpop.permute.xlu0 %1728
      %s1762 = scalar_lea.vmem %s282, 128
      %1763 = vst.msk [vmem:[%s1762] sm:$0xf] %vm1055, %v1667
      %1764 = vst.msk [vmem:[%s1762 + $0x4] sm:$0xf] %vm1055, %v1669
      %1765 = vst.msk [vmem:[%s1762 + $0x8] sm:$0xf] %vm1055, %v1671
      %1766 = vst.msk [vmem:[%s1762 + $0xc] sm:$0xf] %vm1055, %v1673
      %1767 = vst.msk [vmem:[%s1762 + $0x10] sm:$0xf] %vm1055, %v1675
      %1768 = vst.msk [vmem:[%s1762 + $0x14] sm:$0xf] %vm1055, %v1677
      %1769 = vst.msk [vmem:[%s1762 + $0x18] sm:$0xf] %vm1055, %v1679
      %1770 = vst.msk [vmem:[%s1762 + $0x1c] sm:$0xf] %vm1055, %v1681
      %1771 = vst.msk [vmem:[%s1762 + $0x20] sm:$0xf] %vm1055, %v1683
      %1772 = vst.msk [vmem:[%s1762 + $0x24] sm:$0xf] %vm1055, %v1685
      %1773 = vst.msk [vmem:[%s1762 + $0x28] sm:$0xf] %vm1055, %v1687
      %1774 = vst.msk [vmem:[%s1762 + $0x2c] sm:$0xf] %vm1055, %v1689
      %1775 = vst.msk [vmem:[%s1762 + $0x30] sm:$0xf] %vm1055, %v1691
      %1776 = vst.msk [vmem:[%s1762 + $0x34] sm:$0xf] %vm1055, %v1693
      %1777 = vst.msk [vmem:[%s1762 + $0x38] sm:$0xf] %vm1055, %v1695
      %1778 = vst.msk [vmem:[%s1762 + $0x3c] sm:$0xf] %vm1055, %v1697
      %1779 = vst.msk [vmem:[%s1762 + $0x40] sm:$0xf] %vm1055, %v1699
      %1780 = vst.msk [vmem:[%s1762 + $0x44] sm:$0xf] %vm1055, %v1701
      %1781 = vst.msk [vmem:[%s1762 + $0x48] sm:$0xf] %vm1055, %v1703
      %1782 = vst.msk [vmem:[%s1762 + $0x4c] sm:$0xf] %vm1055, %v1705
      %1783 = vst.msk [vmem:[%s1762 + $0x50] sm:$0xf] %vm1055, %v1707
      %1784 = vst.msk [vmem:[%s1762 + $0x54] sm:$0xf] %vm1055, %v1709
      %1785 = vst.msk [vmem:[%s1762 + $0x58] sm:$0xf] %vm1055, %v1711
      %1786 = vst.msk [vmem:[%s1762 + $0x5c] sm:$0xf] %vm1055, %v1713
      %1787 = vst.msk [vmem:[%s1762 + $0x60] sm:$0xf] %vm1055, %v1715
      %1788 = vst.msk [vmem:[%s1762 + $0x64] sm:$0xf] %vm1055, %v1717
      %1789 = vst.msk [vmem:[%s1762 + $0x68] sm:$0xf] %vm1055, %v1719
      %1790 = vst.msk [vmem:[%s1762 + $0x6c] sm:$0xf] %vm1055, %v1721
      %1791 = vst.msk [vmem:[%s1762 + $0x70] sm:$0xf] %vm1055, %v1723
      %1792 = vst.msk [vmem:[%s1762 + $0x74] sm:$0xf] %vm1055, %v1725
      %1793 = vst.msk [vmem:[%s1762 + $0x78] sm:$0xf] %vm1055, %v1727
      %1794 = vst.msk [vmem:[%s1762 + $0x7c] sm:$0xf] %vm1055, %v1729
      %1795 = vrot.lane.b32.xlu0 %v991, 64
      %v1796 = vpop.permute.xlu0 %1795
      %1797 = vrot.lane.b32.xlu0 %v992, 64
      %v1798 = vpop.permute.xlu0 %1797
      %1799 = vrot.lane.b32.xlu0 %v993, 64
      %v1800 = vpop.permute.xlu0 %1799
      %1801 = vrot.lane.b32.xlu0 %v994, 64
      %v1802 = vpop.permute.xlu0 %1801
      %1803 = vrot.lane.b32.xlu0 %v995, 64
      %v1804 = vpop.permute.xlu0 %1803
      %1805 = vrot.lane.b32.xlu0 %v996, 64
      %v1806 = vpop.permute.xlu0 %1805
      %1807 = vrot.lane.b32.xlu0 %v997, 64
      %v1808 = vpop.permute.xlu0 %1807
      %1809 = vrot.lane.b32.xlu0 %v998, 64
      %v1810 = vpop.permute.xlu0 %1809
      %1811 = vrot.lane.b32.xlu0 %v999, 64
      %v1812 = vpop.permute.xlu0 %1811
      %1813 = vrot.lane.b32.xlu0 %v1000, 64
      %v1814 = vpop.permute.xlu0 %1813
      %1815 = vrot.lane.b32.xlu0 %v1001, 64
      %v1816 = vpop.permute.xlu0 %1815
      %1817 = vrot.lane.b32.xlu0 %v1002, 64
      %v1818 = vpop.permute.xlu0 %1817
      %1819 = vrot.lane.b32.xlu0 %v1003, 64
      %v1820 = vpop.permute.xlu0 %1819
      %1821 = vrot.lane.b32.xlu0 %v1004, 64
      %v1822 = vpop.permute.xlu0 %1821
      %1823 = vrot.lane.b32.xlu0 %v1005, 64
      %v1824 = vpop.permute.xlu0 %1823
      %1825 = vrot.lane.b32.xlu0 %v1006, 64
      %v1826 = vpop.permute.xlu0 %1825
      %1827 = vrot.lane.b32.xlu0 %v1007, 64
      %v1828 = vpop.permute.xlu0 %1827
      %1829 = vrot.lane.b32.xlu0 %v1008, 64
      %v1830 = vpop.permute.xlu0 %1829
      %1831 = vrot.lane.b32.xlu0 %v1009, 64
      %v1832 = vpop.permute.xlu0 %1831
      %1833 = vrot.lane.b32.xlu0 %v1010, 64
      %v1834 = vpop.permute.xlu0 %1833
      %1835 = vrot.lane.b32.xlu0 %v1011, 64
      %v1836 = vpop.permute.xlu0 %1835
      %1837 = vrot.lane.b32.xlu0 %v1012, 64
      %v1838 = vpop.permute.xlu0 %1837
      %1839 = vrot.lane.b32.xlu0 %v1013, 64
      %v1840 = vpop.permute.xlu0 %1839
      %1841 = vrot.lane.b32.xlu0 %v1014, 64
      %v1842 = vpop.permute.xlu0 %1841
      %1843 = vrot.lane.b32.xlu0 %v1015, 64
      %v1844 = vpop.permute.xlu0 %1843
      %1845 = vrot.lane.b32.xlu0 %v1016, 64
      %v1846 = vpop.permute.xlu0 %1845
      %1847 = vrot.lane.b32.xlu0 %v1017, 64
      %v1848 = vpop.permute.xlu0 %1847
      %1849 = vrot.lane.b32.xlu0 %v1018, 64
      %v1850 = vpop.permute.xlu0 %1849
      %1851 = vrot.lane.b32.xlu0 %v1019, 64
      %v1852 = vpop.permute.xlu0 %1851
      %1853 = vrot.lane.b32.xlu0 %v1020, 64
      %v1854 = vpop.permute.xlu0 %1853
      %1855 = vrot.lane.b32.xlu0 %v1021, 64
      %v1856 = vpop.permute.xlu0 %1855
      %1857 = vrot.lane.b32.xlu0 %v1022, 64
      %v1858 = vpop.permute.xlu0 %1857
      %s1891 = scalar_lea.vmem %s262, 256
      %1892 = vst.msk [vmem:[%s1891] sm:$0xf] %vm1055, %v1796
      %1893 = vst.msk [vmem:[%s1891 + $0x4] sm:$0xf] %vm1055, %v1798
      %1894 = vst.msk [vmem:[%s1891 + $0x8] sm:$0xf] %vm1055, %v1800
      %1895 = vst.msk [vmem:[%s1891 + $0xc] sm:$0xf] %vm1055, %v1802
      %1896 = vst.msk [vmem:[%s1891 + $0x10] sm:$0xf] %vm1055, %v1804
      %1897 = vst.msk [vmem:[%s1891 + $0x14] sm:$0xf] %vm1055, %v1806
      %1898 = vst.msk [vmem:[%s1891 + $0x18] sm:$0xf] %vm1055, %v1808
      %1899 = vst.msk [vmem:[%s1891 + $0x1c] sm:$0xf] %vm1055, %v1810
      %1900 = vst.msk [vmem:[%s1891 + $0x20] sm:$0xf] %vm1055, %v1812
      %1901 = vst.msk [vmem:[%s1891 + $0x24] sm:$0xf] %vm1055, %v1814
      %1902 = vst.msk [vmem:[%s1891 + $0x28] sm:$0xf] %vm1055, %v1816
      %1903 = vst.msk [vmem:[%s1891 + $0x2c] sm:$0xf] %vm1055, %v1818
      %1904 = vst.msk [vmem:[%s1891 + $0x30] sm:$0xf] %vm1055, %v1820
      %1905 = vst.msk [vmem:[%s1891 + $0x34] sm:$0xf] %vm1055, %v1822
      %1906 = vst.msk [vmem:[%s1891 + $0x38] sm:$0xf] %vm1055, %v1824
      %1907 = vst.msk [vmem:[%s1891 + $0x3c] sm:$0xf] %vm1055, %v1826
      %1908 = vst.msk [vmem:[%s1891 + $0x40] sm:$0xf] %vm1055, %v1828
      %1909 = vst.msk [vmem:[%s1891 + $0x44] sm:$0xf] %vm1055, %v1830
      %1910 = vst.msk [vmem:[%s1891 + $0x48] sm:$0xf] %vm1055, %v1832
      %1911 = vst.msk [vmem:[%s1891 + $0x4c] sm:$0xf] %vm1055, %v1834
      %1912 = vst.msk [vmem:[%s1891 + $0x50] sm:$0xf] %vm1055, %v1836
      %1913 = vst.msk [vmem:[%s1891 + $0x54] sm:$0xf] %vm1055, %v1838
      %1914 = vst.msk [vmem:[%s1891 + $0x58] sm:$0xf] %vm1055, %v1840
      %1915 = vst.msk [vmem:[%s1891 + $0x5c] sm:$0xf] %vm1055, %v1842
      %1916 = vst.msk [vmem:[%s1891 + $0x60] sm:$0xf] %vm1055, %v1844
      %1917 = vst.msk [vmem:[%s1891 + $0x64] sm:$0xf] %vm1055, %v1846
      %1918 = vst.msk [vmem:[%s1891 + $0x68] sm:$0xf] %vm1055, %v1848
      %1919 = vst.msk [vmem:[%s1891 + $0x6c] sm:$0xf] %vm1055, %v1850
      %1920 = vst.msk [vmem:[%s1891 + $0x70] sm:$0xf] %vm1055, %v1852
      %1921 = vst.msk [vmem:[%s1891 + $0x74] sm:$0xf] %vm1055, %v1854
      %1922 = vst.msk [vmem:[%s1891 + $0x78] sm:$0xf] %vm1055, %v1856
      %1923 = vst.msk [vmem:[%s1891 + $0x7c] sm:$0xf] %vm1055, %v1858
      %1924 = vrot.lane.b32.xlu0 %v1152, 64
      %v1925 = vpop.permute.xlu0 %1924
      %1926 = vrot.lane.b32.xlu0 %v1153, 64
      %v1927 = vpop.permute.xlu0 %1926
      %1928 = vrot.lane.b32.xlu0 %v1154, 64
      %v1929 = vpop.permute.xlu0 %1928
      %1930 = vrot.lane.b32.xlu0 %v1155, 64
      %v1931 = vpop.permute.xlu0 %1930
      %1932 = vrot.lane.b32.xlu0 %v1156, 64
      %v1933 = vpop.permute.xlu0 %1932
      %1934 = vrot.lane.b32.xlu0 %v1157, 64
      %v1935 = vpop.permute.xlu0 %1934
      %1936 = vrot.lane.b32.xlu0 %v1158, 64
      %v1937 = vpop.permute.xlu0 %1936
      %1938 = vrot.lane.b32.xlu0 %v1159, 64
      %v1939 = vpop.permute.xlu0 %1938
      %1940 = vrot.lane.b32.xlu0 %v1160, 64
      %v1941 = vpop.permute.xlu0 %1940
      %1942 = vrot.lane.b32.xlu0 %v1161, 64
      %v1943 = vpop.permute.xlu0 %1942
      %1944 = vrot.lane.b32.xlu0 %v1162, 64
      %v1945 = vpop.permute.xlu0 %1944
      %1946 = vrot.lane.b32.xlu0 %v1163, 64
      %v1947 = vpop.permute.xlu0 %1946
      %1948 = vrot.lane.b32.xlu0 %v1164, 64
      %v1949 = vpop.permute.xlu0 %1948
      %1950 = vrot.lane.b32.xlu0 %v1165, 64
      %v1951 = vpop.permute.xlu0 %1950
      %1952 = vrot.lane.b32.xlu0 %v1166, 64
      %v1953 = vpop.permute.xlu0 %1952
      %1954 = vrot.lane.b32.xlu0 %v1167, 64
      %v1955 = vpop.permute.xlu0 %1954
      %1956 = vrot.lane.b32.xlu0 %v1168, 64
      %v1957 = vpop.permute.xlu0 %1956
      %1958 = vrot.lane.b32.xlu0 %v1169, 64
      %v1959 = vpop.permute.xlu0 %1958
      %1960 = vrot.lane.b32.xlu0 %v1170, 64
      %v1961 = vpop.permute.xlu0 %1960
      %1962 = vrot.lane.b32.xlu0 %v1171, 64
      %v1963 = vpop.permute.xlu0 %1962
      %1964 = vrot.lane.b32.xlu0 %v1172, 64
      %v1965 = vpop.permute.xlu0 %1964
      %1966 = vrot.lane.b32.xlu0 %v1173, 64
      %v1967 = vpop.permute.xlu0 %1966
      %1968 = vrot.lane.b32.xlu0 %v1174, 64
      %v1969 = vpop.permute.xlu0 %1968
      %1970 = vrot.lane.b32.xlu0 %v1175, 64
      %v1971 = vpop.permute.xlu0 %1970
      %1972 = vrot.lane.b32.xlu0 %v1176, 64
      %v1973 = vpop.permute.xlu0 %1972
      %1974 = vrot.lane.b32.xlu0 %v1177, 64
      %v1975 = vpop.permute.xlu0 %1974
      %1976 = vrot.lane.b32.xlu0 %v1178, 64
      %v1977 = vpop.permute.xlu0 %1976
      %1978 = vrot.lane.b32.xlu0 %v1179, 64
      %v1979 = vpop.permute.xlu0 %1978
      %1980 = vrot.lane.b32.xlu0 %v1180, 64
      %v1981 = vpop.permute.xlu0 %1980
      %1982 = vrot.lane.b32.xlu0 %v1181, 64
      %v1983 = vpop.permute.xlu0 %1982
      %1984 = vrot.lane.b32.xlu0 %v1182, 64
      %v1985 = vpop.permute.xlu0 %1984
      %1986 = vrot.lane.b32.xlu0 %v1183, 64
      %v1987 = vpop.permute.xlu0 %1986
      %s2020 = scalar_lea.vmem %s272, 256
      %2021 = vst.msk [vmem:[%s2020] sm:$0xf] %vm1055, %v1925
      %2022 = vst.msk [vmem:[%s2020 + $0x4] sm:$0xf] %vm1055, %v1927
      %2023 = vst.msk [vmem:[%s2020 + $0x8] sm:$0xf] %vm1055, %v1929
      %2024 = vst.msk [vmem:[%s2020 + $0xc] sm:$0xf] %vm1055, %v1931
      %2025 = vst.msk [vmem:[%s2020 + $0x10] sm:$0xf] %vm1055, %v1933
      %2026 = vst.msk [vmem:[%s2020 + $0x14] sm:$0xf] %vm1055, %v1935
      %2027 = vst.msk [vmem:[%s2020 + $0x18] sm:$0xf] %vm1055, %v1937
      %2028 = vst.msk [vmem:[%s2020 + $0x1c] sm:$0xf] %vm1055, %v1939
      %2029 = vst.msk [vmem:[%s2020 + $0x20] sm:$0xf] %vm1055, %v1941
      %2030 = vst.msk [vmem:[%s2020 + $0x24] sm:$0xf] %vm1055, %v1943
      %2031 = vst.msk [vmem:[%s2020 + $0x28] sm:$0xf] %vm1055, %v1945
      %2032 = vst.msk [vmem:[%s2020 + $0x2c] sm:$0xf] %vm1055, %v1947
      %2033 = vst.msk [vmem:[%s2020 + $0x30] sm:$0xf] %vm1055, %v1949
      %2034 = vst.msk [vmem:[%s2020 + $0x34] sm:$0xf] %vm1055, %v1951
      %2035 = vst.msk [vmem:[%s2020 + $0x38] sm:$0xf] %vm1055, %v1953
      %2036 = vst.msk [vmem:[%s2020 + $0x3c] sm:$0xf] %vm1055, %v1955
      %2037 = vst.msk [vmem:[%s2020 + $0x40] sm:$0xf] %vm1055, %v1957
      %2038 = vst.msk [vmem:[%s2020 + $0x44] sm:$0xf] %vm1055, %v1959
      %2039 = vst.msk [vmem:[%s2020 + $0x48] sm:$0xf] %vm1055, %v1961
      %2040 = vst.msk [vmem:[%s2020 + $0x4c] sm:$0xf] %vm1055, %v1963
      %2041 = vst.msk [vmem:[%s2020 + $0x50] sm:$0xf] %vm1055, %v1965
      %2042 = vst.msk [vmem:[%s2020 + $0x54] sm:$0xf] %vm1055, %v1967
      %2043 = vst.msk [vmem:[%s2020 + $0x58] sm:$0xf] %vm1055, %v1969
      %2044 = vst.msk [vmem:[%s2020 + $0x5c] sm:$0xf] %vm1055, %v1971
      %2045 = vst.msk [vmem:[%s2020 + $0x60] sm:$0xf] %vm1055, %v1973
      %2046 = vst.msk [vmem:[%s2020 + $0x64] sm:$0xf] %vm1055, %v1975
      %2047 = vst.msk [vmem:[%s2020 + $0x68] sm:$0xf] %vm1055, %v1977
      %2048 = vst.msk [vmem:[%s2020 + $0x6c] sm:$0xf] %vm1055, %v1979
      %2049 = vst.msk [vmem:[%s2020 + $0x70] sm:$0xf] %vm1055, %v1981
      %2050 = vst.msk [vmem:[%s2020 + $0x74] sm:$0xf] %vm1055, %v1983
      %2051 = vst.msk [vmem:[%s2020 + $0x78] sm:$0xf] %vm1055, %v1985
      %2052 = vst.msk [vmem:[%s2020 + $0x7c] sm:$0xf] %vm1055, %v1987
      %2053 = vrot.lane.b32.xlu0 %v1312, 64
      %v2054 = vpop.permute.xlu0 %2053
      %2055 = vrot.lane.b32.xlu0 %v1313, 64
      %v2056 = vpop.permute.xlu0 %2055
      %2057 = vrot.lane.b32.xlu0 %v1314, 64
      %v2058 = vpop.permute.xlu0 %2057
      %2059 = vrot.lane.b32.xlu0 %v1315, 64
      %v2060 = vpop.permute.xlu0 %2059
      %2061 = vrot.lane.b32.xlu0 %v1316, 64
      %v2062 = vpop.permute.xlu0 %2061
      %2063 = vrot.lane.b32.xlu0 %v1317, 64
      %v2064 = vpop.permute.xlu0 %2063
      %2065 = vrot.lane.b32.xlu0 %v1318, 64
      %v2066 = vpop.permute.xlu0 %2065
      %2067 = vrot.lane.b32.xlu0 %v1319, 64
      %v2068 = vpop.permute.xlu0 %2067
      %2069 = vrot.lane.b32.xlu0 %v1320, 64
      %v2070 = vpop.permute.xlu0 %2069
      %2071 = vrot.lane.b32.xlu0 %v1321, 64
      %v2072 = vpop.permute.xlu0 %2071
      %2073 = vrot.lane.b32.xlu0 %v1322, 64
      %v2074 = vpop.permute.xlu0 %2073
      %2075 = vrot.lane.b32.xlu0 %v1323, 64
      %v2076 = vpop.permute.xlu0 %2075
      %2077 = vrot.lane.b32.xlu0 %v1324, 64
      %v2078 = vpop.permute.xlu0 %2077
      %2079 = vrot.lane.b32.xlu0 %v1325, 64
      %v2080 = vpop.permute.xlu0 %2079
      %2081 = vrot.lane.b32.xlu0 %v1326, 64
      %v2082 = vpop.permute.xlu0 %2081
      %2083 = vrot.lane.b32.xlu0 %v1327, 64
      %v2084 = vpop.permute.xlu0 %2083
      %2085 = vrot.lane.b32.xlu0 %v1328, 64
      %v2086 = vpop.permute.xlu0 %2085
      %2087 = vrot.lane.b32.xlu0 %v1329, 64
      %v2088 = vpop.permute.xlu0 %2087
      %2089 = vrot.lane.b32.xlu0 %v1330, 64
      %v2090 = vpop.permute.xlu0 %2089
      %2091 = vrot.lane.b32.xlu0 %v1331, 64
      %v2092 = vpop.permute.xlu0 %2091
      %2093 = vrot.lane.b32.xlu0 %v1332, 64
      %v2094 = vpop.permute.xlu0 %2093
      %2095 = vrot.lane.b32.xlu0 %v1333, 64
      %v2096 = vpop.permute.xlu0 %2095
      %2097 = vrot.lane.b32.xlu0 %v1334, 64
      %v2098 = vpop.permute.xlu0 %2097
      %2099 = vrot.lane.b32.xlu0 %v1335, 64
      %v2100 = vpop.permute.xlu0 %2099
      %2101 = vrot.lane.b32.xlu0 %v1336, 64
      %v2102 = vpop.permute.xlu0 %2101
      %2103 = vrot.lane.b32.xlu0 %v1337, 64
      %v2104 = vpop.permute.xlu0 %2103
      %2105 = vrot.lane.b32.xlu0 %v1338, 64
      %v2106 = vpop.permute.xlu0 %2105
      %2107 = vrot.lane.b32.xlu0 %v1339, 64
      %v2108 = vpop.permute.xlu0 %2107
      %2109 = vrot.lane.b32.xlu0 %v1340, 64
      %v2110 = vpop.permute.xlu0 %2109
      %2111 = vrot.lane.b32.xlu0 %v1341, 64
      %v2112 = vpop.permute.xlu0 %2111
      %2113 = vrot.lane.b32.xlu0 %v1342, 64
      %v2114 = vpop.permute.xlu0 %2113
      %2115 = vrot.lane.b32.xlu0 %v1343, 64
      %v2116 = vpop.permute.xlu0 %2115
      %s2149 = scalar_lea.vmem %s282, 256
      %2150 = vst.msk [vmem:[%s2149] sm:$0xf] %vm1055, %v2054
      %2151 = vst.msk [vmem:[%s2149 + $0x4] sm:$0xf] %vm1055, %v2056
      %2152 = vst.msk [vmem:[%s2149 + $0x8] sm:$0xf] %vm1055, %v2058
      %2153 = vst.msk [vmem:[%s2149 + $0xc] sm:$0xf] %vm1055, %v2060
      %2154 = vst.msk [vmem:[%s2149 + $0x10] sm:$0xf] %vm1055, %v2062
      %2155 = vst.msk [vmem:[%s2149 + $0x14] sm:$0xf] %vm1055, %v2064
      %2156 = vst.msk [vmem:[%s2149 + $0x18] sm:$0xf] %vm1055, %v2066
      %2157 = vst.msk [vmem:[%s2149 + $0x1c] sm:$0xf] %vm1055, %v2068
      %2158 = vst.msk [vmem:[%s2149 + $0x20] sm:$0xf] %vm1055, %v2070
      %2159 = vst.msk [vmem:[%s2149 + $0x24] sm:$0xf] %vm1055, %v2072
      %2160 = vst.msk [vmem:[%s2149 + $0x28] sm:$0xf] %vm1055, %v2074
      %2161 = vst.msk [vmem:[%s2149 + $0x2c] sm:$0xf] %vm1055, %v2076
      %2162 = vst.msk [vmem:[%s2149 + $0x30] sm:$0xf] %vm1055, %v2078
      %2163 = vst.msk [vmem:[%s2149 + $0x34] sm:$0xf] %vm1055, %v2080
      %2164 = vst.msk [vmem:[%s2149 + $0x38] sm:$0xf] %vm1055, %v2082
      %2165 = vst.msk [vmem:[%s2149 + $0x3c] sm:$0xf] %vm1055, %v2084
      %2166 = vst.msk [vmem:[%s2149 + $0x40] sm:$0xf] %vm1055, %v2086
      %2167 = vst.msk [vmem:[%s2149 + $0x44] sm:$0xf] %vm1055, %v2088
      %2168 = vst.msk [vmem:[%s2149 + $0x48] sm:$0xf] %vm1055, %v2090
      %2169 = vst.msk [vmem:[%s2149 + $0x4c] sm:$0xf] %vm1055, %v2092
      %2170 = vst.msk [vmem:[%s2149 + $0x50] sm:$0xf] %vm1055, %v2094
      %2171 = vst.msk [vmem:[%s2149 + $0x54] sm:$0xf] %vm1055, %v2096
      %2172 = vst.msk [vmem:[%s2149 + $0x58] sm:$0xf] %vm1055, %v2098
      %2173 = vst.msk [vmem:[%s2149 + $0x5c] sm:$0xf] %vm1055, %v2100
      %2174 = vst.msk [vmem:[%s2149 + $0x60] sm:$0xf] %vm1055, %v2102
      %2175 = vst.msk [vmem:[%s2149 + $0x64] sm:$0xf] %vm1055, %v2104
      %2176 = vst.msk [vmem:[%s2149 + $0x68] sm:$0xf] %vm1055, %v2106
      %2177 = vst.msk [vmem:[%s2149 + $0x6c] sm:$0xf] %vm1055, %v2108
      %2178 = vst.msk [vmem:[%s2149 + $0x70] sm:$0xf] %vm1055, %v2110
      %2179 = vst.msk [vmem:[%s2149 + $0x74] sm:$0xf] %vm1055, %v2112
      %2180 = vst.msk [vmem:[%s2149 + $0x78] sm:$0xf] %vm1055, %v2114
      %2181 = vst.msk [vmem:[%s2149 + $0x7c] sm:$0xf] %vm1055, %v2116
      %2182 = vrot.lane.b32.xlu0 %v991, 32
      %v2183 = vpop.permute.xlu0 %2182
      %2184 = vrot.lane.b32.xlu0 %v992, 32
      %v2185 = vpop.permute.xlu0 %2184
      %2186 = vrot.lane.b32.xlu0 %v993, 32
      %v2187 = vpop.permute.xlu0 %2186
      %2188 = vrot.lane.b32.xlu0 %v994, 32
      %v2189 = vpop.permute.xlu0 %2188
      %2190 = vrot.lane.b32.xlu0 %v995, 32
      %v2191 = vpop.permute.xlu0 %2190
      %2192 = vrot.lane.b32.xlu0 %v996, 32
      %v2193 = vpop.permute.xlu0 %2192
      %2194 = vrot.lane.b32.xlu0 %v997, 32
      %v2195 = vpop.permute.xlu0 %2194
      %2196 = vrot.lane.b32.xlu0 %v998, 32
      %v2197 = vpop.permute.xlu0 %2196
      %2198 = vrot.lane.b32.xlu0 %v999, 32
      %v2199 = vpop.permute.xlu0 %2198
      %2200 = vrot.lane.b32.xlu0 %v1000, 32
      %v2201 = vpop.permute.xlu0 %2200
      %2202 = vrot.lane.b32.xlu0 %v1001, 32
      %v2203 = vpop.permute.xlu0 %2202
      %2204 = vrot.lane.b32.xlu0 %v1002, 32
      %v2205 = vpop.permute.xlu0 %2204
      %2206 = vrot.lane.b32.xlu0 %v1003, 32
      %v2207 = vpop.permute.xlu0 %2206
      %2208 = vrot.lane.b32.xlu0 %v1004, 32
      %v2209 = vpop.permute.xlu0 %2208
      %2210 = vrot.lane.b32.xlu0 %v1005, 32
      %v2211 = vpop.permute.xlu0 %2210
      %2212 = vrot.lane.b32.xlu0 %v1006, 32
      %v2213 = vpop.permute.xlu0 %2212
      %2214 = vrot.lane.b32.xlu0 %v1007, 32
      %v2215 = vpop.permute.xlu0 %2214
      %2216 = vrot.lane.b32.xlu0 %v1008, 32
      %v2217 = vpop.permute.xlu0 %2216
      %2218 = vrot.lane.b32.xlu0 %v1009, 32
      %v2219 = vpop.permute.xlu0 %2218
      %2220 = vrot.lane.b32.xlu0 %v1010, 32
      %v2221 = vpop.permute.xlu0 %2220
      %2222 = vrot.lane.b32.xlu0 %v1011, 32
      %v2223 = vpop.permute.xlu0 %2222
      %2224 = vrot.lane.b32.xlu0 %v1012, 32
      %v2225 = vpop.permute.xlu0 %2224
      %2226 = vrot.lane.b32.xlu0 %v1013, 32
      %v2227 = vpop.permute.xlu0 %2226
      %2228 = vrot.lane.b32.xlu0 %v1014, 32
      %v2229 = vpop.permute.xlu0 %2228
      %2230 = vrot.lane.b32.xlu0 %v1015, 32
      %v2231 = vpop.permute.xlu0 %2230
      %2232 = vrot.lane.b32.xlu0 %v1016, 32
      %v2233 = vpop.permute.xlu0 %2232
      %2234 = vrot.lane.b32.xlu0 %v1017, 32
      %v2235 = vpop.permute.xlu0 %2234
      %2236 = vrot.lane.b32.xlu0 %v1018, 32
      %v2237 = vpop.permute.xlu0 %2236
      %2238 = vrot.lane.b32.xlu0 %v1019, 32
      %v2239 = vpop.permute.xlu0 %2238
      %2240 = vrot.lane.b32.xlu0 %v1020, 32
      %v2241 = vpop.permute.xlu0 %2240
      %2242 = vrot.lane.b32.xlu0 %v1021, 32
      %v2243 = vpop.permute.xlu0 %2242
      %2244 = vrot.lane.b32.xlu0 %v1022, 32
      %v2245 = vpop.permute.xlu0 %2244
      %s2278 = scalar_lea.vmem %s262, 384
      %2279 = vst.msk [vmem:[%s2278] sm:$0xf] %vm1055, %v2183
      %2280 = vst.msk [vmem:[%s2278 + $0x4] sm:$0xf] %vm1055, %v2185
      %2281 = vst.msk [vmem:[%s2278 + $0x8] sm:$0xf] %vm1055, %v2187
      %2282 = vst.msk [vmem:[%s2278 + $0xc] sm:$0xf] %vm1055, %v2189
      %2283 = vst.msk [vmem:[%s2278 + $0x10] sm:$0xf] %vm1055, %v2191
      %2284 = vst.msk [vmem:[%s2278 + $0x14] sm:$0xf] %vm1055, %v2193
      %2285 = vst.msk [vmem:[%s2278 + $0x18] sm:$0xf] %vm1055, %v2195
      %2286 = vst.msk [vmem:[%s2278 + $0x1c] sm:$0xf] %vm1055, %v2197
      %2287 = vst.msk [vmem:[%s2278 + $0x20] sm:$0xf] %vm1055, %v2199
      %2288 = vst.msk [vmem:[%s2278 + $0x24] sm:$0xf] %vm1055, %v2201
      %2289 = vst.msk [vmem:[%s2278 + $0x28] sm:$0xf] %vm1055, %v2203
      %2290 = vst.msk [vmem:[%s2278 + $0x2c] sm:$0xf] %vm1055, %v2205
      %2291 = vst.msk [vmem:[%s2278 + $0x30] sm:$0xf] %vm1055, %v2207
      %2292 = vst.msk [vmem:[%s2278 + $0x34] sm:$0xf] %vm1055, %v2209
      %2293 = vst.msk [vmem:[%s2278 + $0x38] sm:$0xf] %vm1055, %v2211
      %2294 = vst.msk [vmem:[%s2278 + $0x3c] sm:$0xf] %vm1055, %v2213
      %2295 = vst.msk [vmem:[%s2278 + $0x40] sm:$0xf] %vm1055, %v2215
      %2296 = vst.msk [vmem:[%s2278 + $0x44] sm:$0xf] %vm1055, %v2217
      %2297 = vst.msk [vmem:[%s2278 + $0x48] sm:$0xf] %vm1055, %v2219
      %2298 = vst.msk [vmem:[%s2278 + $0x4c] sm:$0xf] %vm1055, %v2221
      %2299 = vst.msk [vmem:[%s2278 + $0x50] sm:$0xf] %vm1055, %v2223
      %2300 = vst.msk [vmem:[%s2278 + $0x54] sm:$0xf] %vm1055, %v2225
      %2301 = vst.msk [vmem:[%s2278 + $0x58] sm:$0xf] %vm1055, %v2227
      %2302 = vst.msk [vmem:[%s2278 + $0x5c] sm:$0xf] %vm1055, %v2229
      %2303 = vst.msk [vmem:[%s2278 + $0x60] sm:$0xf] %vm1055, %v2231
      %2304 = vst.msk [vmem:[%s2278 + $0x64] sm:$0xf] %vm1055, %v2233
      %2305 = vst.msk [vmem:[%s2278 + $0x68] sm:$0xf] %vm1055, %v2235
      %2306 = vst.msk [vmem:[%s2278 + $0x6c] sm:$0xf] %vm1055, %v2237
      %2307 = vst.msk [vmem:[%s2278 + $0x70] sm:$0xf] %vm1055, %v2239
      %2308 = vst.msk [vmem:[%s2278 + $0x74] sm:$0xf] %vm1055, %v2241
      %2309 = vst.msk [vmem:[%s2278 + $0x78] sm:$0xf] %vm1055, %v2243
      %2310 = vst.msk [vmem:[%s2278 + $0x7c] sm:$0xf] %vm1055, %v2245
      %2311 = vrot.lane.b32.xlu0 %v1152, 32
      %v2312 = vpop.permute.xlu0 %2311
      %2313 = vrot.lane.b32.xlu0 %v1153, 32
      %v2314 = vpop.permute.xlu0 %2313
      %2315 = vrot.lane.b32.xlu0 %v1154, 32
      %v2316 = vpop.permute.xlu0 %2315
      %2317 = vrot.lane.b32.xlu0 %v1155, 32
      %v2318 = vpop.permute.xlu0 %2317
      %2319 = vrot.lane.b32.xlu0 %v1156, 32
      %v2320 = vpop.permute.xlu0 %2319
      %2321 = vrot.lane.b32.xlu0 %v1157, 32
      %v2322 = vpop.permute.xlu0 %2321
      %2323 = vrot.lane.b32.xlu0 %v1158, 32
      %v2324 = vpop.permute.xlu0 %2323
      %2325 = vrot.lane.b32.xlu0 %v1159, 32
      %v2326 = vpop.permute.xlu0 %2325
      %2327 = vrot.lane.b32.xlu0 %v1160, 32
      %v2328 = vpop.permute.xlu0 %2327
      %2329 = vrot.lane.b32.xlu0 %v1161, 32
      %v2330 = vpop.permute.xlu0 %2329
      %2331 = vrot.lane.b32.xlu0 %v1162, 32
      %v2332 = vpop.permute.xlu0 %2331
      %2333 = vrot.lane.b32.xlu0 %v1163, 32
      %v2334 = vpop.permute.xlu0 %2333
      %2335 = vrot.lane.b32.xlu0 %v1164, 32
      %v2336 = vpop.permute.xlu0 %2335
      %2337 = vrot.lane.b32.xlu0 %v1165, 32
      %v2338 = vpop.permute.xlu0 %2337
      %2339 = vrot.lane.b32.xlu0 %v1166, 32
      %v2340 = vpop.permute.xlu0 %2339
      %2341 = vrot.lane.b32.xlu0 %v1167, 32
      %v2342 = vpop.permute.xlu0 %2341
      %2343 = vrot.lane.b32.xlu0 %v1168, 32
      %v2344 = vpop.permute.xlu0 %2343
      %2345 = vrot.lane.b32.xlu0 %v1169, 32
      %v2346 = vpop.permute.xlu0 %2345
      %2347 = vrot.lane.b32.xlu0 %v1170, 32
      %v2348 = vpop.permute.xlu0 %2347
      %2349 = vrot.lane.b32.xlu0 %v1171, 32
      %v2350 = vpop.permute.xlu0 %2349
      %2351 = vrot.lane.b32.xlu0 %v1172, 32
      %v2352 = vpop.permute.xlu0 %2351
      %2353 = vrot.lane.b32.xlu0 %v1173, 32
      %v2354 = vpop.permute.xlu0 %2353
      %2355 = vrot.lane.b32.xlu0 %v1174, 32
      %v2356 = vpop.permute.xlu0 %2355
      %2357 = vrot.lane.b32.xlu0 %v1175, 32
      %v2358 = vpop.permute.xlu0 %2357
      %2359 = vrot.lane.b32.xlu0 %v1176, 32
      %v2360 = vpop.permute.xlu0 %2359
      %2361 = vrot.lane.b32.xlu0 %v1177, 32
      %v2362 = vpop.permute.xlu0 %2361
      %2363 = vrot.lane.b32.xlu0 %v1178, 32
      %v2364 = vpop.permute.xlu0 %2363
      %2365 = vrot.lane.b32.xlu0 %v1179, 32
      %v2366 = vpop.permute.xlu0 %2365
      %2367 = vrot.lane.b32.xlu0 %v1180, 32
      %v2368 = vpop.permute.xlu0 %2367
      %2369 = vrot.lane.b32.xlu0 %v1181, 32
      %v2370 = vpop.permute.xlu0 %2369
      %2371 = vrot.lane.b32.xlu0 %v1182, 32
      %v2372 = vpop.permute.xlu0 %2371
      %2373 = vrot.lane.b32.xlu0 %v1183, 32
      %v2374 = vpop.permute.xlu0 %2373
      %s2407 = scalar_lea.vmem %s272, 384
      %2408 = vst.msk [vmem:[%s2407] sm:$0xf] %vm1055, %v2312
      %2409 = vst.msk [vmem:[%s2407 + $0x4] sm:$0xf] %vm1055, %v2314
      %2410 = vst.msk [vmem:[%s2407 + $0x8] sm:$0xf] %vm1055, %v2316
      %2411 = vst.msk [vmem:[%s2407 + $0xc] sm:$0xf] %vm1055, %v2318
      %2412 = vst.msk [vmem:[%s2407 + $0x10] sm:$0xf] %vm1055, %v2320
      %2413 = vst.msk [vmem:[%s2407 + $0x14] sm:$0xf] %vm1055, %v2322
      %2414 = vst.msk [vmem:[%s2407 + $0x18] sm:$0xf] %vm1055, %v2324
      %2415 = vst.msk [vmem:[%s2407 + $0x1c] sm:$0xf] %vm1055, %v2326
      %2416 = vst.msk [vmem:[%s2407 + $0x20] sm:$0xf] %vm1055, %v2328
      %2417 = vst.msk [vmem:[%s2407 + $0x24] sm:$0xf] %vm1055, %v2330
      %2418 = vst.msk [vmem:[%s2407 + $0x28] sm:$0xf] %vm1055, %v2332
      %2419 = vst.msk [vmem:[%s2407 + $0x2c] sm:$0xf] %vm1055, %v2334
      %2420 = vst.msk [vmem:[%s2407 + $0x30] sm:$0xf] %vm1055, %v2336
      %2421 = vst.msk [vmem:[%s2407 + $0x34] sm:$0xf] %vm1055, %v2338
      %2422 = vst.msk [vmem:[%s2407 + $0x38] sm:$0xf] %vm1055, %v2340
      %2423 = vst.msk [vmem:[%s2407 + $0x3c] sm:$0xf] %vm1055, %v2342
      %2424 = vst.msk [vmem:[%s2407 + $0x40] sm:$0xf] %vm1055, %v2344
      %2425 = vst.msk [vmem:[%s2407 + $0x44] sm:$0xf] %vm1055, %v2346
      %2426 = vst.msk [vmem:[%s2407 + $0x48] sm:$0xf] %vm1055, %v2348
      %2427 = vst.msk [vmem:[%s2407 + $0x4c] sm:$0xf] %vm1055, %v2350
      %2428 = vst.msk [vmem:[%s2407 + $0x50] sm:$0xf] %vm1055, %v2352
      %2429 = vst.msk [vmem:[%s2407 + $0x54] sm:$0xf] %vm1055, %v2354
      %2430 = vst.msk [vmem:[%s2407 + $0x58] sm:$0xf] %vm1055, %v2356
      %2431 = vst.msk [vmem:[%s2407 + $0x5c] sm:$0xf] %vm1055, %v2358
      %2432 = vst.msk [vmem:[%s2407 + $0x60] sm:$0xf] %vm1055, %v2360
      %2433 = vst.msk [vmem:[%s2407 + $0x64] sm:$0xf] %vm1055, %v2362
      %2434 = vst.msk [vmem:[%s2407 + $0x68] sm:$0xf] %vm1055, %v2364
      %2435 = vst.msk [vmem:[%s2407 + $0x6c] sm:$0xf] %vm1055, %v2366
      %2436 = vst.msk [vmem:[%s2407 + $0x70] sm:$0xf] %vm1055, %v2368
      %2437 = vst.msk [vmem:[%s2407 + $0x74] sm:$0xf] %vm1055, %v2370
      %2438 = vst.msk [vmem:[%s2407 + $0x78] sm:$0xf] %vm1055, %v2372
      %2439 = vst.msk [vmem:[%s2407 + $0x7c] sm:$0xf] %vm1055, %v2374
      %2440 = vrot.lane.b32.xlu0 %v1312, 32
      %v2441 = vpop.permute.xlu0 %2440
      %2442 = vrot.lane.b32.xlu0 %v1313, 32
      %v2443 = vpop.permute.xlu0 %2442
      %2444 = vrot.lane.b32.xlu0 %v1314, 32
      %v2445 = vpop.permute.xlu0 %2444
      %2446 = vrot.lane.b32.xlu0 %v1315, 32
      %v2447 = vpop.permute.xlu0 %2446
      %2448 = vrot.lane.b32.xlu0 %v1316, 32
      %v2449 = vpop.permute.xlu0 %2448
      %2450 = vrot.lane.b32.xlu0 %v1317, 32
      %v2451 = vpop.permute.xlu0 %2450
      %2452 = vrot.lane.b32.xlu0 %v1318, 32
      %v2453 = vpop.permute.xlu0 %2452
      %2454 = vrot.lane.b32.xlu0 %v1319, 32
      %v2455 = vpop.permute.xlu0 %2454
      %2456 = vrot.lane.b32.xlu0 %v1320, 32
      %v2457 = vpop.permute.xlu0 %2456
      %2458 = vrot.lane.b32.xlu0 %v1321, 32
      %v2459 = vpop.permute.xlu0 %2458
      %2460 = vrot.lane.b32.xlu0 %v1322, 32
      %v2461 = vpop.permute.xlu0 %2460
      %2462 = vrot.lane.b32.xlu0 %v1323, 32
      %v2463 = vpop.permute.xlu0 %2462
      %2464 = vrot.lane.b32.xlu0 %v1324, 32
      %v2465 = vpop.permute.xlu0 %2464
      %2466 = vrot.lane.b32.xlu0 %v1325, 32
      %v2467 = vpop.permute.xlu0 %2466
      %2468 = vrot.lane.b32.xlu0 %v1326, 32
      %v2469 = vpop.permute.xlu0 %2468
      %2470 = vrot.lane.b32.xlu0 %v1327, 32
      %v2471 = vpop.permute.xlu0 %2470
      %2472 = vrot.lane.b32.xlu0 %v1328, 32
      %v2473 = vpop.permute.xlu0 %2472
      %2474 = vrot.lane.b32.xlu0 %v1329, 32
      %v2475 = vpop.permute.xlu0 %2474
      %2476 = vrot.lane.b32.xlu0 %v1330, 32
      %v2477 = vpop.permute.xlu0 %2476
      %2478 = vrot.lane.b32.xlu0 %v1331, 32
      %v2479 = vpop.permute.xlu0 %2478
      %2480 = vrot.lane.b32.xlu0 %v1332, 32
      %v2481 = vpop.permute.xlu0 %2480
      %2482 = vrot.lane.b32.xlu0 %v1333, 32
      %v2483 = vpop.permute.xlu0 %2482
      %2484 = vrot.lane.b32.xlu0 %v1334, 32
      %v2485 = vpop.permute.xlu0 %2484
      %2486 = vrot.lane.b32.xlu0 %v1335, 32
      %v2487 = vpop.permute.xlu0 %2486
      %2488 = vrot.lane.b32.xlu0 %v1336, 32
      %v2489 = vpop.permute.xlu0 %2488
      %2490 = vrot.lane.b32.xlu0 %v1337, 32
      %v2491 = vpop.permute.xlu0 %2490
      %2492 = vrot.lane.b32.xlu0 %v1338, 32
      %v2493 = vpop.permute.xlu0 %2492
      %2494 = vrot.lane.b32.xlu0 %v1339, 32
      %v2495 = vpop.permute.xlu0 %2494
      %2496 = vrot.lane.b32.xlu0 %v1340, 32
      %v2497 = vpop.permute.xlu0 %2496
      %2498 = vrot.lane.b32.xlu0 %v1341, 32
      %v2499 = vpop.permute.xlu0 %2498
      %2500 = vrot.lane.b32.xlu0 %v1342, 32
      %v2501 = vpop.permute.xlu0 %2500
      %2502 = vrot.lane.b32.xlu0 %v1343, 32
      %v2503 = vpop.permute.xlu0 %2502
      %s2536 = scalar_lea.vmem %s282, 384
      %2537 = vst.msk [vmem:[%s2536] sm:$0xf] %vm1055, %v2441
      %2538 = vst.msk [vmem:[%s2536 + $0x4] sm:$0xf] %vm1055, %v2443
      %2539 = vst.msk [vmem:[%s2536 + $0x8] sm:$0xf] %vm1055, %v2445
      %2540 = vst.msk [vmem:[%s2536 + $0xc] sm:$0xf] %vm1055, %v2447
      %2541 = vst.msk [vmem:[%s2536 + $0x10] sm:$0xf] %vm1055, %v2449
      %2542 = vst.msk [vmem:[%s2536 + $0x14] sm:$0xf] %vm1055, %v2451
      %2543 = vst.msk [vmem:[%s2536 + $0x18] sm:$0xf] %vm1055, %v2453
      %2544 = vst.msk [vmem:[%s2536 + $0x1c] sm:$0xf] %vm1055, %v2455
      %2545 = vst.msk [vmem:[%s2536 + $0x20] sm:$0xf] %vm1055, %v2457
      %2546 = vst.msk [vmem:[%s2536 + $0x24] sm:$0xf] %vm1055, %v2459
      %2547 = vst.msk [vmem:[%s2536 + $0x28] sm:$0xf] %vm1055, %v2461
      %2548 = vst.msk [vmem:[%s2536 + $0x2c] sm:$0xf] %vm1055, %v2463
      %2549 = vst.msk [vmem:[%s2536 + $0x30] sm:$0xf] %vm1055, %v2465
      %2550 = vst.msk [vmem:[%s2536 + $0x34] sm:$0xf] %vm1055, %v2467
      %2551 = vst.msk [vmem:[%s2536 + $0x38] sm:$0xf] %vm1055, %v2469
      %2552 = vst.msk [vmem:[%s2536 + $0x3c] sm:$0xf] %vm1055, %v2471
      %2553 = vst.msk [vmem:[%s2536 + $0x40] sm:$0xf] %vm1055, %v2473
      %2554 = vst.msk [vmem:[%s2536 + $0x44] sm:$0xf] %vm1055, %v2475
      %2555 = vst.msk [vmem:[%s2536 + $0x48] sm:$0xf] %vm1055, %v2477
      %2556 = vst.msk [vmem:[%s2536 + $0x4c] sm:$0xf] %vm1055, %v2479
      %2557 = vst.msk [vmem:[%s2536 + $0x50] sm:$0xf] %vm1055, %v2481
      %2558 = vst.msk [vmem:[%s2536 + $0x54] sm:$0xf] %vm1055, %v2483
      %2559 = vst.msk [vmem:[%s2536 + $0x58] sm:$0xf] %vm1055, %v2485
      %2560 = vst.msk [vmem:[%s2536 + $0x5c] sm:$0xf] %vm1055, %v2487
      %2561 = vst.msk [vmem:[%s2536 + $0x60] sm:$0xf] %vm1055, %v2489
      %2562 = vst.msk [vmem:[%s2536 + $0x64] sm:$0xf] %vm1055, %v2491
      %2563 = vst.msk [vmem:[%s2536 + $0x68] sm:$0xf] %vm1055, %v2493
      %2564 = vst.msk [vmem:[%s2536 + $0x6c] sm:$0xf] %vm1055, %v2495
      %2565 = vst.msk [vmem:[%s2536 + $0x70] sm:$0xf] %vm1055, %v2497
      %2566 = vst.msk [vmem:[%s2536 + $0x74] sm:$0xf] %vm1055, %v2499
      %2567 = vst.msk [vmem:[%s2536 + $0x78] sm:$0xf] %vm1055, %v2501
      %2568 = vst.msk [vmem:[%s2536 + $0x7c] sm:$0xf] %vm1055, %v2503
      %s2569 = smul.u32 32, %s21
      %p2570 = scmp.lt.s32.totalorder %s20, 1
      %s2571 = scalar_select %p2570, %s20, 1
      %p2572 = scmp.lt.s32.totalorder %s2569, 31
      %s2573 = scalar_select %p2572, %s2569, 31
      %s2574 = smul.addr %s2571, 128
      %s2575 = sadd.s32 %s2573, %s2574
      %s2576 = smul.addr %s2575, 4
      %s2577 = scalar_lea.vmem %s2, %s2576
      %s2578 = smul.u32 32, %s21
      %p2579 = scmp.lt.s32.totalorder %s20, 1
      %s2580 = scalar_select %p2579, %s20, 1
      %p2581 = scmp.lt.s32.totalorder %s2578, 31
      %s2582 = scalar_select %p2581, %s2578, 31
      %s2583 = smul.addr %s2580, 128
      %s2584 = sadd.s32 %s2582, %s2583
      %s2585 = smul.addr %s2584, 4
      %s2586 = scalar_lea.vmem %s3, %s2585
      %s2587 = smul.u32 32, %s21
      %p2588 = scmp.lt.s32.totalorder %s20, 1
      %s2589 = scalar_select %p2588, %s20, 1
      %p2590 = scmp.lt.s32.totalorder %s2587, 31
      %s2591 = scalar_select %p2590, %s2587, 31
      %s2592 = smul.addr %s2589, 128
      %s2593 = sadd.s32 %s2591, %s2592
      %s2594 = smul.addr %s2593, 4
      %s2595 = scalar_lea.vmem %s4, %s2594
      // Predicated region
      $region29: #{multi_head_attention.2} parent=27 // pred_check
        %p2596 = pneg %p97
      $region30: #{multi_head_attention.2} parent=27 // pred_check_branch
        %2598 = sbr.rel (%p2596) target = $region32
      $region31: #{multi_head_attention.2} parent=27 // pred_region
        %s2599 = smul.u32 32, %s21
      $region32: #{multi_head_attention.2} parent=27 // pred_fallthru
        _
      // Predicated region
      $region33: #{multi_head_attention.2} parent=27 // pred_check
        %p2600 = pneg %p125
      $region34: #{multi_head_attention.2} parent=27 // pred_check_branch
        %2602 = sbr.rel (%p2600) target = $region36
      $region35: #{multi_head_attention.2} parent=27 // pred_region
        %s2603 = smul.u32 32, %s21
      $region36: #{multi_head_attention.2} parent=27 // pred_fallthru
        _
      // Predicated region
      $region37: #{multi_head_attention.2} parent=27 // pred_check
        %p2604 = pneg %p153
      $region38: #{multi_head_attention.2} parent=27 // pred_check_branch
        %2606 = sbr.rel (%p2604) target = $region40
      $region39: #{multi_head_attention.2} parent=27 // pred_region
        %s2607 = smul.u32 32, %s21
      $region40: #{multi_head_attention.2} parent=27 // pred_fallthru
        _
    $region28: #{multi_head_attention.2} parent=5 // pred_fallthru
      _
    %p2608 = scmp.le.s32.totalorder 2, %s11
    // Predicated region
    $region41: #{multi_head_attention.2} parent=5 // pred_check
      %p2609 = pneg %p2608
    $region42: #{multi_head_attention.2} parent=5 // pred_check_branch
      %2611 = sbr.rel (%p2609) target = $region44
    $region43: #{multi_head_attention.2} parent=5 // pred_region
      %s2612 = ssub.s32 %s11, 2
      // Predicated region
      $region45: #{multi_head_attention.2} parent=43 // pred_check
        %p2613 = pneg %p103
      $region46: #{multi_head_attention.2} parent=43 // pred_check_branch
        %2615 = sbr.rel (%p2613) target = $region48
      $region47: #{multi_head_attention.2} parent=43 // pred_region
        %s2616 = smul.u32 32, %s23
        %p2617 = scmp.lt.s32.totalorder %s22, 1
        %s2618 = scalar_select %p2617, %s22, 1
        %p2619 = scmp.lt.s32.totalorder %s2616, 31
        %s2620 = scalar_select %p2619, %s2616, 31
        %s2621 = smul.addr %s2618, 128
        %s2622 = sadd.s32 %s2620, %s2621
        %s2623 = smul.addr %s2622, 4
        %s2624 = scalar_lea.vmem %s2, %s2623
      $region48: #{multi_head_attention.2} parent=43 // pred_fallthru
        _
      // Predicated region
      $region49: #{multi_head_attention.2} parent=43 // pred_check
        %p2625 = pneg %p131
      $region50: #{multi_head_attention.2} parent=43 // pred_check_branch
        %2627 = sbr.rel (%p2625) target = $region52
      $region51: #{multi_head_attention.2} parent=43 // pred_region
        %s2628 = smul.u32 32, %s23
        %p2629 = scmp.lt.s32.totalorder %s22, 1
        %s2630 = scalar_select %p2629, %s22, 1
        %p2631 = scmp.lt.s32.totalorder %s2628, 31
        %s2632 = scalar_select %p2631, %s2628, 31
        %s2633 = smul.addr %s2630, 128
        %s2634 = sadd.s32 %s2632, %s2633
        %s2635 = smul.addr %s2634, 4
        %s2636 = scalar_lea.vmem %s3, %s2635
      $region52: #{multi_head_attention.2} parent=43 // pred_fallthru
        _
      // Predicated region
      $region53: #{multi_head_attention.2} parent=43 // pred_check
        %p2637 = pneg %p159
      $region54: #{multi_head_attention.2} parent=43 // pred_check_branch
        %2639 = sbr.rel (%p2637) target = $region56
      $region55: #{multi_head_attention.2} parent=43 // pred_region
        %s2640 = smul.u32 32, %s23
        %p2641 = scmp.lt.s32.totalorder %s22, 1
        %s2642 = scalar_select %p2641, %s22, 1
        %p2643 = scmp.lt.s32.totalorder %s2640, 31
        %s2644 = scalar_select %p2643, %s2640, 31
        %s2645 = smul.addr %s2642, 128
        %s2646 = sadd.s32 %s2644, %s2645
        %s2647 = smul.addr %s2646, 4
        %s2648 = scalar_lea.vmem %s4, %s2647
      $region56: #{multi_head_attention.2} parent=43 // pred_fallthru
        _
    $region44: #{multi_head_attention.2} parent=5 // pred_fallthru
      _
  $region6: #{multi_head_attention.2} parent=0 // loop_footer
    %s15 = sadd.s32 1, %s11
  $region7: #{multi_head_attention.2} parent=0 // loop_footer_branch
    %10 = sbr.rel target = $region3
  $region8: #{multi_head_attention.2} parent=0 // loop_exit
    _

// kernel: multi_head_attention.3
$region0: #{multi_head_attention.3}
  #allocation0 [shape = 'u32[]', space=smem, size = 0x4, offset = 0x4, fixed_abs, tag = 'smem constant byte address 0x4 - core index']
  #allocation1 [shape = 'u32[144,128]{1,0:T(1,128)}', space=vmem, size = 0x12000, scoped, tag = 'internal scratch']
  #allocation2 [shape = 'f32[4,128,1]{2,1,0:T(8,128)}', space=vmem, size = 0x40000, scoped, tag = 'scratch operand']
  #allocation3 [shape = 'f32[4,128,1]{2,1,0:T(8,128)}', space=vmem, size = 0x40000, scoped, tag = 'scratch operand']
  #allocation4 [shape = 'f32[4,128,32]{2,1,0:T(8,128)}', space=vmem, size = 0x40000, scoped, tag = 'scratch operand']
  %s0 = inlined_call_operand.vmem [shape: f32[2,1,256], index: 0, kind: input, shape index: {}]
  %s1 = inlined_call_operand.vmem [shape: bf16[2,4,256,32], index: 1, kind: input, shape index: {}]
  %s2 = inlined_call_operand.vmem [shape: bf16[2,4,256,32], index: 2, kind: input, shape index: {}]
  %s3 = inlined_call_operand.vmem [shape: bf16[2,4,256,32], index: 3, kind: input, shape index: {}]
  %s4 = inlined_call_operand.vmem [shape: bf16[4,32,128], index: 4, kind: input, shape index: {}]
  %s5 = inlined_call_operand.vmem [shape: f32[1,128], index: 5, kind: input, shape index: {}]
  %s6 = inlined_call_operand.hbm [shape: f32[2,256,128], index: 6, kind: output, shape index: {}]
  %s7 = sld [smem:[#allocation0]]
  $region192: #{multi_head_attention.3} parent=0
    _
  %s9 = ssub.s32 1, %s7
  %s10 = scalar_select 0, %s9, %s7
  $region1: #{multi_head_attention.3} parent=0
    #allocation5 [shape = 'u8[262144]{0}', space=vmem, size = 0x40000, scoped, tag = 'input window, operand 1']
    #allocation6 [shape = 'u8[262144]{0}', space=vmem, size = 0x40000, scoped, tag = 'input window, operand 2']
    #allocation7 [shape = 'u8[262144]{0}', space=vmem, size = 0x40000, scoped, tag = 'input window, operand 3']
    #allocation8 [shape = 'u8[131072]{0}', space=vmem, size = 0x20000, scoped, tag = 'output window, operand 0']
    #allocation9 [shape = 's32[2]{0}', space=sflag, size = 0x8, scoped, tag = 'scoped memory for multi_head_attention.3']
    %11 = vsyncpa [#allocation9], 0
    %s12 = scalar_lea.sflag [#allocation9], 1
    %13 = vsyncpa %s12, 0
    loop: start=0, step=1, limit=10
    $region2: #{multi_head_attention.3} parent=1 // loop_pre_header
      _
    $region3: #{multi_head_attention.3} parent=1 // loop_header
      %s15 = sphi 0, %s19
      %p16 = scmp.ge.s32.totalorder %s15, 10
      %s22 = sphi 0, %s41
      %s23 = sphi 0, %s37
      %s24 = sphi 0, %s33
      %s25 = sphi 0, %s22
      %s26 = sphi 0, %s23
      %s27 = sphi 0, %s24
      %s28 = sphi 0, %s25
      %s29 = sphi 0, %s26
      %s30 = sphi 0, %s27
      %s46 = sphi 0, %s48
      %s49 = sphi 0, %s46
      %s50 = sphi 0, %s49
      %s66 = sphi 0, %s50
      %s74 = sphi 0, %s76
      %s77 = sphi 0, %s74
      %s78 = sphi 0, %s77
      %s94 = sphi 0, %s78
      %s102 = sphi 0, %s104
      %s105 = sphi 0, %s102
      %s106 = sphi 0, %s105
      %s122 = sphi 0, %s106
      %s130 = sphi 0, %s132
      %s133 = sphi 0, %s130
      %s134 = sphi 0, %s133
      %s150 = sphi 0, %s134
      %s154 = sphi 0, %s154
      %s156 = sphi 0, %s154
      %s157 = sphi 0, %s156
      %s171 = sphi 0, %s157
      %s175 = sphi 0, %s175
      %s177 = sphi 0, %s175
      %s178 = sphi 0, %s177
      %s192 = sphi 0, %s178
      %s200 = sphi 0, %s202
      %s203 = sphi 0, %s200
      %s204 = sphi 0, %s203
      %s220 = sphi 0, %s204
    $region4: #{multi_head_attention.3} parent=1 // loop_header_branch
      %18 = sbr.rel (%p16) target = $region8
    $region5: #{multi_head_attention.3} parent=1 // loop_body
      %s20 = ssub.s32 %s15, 1
      %s21 = ssub.s32 %s15, 2
      %s31 = sadd.s32 1, %s24
      %p32 = scmp.ge.s32.totalorder %s31, 2
      %s33 = scalar_select %p32, 0, %s31
      %s34 = sadd.s32 1, %s23
      %s35 = scalar_select %p32, %s34, %s23
      %p36 = scmp.ge.s32.totalorder %s35, 2
      %s37 = scalar_select %p36, 0, %s35
      %s38 = sadd.s32 1, %s22
      %s39 = scalar_select %p36, %s38, %s22
      %p40 = scmp.ge.s32.totalorder %s39, 2
      %s41 = scalar_select %p40, 0, %s39
      %s42 = ssub.s32 %s22, %s41
      %s43 = ssub.s32 %s24, %s33
      %s44 = sor.u32 %s42, %s43
      %p45 = scmp.eq.s32.totalorder %s44, 0
      %s47 = sadd.s32 %s46, 1
      %s48 = scalar_select %p45, %s46, %s47
      %p51 = pneg %p45
      %p52 = scmp.eq.s32.totalorder %s15, 7
      %p53 = por %p51, %p52
      %p54 = scmp.ne.s32.totalorder %s46, %s49
      %p55 = scmp.eq.s32.totalorder %s15, 0
      %p56 = por %p54, %p55
      %p57 = scmp.ne.s32.totalorder %s46, %s49
      %p58 = scmp.eq.s32.totalorder %s20, 7
      %p59 = por %p57, %p58
      %p60 = scmp.ne.s32.totalorder %s49, %s50
      %p61 = scmp.eq.s32.totalorder %s20, 0
      %p62 = por %p60, %p61
      %p63 = scmp.ne.s32.totalorder %s49, %s50
      %p64 = scmp.eq.s32.totalorder %s21, 7
      %p65 = por %p63, %p64
      %p67 = scmp.ne.s32.totalorder %s50, %s66
      %p68 = scmp.eq.s32.totalorder %s21, 0
      %p69 = por %p67, %p68
      %s70 = ssub.s32 %s22, %s41
      %s71 = ssub.s32 %s23, %s37
      %s72 = sor.u32 %s70, %s71
      %p73 = scmp.eq.s32.totalorder %s72, 0
      %s75 = sadd.s32 %s74, 1
      %s76 = scalar_select %p73, %s74, %s75
      %p79 = pneg %p73
      %p80 = scmp.eq.s32.totalorder %s15, 7
      %p81 = por %p79, %p80
      %p82 = scmp.ne.s32.totalorder %s74, %s77
      %p83 = scmp.eq.s32.totalorder %s15, 0
      %p84 = por %p82, %p83
      %p85 = scmp.ne.s32.totalorder %s74, %s77
      %p86 = scmp.eq.s32.totalorder %s20, 7
      %p87 = por %p85, %p86
      %p88 = scmp.ne.s32.totalorder %s77, %s78
      %p89 = scmp.eq.s32.totalorder %s20, 0
      %p90 = por %p88, %p89
      %p91 = scmp.ne.s32.totalorder %s77, %s78
      %p92 = scmp.eq.s32.totalorder %s21, 7
      %p93 = por %p91, %p92
      %p95 = scmp.ne.s32.totalorder %s78, %s94
      %p96 = scmp.eq.s32.totalorder %s21, 0
      %p97 = por %p95, %p96
      %s98 = ssub.s32 %s22, %s41
      %s99 = ssub.s32 %s24, %s33
      %s100 = sor.u32 %s98, %s99
      %p101 = scmp.eq.s32.totalorder %s100, 0
      %s103 = sadd.s32 %s102, 1
      %s104 = scalar_select %p101, %s102, %s103
      %p107 = pneg %p101
      %p108 = scmp.eq.s32.totalorder %s15, 7
      %p109 = por %p107, %p108
      %p110 = scmp.ne.s32.totalorder %s102, %s105
      %p111 = scmp.eq.s32.totalorder %s15, 0
      %p112 = por %p110, %p111
      %p113 = scmp.ne.s32.totalorder %s102, %s105
      %p114 = scmp.eq.s32.totalorder %s20, 7
      %p115 = por %p113, %p114
      %p116 = scmp.ne.s32.totalorder %s105, %s106
      %p117 = scmp.eq.s32.totalorder %s20, 0
      %p118 = por %p116, %p117
      %p119 = scmp.ne.s32.totalorder %s105, %s106
      %p120 = scmp.eq.s32.totalorder %s21, 7
      %p121 = por %p119, %p120
      %p123 = scmp.ne.s32.totalorder %s106, %s122
      %p124 = scmp.eq.s32.totalorder %s21, 0
      %p125 = por %p123, %p124
      %s126 = ssub.s32 %s22, %s41
      %s127 = ssub.s32 %s24, %s33
      %s128 = sor.u32 %s126, %s127
      %p129 = scmp.eq.s32.totalorder %s128, 0
      %s131 = sadd.s32 %s130, 1
      %s132 = scalar_select %p129, %s130, %s131
      %p135 = pneg %p129
      %p136 = scmp.eq.s32.totalorder %s15, 7
      %p137 = por %p135, %p136
      %p138 = scmp.ne.s32.totalorder %s130, %s133
      %p139 = scmp.eq.s32.totalorder %s15, 0
      %p140 = por %p138, %p139
      %p141 = scmp.ne.s32.totalorder %s130, %s133
      %p142 = scmp.eq.s32.totalorder %s20, 7
      %p143 = por %p141, %p142
      %p144 = scmp.ne.s32.totalorder %s133, %s134
      %p145 = scmp.eq.s32.totalorder %s20, 0
      %p146 = por %p144, %p145
      %p147 = scmp.ne.s32.totalorder %s133, %s134
      %p148 = scmp.eq.s32.totalorder %s21, 7
      %p149 = por %p147, %p148
      %p151 = scmp.ne.s32.totalorder %s134, %s150
      %p152 = scmp.eq.s32.totalorder %s21, 0
      %p153 = por %p151, %p152
      %s155 = sadd.s32 %s154, 1
      %p158 = scmp.eq.s32.totalorder %s15, 7
      %p159 = scmp.ne.s32.totalorder %s154, %s156
      %p160 = scmp.eq.s32.totalorder %s15, 0
      %p161 = por %p159, %p160
      %p162 = scmp.ne.s32.totalorder %s154, %s156
      %p163 = scmp.eq.s32.totalorder %s20, 7
      %p164 = por %p162, %p163
      %p165 = scmp.ne.s32.totalorder %s156, %s157
      %p166 = scmp.eq.s32.totalorder %s20, 0
      %p167 = por %p165, %p166
      %p168 = scmp.ne.s32.totalorder %s156, %s157
      %p169 = scmp.eq.s32.totalorder %s21, 7
      %p170 = por %p168, %p169
      %p172 = scmp.ne.s32.totalorder %s157, %s171
      %p173 = scmp.eq.s32.totalorder %s21, 0
      %p174 = por %p172, %p173
      %s176 = sadd.s32 %s175, 1
      %p179 = scmp.eq.s32.totalorder %s15, 7
      %p180 = scmp.ne.s32.totalorder %s175, %s177
      %p181 = scmp.eq.s32.totalorder %s15, 0
      %p182 = por %p180, %p181
      %p183 = scmp.ne.s32.totalorder %s175, %s177
      %p184 = scmp.eq.s32.totalorder %s20, 7
      %p185 = por %p183, %p184
      %p186 = scmp.ne.s32.totalorder %s177, %s178
      %p187 = scmp.eq.s32.totalorder %s20, 0
      %p188 = por %p186, %p187
      %p189 = scmp.ne.s32.totalorder %s177, %s178
      %p190 = scmp.eq.s32.totalorder %s21, 7
      %p191 = por %p189, %p190
      %p193 = scmp.ne.s32.totalorder %s178, %s192
      %p194 = scmp.eq.s32.totalorder %s21, 0
      %p195 = por %p193, %p194
      %s196 = ssub.s32 %s22, %s41
      %s197 = ssub.s32 %s23, %s37
      %s198 = sor.u32 %s196, %s197
      %p199 = scmp.eq.s32.totalorder %s198, 0
      %s201 = sadd.s32 %s200, 1
      %s202 = scalar_select %p199, %s200, %s201
      %p205 = pneg %p199
      %p206 = scmp.eq.s32.totalorder %s15, 7
      %p207 = por %p205, %p206
      %p208 = scmp.ne.s32.totalorder %s200, %s203
      %p209 = scmp.eq.s32.totalorder %s15, 0
      %p210 = por %p208, %p209
      %p211 = scmp.ne.s32.totalorder %s200, %s203
      %p212 = scmp.eq.s32.totalorder %s20, 7
      %p213 = por %p211, %p212
      %p214 = scmp.ne.s32.totalorder %s203, %s204
      %p215 = scmp.eq.s32.totalorder %s20, 0
      %p216 = por %p214, %p215
      %p217 = scmp.ne.s32.totalorder %s203, %s204
      %p218 = scmp.eq.s32.totalorder %s21, 7
      %p219 = por %p217, %p218
      %p221 = scmp.ne.s32.totalorder %s204, %s220
      %p222 = scmp.eq.s32.totalorder %s21, 0
      %p223 = por %p221, %p222
      %p224 = scmp.le.s32.totalorder 1, %s15
      %p225 = scmp.lt.s32.totalorder %s15, 9
      %p226 = pnand %p224, %p225
      %p227 = pneg %p226
      // Predicated region
      $region9: #{multi_head_attention.3} parent=5 // pred_check
        _
      $region10: #{multi_head_attention.3} parent=5 // pred_check_branch
        %229 = sbr.rel (%p226) target = $region12
      $region11: #{multi_head_attention.3} parent=5 // pred_region
        %s230 = ssub.s32 %s15, 1
        // Predicated region
        $region13: #{multi_head_attention.3} parent=11 // pred_check
          %p231 = pneg %p167
        $region14: #{multi_head_attention.3} parent=11 // pred_check_branch
          %233 = sbr.rel (%p231) target = $region16
        $region15: #{multi_head_attention.3} parent=11 // pred_region
          _
        $region16: #{multi_head_attention.3} parent=11 // pred_fallthru
          _
        // Predicated region
        $region17: #{multi_head_attention.3} parent=11 // pred_check
          %p234 = pneg %p188
        $region18: #{multi_head_attention.3} parent=11 // pred_check_branch
          %236 = sbr.rel (%p234) target = $region20
        $region19: #{multi_head_attention.3} parent=11 // pred_region
          _
        $region20: #{multi_head_attention.3} parent=11 // pred_fallthru
          _
      $region12: #{multi_head_attention.3} parent=5 // pred_fallthru
        _
      %p237 = scmp.lt.s32.totalorder %s15, 8
      // Predicated region
      $region21: #{multi_head_attention.3} parent=5 // pred_check
        %p238 = pneg %p237
      $region22: #{multi_head_attention.3} parent=5 // pred_check_branch
        %240 = sbr.rel (%p238) target = $region24
      $region23: #{multi_head_attention.3} parent=5 // pred_region
        // Predicated region
        $region25: #{multi_head_attention.3} parent=23 // pred_check
          %p241 = pneg %p56
        $region26: #{multi_head_attention.3} parent=23 // pred_check_branch
          %243 = sbr.rel (%p241) target = $region28
        $region27: #{multi_head_attention.3} parent=23 // pred_region
          %p244 = scmp.lt.s32.totalorder %s22, 1
          %s245 = scalar_select %p244, %s22, 1
          %p246 = scmp.lt.s32.totalorder %s24, 1
          %s247 = scalar_select %p246, %s24, 1
          %s248 = smul.addr %s245, 2
          %s249 = sadd.s32 %s247, %s248
          %s250 = scalar_lea.vmem %s0, %s249
        $region28: #{multi_head_attention.3} parent=23 // pred_fallthru
          _
        // Predicated region
        $region29: #{multi_head_attention.3} parent=23 // pred_check
          %p251 = pneg %p84
        $region30: #{multi_head_attention.3} parent=23 // pred_check_branch
          %253 = sbr.rel (%p251) target = $region32
        $region31: #{multi_head_attention.3} parent=23 // pred_region
          %s254 = sand.u32 %s74, 1
          %s255 = sand.u32 %s74, 1
          %s256 = smul.addr %s255, 256
          %s257 = scalar_lea.vmem [#allocation5], %s256
          %s258 = smul.u32 16, %s23
          %s259 = smul.addr %s22, 128
          %s260 = sadd.s32 %s258, %s259
          %s261 = smul.addr %s260, 4
          %s262 = scalar_lea.vmem %s1, %s261
          // Predicated region
          $region33: #{multi_head_attention.3} parent=31 // pred_check
            _
          $region34: #{multi_head_attention.3} parent=31 // pred_check_branch
            %264 = sbr.rel (0) target = $region36
          $region35: #{multi_head_attention.3} parent=31 // pred_region
            // Predicated region
            $region37: #{multi_head_attention.3} parent=35 // pred_check
              _
            $region38: #{multi_head_attention.3} parent=35 // pred_check_branch
              %266 = sbr.rel target = $region40
            $region39: #{multi_head_attention.3} parent=35 // pred_region
              // Predicated region
              $region52: #{multi_head_attention.3} parent=39 // pred_check
                _
              $region53: #{multi_head_attention.3} parent=39 // pred_check_branch
                %408 = sbr.rel (0) target = $region55
              $region54: #{multi_head_attention.3} parent=39 // pred_region
                loop: start=0, step=1, limit=1
                $region56: #{multi_head_attention.3} parent=54 // loop_pre_header
                  _
                $region57: #{multi_head_attention.3} parent=54 // loop_header
                  %s410 = sphi 0, %s414
                  %p411 = scmp.ge.s32.totalorder %s410, 1
                  %s415 = sphi %s262, %s262
                  %s416 = sphi %s257, %s257
                $region58: #{multi_head_attention.3} parent=54 // loop_header_branch
                  %413 = sbr.rel (%p411) target = $region62
                $region59: #{multi_head_attention.3} parent=54 // loop_body
                  _
                $region60: #{multi_head_attention.3} parent=54 // loop_footer
                  %s414 = sadd.s32 1, %s410
                $region61: #{multi_head_attention.3} parent=54 // loop_footer_branch
                  %409 = sbr.rel target = $region57
                $region62: #{multi_head_attention.3} parent=54 // loop_exit
                  _
                %s418 = ssub.s32 16, 1
                loop: start=0, step=1, limit=1
                $region63: #{multi_head_attention.3} parent=54 // loop_pre_header
                  _
                $region64: #{multi_head_attention.3} parent=54 // loop_header
                  %s420 = sphi 0, %s424
                  %p421 = scmp.ge.s32.totalorder %s420, 1
                  %s425 = sphi %s262, %s262
                  %s426 = sphi %s257, %s257
                $region65: #{multi_head_attention.3} parent=54 // loop_header_branch
                  %423 = sbr.rel (%p421) target = $region69
                $region66: #{multi_head_attention.3} parent=54 // loop_body
                  %v427 = vld [vmem:[%s425] sm:%s418]
                  %428 = vst [vmem:[%s426] sm:%s418] %v427
                  %v429 = vld [vmem:[%s425 + $0x4] sm:%s418]
                  %430 = vst [vmem:[%s426 + $0x4] sm:%s418] %v429
                  %v431 = vld [vmem:[%s425 + $0x8] sm:%s418]
                  %432 = vst [vmem:[%s426 + $0x8] sm:%s418] %v431
                  %v433 = vld [vmem:[%s425 + $0xc] sm:%s418]
                  %434 = vst [vmem:[%s426 + $0xc] sm:%s418] %v433
                  %v435 = vld [vmem:[%s425 + $0x10] sm:%s418]
                  %436 = vst [vmem:[%s426 + $0x10] sm:%s418] %v435
                  %v437 = vld [vmem:[%s425 + $0x14] sm:%s418]
                  %438 = vst [vmem:[%s426 + $0x14] sm:%s418] %v437
                  %v439 = vld [vmem:[%s425 + $0x18] sm:%s418]
                  %440 = vst [vmem:[%s426 + $0x18] sm:%s418] %v439
                  %v441 = vld [vmem:[%s425 + $0x1c] sm:%s418]
                  %442 = vst [vmem:[%s426 + $0x1c] sm:%s418] %v441
                  %v443 = vld [vmem:[%s425 + $0x20] sm:%s418]
                  %444 = vst [vmem:[%s426 + $0x20] sm:%s418] %v443
                  %v445 = vld [vmem:[%s425 + $0x24] sm:%s418]
                  %446 = vst [vmem:[%s426 + $0x24] sm:%s418] %v445
                  %v447 = vld [vmem:[%s425 + $0x28] sm:%s418]
                  %448 = vst [vmem:[%s426 + $0x28] sm:%s418] %v447
                  %v449 = vld [vmem:[%s425 + $0x2c] sm:%s418]
                  %450 = vst [vmem:[%s426 + $0x2c] sm:%s418] %v449
                  %v451 = vld [vmem:[%s425 + $0x30] sm:%s418]
                  %452 = vst [vmem:[%s426 + $0x30] sm:%s418] %v451
                  %v453 = vld [vmem:[%s425 + $0x34] sm:%s418]
                  %454 = vst [vmem:[%s426 + $0x34] sm:%s418] %v453
                  %v455 = vld [vmem:[%s425 + $0x38] sm:%s418]
                  %456 = vst [vmem:[%s426 + $0x38] sm:%s418] %v455
                  %v457 = vld [vmem:[%s425 + $0x3c] sm:%s418]
                  %458 = vst [vmem:[%s426 + $0x3c] sm:%s418] %v457
                  %v459 = vld [vmem:[%s425 + $0x80] sm:%s418]
                  %460 = vst [vmem:[%s426 + $0x40] sm:%s418] %v459
                  %v461 = vld [vmem:[%s425 + $0x84] sm:%s418]
                  %462 = vst [vmem:[%s426 + $0x44] sm:%s418] %v461
                  %v463 = vld [vmem:[%s425 + $0x88] sm:%s418]
                  %464 = vst [vmem:[%s426 + $0x48] sm:%s418] %v463
                  %v465 = vld [vmem:[%s425 + $0x8c] sm:%s418]
                  %466 = vst [vmem:[%s426 + $0x4c] sm:%s418] %v465
                  %v467 = vld [vmem:[%s425 + $0x90] sm:%s418]
                  %468 = vst [vmem:[%s426 + $0x50] sm:%s418] %v467
                  %v469 = vld [vmem:[%s425 + $0x94] sm:%s418]
                  %470 = vst [vmem:[%s426 + $0x54] sm:%s418] %v469
                  %v471 = vld [vmem:[%s425 + $0x98] sm:%s418]
                  %472 = vst [vmem:[%s426 + $0x58] sm:%s418] %v471
                  %v473 = vld [vmem:[%s425 + $0x9c] sm:%s418]
                  %474 = vst [vmem:[%s426 + $0x5c] sm:%s418] %v473
                  %v475 = vld [vmem:[%s425 + $0xa0] sm:%s418]
                  %476 = vst [vmem:[%s426 + $0x60] sm:%s418] %v475
                  %v477 = vld [vmem:[%s425 + $0xa4] sm:%s418]
                  %478 = vst [vmem:[%s426 + $0x64] sm:%s418] %v477
                  %v479 = vld [vmem:[%s425 + $0xa8] sm:%s418]
                  %480 = vst [vmem:[%s426 + $0x68] sm:%s418] %v479
                  %v481 = vld [vmem:[%s425 + $0xac] sm:%s418]
                  %482 = vst [vmem:[%s426 + $0x6c] sm:%s418] %v481
                  %v483 = vld [vmem:[%s425 + $0xb0] sm:%s418]
                  %484 = vst [vmem:[%s426 + $0x70] sm:%s418] %v483
                  %v485 = vld [vmem:[%s425 + $0xb4] sm:%s418]
                  %486 = vst [vmem:[%s426 + $0x74] sm:%s418] %v485
                  %v487 = vld [vmem:[%s425 + $0xb8] sm:%s418]
                  %488 = vst [vmem:[%s426 + $0x78] sm:%s418] %v487
                  %v489 = vld [vmem:[%s425 + $0xbc] sm:%s418]
                  %490 = vst [vmem:[%s426 + $0x7c] sm:%s418] %v489
                  %v491 = vld [vmem:[%s425 + $0x100] sm:%s418]
                  %492 = vst [vmem:[%s426 + $0x80] sm:%s418] %v491
                  %v493 = vld [vmem:[%s425 + $0x104] sm:%s418]
                  %494 = vst [vmem:[%s426 + $0x84] sm:%s418] %v493
                  %v495 = vld [vmem:[%s425 + $0x108] sm:%s418]
                  %496 = vst [vmem:[%s426 + $0x88] sm:%s418] %v495
                  %v497 = vld [vmem:[%s425 + $0x10c] sm:%s418]
                  %498 = vst [vmem:[%s426 + $0x8c] sm:%s418] %v497
                  %v499 = vld [vmem:[%s425 + $0x110] sm:%s418]
                  %500 = vst [vmem:[%s426 + $0x90] sm:%s418] %v499
                  %v501 = vld [vmem:[%s425 + $0x114] sm:%s418]
                  %502 = vst [vmem:[%s426 + $0x94] sm:%s418] %v501
                  %v503 = vld [vmem:[%s425 + $0x118] sm:%s418]
                  %504 = vst [vmem:[%s426 + $0x98] sm:%s418] %v503
                  %v505 = vld [vmem:[%s425 + $0x11c] sm:%s418]
                  %506 = vst [vmem:[%s426 + $0x9c] sm:%s418] %v505
                  %v507 = vld [vmem:[%s425 + $0x120] sm:%s418]
                  %508 = vst [vmem:[%s426 + $0xa0] sm:%s418] %v507
                  %v509 = vld [vmem:[%s425 + $0x124] sm:%s418]
                  %510 = vst [vmem:[%s426 + $0xa4] sm:%s418] %v509
                  %v511 = vld [vmem:[%s425 + $0x128] sm:%s418]
                  %512 = vst [vmem:[%s426 + $0xa8] sm:%s418] %v511
                  %v513 = vld [vmem:[%s425 + $0x12c] sm:%s418]
                  %514 = vst [vmem:[%s426 + $0xac] sm:%s418] %v513
                  %v515 = vld [vmem:[%s425 + $0x130] sm:%s418]
                  %516 = vst [vmem:[%s426 + $0xb0] sm:%s418] %v515
                  %v517 = vld [vmem:[%s425 + $0x134] sm:%s418]
                  %518 = vst [vmem:[%s426 + $0xb4] sm:%s418] %v517
                  %v519 = vld [vmem:[%s425 + $0x138] sm:%s418]
                  %520 = vst [vmem:[%s426 + $0xb8] sm:%s418] %v519
                  %v521 = vld [vmem:[%s425 + $0x13c] sm:%s418]
                  %522 = vst [vmem:[%s426 + $0xbc] sm:%s418] %v521
                  %v523 = vld [vmem:[%s425 + $0x180] sm:%s418]
                  %524 = vst [vmem:[%s426 + $0xc0] sm:%s418] %v523
                  %v525 = vld [vmem:[%s425 + $0x184] sm:%s418]
                  %526 = vst [vmem:[%s426 + $0xc4] sm:%s418] %v525
                  %v527 = vld [vmem:[%s425 + $0x188] sm:%s418]
                  %528 = vst [vmem:[%s426 + $0xc8] sm:%s418] %v527
                  %v529 = vld [vmem:[%s425 + $0x18c] sm:%s418]
                  %530 = vst [vmem:[%s426 + $0xcc] sm:%s418] %v529
                  %v531 = vld [vmem:[%s425 + $0x190] sm:%s418]
                  %532 = vst [vmem:[%s426 + $0xd0] sm:%s418] %v531
                  %v533 = vld [vmem:[%s425 + $0x194] sm:%s418]
                  %534 = vst [vmem:[%s426 + $0xd4] sm:%s418] %v533
                  %v535 = vld [vmem:[%s425 + $0x198] sm:%s418]
                  %536 = vst [vmem:[%s426 + $0xd8] sm:%s418] %v535
                  %v537 = vld [vmem:[%s425 + $0x19c] sm:%s418]
                  %538 = vst [vmem:[%s426 + $0xdc] sm:%s418] %v537
                  %v539 = vld [vmem:[%s425 + $0x1a0] sm:%s418]
                  %540 = vst [vmem:[%s426 + $0xe0] sm:%s418] %v539
                  %v541 = vld [vmem:[%s425 + $0x1a4] sm:%s418]
                  %542 = vst [vmem:[%s426 + $0xe4] sm:%s418] %v541
                  %v543 = vld [vmem:[%s425 + $0x1a8] sm:%s418]
                  %544 = vst [vmem:[%s426 + $0xe8] sm:%s418] %v543
                  %v545 = vld [vmem:[%s425 + $0x1ac] sm:%s418]
                  %546 = vst [vmem:[%s426 + $0xec] sm:%s418] %v545
                  %v547 = vld [vmem:[%s425 + $0x1b0] sm:%s418]
                  %548 = vst [vmem:[%s426 + $0xf0] sm:%s418] %v547
                  %v549 = vld [vmem:[%s425 + $0x1b4] sm:%s418]
                  %550 = vst [vmem:[%s426 + $0xf4] sm:%s418] %v549
                  %v551 = vld [vmem:[%s425 + $0x1b8] sm:%s418]
                  %552 = vst [vmem:[%s426 + $0xf8] sm:%s418] %v551
                  %v553 = vld [vmem:[%s425 + $0x1bc] sm:%s418]
                  %554 = vst [vmem:[%s426 + $0xfc] sm:%s418] %v553
                $region67: #{multi_head_attention.3} parent=54 // loop_footer
                  %s424 = sadd.s32 1, %s420
                $region68: #{multi_head_attention.3} parent=54 // loop_footer_branch
                  %419 = sbr.rel target = $region64
                $region69: #{multi_head_attention.3} parent=54 // loop_exit
                  _
              $region55: #{multi_head_attention.3} parent=39 // pred_fallthru
                _
            $region40: #{multi_head_attention.3} parent=35 // pred_fallthru
              _
            // Predicated region
            $region41: #{multi_head_attention.3} parent=35 // pred_check
              _
            $region42: #{multi_head_attention.3} parent=35 // pred_check_branch
              %268 = sbr.rel (0) target = $region44
            $region43: #{multi_head_attention.3} parent=35 // pred_region
              %s270 = ssub.s32 16, 1
              loop: start=0, step=1, limit=1
              $region45: #{multi_head_attention.3} parent=43 // loop_pre_header
                _
              $region46: #{multi_head_attention.3} parent=43 // loop_header
                %s272 = sphi 0, %s276
                %p273 = scmp.ge.s32.totalorder %s272, 1
                %s277 = sphi %s262, %s262
                %s278 = sphi %s257, %s257
              $region47: #{multi_head_attention.3} parent=43 // loop_header_branch
                %275 = sbr.rel (%p273) target = $region51
              $region48: #{multi_head_attention.3} parent=43 // loop_body
                %v279 = vld [vmem:[%s277] sm:%s270]
                %280 = vst [vmem:[%s278] sm:%s270] %v279
                %v281 = vld [vmem:[%s277 + $0x4] sm:%s270]
                %282 = vst [vmem:[%s278 + $0x4] sm:%s270] %v281
                %v283 = vld [vmem:[%s277 + $0x8] sm:%s270]
                %284 = vst [vmem:[%s278 + $0x8] sm:%s270] %v283
                %v285 = vld [vmem:[%s277 + $0xc] sm:%s270]
                %286 = vst [vmem:[%s278 + $0xc] sm:%s270] %v285
                %v287 = vld [vmem:[%s277 + $0x10] sm:%s270]
                %288 = vst [vmem:[%s278 + $0x10] sm:%s270] %v287
                %v289 = vld [vmem:[%s277 + $0x14] sm:%s270]
                %290 = vst [vmem:[%s278 + $0x14] sm:%s270] %v289
                %v291 = vld [vmem:[%s277 + $0x18] sm:%s270]
                %292 = vst [vmem:[%s278 + $0x18] sm:%s270] %v291
                %v293 = vld [vmem:[%s277 + $0x1c] sm:%s270]
                %294 = vst [vmem:[%s278 + $0x1c] sm:%s270] %v293
                %v295 = vld [vmem:[%s277 + $0x20] sm:%s270]
                %296 = vst [vmem:[%s278 + $0x20] sm:%s270] %v295
                %v297 = vld [vmem:[%s277 + $0x24] sm:%s270]
                %298 = vst [vmem:[%s278 + $0x24] sm:%s270] %v297
                %v299 = vld [vmem:[%s277 + $0x28] sm:%s270]
                %300 = vst [vmem:[%s278 + $0x28] sm:%s270] %v299
                %v301 = vld [vmem:[%s277 + $0x2c] sm:%s270]
                %302 = vst [vmem:[%s278 + $0x2c] sm:%s270] %v301
                %v303 = vld [vmem:[%s277 + $0x30] sm:%s270]
                %304 = vst [vmem:[%s278 + $0x30] sm:%s270] %v303
                %v305 = vld [vmem:[%s277 + $0x34] sm:%s270]
                %306 = vst [vmem:[%s278 + $0x34] sm:%s270] %v305
                %v307 = vld [vmem:[%s277 + $0x38] sm:%s270]
                %308 = vst [vmem:[%s278 + $0x38] sm:%s270] %v307
                %v309 = vld [vmem:[%s277 + $0x3c] sm:%s270]
                %310 = vst [vmem:[%s278 + $0x3c] sm:%s270] %v309
                %v311 = vld [vmem:[%s277 + $0x80] sm:%s270]
                %312 = vst [vmem:[%s278 + $0x40] sm:%s270] %v311
                %v313 = vld [vmem:[%s277 + $0x84] sm:%s270]
                %314 = vst [vmem:[%s278 + $0x44] sm:%s270] %v313
                %v315 = vld [vmem:[%s277 + $0x88] sm:%s270]
                %316 = vst [vmem:[%s278 + $0x48] sm:%s270] %v315
                %v317 = vld [vmem:[%s277 + $0x8c] sm:%s270]
                %318 = vst [vmem:[%s278 + $0x4c] sm:%s270] %v317
                %v319 = vld [vmem:[%s277 + $0x90] sm:%s270]
                %320 = vst [vmem:[%s278 + $0x50] sm:%s270] %v319
                %v321 = vld [vmem:[%s277 + $0x94] sm:%s270]
                %322 = vst [vmem:[%s278 + $0x54] sm:%s270] %v321
                %v323 = vld [vmem:[%s277 + $0x98] sm:%s270]
                %324 = vst [vmem:[%s278 + $0x58] sm:%s270] %v323
                %v325 = vld [vmem:[%s277 + $0x9c] sm:%s270]
                %326 = vst [vmem:[%s278 + $0x5c] sm:%s270] %v325
                %v327 = vld [vmem:[%s277 + $0xa0] sm:%s270]
                %328 = vst [vmem:[%s278 + $0x60] sm:%s270] %v327
                %v329 = vld [vmem:[%s277 + $0xa4] sm:%s270]
                %330 = vst [vmem:[%s278 + $0x64] sm:%s270] %v329
                %v331 = vld [vmem:[%s277 + $0xa8] sm:%s270]
                %332 = vst [vmem:[%s278 + $0x68] sm:%s270] %v331
                %v333 = vld [vmem:[%s277 + $0xac] sm:%s270]
                %334 = vst [vmem:[%s278 + $0x6c] sm:%s270] %v333
                %v335 = vld [vmem:[%s277 + $0xb0] sm:%s270]
                %336 = vst [vmem:[%s278 + $0x70] sm:%s270] %v335
                %v337 = vld [vmem:[%s277 + $0xb4] sm:%s270]
                %338 = vst [vmem:[%s278 + $0x74] sm:%s270] %v337
                %v339 = vld [vmem:[%s277 + $0xb8] sm:%s270]
                %340 = vst [vmem:[%s278 + $0x78] sm:%s270] %v339
                %v341 = vld [vmem:[%s277 + $0xbc] sm:%s270]
                %342 = vst [vmem:[%s278 + $0x7c] sm:%s270] %v341
                %v343 = vld [vmem:[%s277 + $0x100] sm:%s270]
                %344 = vst [vmem:[%s278 + $0x80] sm:%s270] %v343
                %v345 = vld [vmem:[%s277 + $0x104] sm:%s270]
                %346 = vst [vmem:[%s278 + $0x84] sm:%s270] %v345
                %v347 = vld [vmem:[%s277 + $0x108] sm:%s270]
                %348 = vst [vmem:[%s278 + $0x88] sm:%s270] %v347
                %v349 = vld [vmem:[%s277 + $0x10c] sm:%s270]
                %350 = vst [vmem:[%s278 + $0x8c] sm:%s270] %v349
                %v351 = vld [vmem:[%s277 + $0x110] sm:%s270]
                %352 = vst [vmem:[%s278 + $0x90] sm:%s270] %v351
                %v353 = vld [vmem:[%s277 + $0x114] sm:%s270]
                %354 = vst [vmem:[%s278 + $0x94] sm:%s270] %v353
                %v355 = vld [vmem:[%s277 + $0x118] sm:%s270]
                %356 = vst [vmem:[%s278 + $0x98] sm:%s270] %v355
                %v357 = vld [vmem:[%s277 + $0x11c] sm:%s270]
                %358 = vst [vmem:[%s278 + $0x9c] sm:%s270] %v357
                %v359 = vld [vmem:[%s277 + $0x120] sm:%s270]
                %360 = vst [vmem:[%s278 + $0xa0] sm:%s270] %v359
                %v361 = vld [vmem:[%s277 + $0x124] sm:%s270]
                %362 = vst [vmem:[%s278 + $0xa4] sm:%s270] %v361
                %v363 = vld [vmem:[%s277 + $0x128] sm:%s270]
                %364 = vst [vmem:[%s278 + $0xa8] sm:%s270] %v363
                %v365 = vld [vmem:[%s277 + $0x12c] sm:%s270]
                %366 = vst [vmem:[%s278 + $0xac] sm:%s270] %v365
                %v367 = vld [vmem:[%s277 + $0x130] sm:%s270]
                %368 = vst [vmem:[%s278 + $0xb0] sm:%s270] %v367
                %v369 = vld [vmem:[%s277 + $0x134] sm:%s270]
                %370 = vst [vmem:[%s278 + $0xb4] sm:%s270] %v369
                %v371 = vld [vmem:[%s277 + $0x138] sm:%s270]
                %372 = vst [vmem:[%s278 + $0xb8] sm:%s270] %v371
                %v373 = vld [vmem:[%s277 + $0x13c] sm:%s270]
                %374 = vst [vmem:[%s278 + $0xbc] sm:%s270] %v373
                %v375 = vld [vmem:[%s277 + $0x180] sm:%s270]
                %376 = vst [vmem:[%s278 + $0xc0] sm:%s270] %v375
                %v377 = vld [vmem:[%s277 + $0x184] sm:%s270]
                %378 = vst [vmem:[%s278 + $0xc4] sm:%s270] %v377
                %v379 = vld [vmem:[%s277 + $0x188] sm:%s270]
                %380 = vst [vmem:[%s278 + $0xc8] sm:%s270] %v379
                %v381 = vld [vmem:[%s277 + $0x18c] sm:%s270]
                %382 = vst [vmem:[%s278 + $0xcc] sm:%s270] %v381
                %v383 = vld [vmem:[%s277 + $0x190] sm:%s270]
                %384 = vst [vmem:[%s278 + $0xd0] sm:%s270] %v383
                %v385 = vld [vmem:[%s277 + $0x194] sm:%s270]
                %386 = vst [vmem:[%s278 + $0xd4] sm:%s270] %v385
                %v387 = vld [vmem:[%s277 + $0x198] sm:%s270]
                %388 = vst [vmem:[%s278 + $0xd8] sm:%s270] %v387
                %v389 = vld [vmem:[%s277 + $0x19c] sm:%s270]
                %390 = vst [vmem:[%s278 + $0xdc] sm:%s270] %v389
                %v391 = vld [vmem:[%s277 + $0x1a0] sm:%s270]
                %392 = vst [vmem:[%s278 + $0xe0] sm:%s270] %v391
                %v393 = vld [vmem:[%s277 + $0x1a4] sm:%s270]
                %394 = vst [vmem:[%s278 + $0xe4] sm:%s270] %v393
                %v395 = vld [vmem:[%s277 + $0x1a8] sm:%s270]
                %396 = vst [vmem:[%s278 + $0xe8] sm:%s270] %v395
                %v397 = vld [vmem:[%s277 + $0x1ac] sm:%s270]
                %398 = vst [vmem:[%s278 + $0xec] sm:%s270] %v397
                %v399 = vld [vmem:[%s277 + $0x1b0] sm:%s270]
                %400 = vst [vmem:[%s278 + $0xf0] sm:%s270] %v399
                %v401 = vld [vmem:[%s277 + $0x1b4] sm:%s270]
                %402 = vst [vmem:[%s278 + $0xf4] sm:%s270] %v401
                %v403 = vld [vmem:[%s277 + $0x1b8] sm:%s270]
                %404 = vst [vmem:[%s278 + $0xf8] sm:%s270] %v403
                %v405 = vld [vmem:[%s277 + $0x1bc] sm:%s270]
                %406 = vst [vmem:[%s278 + $0xfc] sm:%s270] %v405
              $region49: #{multi_head_attention.3} parent=43 // loop_footer
                %s276 = sadd.s32 1, %s272
              $region50: #{multi_head_attention.3} parent=43 // loop_footer_branch
                %271 = sbr.rel target = $region46
              $region51: #{multi_head_attention.3} parent=43 // loop_exit
                _
            $region44: #{multi_head_attention.3} parent=35 // pred_fallthru
              _
          $region36: #{multi_head_attention.3} parent=31 // pred_fallthru
            _
          %555 = vnop
        $region32: #{multi_head_attention.3} parent=23 // pred_fallthru
          _
        // Predicated region
        $region70: #{multi_head_attention.3} parent=23 // pred_check
          %p556 = pneg %p112
        $region71: #{multi_head_attention.3} parent=23 // pred_check_branch
          %558 = sbr.rel (%p556) target = $region73
        $region72: #{multi_head_attention.3} parent=23 // pred_region
          %s559 = sand.u32 %s102, 1
          %s560 = sand.u32 %s102, 1
          %s561 = smul.addr %s560, 256
          %s562 = scalar_lea.vmem [#allocation6], %s561
          %s563 = smul.u32 16, %s24
          %s564 = smul.addr %s22, 128
          %s565 = sadd.s32 %s563, %s564
          %s566 = smul.addr %s565, 4
          %s567 = scalar_lea.vmem %s2, %s566
          // Predicated region
          $region74: #{multi_head_attention.3} parent=72 // pred_check
            _
          $region75: #{multi_head_attention.3} parent=72 // pred_check_branch
            %569 = sbr.rel (0) target = $region77
          $region76: #{multi_head_attention.3} parent=72 // pred_region
            // Predicated region
            $region78: #{multi_head_attention.3} parent=76 // pred_check
              _
            $region79: #{multi_head_attention.3} parent=76 // pred_check_branch
              %571 = sbr.rel target = $region81
            $region80: #{multi_head_attention.3} parent=76 // pred_region
              // Predicated region
              $region93: #{multi_head_attention.3} parent=80 // pred_check
                _
              $region94: #{multi_head_attention.3} parent=80 // pred_check_branch
                %713 = sbr.rel (0) target = $region96
              $region95: #{multi_head_attention.3} parent=80 // pred_region
                loop: start=0, step=1, limit=1
                $region97: #{multi_head_attention.3} parent=95 // loop_pre_header
                  _
                $region98: #{multi_head_attention.3} parent=95 // loop_header
                  %s715 = sphi 0, %s719
                  %p716 = scmp.ge.s32.totalorder %s715, 1
                  %s720 = sphi %s567, %s567
                  %s721 = sphi %s562, %s562
                $region99: #{multi_head_attention.3} parent=95 // loop_header_branch
                  %718 = sbr.rel (%p716) target = $region103
                $region100: #{multi_head_attention.3} parent=95 // loop_body
                  _
                $region101: #{multi_head_attention.3} parent=95 // loop_footer
                  %s719 = sadd.s32 1, %s715
                $region102: #{multi_head_attention.3} parent=95 // loop_footer_branch
                  %714 = sbr.rel target = $region98
                $region103: #{multi_head_attention.3} parent=95 // loop_exit
                  _
                %s723 = ssub.s32 16, 1
                loop: start=0, step=1, limit=1
                $region104: #{multi_head_attention.3} parent=95 // loop_pre_header
                  _
                $region105: #{multi_head_attention.3} parent=95 // loop_header
                  %s725 = sphi 0, %s729
                  %p726 = scmp.ge.s32.totalorder %s725, 1
                  %s730 = sphi %s567, %s567
                  %s731 = sphi %s562, %s562
                $region106: #{multi_head_attention.3} parent=95 // loop_header_branch
                  %728 = sbr.rel (%p726) target = $region110
                $region107: #{multi_head_attention.3} parent=95 // loop_body
                  %v732 = vld [vmem:[%s730] sm:%s723]
                  %733 = vst [vmem:[%s731] sm:%s723] %v732
                  %v734 = vld [vmem:[%s730 + $0x4] sm:%s723]
                  %735 = vst [vmem:[%s731 + $0x4] sm:%s723] %v734
                  %v736 = vld [vmem:[%s730 + $0x8] sm:%s723]
                  %737 = vst [vmem:[%s731 + $0x8] sm:%s723] %v736
                  %v738 = vld [vmem:[%s730 + $0xc] sm:%s723]
                  %739 = vst [vmem:[%s731 + $0xc] sm:%s723] %v738
                  %v740 = vld [vmem:[%s730 + $0x10] sm:%s723]
                  %741 = vst [vmem:[%s731 + $0x10] sm:%s723] %v740
                  %v742 = vld [vmem:[%s730 + $0x14] sm:%s723]
                  %743 = vst [vmem:[%s731 + $0x14] sm:%s723] %v742
                  %v744 = vld [vmem:[%s730 + $0x18] sm:%s723]
                  %745 = vst [vmem:[%s731 + $0x18] sm:%s723] %v744
                  %v746 = vld [vmem:[%s730 + $0x1c] sm:%s723]
                  %747 = vst [vmem:[%s731 + $0x1c] sm:%s723] %v746
                  %v748 = vld [vmem:[%s730 + $0x20] sm:%s723]
                  %749 = vst [vmem:[%s731 + $0x20] sm:%s723] %v748
                  %v750 = vld [vmem:[%s730 + $0x24] sm:%s723]
                  %751 = vst [vmem:[%s731 + $0x24] sm:%s723] %v750
                  %v752 = vld [vmem:[%s730 + $0x28] sm:%s723]
                  %753 = vst [vmem:[%s731 + $0x28] sm:%s723] %v752
                  %v754 = vld [vmem:[%s730 + $0x2c] sm:%s723]
                  %755 = vst [vmem:[%s731 + $0x2c] sm:%s723] %v754
                  %v756 = vld [vmem:[%s730 + $0x30] sm:%s723]
                  %757 = vst [vmem:[%s731 + $0x30] sm:%s723] %v756
                  %v758 = vld [vmem:[%s730 + $0x34] sm:%s723]
                  %759 = vst [vmem:[%s731 + $0x34] sm:%s723] %v758
                  %v760 = vld [vmem:[%s730 + $0x38] sm:%s723]
                  %761 = vst [vmem:[%s731 + $0x38] sm:%s723] %v760
                  %v762 = vld [vmem:[%s730 + $0x3c] sm:%s723]
                  %763 = vst [vmem:[%s731 + $0x3c] sm:%s723] %v762
                  %v764 = vld [vmem:[%s730 + $0x80] sm:%s723]
                  %765 = vst [vmem:[%s731 + $0x40] sm:%s723] %v764
                  %v766 = vld [vmem:[%s730 + $0x84] sm:%s723]
                  %767 = vst [vmem:[%s731 + $0x44] sm:%s723] %v766
                  %v768 = vld [vmem:[%s730 + $0x88] sm:%s723]
                  %769 = vst [vmem:[%s731 + $0x48] sm:%s723] %v768
                  %v770 = vld [vmem:[%s730 + $0x8c] sm:%s723]
                  %771 = vst [vmem:[%s731 + $0x4c] sm:%s723] %v770
                  %v772 = vld [vmem:[%s730 + $0x90] sm:%s723]
                  %773 = vst [vmem:[%s731 + $0x50] sm:%s723] %v772
                  %v774 = vld [vmem:[%s730 + $0x94] sm:%s723]
                  %775 = vst [vmem:[%s731 + $0x54] sm:%s723] %v774
                  %v776 = vld [vmem:[%s730 + $0x98] sm:%s723]
                  %777 = vst [vmem:[%s731 + $0x58] sm:%s723] %v776
                  %v778 = vld [vmem:[%s730 + $0x9c] sm:%s723]
                  %779 = vst [vmem:[%s731 + $0x5c] sm:%s723] %v778
                  %v780 = vld [vmem:[%s730 + $0xa0] sm:%s723]
                  %781 = vst [vmem:[%s731 + $0x60] sm:%s723] %v780
                  %v782 = vld [vmem:[%s730 + $0xa4] sm:%s723]
                  %783 = vst [vmem:[%s731 + $0x64] sm:%s723] %v782
                  %v784 = vld [vmem:[%s730 + $0xa8] sm:%s723]
                  %785 = vst [vmem:[%s731 + $0x68] sm:%s723] %v784
                  %v786 = vld [vmem:[%s730 + $0xac] sm:%s723]
                  %787 = vst [vmem:[%s731 + $0x6c] sm:%s723] %v786
                  %v788 = vld [vmem:[%s730 + $0xb0] sm:%s723]
                  %789 = vst [vmem:[%s731 + $0x70] sm:%s723] %v788
                  %v790 = vld [vmem:[%s730 + $0xb4] sm:%s723]
                  %791 = vst [vmem:[%s731 + $0x74] sm:%s723] %v790
                  %v792 = vld [vmem:[%s730 + $0xb8] sm:%s723]
                  %793 = vst [vmem:[%s731 + $0x78] sm:%s723] %v792
                  %v794 = vld [vmem:[%s730 + $0xbc] sm:%s723]
                  %795 = vst [vmem:[%s731 + $0x7c] sm:%s723] %v794
                  %v796 = vld [vmem:[%s730 + $0x100] sm:%s723]
                  %797 = vst [vmem:[%s731 + $0x80] sm:%s723] %v796
                  %v798 = vld [vmem:[%s730 + $0x104] sm:%s723]
                  %799 = vst [vmem:[%s731 + $0x84] sm:%s723] %v798
                  %v800 = vld [vmem:[%s730 + $0x108] sm:%s723]
                  %801 = vst [vmem:[%s731 + $0x88] sm:%s723] %v800
                  %v802 = vld [vmem:[%s730 + $0x10c] sm:%s723]
                  %803 = vst [vmem:[%s731 + $0x8c] sm:%s723] %v802
                  %v804 = vld [vmem:[%s730 + $0x110] sm:%s723]
                  %805 = vst [vmem:[%s731 + $0x90] sm:%s723] %v804
                  %v806 = vld [vmem:[%s730 + $0x114] sm:%s723]
                  %807 = vst [vmem:[%s731 + $0x94] sm:%s723] %v806
                  %v808 = vld [vmem:[%s730 + $0x118] sm:%s723]
                  %809 = vst [vmem:[%s731 + $0x98] sm:%s723] %v808
                  %v810 = vld [vmem:[%s730 + $0x11c] sm:%s723]
                  %811 = vst [vmem:[%s731 + $0x9c] sm:%s723] %v810
                  %v812 = vld [vmem:[%s730 + $0x120] sm:%s723]
                  %813 = vst [vmem:[%s731 + $0xa0] sm:%s723] %v812
                  %v814 = vld [vmem:[%s730 + $0x124] sm:%s723]
                  %815 = vst [vmem:[%s731 + $0xa4] sm:%s723] %v814
                  %v816 = vld [vmem:[%s730 + $0x128] sm:%s723]
                  %817 = vst [vmem:[%s731 + $0xa8] sm:%s723] %v816
                  %v818 = vld [vmem:[%s730 + $0x12c] sm:%s723]
                  %819 = vst [vmem:[%s731 + $0xac] sm:%s723] %v818
                  %v820 = vld [vmem:[%s730 + $0x130] sm:%s723]
                  %821 = vst [vmem:[%s731 + $0xb0] sm:%s723] %v820
                  %v822 = vld [vmem:[%s730 + $0x134] sm:%s723]
                  %823 = vst [vmem:[%s731 + $0xb4] sm:%s723] %v822
                  %v824 = vld [vmem:[%s730 + $0x138] sm:%s723]
                  %825 = vst [vmem:[%s731 + $0xb8] sm:%s723] %v824
                  %v826 = vld [vmem:[%s730 + $0x13c] sm:%s723]
                  %827 = vst [vmem:[%s731 + $0xbc] sm:%s723] %v826
                  %v828 = vld [vmem:[%s730 + $0x180] sm:%s723]
                  %829 = vst [vmem:[%s731 + $0xc0] sm:%s723] %v828
                  %v830 = vld [vmem:[%s730 + $0x184] sm:%s723]
                  %831 = vst [vmem:[%s731 + $0xc4] sm:%s723] %v830
                  %v832 = vld [vmem:[%s730 + $0x188] sm:%s723]
                  %833 = vst [vmem:[%s731 + $0xc8] sm:%s723] %v832
                  %v834 = vld [vmem:[%s730 + $0x18c] sm:%s723]
                  %835 = vst [vmem:[%s731 + $0xcc] sm:%s723] %v834
                  %v836 = vld [vmem:[%s730 + $0x190] sm:%s723]
                  %837 = vst [vmem:[%s731 + $0xd0] sm:%s723] %v836
                  %v838 = vld [vmem:[%s730 + $0x194] sm:%s723]
                  %839 = vst [vmem:[%s731 + $0xd4] sm:%s723] %v838
                  %v840 = vld [vmem:[%s730 + $0x198] sm:%s723]
                  %841 = vst [vmem:[%s731 + $0xd8] sm:%s723] %v840
                  %v842 = vld [vmem:[%s730 + $0x19c] sm:%s723]
                  %843 = vst [vmem:[%s731 + $0xdc] sm:%s723] %v842
                  %v844 = vld [vmem:[%s730 + $0x1a0] sm:%s723]
                  %845 = vst [vmem:[%s731 + $0xe0] sm:%s723] %v844
                  %v846 = vld [vmem:[%s730 + $0x1a4] sm:%s723]
                  %847 = vst [vmem:[%s731 + $0xe4] sm:%s723] %v846
                  %v848 = vld [vmem:[%s730 + $0x1a8] sm:%s723]
                  %849 = vst [vmem:[%s731 + $0xe8] sm:%s723] %v848
                  %v850 = vld [vmem:[%s730 + $0x1ac] sm:%s723]
                  %851 = vst [vmem:[%s731 + $0xec] sm:%s723] %v850
                  %v852 = vld [vmem:[%s730 + $0x1b0] sm:%s723]
                  %853 = vst [vmem:[%s731 + $0xf0] sm:%s723] %v852
                  %v854 = vld [vmem:[%s730 + $0x1b4] sm:%s723]
                  %855 = vst [vmem:[%s731 + $0xf4] sm:%s723] %v854
                  %v856 = vld [vmem:[%s730 + $0x1b8] sm:%s723]
                  %857 = vst [vmem:[%s731 + $0xf8] sm:%s723] %v856
                  %v858 = vld [vmem:[%s730 + $0x1bc] sm:%s723]
                  %859 = vst [vmem:[%s731 + $0xfc] sm:%s723] %v858
                $region108: #{multi_head_attention.3} parent=95 // loop_footer
                  %s729 = sadd.s32 1, %s725
                $region109: #{multi_head_attention.3} parent=95 // loop_footer_branch
                  %724 = sbr.rel target = $region105
                $region110: #{multi_head_attention.3} parent=95 // loop_exit
                  _
              $region96: #{multi_head_attention.3} parent=80 // pred_fallthru
                _
            $region81: #{multi_head_attention.3} parent=76 // pred_fallthru
              _
            // Predicated region
            $region82: #{multi_head_attention.3} parent=76 // pred_check
              _
            $region83: #{multi_head_attention.3} parent=76 // pred_check_branch
              %573 = sbr.rel (0) target = $region85
            $region84: #{multi_head_attention.3} parent=76 // pred_region
              %s575 = ssub.s32 16, 1
              loop: start=0, step=1, limit=1
              $region86: #{multi_head_attention.3} parent=84 // loop_pre_header
                _
              $region87: #{multi_head_attention.3} parent=84 // loop_header
                %s577 = sphi 0, %s581
                %p578 = scmp.ge.s32.totalorder %s577, 1
                %s582 = sphi %s567, %s567
                %s583 = sphi %s562, %s562
              $region88: #{multi_head_attention.3} parent=84 // loop_header_branch
                %580 = sbr.rel (%p578) target = $region92
              $region89: #{multi_head_attention.3} parent=84 // loop_body
                %v584 = vld [vmem:[%s582] sm:%s575]
                %585 = vst [vmem:[%s583] sm:%s575] %v584
                %v586 = vld [vmem:[%s582 + $0x4] sm:%s575]
                %587 = vst [vmem:[%s583 + $0x4] sm:%s575] %v586
                %v588 = vld [vmem:[%s582 + $0x8] sm:%s575]
                %589 = vst [vmem:[%s583 + $0x8] sm:%s575] %v588
                %v590 = vld [vmem:[%s582 + $0xc] sm:%s575]
                %591 = vst [vmem:[%s583 + $0xc] sm:%s575] %v590
                %v592 = vld [vmem:[%s582 + $0x10] sm:%s575]
                %593 = vst [vmem:[%s583 + $0x10] sm:%s575] %v592
                %v594 = vld [vmem:[%s582 + $0x14] sm:%s575]
                %595 = vst [vmem:[%s583 + $0x14] sm:%s575] %v594
                %v596 = vld [vmem:[%s582 + $0x18] sm:%s575]
                %597 = vst [vmem:[%s583 + $0x18] sm:%s575] %v596
                %v598 = vld [vmem:[%s582 + $0x1c] sm:%s575]
                %599 = vst [vmem:[%s583 + $0x1c] sm:%s575] %v598
                %v600 = vld [vmem:[%s582 + $0x20] sm:%s575]
                %601 = vst [vmem:[%s583 + $0x20] sm:%s575] %v600
                %v602 = vld [vmem:[%s582 + $0x24] sm:%s575]
                %603 = vst [vmem:[%s583 + $0x24] sm:%s575] %v602
                %v604 = vld [vmem:[%s582 + $0x28] sm:%s575]
                %605 = vst [vmem:[%s583 + $0x28] sm:%s575] %v604
                %v606 = vld [vmem:[%s582 + $0x2c] sm:%s575]
                %607 = vst [vmem:[%s583 + $0x2c] sm:%s575] %v606
                %v608 = vld [vmem:[%s582 + $0x30] sm:%s575]
                %609 = vst [vmem:[%s583 + $0x30] sm:%s575] %v608
                %v610 = vld [vmem:[%s582 + $0x34] sm:%s575]
                %611 = vst [vmem:[%s583 + $0x34] sm:%s575] %v610
                %v612 = vld [vmem:[%s582 + $0x38] sm:%s575]
                %613 = vst [vmem:[%s583 + $0x38] sm:%s575] %v612
                %v614 = vld [vmem:[%s582 + $0x3c] sm:%s575]
                %615 = vst [vmem:[%s583 + $0x3c] sm:%s575] %v614
                %v616 = vld [vmem:[%s582 + $0x80] sm:%s575]
                %617 = vst [vmem:[%s583 + $0x40] sm:%s575] %v616
                %v618 = vld [vmem:[%s582 + $0x84] sm:%s575]
                %619 = vst [vmem:[%s583 + $0x44] sm:%s575] %v618
                %v620 = vld [vmem:[%s582 + $0x88] sm:%s575]
                %621 = vst [vmem:[%s583 + $0x48] sm:%s575] %v620
                %v622 = vld [vmem:[%s582 + $0x8c] sm:%s575]
                %623 = vst [vmem:[%s583 + $0x4c] sm:%s575] %v622
                %v624 = vld [vmem:[%s582 + $0x90] sm:%s575]
                %625 = vst [vmem:[%s583 + $0x50] sm:%s575] %v624
                %v626 = vld [vmem:[%s582 + $0x94] sm:%s575]
                %627 = vst [vmem:[%s583 + $0x54] sm:%s575] %v626
                %v628 = vld [vmem:[%s582 + $0x98] sm:%s575]
                %629 = vst [vmem:[%s583 + $0x58] sm:%s575] %v628
                %v630 = vld [vmem:[%s582 + $0x9c] sm:%s575]
                %631 = vst [vmem:[%s583 + $0x5c] sm:%s575] %v630
                %v632 = vld [vmem:[%s582 + $0xa0] sm:%s575]
                %633 = vst [vmem:[%s583 + $0x60] sm:%s575] %v632
                %v634 = vld [vmem:[%s582 + $0xa4] sm:%s575]
                %635 = vst [vmem:[%s583 + $0x64] sm:%s575] %v634
                %v636 = vld [vmem:[%s582 + $0xa8] sm:%s575]
                %637 = vst [vmem:[%s583 + $0x68] sm:%s575] %v636
                %v638 = vld [vmem:[%s582 + $0xac] sm:%s575]
                %639 = vst [vmem:[%s583 + $0x6c] sm:%s575] %v638
                %v640 = vld [vmem:[%s582 + $0xb0] sm:%s575]
                %641 = vst [vmem:[%s583 + $0x70] sm:%s575] %v640
                %v642 = vld [vmem:[%s582 + $0xb4] sm:%s575]
                %643 = vst [vmem:[%s583 + $0x74] sm:%s575] %v642
                %v644 = vld [vmem:[%s582 + $0xb8] sm:%s575]
                %645 = vst [vmem:[%s583 + $0x78] sm:%s575] %v644
                %v646 = vld [vmem:[%s582 + $0xbc] sm:%s575]
                %647 = vst [vmem:[%s583 + $0x7c] sm:%s575] %v646
                %v648 = vld [vmem:[%s582 + $0x100] sm:%s575]
                %649 = vst [vmem:[%s583 + $0x80] sm:%s575] %v648
                %v650 = vld [vmem:[%s582 + $0x104] sm:%s575]
                %651 = vst [vmem:[%s583 + $0x84] sm:%s575] %v650
                %v652 = vld [vmem:[%s582 + $0x108] sm:%s575]
                %653 = vst [vmem:[%s583 + $0x88] sm:%s575] %v652
                %v654 = vld [vmem:[%s582 + $0x10c] sm:%s575]
                %655 = vst [vmem:[%s583 + $0x8c] sm:%s575] %v654
                %v656 = vld [vmem:[%s582 + $0x110] sm:%s575]
                %657 = vst [vmem:[%s583 + $0x90] sm:%s575] %v656
                %v658 = vld [vmem:[%s582 + $0x114] sm:%s575]
                %659 = vst [vmem:[%s583 + $0x94] sm:%s575] %v658
                %v660 = vld [vmem:[%s582 + $0x118] sm:%s575]
                %661 = vst [vmem:[%s583 + $0x98] sm:%s575] %v660
                %v662 = vld [vmem:[%s582 + $0x11c] sm:%s575]
                %663 = vst [vmem:[%s583 + $0x9c] sm:%s575] %v662
                %v664 = vld [vmem:[%s582 + $0x120] sm:%s575]
                %665 = vst [vmem:[%s583 + $0xa0] sm:%s575] %v664
                %v666 = vld [vmem:[%s582 + $0x124] sm:%s575]
                %667 = vst [vmem:[%s583 + $0xa4] sm:%s575] %v666
                %v668 = vld [vmem:[%s582 + $0x128] sm:%s575]
                %669 = vst [vmem:[%s583 + $0xa8] sm:%s575] %v668
                %v670 = vld [vmem:[%s582 + $0x12c] sm:%s575]
                %671 = vst [vmem:[%s583 + $0xac] sm:%s575] %v670
                %v672 = vld [vmem:[%s582 + $0x130] sm:%s575]
                %673 = vst [vmem:[%s583 + $0xb0] sm:%s575] %v672
                %v674 = vld [vmem:[%s582 + $0x134] sm:%s575]
                %675 = vst [vmem:[%s583 + $0xb4] sm:%s575] %v674
                %v676 = vld [vmem:[%s582 + $0x138] sm:%s575]
                %677 = vst [vmem:[%s583 + $0xb8] sm:%s575] %v676
                %v678 = vld [vmem:[%s582 + $0x13c] sm:%s575]
                %679 = vst [vmem:[%s583 + $0xbc] sm:%s575] %v678
                %v680 = vld [vmem:[%s582 + $0x180] sm:%s575]
                %681 = vst [vmem:[%s583 + $0xc0] sm:%s575] %v680
                %v682 = vld [vmem:[%s582 + $0x184] sm:%s575]
                %683 = vst [vmem:[%s583 + $0xc4] sm:%s575] %v682
                %v684 = vld [vmem:[%s582 + $0x188] sm:%s575]
                %685 = vst [vmem:[%s583 + $0xc8] sm:%s575] %v684
                %v686 = vld [vmem:[%s582 + $0x18c] sm:%s575]
                %687 = vst [vmem:[%s583 + $0xcc] sm:%s575] %v686
                %v688 = vld [vmem:[%s582 + $0x190] sm:%s575]
                %689 = vst [vmem:[%s583 + $0xd0] sm:%s575] %v688
                %v690 = vld [vmem:[%s582 + $0x194] sm:%s575]
                %691 = vst [vmem:[%s583 + $0xd4] sm:%s575] %v690
                %v692 = vld [vmem:[%s582 + $0x198] sm:%s575]
                %693 = vst [vmem:[%s583 + $0xd8] sm:%s575] %v692
                %v694 = vld [vmem:[%s582 + $0x19c] sm:%s575]
                %695 = vst [vmem:[%s583 + $0xdc] sm:%s575] %v694
                %v696 = vld [vmem:[%s582 + $0x1a0] sm:%s575]
                %697 = vst [vmem:[%s583 + $0xe0] sm:%s575] %v696
                %v698 = vld [vmem:[%s582 + $0x1a4] sm:%s575]
                %699 = vst [vmem:[%s583 + $0xe4] sm:%s575] %v698
                %v700 = vld [vmem:[%s582 + $0x1a8] sm:%s575]
                %701 = vst [vmem:[%s583 + $0xe8] sm:%s575] %v700
                %v702 = vld [vmem:[%s582 + $0x1ac] sm:%s575]
                %703 = vst [vmem:[%s583 + $0xec] sm:%s575] %v702
                %v704 = vld [vmem:[%s582 + $0x1b0] sm:%s575]
                %705 = vst [vmem:[%s583 + $0xf0] sm:%s575] %v704
                %v706 = vld [vmem:[%s582 + $0x1b4] sm:%s575]
                %707 = vst [vmem:[%s583 + $0xf4] sm:%s575] %v706
                %v708 = vld [vmem:[%s582 + $0x1b8] sm:%s575]
                %709 = vst [vmem:[%s583 + $0xf8] sm:%s575] %v708
                %v710 = vld [vmem:[%s582 + $0x1bc] sm:%s575]
                %711 = vst [vmem:[%s583 + $0xfc] sm:%s575] %v710
              $region90: #{multi_head_attention.3} parent=84 // loop_footer
                %s581 = sadd.s32 1, %s577
              $region91: #{multi_head_attention.3} parent=84 // loop_footer_branch
                %576 = sbr.rel target = $region87
              $region92: #{multi_head_attention.3} parent=84 // loop_exit
                _
            $region85: #{multi_head_attention.3} parent=76 // pred_fallthru
              _
          $region77: #{multi_head_attention.3} parent=72 // pred_fallthru
            _
          %860 = vnop
        $region73: #{multi_head_attention.3} parent=23 // pred_fallthru
          _
        // Predicated region
        $region111: #{multi_head_attention.3} parent=23 // pred_check
          %p861 = pneg %p140
        $region112: #{multi_head_attention.3} parent=23 // pred_check_branch
          %863 = sbr.rel (%p861) target = $region114
        $region113: #{multi_head_attention.3} parent=23 // pred_region
          %s864 = sand.u32 %s130, 1
          %s865 = sand.u32 %s130, 1
          %s866 = smul.addr %s865, 256
          %s867 = scalar_lea.vmem [#allocation7], %s866
          %s868 = smul.u32 16, %s24
          %s869 = smul.addr %s22, 128
          %s870 = sadd.s32 %s868, %s869
          %s871 = smul.addr %s870, 4
          %s872 = scalar_lea.vmem %s3, %s871
          // Predicated region
          $region115: #{multi_head_attention.3} parent=113 // pred_check
            _
          $region116: #{multi_head_attention.3} parent=113 // pred_check_branch
            %874 = sbr.rel (0) target = $region118
          $region117: #{multi_head_attention.3} parent=113 // pred_region
            // Predicated region
            $region119: #{multi_head_attention.3} parent=117 // pred_check
              _
            $region120: #{multi_head_attention.3} parent=117 // pred_check_branch
              %876 = sbr.rel target = $region122
            $region121: #{multi_head_attention.3} parent=117 // pred_region
              // Predicated region
              $region134: #{multi_head_attention.3} parent=121 // pred_check
                _
              $region135: #{multi_head_attention.3} parent=121 // pred_check_branch
                %1018 = sbr.rel (0) target = $region137
              $region136: #{multi_head_attention.3} parent=121 // pred_region
                loop: start=0, step=1, limit=1
                $region138: #{multi_head_attention.3} parent=136 // loop_pre_header
                  _
                $region139: #{multi_head_attention.3} parent=136 // loop_header
                  %s1020 = sphi 0, %s1024
                  %p1021 = scmp.ge.s32.totalorder %s1020, 1
                  %s1025 = sphi %s872, %s872
                  %s1026 = sphi %s867, %s867
                $region140: #{multi_head_attention.3} parent=136 // loop_header_branch
                  %1023 = sbr.rel (%p1021) target = $region144
                $region141: #{multi_head_attention.3} parent=136 // loop_body
                  _
                $region142: #{multi_head_attention.3} parent=136 // loop_footer
                  %s1024 = sadd.s32 1, %s1020
                $region143: #{multi_head_attention.3} parent=136 // loop_footer_branch
                  %1019 = sbr.rel target = $region139
                $region144: #{multi_head_attention.3} parent=136 // loop_exit
                  _
                %s1028 = ssub.s32 16, 1
                loop: start=0, step=1, limit=1
                $region145: #{multi_head_attention.3} parent=136 // loop_pre_header
                  _
                $region146: #{multi_head_attention.3} parent=136 // loop_header
                  %s1030 = sphi 0, %s1034
                  %p1031 = scmp.ge.s32.totalorder %s1030, 1
                  %s1035 = sphi %s872, %s872
                  %s1036 = sphi %s867, %s867
                $region147: #{multi_head_attention.3} parent=136 // loop_header_branch
                  %1033 = sbr.rel (%p1031) target = $region151
                $region148: #{multi_head_attention.3} parent=136 // loop_body
                  %v1037 = vld [vmem:[%s1035] sm:%s1028]
                  %1038 = vst [vmem:[%s1036] sm:%s1028] %v1037
                  %v1039 = vld [vmem:[%s1035 + $0x4] sm:%s1028]
                  %1040 = vst [vmem:[%s1036 + $0x4] sm:%s1028] %v1039
                  %v1041 = vld [vmem:[%s1035 + $0x8] sm:%s1028]
                  %1042 = vst [vmem:[%s1036 + $0x8] sm:%s1028] %v1041
                  %v1043 = vld [vmem:[%s1035 + $0xc] sm:%s1028]
                  %1044 = vst [vmem:[%s1036 + $0xc] sm:%s1028] %v1043
                  %v1045 = vld [vmem:[%s1035 + $0x10] sm:%s1028]
                  %1046 = vst [vmem:[%s1036 + $0x10] sm:%s1028] %v1045
                  %v1047 = vld [vmem:[%s1035 + $0x14] sm:%s1028]
                  %1048 = vst [vmem:[%s1036 + $0x14] sm:%s1028] %v1047
                  %v1049 = vld [vmem:[%s1035 + $0x18] sm:%s1028]
                  %1050 = vst [vmem:[%s1036 + $0x18] sm:%s1028] %v1049
                  %v1051 = vld [vmem:[%s1035 + $0x1c] sm:%s1028]
                  %1052 = vst [vmem:[%s1036 + $0x1c] sm:%s1028] %v1051
                  %v1053 = vld [vmem:[%s1035 + $0x20] sm:%s1028]
                  %1054 = vst [vmem:[%s1036 + $0x20] sm:%s1028] %v1053
                  %v1055 = vld [vmem:[%s1035 + $0x24] sm:%s1028]
                  %1056 = vst [vmem:[%s1036 + $0x24] sm:%s1028] %v1055
                  %v1057 = vld [vmem:[%s1035 + $0x28] sm:%s1028]
                  %1058 = vst [vmem:[%s1036 + $0x28] sm:%s1028] %v1057
                  %v1059 = vld [vmem:[%s1035 + $0x2c] sm:%s1028]
                  %1060 = vst [vmem:[%s1036 + $0x2c] sm:%s1028] %v1059
                  %v1061 = vld [vmem:[%s1035 + $0x30] sm:%s1028]
                  %1062 = vst [vmem:[%s1036 + $0x30] sm:%s1028] %v1061
                  %v1063 = vld [vmem:[%s1035 + $0x34] sm:%s1028]
                  %1064 = vst [vmem:[%s1036 + $0x34] sm:%s1028] %v1063
                  %v1065 = vld [vmem:[%s1035 + $0x38] sm:%s1028]
                  %1066 = vst [vmem:[%s1036 + $0x38] sm:%s1028] %v1065
                  %v1067 = vld [vmem:[%s1035 + $0x3c] sm:%s1028]
                  %1068 = vst [vmem:[%s1036 + $0x3c] sm:%s1028] %v1067
                  %v1069 = vld [vmem:[%s1035 + $0x80] sm:%s1028]
                  %1070 = vst [vmem:[%s1036 + $0x40] sm:%s1028] %v1069
                  %v1071 = vld [vmem:[%s1035 + $0x84] sm:%s1028]
                  %1072 = vst [vmem:[%s1036 + $0x44] sm:%s1028] %v1071
                  %v1073 = vld [vmem:[%s1035 + $0x88] sm:%s1028]
                  %1074 = vst [vmem:[%s1036 + $0x48] sm:%s1028] %v1073
                  %v1075 = vld [vmem:[%s1035 + $0x8c] sm:%s1028]
                  %1076 = vst [vmem:[%s1036 + $0x4c] sm:%s1028] %v1075
                  %v1077 = vld [vmem:[%s1035 + $0x90] sm:%s1028]
                  %1078 = vst [vmem:[%s1036 + $0x50] sm:%s1028] %v1077
                  %v1079 = vld [vmem:[%s1035 + $0x94] sm:%s1028]
                  %1080 = vst [vmem:[%s1036 + $0x54] sm:%s1028] %v1079
                  %v1081 = vld [vmem:[%s1035 + $0x98] sm:%s1028]
                  %1082 = vst [vmem:[%s1036 + $0x58] sm:%s1028] %v1081
                  %v1083 = vld [vmem:[%s1035 + $0x9c] sm:%s1028]
                  %1084 = vst [vmem:[%s1036 + $0x5c] sm:%s1028] %v1083
                  %v1085 = vld [vmem:[%s1035 + $0xa0] sm:%s1028]
                  %1086 = vst [vmem:[%s1036 + $0x60] sm:%s1028] %v1085
                  %v1087 = vld [vmem:[%s1035 + $0xa4] sm:%s1028]
                  %1088 = vst [vmem:[%s1036 + $0x64] sm:%s1028] %v1087
                  %v1089 = vld [vmem:[%s1035 + $0xa8] sm:%s1028]
                  %1090 = vst [vmem:[%s1036 + $0x68] sm:%s1028] %v1089
                  %v1091 = vld [vmem:[%s1035 + $0xac] sm:%s1028]
                  %1092 = vst [vmem:[%s1036 + $0x6c] sm:%s1028] %v1091
                  %v1093 = vld [vmem:[%s1035 + $0xb0] sm:%s1028]
                  %1094 = vst [vmem:[%s1036 + $0x70] sm:%s1028] %v1093
                  %v1095 = vld [vmem:[%s1035 + $0xb4] sm:%s1028]
                  %1096 = vst [vmem:[%s1036 + $0x74] sm:%s1028] %v1095
                  %v1097 = vld [vmem:[%s1035 + $0xb8] sm:%s1028]
                  %1098 = vst [vmem:[%s1036 + $0x78] sm:%s1028] %v1097
                  %v1099 = vld [vmem:[%s1035 + $0xbc] sm:%s1028]
                  %1100 = vst [vmem:[%s1036 + $0x7c] sm:%s1028] %v1099
                  %v1101 = vld [vmem:[%s1035 + $0x100] sm:%s1028]
                  %1102 = vst [vmem:[%s1036 + $0x80] sm:%s1028] %v1101
                  %v1103 = vld [vmem:[%s1035 + $0x104] sm:%s1028]
                  %1104 = vst [vmem:[%s1036 + $0x84] sm:%s1028] %v1103
                  %v1105 = vld [vmem:[%s1035 + $0x108] sm:%s1028]
                  %1106 = vst [vmem:[%s1036 + $0x88] sm:%s1028] %v1105
                  %v1107 = vld [vmem:[%s1035 + $0x10c] sm:%s1028]
                  %1108 = vst [vmem:[%s1036 + $0x8c] sm:%s1028] %v1107
                  %v1109 = vld [vmem:[%s1035 + $0x110] sm:%s1028]
                  %1110 = vst [vmem:[%s1036 + $0x90] sm:%s1028] %v1109
                  %v1111 = vld [vmem:[%s1035 + $0x114] sm:%s1028]
                  %1112 = vst [vmem:[%s1036 + $0x94] sm:%s1028] %v1111
                  %v1113 = vld [vmem:[%s1035 + $0x118] sm:%s1028]
                  %1114 = vst [vmem:[%s1036 + $0x98] sm:%s1028] %v1113
                  %v1115 = vld [vmem:[%s1035 + $0x11c] sm:%s1028]
                  %1116 = vst [vmem:[%s1036 + $0x9c] sm:%s1028] %v1115
                  %v1117 = vld [vmem:[%s1035 + $0x120] sm:%s1028]
                  %1118 = vst [vmem:[%s1036 + $0xa0] sm:%s1028] %v1117
                  %v1119 = vld [vmem:[%s1035 + $0x124] sm:%s1028]
                  %1120 = vst [vmem:[%s1036 + $0xa4] sm:%s1028] %v1119
                  %v1121 = vld [vmem:[%s1035 + $0x128] sm:%s1028]
                  %1122 = vst [vmem:[%s1036 + $0xa8] sm:%s1028] %v1121
                  %v1123 = vld [vmem:[%s1035 + $0x12c] sm:%s1028]
                  %1124 = vst [vmem:[%s1036 + $0xac] sm:%s1028] %v1123
                  %v1125 = vld [vmem:[%s1035 + $0x130] sm:%s1028]
                  %1126 = vst [vmem:[%s1036 + $0xb0] sm:%s1028] %v1125
                  %v1127 = vld [vmem:[%s1035 + $0x134] sm:%s1028]
                  %1128 = vst [vmem:[%s1036 + $0xb4] sm:%s1028] %v1127
                  %v1129 = vld [vmem:[%s1035 + $0x138] sm:%s1028]
                  %1130 = vst [vmem:[%s1036 + $0xb8] sm:%s1028] %v1129
                  %v1131 = vld [vmem:[%s1035 + $0x13c] sm:%s1028]
                  %1132 = vst [vmem:[%s1036 + $0xbc] sm:%s1028] %v1131
                  %v1133 = vld [vmem:[%s1035 + $0x180] sm:%s1028]
                  %1134 = vst [vmem:[%s1036 + $0xc0] sm:%s1028] %v1133
                  %v1135 = vld [vmem:[%s1035 + $0x184] sm:%s1028]
                  %1136 = vst [vmem:[%s1036 + $0xc4] sm:%s1028] %v1135
                  %v1137 = vld [vmem:[%s1035 + $0x188] sm:%s1028]
                  %1138 = vst [vmem:[%s1036 + $0xc8] sm:%s1028] %v1137
                  %v1139 = vld [vmem:[%s1035 + $0x18c] sm:%s1028]
                  %1140 = vst [vmem:[%s1036 + $0xcc] sm:%s1028] %v1139
                  %v1141 = vld [vmem:[%s1035 + $0x190] sm:%s1028]
                  %1142 = vst [vmem:[%s1036 + $0xd0] sm:%s1028] %v1141
                  %v1143 = vld [vmem:[%s1035 + $0x194] sm:%s1028]
                  %1144 = vst [vmem:[%s1036 + $0xd4] sm:%s1028] %v1143
                  %v1145 = vld [vmem:[%s1035 + $0x198] sm:%s1028]
                  %1146 = vst [vmem:[%s1036 + $0xd8] sm:%s1028] %v1145
                  %v1147 = vld [vmem:[%s1035 + $0x19c] sm:%s1028]
                  %1148 = vst [vmem:[%s1036 + $0xdc] sm:%s1028] %v1147
                  %v1149 = vld [vmem:[%s1035 + $0x1a0] sm:%s1028]
                  %1150 = vst [vmem:[%s1036 + $0xe0] sm:%s1028] %v1149
                  %v1151 = vld [vmem:[%s1035 + $0x1a4] sm:%s1028]
                  %1152 = vst [vmem:[%s1036 + $0xe4] sm:%s1028] %v1151
                  %v1153 = vld [vmem:[%s1035 + $0x1a8] sm:%s1028]
                  %1154 = vst [vmem:[%s1036 + $0xe8] sm:%s1028] %v1153
                  %v1155 = vld [vmem:[%s1035 + $0x1ac] sm:%s1028]
                  %1156 = vst [vmem:[%s1036 + $0xec] sm:%s1028] %v1155
                  %v1157 = vld [vmem:[%s1035 + $0x1b0] sm:%s1028]
                  %1158 = vst [vmem:[%s1036 + $0xf0] sm:%s1028] %v1157
                  %v1159 = vld [vmem:[%s1035 + $0x1b4] sm:%s1028]
                  %1160 = vst [vmem:[%s1036 + $0xf4] sm:%s1028] %v1159
                  %v1161 = vld [vmem:[%s1035 + $0x1b8] sm:%s1028]
                  %1162 = vst [vmem:[%s1036 + $0xf8] sm:%s1028] %v1161
                  %v1163 = vld [vmem:[%s1035 + $0x1bc] sm:%s1028]
                  %1164 = vst [vmem:[%s1036 + $0xfc] sm:%s1028] %v1163
                $region149: #{multi_head_attention.3} parent=136 // loop_footer
                  %s1034 = sadd.s32 1, %s1030
                $region150: #{multi_head_attention.3} parent=136 // loop_footer_branch
                  %1029 = sbr.rel target = $region146
                $region151: #{multi_head_attention.3} parent=136 // loop_exit
                  _
              $region137: #{multi_head_attention.3} parent=121 // pred_fallthru
                _
            $region122: #{multi_head_attention.3} parent=117 // pred_fallthru
              _
            // Predicated region
            $region123: #{multi_head_attention.3} parent=117 // pred_check
              _
            $region124: #{multi_head_attention.3} parent=117 // pred_check_branch
              %878 = sbr.rel (0) target = $region126
            $region125: #{multi_head_attention.3} parent=117 // pred_region
              %s880 = ssub.s32 16, 1
              loop: start=0, step=1, limit=1
              $region127: #{multi_head_attention.3} parent=125 // loop_pre_header
                _
              $region128: #{multi_head_attention.3} parent=125 // loop_header
                %s882 = sphi 0, %s886
                %p883 = scmp.ge.s32.totalorder %s882, 1
                %s887 = sphi %s872, %s872
                %s888 = sphi %s867, %s867
              $region129: #{multi_head_attention.3} parent=125 // loop_header_branch
                %885 = sbr.rel (%p883) target = $region133
              $region130: #{multi_head_attention.3} parent=125 // loop_body
                %v889 = vld [vmem:[%s887] sm:%s880]
                %890 = vst [vmem:[%s888] sm:%s880] %v889
                %v891 = vld [vmem:[%s887 + $0x4] sm:%s880]
                %892 = vst [vmem:[%s888 + $0x4] sm:%s880] %v891
                %v893 = vld [vmem:[%s887 + $0x8] sm:%s880]
                %894 = vst [vmem:[%s888 + $0x8] sm:%s880] %v893
                %v895 = vld [vmem:[%s887 + $0xc] sm:%s880]
                %896 = vst [vmem:[%s888 + $0xc] sm:%s880] %v895
                %v897 = vld [vmem:[%s887 + $0x10] sm:%s880]
                %898 = vst [vmem:[%s888 + $0x10] sm:%s880] %v897
                %v899 = vld [vmem:[%s887 + $0x14] sm:%s880]
                %900 = vst [vmem:[%s888 + $0x14] sm:%s880] %v899
                %v901 = vld [vmem:[%s887 + $0x18] sm:%s880]
                %902 = vst [vmem:[%s888 + $0x18] sm:%s880] %v901
                %v903 = vld [vmem:[%s887 + $0x1c] sm:%s880]
                %904 = vst [vmem:[%s888 + $0x1c] sm:%s880] %v903
                %v905 = vld [vmem:[%s887 + $0x20] sm:%s880]
                %906 = vst [vmem:[%s888 + $0x20] sm:%s880] %v905
                %v907 = vld [vmem:[%s887 + $0x24] sm:%s880]
                %908 = vst [vmem:[%s888 + $0x24] sm:%s880] %v907
                %v909 = vld [vmem:[%s887 + $0x28] sm:%s880]
                %910 = vst [vmem:[%s888 + $0x28] sm:%s880] %v909
                %v911 = vld [vmem:[%s887 + $0x2c] sm:%s880]
                %912 = vst [vmem:[%s888 + $0x2c] sm:%s880] %v911
                %v913 = vld [vmem:[%s887 + $0x30] sm:%s880]
                %914 = vst [vmem:[%s888 + $0x30] sm:%s880] %v913
                %v915 = vld [vmem:[%s887 + $0x34] sm:%s880]
                %916 = vst [vmem:[%s888 + $0x34] sm:%s880] %v915
                %v917 = vld [vmem:[%s887 + $0x38] sm:%s880]
                %918 = vst [vmem:[%s888 + $0x38] sm:%s880] %v917
                %v919 = vld [vmem:[%s887 + $0x3c] sm:%s880]
                %920 = vst [vmem:[%s888 + $0x3c] sm:%s880] %v919
                %v921 = vld [vmem:[%s887 + $0x80] sm:%s880]
                %922 = vst [vmem:[%s888 + $0x40] sm:%s880] %v921
                %v923 = vld [vmem:[%s887 + $0x84] sm:%s880]
                %924 = vst [vmem:[%s888 + $0x44] sm:%s880] %v923
                %v925 = vld [vmem:[%s887 + $0x88] sm:%s880]
                %926 = vst [vmem:[%s888 + $0x48] sm:%s880] %v925
                %v927 = vld [vmem:[%s887 + $0x8c] sm:%s880]
                %928 = vst [vmem:[%s888 + $0x4c] sm:%s880] %v927
                %v929 = vld [vmem:[%s887 + $0x90] sm:%s880]
                %930 = vst [vmem:[%s888 + $0x50] sm:%s880] %v929
                %v931 = vld [vmem:[%s887 + $0x94] sm:%s880]
                %932 = vst [vmem:[%s888 + $0x54] sm:%s880] %v931
                %v933 = vld [vmem:[%s887 + $0x98] sm:%s880]
                %934 = vst [vmem:[%s888 + $0x58] sm:%s880] %v933
                %v935 = vld [vmem:[%s887 + $0x9c] sm:%s880]
                %936 = vst [vmem:[%s888 + $0x5c] sm:%s880] %v935
                %v937 = vld [vmem:[%s887 + $0xa0] sm:%s880]
                %938 = vst [vmem:[%s888 + $0x60] sm:%s880] %v937
                %v939 = vld [vmem:[%s887 + $0xa4] sm:%s880]
                %940 = vst [vmem:[%s888 + $0x64] sm:%s880] %v939
                %v941 = vld [vmem:[%s887 + $0xa8] sm:%s880]
                %942 = vst [vmem:[%s888 + $0x68] sm:%s880] %v941
                %v943 = vld [vmem:[%s887 + $0xac] sm:%s880]
                %944 = vst [vmem:[%s888 + $0x6c] sm:%s880] %v943
                %v945 = vld [vmem:[%s887 + $0xb0] sm:%s880]
                %946 = vst [vmem:[%s888 + $0x70] sm:%s880] %v945
                %v947 = vld [vmem:[%s887 + $0xb4] sm:%s880]
                %948 = vst [vmem:[%s888 + $0x74] sm:%s880] %v947
                %v949 = vld [vmem:[%s887 + $0xb8] sm:%s880]
                %950 = vst [vmem:[%s888 + $0x78] sm:%s880] %v949
                %v951 = vld [vmem:[%s887 + $0xbc] sm:%s880]
                %952 = vst [vmem:[%s888 + $0x7c] sm:%s880] %v951
                %v953 = vld [vmem:[%s887 + $0x100] sm:%s880]
                %954 = vst [vmem:[%s888 + $0x80] sm:%s880] %v953
                %v955 = vld [vmem:[%s887 + $0x104] sm:%s880]
                %956 = vst [vmem:[%s888 + $0x84] sm:%s880] %v955
                %v957 = vld [vmem:[%s887 + $0x108] sm:%s880]
                %958 = vst [vmem:[%s888 + $0x88] sm:%s880] %v957
                %v959 = vld [vmem:[%s887 + $0x10c] sm:%s880]
                %960 = vst [vmem:[%s888 + $0x8c] sm:%s880] %v959
                %v961 = vld [vmem:[%s887 + $0x110] sm:%s880]
                %962 = vst [vmem:[%s888 + $0x90] sm:%s880] %v961
                %v963 = vld [vmem:[%s887 + $0x114] sm:%s880]
                %964 = vst [vmem:[%s888 + $0x94] sm:%s880] %v963
                %v965 = vld [vmem:[%s887 + $0x118] sm:%s880]
                %966 = vst [vmem:[%s888 + $0x98] sm:%s880] %v965
                %v967 = vld [vmem:[%s887 + $0x11c] sm:%s880]
                %968 = vst [vmem:[%s888 + $0x9c] sm:%s880] %v967
                %v969 = vld [vmem:[%s887 + $0x120] sm:%s880]
                %970 = vst [vmem:[%s888 + $0xa0] sm:%s880] %v969
                %v971 = vld [vmem:[%s887 + $0x124] sm:%s880]
                %972 = vst [vmem:[%s888 + $0xa4] sm:%s880] %v971
                %v973 = vld [vmem:[%s887 + $0x128] sm:%s880]
                %974 = vst [vmem:[%s888 + $0xa8] sm:%s880] %v973
                %v975 = vld [vmem:[%s887 + $0x12c] sm:%s880]
                %976 = vst [vmem:[%s888 + $0xac] sm:%s880] %v975
                %v977 = vld [vmem:[%s887 + $0x130] sm:%s880]
                %978 = vst [vmem:[%s888 + $0xb0] sm:%s880] %v977
                %v979 = vld [vmem:[%s887 + $0x134] sm:%s880]
                %980 = vst [vmem:[%s888 + $0xb4] sm:%s880] %v979
                %v981 = vld [vmem:[%s887 + $0x138] sm:%s880]
                %982 = vst [vmem:[%s888 + $0xb8] sm:%s880] %v981
                %v983 = vld [vmem:[%s887 + $0x13c] sm:%s880]
                %984 = vst [vmem:[%s888 + $0xbc] sm:%s880] %v983
                %v985 = vld [vmem:[%s887 + $0x180] sm:%s880]
                %986 = vst [vmem:[%s888 + $0xc0] sm:%s880] %v985
                %v987 = vld [vmem:[%s887 + $0x184] sm:%s880]
                %988 = vst [vmem:[%s888 + $0xc4] sm:%s880] %v987
                %v989 = vld [vmem:[%s887 + $0x188] sm:%s880]
                %990 = vst [vmem:[%s888 + $0xc8] sm:%s880] %v989
                %v991 = vld [vmem:[%s887 + $0x18c] sm:%s880]
                %992 = vst [vmem:[%s888 + $0xcc] sm:%s880] %v991
                %v993 = vld [vmem:[%s887 + $0x190] sm:%s880]
                %994 = vst [vmem:[%s888 + $0xd0] sm:%s880] %v993
                %v995 = vld [vmem:[%s887 + $0x194] sm:%s880]
                %996 = vst [vmem:[%s888 + $0xd4] sm:%s880] %v995
                %v997 = vld [vmem:[%s887 + $0x198] sm:%s880]
                %998 = vst [vmem:[%s888 + $0xd8] sm:%s880] %v997
                %v999 = vld [vmem:[%s887 + $0x19c] sm:%s880]
                %1000 = vst [vmem:[%s888 + $0xdc] sm:%s880] %v999
                %v1001 = vld [vmem:[%s887 + $0x1a0] sm:%s880]
                %1002 = vst [vmem:[%s888 + $0xe0] sm:%s880] %v1001
                %v1003 = vld [vmem:[%s887 + $0x1a4] sm:%s880]
                %1004 = vst [vmem:[%s888 + $0xe4] sm:%s880] %v1003
                %v1005 = vld [vmem:[%s887 + $0x1a8] sm:%s880]
                %1006 = vst [vmem:[%s888 + $0xe8] sm:%s880] %v1005
                %v1007 = vld [vmem:[%s887 + $0x1ac] sm:%s880]
                %1008 = vst [vmem:[%s888 + $0xec] sm:%s880] %v1007
                %v1009 = vld [vmem:[%s887 + $0x1b0] sm:%s880]
                %1010 = vst [vmem:[%s888 + $0xf0] sm:%s880] %v1009
                %v1011 = vld [vmem:[%s887 + $0x1b4] sm:%s880]
                %1012 = vst [vmem:[%s888 + $0xf4] sm:%s880] %v1011
                %v1013 = vld [vmem:[%s887 + $0x1b8] sm:%s880]
                %1014 = vst [vmem:[%s888 + $0xf8] sm:%s880] %v1013
                %v1015 = vld [vmem:[%s887 + $0x1bc] sm:%s880]
                %1016 = vst [vmem:[%s888 + $0xfc] sm:%s880] %v1015
              $region131: #{multi_head_attention.3} parent=125 // loop_footer
                %s886 = sadd.s32 1, %s882
              $region132: #{multi_head_attention.3} parent=125 // loop_footer_branch
                %881 = sbr.rel target = $region128
              $region133: #{multi_head_attention.3} parent=125 // loop_exit
                _
            $region126: #{multi_head_attention.3} parent=117 // pred_fallthru
              _
          $region118: #{multi_head_attention.3} parent=113 // pred_fallthru
            _
          %1165 = vnop
        $region114: #{multi_head_attention.3} parent=23 // pred_fallthru
          _
      $region24: #{multi_head_attention.3} parent=5 // pred_fallthru
        _
      %p1166 = scmp.le.s32.totalorder 1, %s15
      %p1167 = scmp.lt.s32.totalorder %s15, 9
      %p1168 = pnand %p1166, %p1167
      %p1169 = pneg %p1168
      // Predicated region
      $region152: #{multi_head_attention.3} parent=5 // pred_check
        _
      $region153: #{multi_head_attention.3} parent=5 // pred_check_branch
        %1171 = sbr.rel (%p1168) target = $region155
      $region154: #{multi_head_attention.3} parent=5 // pred_region
        %s1172 = ssub.s32 %s15, 1
        %s1173 = sand.u32 %s77, 1
        %s1174 = sand.u32 %s77, 1
        %s1175 = smul.addr %s1174, 256
        %s1176 = scalar_lea.vmem [#allocation5], %s1175
        // Predicated region
        $region156: #{multi_head_attention.3} parent=154 // pred_check
          %p1177 = pneg %p90
        $region157: #{multi_head_attention.3} parent=154 // pred_check_branch
          %1179 = sbr.rel (%p1177) target = $region159
        $region158: #{multi_head_attention.3} parent=154 // pred_region
          _
        $region159: #{multi_head_attention.3} parent=154 // pred_fallthru
          _
        %s1180 = sand.u32 %s105, 1
        %s1181 = sand.u32 %s105, 1
        %s1182 = smul.addr %s1181, 256
        %s1183 = scalar_lea.vmem [#allocation6], %s1182
        // Predicated region
        $region160: #{multi_head_attention.3} parent=154 // pred_check
          %p1184 = pneg %p118
        $region161: #{multi_head_attention.3} parent=154 // pred_check_branch
          %1186 = sbr.rel (%p1184) target = $region163
        $region162: #{multi_head_attention.3} parent=154 // pred_region
          _
        $region163: #{multi_head_attention.3} parent=154 // pred_fallthru
          _
        %s1187 = sand.u32 %s133, 1
        %s1188 = sand.u32 %s133, 1
        %s1189 = smul.addr %s1188, 256
        %s1190 = scalar_lea.vmem [#allocation7], %s1189
        // Predicated region
        $region164: #{multi_head_attention.3} parent=154 // pred_check
          %p1191 = pneg %p146
        $region165: #{multi_head_attention.3} parent=154 // pred_check_branch
          %1193 = sbr.rel (%p1191) target = $region167
        $region166: #{multi_head_attention.3} parent=154 // pred_region
          _
        $region167: #{multi_head_attention.3} parent=154 // pred_fallthru
          _
        %p1194 = scmp.lt.s32.totalorder %s25, 1
        %s1195 = scalar_select %p1194, %s25, 1
        %p1196 = scmp.lt.s32.totalorder %s27, 1
        %s1197 = scalar_select %p1196, %s27, 1
        %s1198 = smul.addr %s1195, 2
        %s1199 = sadd.s32 %s1197, %s1198
        %s1200 = scalar_lea.vmem %s0, %s1199
        %p1201 = pneg %p62
        %p1202 = pneg %p59
        %s1203 = sand.u32 %s77, 1
        %s1204 = sand.u32 %s77, 1
        %s1205 = smul.addr %s1204, 256
        %s1206 = scalar_lea.vmem [#allocation5], %s1205
        %p1207 = pneg %p90
        %p1208 = pneg %p87
        %s1209 = sand.u32 %s105, 1
        %s1210 = sand.u32 %s105, 1
        %s1211 = smul.addr %s1210, 256
        %s1212 = scalar_lea.vmem [#allocation6], %s1211
        %p1213 = pneg %p118
        %p1214 = pneg %p115
        %s1215 = sand.u32 %s133, 1
        %s1216 = sand.u32 %s133, 1
        %s1217 = smul.addr %s1216, 256
        %s1218 = scalar_lea.vmem [#allocation7], %s1217
        %p1219 = pneg %p146
        %p1220 = pneg %p143
        %p1221 = pneg %p167
        %p1222 = pneg %p164
        %p1223 = pneg %p188
        %p1224 = pneg %p185
        %p1225 = pneg %p216
        %p1226 = pneg %p213
        %s1227 = sand.u32 %s203, 1
        %s1228 = scalar_lea.sflag [#allocation9], %s1227
        %s1229 = sand.u32 %s203, 1
        %s1230 = smul.addr %s1229, 128
        %s1231 = scalar_lea.vmem [#allocation8], %s1230
        %p1232 = scmp.lt.s32.totalorder %s25, 1
        %s1233 = scalar_select %p1232, %s25, 1
        %p1234 = scmp.lt.s32.totalorder %s27, 1
        %s1235 = scalar_select %p1234, %s27, 1
        %s1236 = smul.addr %s1233, 2
        %s1237 = sadd.s32 %s1235, %s1236
        %s1238 = scalar_lea.vmem %s0, %s1237
        %s1239 = smul.u32 16, %s26
        %s1240 = smul.u32 16, %s27
        %s1241 = smul.u32 16, %s27
        %s1242 = smul.u32 16, %s26
        %p1244 = scmp.eq.s32.totalorder %s27, 0
        // Predicated region
        $region168: #{multi_head_attention.3} parent=154 // pred_check
          %p1245 = pneg %p1244
        $region169: #{multi_head_attention.3} parent=154 // pred_check_branch
          %1247 = sbr.rel (%p1245) target = $region171
        $region170: #{multi_head_attention.3} parent=154 // pred_region
          %vm1248 = vcmask 7168
          %1249 = vst.msk [vmem:[#allocation2] sm:$0xff] %vm1248, -1e+30
          %1250 = vst.msk [vmem:[#allocation2 + $0x8] sm:$0xff] %vm1248, -1e+30
          %1251 = vst.msk [vmem:[#allocation2 + $0x10] sm:$0xff] %vm1248, -1e+30
          %1252 = vst.msk [vmem:[#allocation2 + $0x18] sm:$0xff] %vm1248, -1e+30
          %1253 = vst.msk [vmem:[#allocation2 + $0x20] sm:$0xff] %vm1248, -1e+30
          %1254 = vst.msk [vmem:[#allocation2 + $0x28] sm:$0xff] %vm1248, -1e+30
          %1255 = vst.msk [vmem:[#allocation2 + $0x30] sm:$0xff] %vm1248, -1e+30
          %1256 = vst.msk [vmem:[#allocation2 + $0x38] sm:$0xff] %vm1248, -1e+30
          %1257 = vst.msk [vmem:[#allocation2 + $0x40] sm:$0xff] %vm1248, -1e+30
          %1258 = vst.msk [vmem:[#allocation2 + $0x48] sm:$0xff] %vm1248, -1e+30
          %1259 = vst.msk [vmem:[#allocation2 + $0x50] sm:$0xff] %vm1248, -1e+30
          %1260 = vst.msk [vmem:[#allocation2 + $0x58] sm:$0xff] %vm1248, -1e+30
          %1261 = vst.msk [vmem:[#allocation2 + $0x60] sm:$0xff] %vm1248, -1e+30
          %1262 = vst.msk [vmem:[#allocation2 + $0x68] sm:$0xff] %vm1248, -1e+30
          %1263 = vst.msk [vmem:[#allocation2 + $0x70] sm:$0xff] %vm1248, -1e+30
          %1264 = vst.msk [vmem:[#allocation2 + $0x78] sm:$0xff] %vm1248, -1e+30
          %1265 = vst.msk [vmem:[#allocation2 + $0x80] sm:$0xff] %vm1248, -1e+30
          %1266 = vst.msk [vmem:[#allocation2 + $0x88] sm:$0xff] %vm1248, -1e+30
          %1267 = vst.msk [vmem:[#allocation2 + $0x90] sm:$0xff] %vm1248, -1e+30
          %1268 = vst.msk [vmem:[#allocation2 + $0x98] sm:$0xff] %vm1248, -1e+30
          %1269 = vst.msk [vmem:[#allocation2 + $0xa0] sm:$0xff] %vm1248, -1e+30
          %1270 = vst.msk [vmem:[#allocation2 + $0xa8] sm:$0xff] %vm1248, -1e+30
          %1271 = vst.msk [vmem:[#allocation2 + $0xb0] sm:$0xff] %vm1248, -1e+30
          %1272 = vst.msk [vmem:[#allocation2 + $0xb8] sm:$0xff] %vm1248, -1e+30
          %1273 = vst.msk [vmem:[#allocation2 + $0xc0] sm:$0xff] %vm1248, -1e+30
          %1274 = vst.msk [vmem:[#allocation2 + $0xc8] sm:$0xff] %vm1248, -1e+30
          %1275 = vst.msk [vmem:[#allocation2 + $0xd0] sm:$0xff] %vm1248, -1e+30
          %1276 = vst.msk [vmem:[#allocation2 + $0xd8] sm:$0xff] %vm1248, -1e+30
          %1277 = vst.msk [vmem:[#allocation2 + $0xe0] sm:$0xff] %vm1248, -1e+30
          %1278 = vst.msk [vmem:[#allocation2 + $0xe8] sm:$0xff] %vm1248, -1e+30
          %1279 = vst.msk [vmem:[#allocation2 + $0xf0] sm:$0xff] %vm1248, -1e+30
          %1280 = vst.msk [vmem:[#allocation2 + $0xf8] sm:$0xff] %vm1248, -1e+30
          %1281 = vst.msk [vmem:[#allocation2 + $0x100] sm:$0xff] %vm1248, -1e+30
          %1282 = vst.msk [vmem:[#allocation2 + $0x108] sm:$0xff] %vm1248, -1e+30
          %1283 = vst.msk [vmem:[#allocation2 + $0x110] sm:$0xff] %vm1248, -1e+30
          %1284 = vst.msk [vmem:[#allocation2 + $0x118] sm:$0xff] %vm1248, -1e+30
          %1285 = vst.msk [vmem:[#allocation2 + $0x120] sm:$0xff] %vm1248, -1e+30
          %1286 = vst.msk [vmem:[#allocation2 + $0x128] sm:$0xff] %vm1248, -1e+30
          %1287 = vst.msk [vmem:[#allocation2 + $0x130] sm:$0xff] %vm1248, -1e+30
          %1288 = vst.msk [vmem:[#allocation2 + $0x138] sm:$0xff] %vm1248, -1e+30
          %1289 = vst.msk [vmem:[#allocation2 + $0x140] sm:$0xff] %vm1248, -1e+30
          %1290 = vst.msk [vmem:[#allocation2 + $0x148] sm:$0xff] %vm1248, -1e+30
          %1291 = vst.msk [vmem:[#allocation2 + $0x150] sm:$0xff] %vm1248, -1e+30
          %1292 = vst.msk [vmem:[#allocation2 + $0x158] sm:$0xff] %vm1248, -1e+30
          %1293 = vst.msk [vmem:[#allocation2 + $0x160] sm:$0xff] %vm1248, -1e+30
          %1294 = vst.msk [vmem:[#allocation2 + $0x168] sm:$0xff] %vm1248, -1e+30
          %1295 = vst.msk [vmem:[#allocation2 + $0x170] sm:$0xff] %vm1248, -1e+30
          %1296 = vst.msk [vmem:[#allocation2 + $0x178] sm:$0xff] %vm1248, -1e+30
          %1297 = vst.msk [vmem:[#allocation2 + $0x180] sm:$0xff] %vm1248, -1e+30
          %1298 = vst.msk [vmem:[#allocation2 + $0x188] sm:$0xff] %vm1248, -1e+30
          %1299 = vst.msk [vmem:[#allocation2 + $0x190] sm:$0xff] %vm1248, -1e+30
          %1300 = vst.msk [vmem:[#allocation2 + $0x198] sm:$0xff] %vm1248, -1e+30
          %1301 = vst.msk [vmem:[#allocation2 + $0x1a0] sm:$0xff] %vm1248, -1e+30
          %1302 = vst.msk [vmem:[#allocation2 + $0x1a8] sm:$0xff] %vm1248, -1e+30
          %1303 = vst.msk [vmem:[#allocation2 + $0x1b0] sm:$0xff] %vm1248, -1e+30
          %1304 = vst.msk [vmem:[#allocation2 + $0x1b8] sm:$0xff] %vm1248, -1e+30
          %1305 = vst.msk [vmem:[#allocation2 + $0x1c0] sm:$0xff] %vm1248, -1e+30
          %1306 = vst.msk [vmem:[#allocation2 + $0x1c8] sm:$0xff] %vm1248, -1e+30
          %1307 = vst.msk [vmem:[#allocation2 + $0x1d0] sm:$0xff] %vm1248, -1e+30
          %1308 = vst.msk [vmem:[#allocation2 + $0x1d8] sm:$0xff] %vm1248, -1e+30
          %1309 = vst.msk [vmem:[#allocation2 + $0x1e0] sm:$0xff] %vm1248, -1e+30
          %1310 = vst.msk [vmem:[#allocation2 + $0x1e8] sm:$0xff] %vm1248, -1e+30
          %1311 = vst.msk [vmem:[#allocation2 + $0x1f0] sm:$0xff] %vm1248, -1e+30
          %1312 = vst.msk [vmem:[#allocation2 + $0x1f8] sm:$0xff] %vm1248, -1e+30
          %1313 = vst.msk [vmem:[#allocation3] sm:$0xff] %vm1248, 0.0
          %1314 = vst.msk [vmem:[#allocation3 + $0x8] sm:$0xff] %vm1248, 0.0
          %1315 = vst.msk [vmem:[#allocation3 + $0x10] sm:$0xff] %vm1248, 0.0
          %1316 = vst.msk [vmem:[#allocation3 + $0x18] sm:$0xff] %vm1248, 0.0
          %1317 = vst.msk [vmem:[#allocation3 + $0x20] sm:$0xff] %vm1248, 0.0
          %1318 = vst.msk [vmem:[#allocation3 + $0x28] sm:$0xff] %vm1248, 0.0
          %1319 = vst.msk [vmem:[#allocation3 + $0x30] sm:$0xff] %vm1248, 0.0
          %1320 = vst.msk [vmem:[#allocation3 + $0x38] sm:$0xff] %vm1248, 0.0
          %1321 = vst.msk [vmem:[#allocation3 + $0x40] sm:$0xff] %vm1248, 0.0
          %1322 = vst.msk [vmem:[#allocation3 + $0x48] sm:$0xff] %vm1248, 0.0
          %1323 = vst.msk [vmem:[#allocation3 + $0x50] sm:$0xff] %vm1248, 0.0
          %1324 = vst.msk [vmem:[#allocation3 + $0x58] sm:$0xff] %vm1248, 0.0
          %1325 = vst.msk [vmem:[#allocation3 + $0x60] sm:$0xff] %vm1248, 0.0
          %1326 = vst.msk [vmem:[#allocation3 + $0x68] sm:$0xff] %vm1248, 0.0
          %1327 = vst.msk [vmem:[#allocation3 + $0x70] sm:$0xff] %vm1248, 0.0
          %1328 = vst.msk [vmem:[#allocation3 + $0x78] sm:$0xff] %vm1248, 0.0
          %1329 = vst.msk [vmem:[#allocation3 + $0x80] sm:$0xff] %vm1248, 0.0
          %1330 = vst.msk [vmem:[#allocation3 + $0x88] sm:$0xff] %vm1248, 0.0
          %1331 = vst.msk [vmem:[#allocation3 + $0x90] sm:$0xff] %vm1248, 0.0
          %1332 = vst.msk [vmem:[#allocation3 + $0x98] sm:$0xff] %vm1248, 0.0
          %1333 = vst.msk [vmem:[#allocation3 + $0xa0] sm:$0xff] %vm1248, 0.0
          %1334 = vst.msk [vmem:[#allocation3 + $0xa8] sm:$0xff] %vm1248, 0.0
          %1335 = vst.msk [vmem:[#allocation3 + $0xb0] sm:$0xff] %vm1248, 0.0
          %1336 = vst.msk [vmem:[#allocation3 + $0xb8] sm:$0xff] %vm1248, 0.0
          %1337 = vst.msk [vmem:[#allocation3 + $0xc0] sm:$0xff] %vm1248, 0.0
          %1338 = vst.msk [vmem:[#allocation3 + $0xc8] sm:$0xff] %vm1248, 0.0
          %1339 = vst.msk [vmem:[#allocation3 + $0xd0] sm:$0xff] %vm1248, 0.0
          %1340 = vst.msk [vmem:[#allocation3 + $0xd8] sm:$0xff] %vm1248, 0.0
          %1341 = vst.msk [vmem:[#allocation3 + $0xe0] sm:$0xff] %vm1248, 0.0
          %1342 = vst.msk [vmem:[#allocation3 + $0xe8] sm:$0xff] %vm1248, 0.0
          %1343 = vst.msk [vmem:[#allocation3 + $0xf0] sm:$0xff] %vm1248, 0.0
          %1344 = vst.msk [vmem:[#allocation3 + $0xf8] sm:$0xff] %vm1248, 0.0
          %1345 = vst.msk [vmem:[#allocation3 + $0x100] sm:$0xff] %vm1248, 0.0
          %1346 = vst.msk [vmem:[#allocation3 + $0x108] sm:$0xff] %vm1248, 0.0
          %1347 = vst.msk [vmem:[#allocation3 + $0x110] sm:$0xff] %vm1248, 0.0
          %1348 = vst.msk [vmem:[#allocation3 + $0x118] sm:$0xff] %vm1248, 0.0
          %1349 = vst.msk [vmem:[#allocation3 + $0x120] sm:$0xff] %vm1248, 0.0
          %1350 = vst.msk [vmem:[#allocation3 + $0x128] sm:$0xff] %vm1248, 0.0
          %1351 = vst.msk [vmem:[#allocation3 + $0x130] sm:$0xff] %vm1248, 0.0
          %1352 = vst.msk [vmem:[#allocation3 + $0x138] sm:$0xff] %vm1248, 0.0
          %1353 = vst.msk [vmem:[#allocation3 + $0x140] sm:$0xff] %vm1248, 0.0
          %1354 = vst.msk [vmem:[#allocation3 + $0x148] sm:$0xff] %vm1248, 0.0
          %1355 = vst.msk [vmem:[#allocation3 + $0x150] sm:$0xff] %vm1248, 0.0
          %1356 = vst.msk [vmem:[#allocation3 + $0x158] sm:$0xff] %vm1248, 0.0
          %1357 = vst.msk [vmem:[#allocation3 + $0x160] sm:$0xff] %vm1248, 0.0
          %1358 = vst.msk [vmem:[#allocation3 + $0x168] sm:$0xff] %vm1248, 0.0
          %1359 = vst.msk [vmem:[#allocation3 + $0x170] sm:$0xff] %vm1248, 0.0
          %1360 = vst.msk [vmem:[#allocation3 + $0x178] sm:$0xff] %vm1248, 0.0
          %1361 = vst.msk [vmem:[#allocation3 + $0x180] sm:$0xff] %vm1248, 0.0
          %1362 = vst.msk [vmem:[#allocation3 + $0x188] sm:$0xff] %vm1248, 0.0
          %1363 = vst.msk [vmem:[#allocation3 + $0x190] sm:$0xff] %vm1248, 0.0
          %1364 = vst.msk [vmem:[#allocation3 + $0x198] sm:$0xff] %vm1248, 0.0
          %1365 = vst.msk [vmem:[#allocation3 + $0x1a0] sm:$0xff] %vm1248, 0.0
          %1366 = vst.msk [vmem:[#allocation3 + $0x1a8] sm:$0xff] %vm1248, 0.0
          %1367 = vst.msk [vmem:[#allocation3 + $0x1b0] sm:$0xff] %vm1248, 0.0
          %1368 = vst.msk [vmem:[#allocation3 + $0x1b8] sm:$0xff] %vm1248, 0.0
          %1369 = vst.msk [vmem:[#allocation3 + $0x1c0] sm:$0xff] %vm1248, 0.0
          %1370 = vst.msk [vmem:[#allocation3 + $0x1c8] sm:$0xff] %vm1248, 0.0
          %1371 = vst.msk [vmem:[#allocation3 + $0x1d0] sm:$0xff] %vm1248, 0.0
          %1372 = vst.msk [vmem:[#allocation3 + $0x1d8] sm:$0xff] %vm1248, 0.0
          %1373 = vst.msk [vmem:[#allocation3 + $0x1e0] sm:$0xff] %vm1248, 0.0
          %1374 = vst.msk [vmem:[#allocation3 + $0x1e8] sm:$0xff] %vm1248, 0.0
          %1375 = vst.msk [vmem:[#allocation3 + $0x1f0] sm:$0xff] %vm1248, 0.0
          %1376 = vst.msk [vmem:[#allocation3 + $0x1f8] sm:$0xff] %vm1248, 0.0
          %vm1377 = vcmask 261120
          %1378 = vst.msk [vmem:[#allocation4] sm:$0xff] %vm1377, 0.0
          %1379 = vst.msk [vmem:[#allocation4 + $0x8] sm:$0xff] %vm1377, 0.0
          %1380 = vst.msk [vmem:[#allocation4 + $0x10] sm:$0xff] %vm1377, 0.0
          %1381 = vst.msk [vmem:[#allocation4 + $0x18] sm:$0xff] %vm1377, 0.0
          %1382 = vst.msk [vmem:[#allocation4 + $0x20] sm:$0xff] %vm1377, 0.0
          %1383 = vst.msk [vmem:[#allocation4 + $0x28] sm:$0xff] %vm1377, 0.0
          %1384 = vst.msk [vmem:[#allocation4 + $0x30] sm:$0xff] %vm1377, 0.0
          %1385 = vst.msk [vmem:[#allocation4 + $0x38] sm:$0xff] %vm1377, 0.0
          %1386 = vst.msk [vmem:[#allocation4 + $0x40] sm:$0xff] %vm1377, 0.0
          %1387 = vst.msk [vmem:[#allocation4 + $0x48] sm:$0xff] %vm1377, 0.0
          %1388 = vst.msk [vmem:[#allocation4 + $0x50] sm:$0xff] %vm1377, 0.0
          %1389 = vst.msk [vmem:[#allocation4 + $0x58] sm:$0xff] %vm1377, 0.0
          %1390 = vst.msk [vmem:[#allocation4 + $0x60] sm:$0xff] %vm1377, 0.0
          %1391 = vst.msk [vmem:[#allocation4 + $0x68] sm:$0xff] %vm1377, 0.0
          %1392 = vst.msk [vmem:[#allocation4 + $0x70] sm:$0xff] %vm1377, 0.0
          %1393 = vst.msk [vmem:[#allocation4 + $0x78] sm:$0xff] %vm1377, 0.0
          %1394 = vst.msk [vmem:[#allocation4 + $0x80] sm:$0xff] %vm1377, 0.0
          %1395 = vst.msk [vmem:[#allocation4 + $0x88] sm:$0xff] %vm1377, 0.0
          %1396 = vst.msk [vmem:[#allocation4 + $0x90] sm:$0xff] %vm1377, 0.0
          %1397 = vst.msk [vmem:[#allocation4 + $0x98] sm:$0xff] %vm1377, 0.0
          %1398 = vst.msk [vmem:[#allocation4 + $0xa0] sm:$0xff] %vm1377, 0.0
          %1399 = vst.msk [vmem:[#allocation4 + $0xa8] sm:$0xff] %vm1377, 0.0
          %1400 = vst.msk [vmem:[#allocation4 + $0xb0] sm:$0xff] %vm1377, 0.0
          %1401 = vst.msk [vmem:[#allocation4 + $0xb8] sm:$0xff] %vm1377, 0.0
          %1402 = vst.msk [vmem:[#allocation4 + $0xc0] sm:$0xff] %vm1377, 0.0
          %1403 = vst.msk [vmem:[#allocation4 + $0xc8] sm:$0xff] %vm1377, 0.0
          %1404 = vst.msk [vmem:[#allocation4 + $0xd0] sm:$0xff] %vm1377, 0.0
          %1405 = vst.msk [vmem:[#allocation4 + $0xd8] sm:$0xff] %vm1377, 0.0
          %1406 = vst.msk [vmem:[#allocation4 + $0xe0] sm:$0xff] %vm1377, 0.0
          %1407 = vst.msk [vmem:[#allocation4 + $0xe8] sm:$0xff] %vm1377, 0.0
          %1408 = vst.msk [vmem:[#allocation4 + $0xf0] sm:$0xff] %vm1377, 0.0
          %1409 = vst.msk [vmem:[#allocation4 + $0xf8] sm:$0xff] %vm1377, 0.0
          %1410 = vst.msk [vmem:[#allocation4 + $0x100] sm:$0xff] %vm1377, 0.0
          %1411 = vst.msk [vmem:[#allocation4 + $0x108] sm:$0xff] %vm1377, 0.0
          %1412 = vst.msk [vmem:[#allocation4 + $0x110] sm:$0xff] %vm1377, 0.0
          %1413 = vst.msk [vmem:[#allocation4 + $0x118] sm:$0xff] %vm1377, 0.0
          %1414 = vst.msk [vmem:[#allocation4 + $0x120] sm:$0xff] %vm1377, 0.0
          %1415 = vst.msk [vmem:[#allocation4 + $0x128] sm:$0xff] %vm1377, 0.0
          %1416 = vst.msk [vmem:[#allocation4 + $0x130] sm:$0xff] %vm1377, 0.0
          %1417 = vst.msk [vmem:[#allocation4 + $0x138] sm:$0xff] %vm1377, 0.0
          %1418 = vst.msk [vmem:[#allocation4 + $0x140] sm:$0xff] %vm1377, 0.0
          %1419 = vst.msk [vmem:[#allocation4 + $0x148] sm:$0xff] %vm1377, 0.0
          %1420 = vst.msk [vmem:[#allocation4 + $0x150] sm:$0xff] %vm1377, 0.0
          %1421 = vst.msk [vmem:[#allocation4 + $0x158] sm:$0xff] %vm1377, 0.0
          %1422 = vst.msk [vmem:[#allocation4 + $0x160] sm:$0xff] %vm1377, 0.0
          %1423 = vst.msk [vmem:[#allocation4 + $0x168] sm:$0xff] %vm1377, 0.0
          %1424 = vst.msk [vmem:[#allocation4 + $0x170] sm:$0xff] %vm1377, 0.0
          %1425 = vst.msk [vmem:[#allocation4 + $0x178] sm:$0xff] %vm1377, 0.0
          %1426 = vst.msk [vmem:[#allocation4 + $0x180] sm:$0xff] %vm1377, 0.0
          %1427 = vst.msk [vmem:[#allocation4 + $0x188] sm:$0xff] %vm1377, 0.0
          %1428 = vst.msk [vmem:[#allocation4 + $0x190] sm:$0xff] %vm1377, 0.0
          %1429 = vst.msk [vmem:[#allocation4 + $0x198] sm:$0xff] %vm1377, 0.0
          %1430 = vst.msk [vmem:[#allocation4 + $0x1a0] sm:$0xff] %vm1377, 0.0
          %1431 = vst.msk [vmem:[#allocation4 + $0x1a8] sm:$0xff] %vm1377, 0.0
          %1432 = vst.msk [vmem:[#allocation4 + $0x1b0] sm:$0xff] %vm1377, 0.0
          %1433 = vst.msk [vmem:[#allocation4 + $0x1b8] sm:$0xff] %vm1377, 0.0
          %1434 = vst.msk [vmem:[#allocation4 + $0x1c0] sm:$0xff] %vm1377, 0.0
          %1435 = vst.msk [vmem:[#allocation4 + $0x1c8] sm:$0xff] %vm1377, 0.0
          %1436 = vst.msk [vmem:[#allocation4 + $0x1d0] sm:$0xff] %vm1377, 0.0
          %1437 = vst.msk [vmem:[#allocation4 + $0x1d8] sm:$0xff] %vm1377, 0.0
          %1438 = vst.msk [vmem:[#allocation4 + $0x1e0] sm:$0xff] %vm1377, 0.0
          %1439 = vst.msk [vmem:[#allocation4 + $0x1e8] sm:$0xff] %vm1377, 0.0
          %1440 = vst.msk [vmem:[#allocation4 + $0x1f0] sm:$0xff] %vm1377, 0.0
          %1441 = vst.msk [vmem:[#allocation4 + $0x1f8] sm:$0xff] %vm1377, 0.0
        $region171: #{multi_head_attention.3} parent=154 // pred_fallthru
          _
        %s1442 = smul.u32 %s27, 128
        %s1443 = smul.u32 %s26, 128
        %s1444 = sadd.s32 %s1443, 127
        %p1445 = scmp.le.s32.totalorder %s1442, %s1444
        // Predicated region
        $region172: #{multi_head_attention.3} parent=154 // pred_check
          %p1446 = pneg %p1445
        $region173: #{multi_head_attention.3} parent=154 // pred_check_branch
          %1448 = sbr.rel (%p1446) target = $region175
        $region174: #{multi_head_attention.3} parent=154 // pred_region
          %v1449 = vld [vmem:[%s1176] sm:$0xf]
          %v1450 = vld [vmem:[%s1176 + $0x4] sm:$0xf]
          %v1451 = vld [vmem:[%s1176 + $0x8] sm:$0xf]
          %v1452 = vld [vmem:[%s1176 + $0xc] sm:$0xf]
          %v1453 = vld [vmem:[%s1176 + $0x10] sm:$0xf]
          %v1454 = vld [vmem:[%s1176 + $0x14] sm:$0xf]
          %v1455 = vld [vmem:[%s1176 + $0x18] sm:$0xf]
          %v1456 = vld [vmem:[%s1176 + $0x1c] sm:$0xf]
          %v1457 = vld [vmem:[%s1176 + $0x20] sm:$0xf]
          %v1458 = vld [vmem:[%s1176 + $0x24] sm:$0xf]
          %v1459 = vld [vmem:[%s1176 + $0x28] sm:$0xf]
          %v1460 = vld [vmem:[%s1176 + $0x2c] sm:$0xf]
          %v1461 = vld [vmem:[%s1176 + $0x30] sm:$0xf]
          %v1462 = vld [vmem:[%s1176 + $0x34] sm:$0xf]
          %v1463 = vld [vmem:[%s1176 + $0x38] sm:$0xf]
          %v1464 = vld [vmem:[%s1176 + $0x3c] sm:$0xf]
          %v1465 = vld [vmem:[%s1176 + $0x40] sm:$0xf]
          %v1466 = vld [vmem:[%s1176 + $0x44] sm:$0xf]
          %v1467 = vld [vmem:[%s1176 + $0x48] sm:$0xf]
          %v1468 = vld [vmem:[%s1176 + $0x4c] sm:$0xf]
          %v1469 = vld [vmem:[%s1176 + $0x50] sm:$0xf]
          %v1470 = vld [vmem:[%s1176 + $0x54] sm:$0xf]
          %v1471 = vld [vmem:[%s1176 + $0x58] sm:$0xf]
          %v1472 = vld [vmem:[%s1176 + $0x5c] sm:$0xf]
          %v1473 = vld [vmem:[%s1176 + $0x60] sm:$0xf]
          %v1474 = vld [vmem:[%s1176 + $0x64] sm:$0xf]
          %v1475 = vld [vmem:[%s1176 + $0x68] sm:$0xf]
          %v1476 = vld [vmem:[%s1176 + $0x6c] sm:$0xf]
          %v1477 = vld [vmem:[%s1176 + $0x70] sm:$0xf]
          %v1478 = vld [vmem:[%s1176 + $0x74] sm:$0xf]
          %v1479 = vld [vmem:[%s1176 + $0x78] sm:$0xf]
          %v1480 = vld [vmem:[%s1176 + $0x7c] sm:$0xf]
          %v1481 = vld [vmem:[%s1176 + $0x80] sm:$0xf]
          %v1482 = vld [vmem:[%s1176 + $0x84] sm:$0xf]
          %v1483 = vld [vmem:[%s1176 + $0x88] sm:$0xf]
          %v1484 = vld [vmem:[%s1176 + $0x8c] sm:$0xf]
          %v1485 = vld [vmem:[%s1176 + $0x90] sm:$0xf]
          %v1486 = vld [vmem:[%s1176 + $0x94] sm:$0xf]
          %v1487 = vld [vmem:[%s1176 + $0x98] sm:$0xf]
          %v1488 = vld [vmem:[%s1176 + $0x9c] sm:$0xf]
          %v1489 = vld [vmem:[%s1176 + $0xa0] sm:$0xf]
          %v1490 = vld [vmem:[%s1176 + $0xa4] sm:$0xf]
          %v1491 = vld [vmem:[%s1176 + $0xa8] sm:$0xf]
          %v1492 = vld [vmem:[%s1176 + $0xac] sm:$0xf]
          %v1493 = vld [vmem:[%s1176 + $0xb0] sm:$0xf]
          %v1494 = vld [vmem:[%s1176 + $0xb4] sm:$0xf]
          %v1495 = vld [vmem:[%s1176 + $0xb8] sm:$0xf]
          %v1496 = vld [vmem:[%s1176 + $0xbc] sm:$0xf]
          %v1497 = vld [vmem:[%s1176 + $0xc0] sm:$0xf]
          %v1498 = vld [vmem:[%s1176 + $0xc4] sm:$0xf]
          %v1499 = vld [vmem:[%s1176 + $0xc8] sm:$0xf]
          %v1500 = vld [vmem:[%s1176 + $0xcc] sm:$0xf]
          %v1501 = vld [vmem:[%s1176 + $0xd0] sm:$0xf]
          %v1502 = vld [vmem:[%s1176 + $0xd4] sm:$0xf]
          %v1503 = vld [vmem:[%s1176 + $0xd8] sm:$0xf]
          %v1504 = vld [vmem:[%s1176 + $0xdc] sm:$0xf]
          %v1505 = vld [vmem:[%s1176 + $0xe0] sm:$0xf]
          %v1506 = vld [vmem:[%s1176 + $0xe4] sm:$0xf]
          %v1507 = vld [vmem:[%s1176 + $0xe8] sm:$0xf]
          %v1508 = vld [vmem:[%s1176 + $0xec] sm:$0xf]
          %v1509 = vld [vmem:[%s1176 + $0xf0] sm:$0xf]
          %v1510 = vld [vmem:[%s1176 + $0xf4] sm:$0xf]
          %v1511 = vld [vmem:[%s1176 + $0xf8] sm:$0xf]
          %v1512 = vld [vmem:[%s1176 + $0xfc] sm:$0xf]
          %v1513 = vld [vmem:[%s1183] sm:$0xf]
          %v1514 = vld [vmem:[%s1183 + $0x4] sm:$0xf]
          %v1515 = vld [vmem:[%s1183 + $0x8] sm:$0xf]
          %v1516 = vld [vmem:[%s1183 + $0xc] sm:$0xf]
          %v1517 = vld [vmem:[%s1183 + $0x10] sm:$0xf]
          %v1518 = vld [vmem:[%s1183 + $0x14] sm:$0xf]
          %v1519 = vld [vmem:[%s1183 + $0x18] sm:$0xf]
          %v1520 = vld [vmem:[%s1183 + $0x1c] sm:$0xf]
          %v1521 = vld [vmem:[%s1183 + $0x20] sm:$0xf]
          %v1522 = vld [vmem:[%s1183 + $0x24] sm:$0xf]
          %v1523 = vld [vmem:[%s1183 + $0x28] sm:$0xf]
          %v1524 = vld [vmem:[%s1183 + $0x2c] sm:$0xf]
          %v1525 = vld [vmem:[%s1183 + $0x30] sm:$0xf]
          %v1526 = vld [vmem:[%s1183 + $0x34] sm:$0xf]
          %v1527 = vld [vmem:[%s1183 + $0x38] sm:$0xf]
          %v1528 = vld [vmem:[%s1183 + $0x3c] sm:$0xf]
          %v1529 = vld [vmem:[%s1183 + $0x40] sm:$0xf]
          %v1530 = vld [vmem:[%s1183 + $0x44] sm:$0xf]
          %v1531 = vld [vmem:[%s1183 + $0x48] sm:$0xf]
          %v1532 = vld [vmem:[%s1183 + $0x4c] sm:$0xf]
          %v1533 = vld [vmem:[%s1183 + $0x50] sm:$0xf]
          %v1534 = vld [vmem:[%s1183 + $0x54] sm:$0xf]
          %v1535 = vld [vmem:[%s1183 + $0x58] sm:$0xf]
          %v1536 = vld [vmem:[%s1183 + $0x5c] sm:$0xf]
          %v1537 = vld [vmem:[%s1183 + $0x60] sm:$0xf]
          %v1538 = vld [vmem:[%s1183 + $0x64] sm:$0xf]
          %v1539 = vld [vmem:[%s1183 + $0x68] sm:$0xf]
          %v1540 = vld [vmem:[%s1183 + $0x6c] sm:$0xf]
          %v1541 = vld [vmem:[%s1183 + $0x70] sm:$0xf]
          %v1542 = vld [vmem:[%s1183 + $0x74] sm:$0xf]
          %v1543 = vld [vmem:[%s1183 + $0x78] sm:$0xf]
          %v1544 = vld [vmem:[%s1183 + $0x7c] sm:$0xf]
          %v1545 = vld [vmem:[%s1183 + $0x80] sm:$0xf]
          %v1546 = vld [vmem:[%s1183 + $0x84] sm:$0xf]
          %v1547 = vld [vmem:[%s1183 + $0x88] sm:$0xf]
          %v1548 = vld [vmem:[%s1183 + $0x8c] sm:$0xf]
          %v1549 = vld [vmem:[%s1183 + $0x90] sm:$0xf]
          %v1550 = vld [vmem:[%s1183 + $0x94] sm:$0xf]
          %v1551 = vld [vmem:[%s1183 + $0x98] sm:$0xf]
          %v1552 = vld [vmem:[%s1183 + $0x9c] sm:$0xf]
          %v1553 = vld [vmem:[%s1183 + $0xa0] sm:$0xf]
          %v1554 = vld [vmem:[%s1183 + $0xa4] sm:$0xf]
          %v1555 = vld [vmem:[%s1183 + $0xa8] sm:$0xf]
          %v1556 = vld [vmem:[%s1183 + $0xac] sm:$0xf]
          %v1557 = vld [vmem:[%s1183 + $0xb0] sm:$0xf]
          %v1558 = vld [vmem:[%s1183 + $0xb4] sm:$0xf]
          %v1559 = vld [vmem:[%s1183 + $0xb8] sm:$0xf]
          %v1560 = vld [vmem:[%s1183 + $0xbc] sm:$0xf]
          %v1561 = vld [vmem:[%s1183 + $0xc0] sm:$0xf]
          %v1562 = vld [vmem:[%s1183 + $0xc4] sm:$0xf]
          %v1563 = vld [vmem:[%s1183 + $0xc8] sm:$0xf]
          %v1564 = vld [vmem:[%s1183 + $0xcc] sm:$0xf]
          %v1565 = vld [vmem:[%s1183 + $0xd0] sm:$0xf]
          %v1566 = vld [vmem:[%s1183 + $0xd4] sm:$0xf]
          %v1567 = vld [vmem:[%s1183 + $0xd8] sm:$0xf]
          %v1568 = vld [vmem:[%s1183 + $0xdc] sm:$0xf]
          %v1569 = vld [vmem:[%s1183 + $0xe0] sm:$0xf]
          %v1570 = vld [vmem:[%s1183 + $0xe4] sm:$0xf]
          %v1571 = vld [vmem:[%s1183 + $0xe8] sm:$0xf]
          %v1572 = vld [vmem:[%s1183 + $0xec] sm:$0xf]
          %v1573 = vld [vmem:[%s1183 + $0xf0] sm:$0xf]
          %v1574 = vld [vmem:[%s1183 + $0xf4] sm:$0xf]
          %v1575 = vld [vmem:[%s1183 + $0xf8] sm:$0xf]
          %v1576 = vld [vmem:[%s1183 + $0xfc] sm:$0xf]
          %v1577 = vld [vmem:[%s1190] sm:$0xf]
          %v1578 = vld [vmem:[%s1190 + $0x4] sm:$0xf]
          %v1579 = vld [vmem:[%s1190 + $0x8] sm:$0xf]
          %v1580 = vld [vmem:[%s1190 + $0xc] sm:$0xf]
          %v1581 = vld [vmem:[%s1190 + $0x10] sm:$0xf]
          %v1582 = vld [vmem:[%s1190 + $0x14] sm:$0xf]
          %v1583 = vld [vmem:[%s1190 + $0x18] sm:$0xf]
          %v1584 = vld [vmem:[%s1190 + $0x1c] sm:$0xf]
          %v1585 = vld [vmem:[%s1190 + $0x20] sm:$0xf]
          %v1586 = vld [vmem:[%s1190 + $0x24] sm:$0xf]
          %v1587 = vld [vmem:[%s1190 + $0x28] sm:$0xf]
          %v1588 = vld [vmem:[%s1190 + $0x2c] sm:$0xf]
          %v1589 = vld [vmem:[%s1190 + $0x30] sm:$0xf]
          %v1590 = vld [vmem:[%s1190 + $0x34] sm:$0xf]
          %v1591 = vld [vmem:[%s1190 + $0x38] sm:$0xf]
          %v1592 = vld [vmem:[%s1190 + $0x3c] sm:$0xf]
          %v1593 = vld [vmem:[%s1190 + $0x40] sm:$0xf]
          %v1594 = vld [vmem:[%s1190 + $0x44] sm:$0xf]
          %v1595 = vld [vmem:[%s1190 + $0x48] sm:$0xf]
          %v1596 = vld [vmem:[%s1190 + $0x4c] sm:$0xf]
          %v1597 = vld [vmem:[%s1190 + $0x50] sm:$0xf]
          %v1598 = vld [vmem:[%s1190 + $0x54] sm:$0xf]
          %v1599 = vld [vmem:[%s1190 + $0x58] sm:$0xf]
          %v1600 = vld [vmem:[%s1190 + $0x5c] sm:$0xf]
          %v1601 = vld [vmem:[%s1190 + $0x60] sm:$0xf]
          %v1602 = vld [vmem:[%s1190 + $0x64] sm:$0xf]
          %v1603 = vld [vmem:[%s1190 + $0x68] sm:$0xf]
          %v1604 = vld [vmem:[%s1190 + $0x6c] sm:$0xf]
          %v1605 = vld [vmem:[%s1190 + $0x70] sm:$0xf]
          %v1606 = vld [vmem:[%s1190 + $0x74] sm:$0xf]
          %v1607 = vld [vmem:[%s1190 + $0x78] sm:$0xf]
          %v1608 = vld [vmem:[%s1190 + $0x7c] sm:$0xf]
          %v1609 = vld [vmem:[%s1190 + $0x80] sm:$0xf]
          %v1610 = vld [vmem:[%s1190 + $0x84] sm:$0xf]
          %v1611 = vld [vmem:[%s1190 + $0x88] sm:$0xf]
          %v1612 = vld [vmem:[%s1190 + $0x8c] sm:$0xf]
          %v1613 = vld [vmem:[%s1190 + $0x90] sm:$0xf]
          %v1614 = vld [vmem:[%s1190 + $0x94] sm:$0xf]
          %v1615 = vld [vmem:[%s1190 + $0x98] sm:$0xf]
          %v1616 = vld [vmem:[%s1190 + $0x9c] sm:$0xf]
          %v1617 = vld [vmem:[%s1190 + $0xa0] sm:$0xf]
          %v1618 = vld [vmem:[%s1190 + $0xa4] sm:$0xf]
          %v1619 = vld [vmem:[%s1190 + $0xa8] sm:$0xf]
          %v1620 = vld [vmem:[%s1190 + $0xac] sm:$0xf]
          %v1621 = vld [vmem:[%s1190 + $0xb0] sm:$0xf]
          %v1622 = vld [vmem:[%s1190 + $0xb4] sm:$0xf]
          %v1623 = vld [vmem:[%s1190 + $0xb8] sm:$0xf]
          %v1624 = vld [vmem:[%s1190 + $0xbc] sm:$0xf]
          %v1625 = vld [vmem:[%s1190 + $0xc0] sm:$0xf]
          %v1626 = vld [vmem:[%s1190 + $0xc4] sm:$0xf]
          %v1627 = vld [vmem:[%s1190 + $0xc8] sm:$0xf]
          %v1628 = vld [vmem:[%s1190 + $0xcc] sm:$0xf]
          %v1629 = vld [vmem:[%s1190 + $0xd0] sm:$0xf]
          %v1630 = vld [vmem:[%s1190 + $0xd4] sm:$0xf]
          %v1631 = vld [vmem:[%s1190 + $0xd8] sm:$0xf]
          %v1632 = vld [vmem:[%s1190 + $0xdc] sm:$0xf]
          %v1633 = vld [vmem:[%s1190 + $0xe0] sm:$0xf]
          %v1634 = vld [vmem:[%s1190 + $0xe4] sm:$0xf]
          %v1635 = vld [vmem:[%s1190 + $0xe8] sm:$0xf]
          %v1636 = vld [vmem:[%s1190 + $0xec] sm:$0xf]
          %v1637 = vld [vmem:[%s1190 + $0xf0] sm:$0xf]
          %v1638 = vld [vmem:[%s1190 + $0xf4] sm:$0xf]
          %v1639 = vld [vmem:[%s1190 + $0xf8] sm:$0xf]
          %v1640 = vld [vmem:[%s1190 + $0xfc] sm:$0xf]
          %v1641 = vunpack.c.l.bf16 %v1449
          %v1642 = vunpack.c.l.bf16 %v1450
          %v1643 = vunpack.c.l.bf16 %v1451
          %v1644 = vunpack.c.l.bf16 %v1452
          %v1645 = vunpack.c.l.bf16 %v1453
          %v1646 = vunpack.c.l.bf16 %v1454
          %v1647 = vunpack.c.l.bf16 %v1455
          %v1648 = vunpack.c.l.bf16 %v1456
          %v1649 = vunpack.c.l.bf16 %v1457
          %v1650 = vunpack.c.l.bf16 %v1458
          %v1651 = vunpack.c.l.bf16 %v1459
          %v1652 = vunpack.c.l.bf16 %v1460
          %v1653 = vunpack.c.l.bf16 %v1461
          %v1654 = vunpack.c.l.bf16 %v1462
          %v1655 = vunpack.c.l.bf16 %v1463
          %v1656 = vunpack.c.l.bf16 %v1464
          %v1657 = vunpack.c.l.bf16 %v1465
          %v1658 = vunpack.c.l.bf16 %v1466
          %v1659 = vunpack.c.l.bf16 %v1467
          %v1660 = vunpack.c.l.bf16 %v1468
          %v1661 = vunpack.c.l.bf16 %v1469
          %v1662 = vunpack.c.l.bf16 %v1470
          %v1663 = vunpack.c.l.bf16 %v1471
          %v1664 = vunpack.c.l.bf16 %v1472
          %v1665 = vunpack.c.l.bf16 %v1473
          %v1666 = vunpack.c.l.bf16 %v1474
          %v1667 = vunpack.c.l.bf16 %v1475
          %v1668 = vunpack.c.l.bf16 %v1476
          %v1669 = vunpack.c.l.bf16 %v1477
          %v1670 = vunpack.c.l.bf16 %v1478
          %v1671 = vunpack.c.l.bf16 %v1479
          %v1672 = vunpack.c.l.bf16 %v1480
          %v1673 = vunpack.c.l.bf16 %v1481
          %v1674 = vunpack.c.l.bf16 %v1482
          %v1675 = vunpack.c.l.bf16 %v1483
          %v1676 = vunpack.c.l.bf16 %v1484
          %v1677 = vunpack.c.l.bf16 %v1485
          %v1678 = vunpack.c.l.bf16 %v1486
          %v1679 = vunpack.c.l.bf16 %v1487
          %v1680 = vunpack.c.l.bf16 %v1488
          %v1681 = vunpack.c.l.bf16 %v1489
          %v1682 = vunpack.c.l.bf16 %v1490
          %v1683 = vunpack.c.l.bf16 %v1491
          %v1684 = vunpack.c.l.bf16 %v1492
          %v1685 = vunpack.c.l.bf16 %v1493
          %v1686 = vunpack.c.l.bf16 %v1494
          %v1687 = vunpack.c.l.bf16 %v1495
          %v1688 = vunpack.c.l.bf16 %v1496
          %v1689 = vunpack.c.l.bf16 %v1497
          %v1690 = vunpack.c.l.bf16 %v1498
          %v1691 = vunpack.c.l.bf16 %v1499
          %v1692 = vunpack.c.l.bf16 %v1500
          %v1693 = vunpack.c.l.bf16 %v1501
          %v1694 = vunpack.c.l.bf16 %v1502
          %v1695 = vunpack.c.l.bf16 %v1503
          %v1696 = vunpack.c.l.bf16 %v1504
          %v1697 = vunpack.c.l.bf16 %v1505
          %v1698 = vunpack.c.l.bf16 %v1506
          %v1699 = vunpack.c.l.bf16 %v1507
          %v1700 = vunpack.c.l.bf16 %v1508
          %v1701 = vunpack.c.l.bf16 %v1509
          %v1702 = vunpack.c.l.bf16 %v1510
          %v1703 = vunpack.c.l.bf16 %v1511
          %v1704 = vunpack.c.l.bf16 %v1512
          %v1705 = vmul.f32 %v1641, 0.17677669
          %v1706 = vmul.f32 %v1642, 0.17677669
          %v1707 = vmul.f32 %v1643, 0.17677669
          %v1708 = vmul.f32 %v1644, 0.17677669
          %v1709 = vmul.f32 %v1645, 0.17677669
          %v1710 = vmul.f32 %v1646, 0.17677669
          %v1711 = vmul.f32 %v1647, 0.17677669
          %v1712 = vmul.f32 %v1648, 0.17677669
          %v1713 = vmul.f32 %v1649, 0.17677669
          %v1714 = vmul.f32 %v1650, 0.17677669
          %v1715 = vmul.f32 %v1651, 0.17677669
          %v1716 = vmul.f32 %v1652, 0.17677669
          %v1717 = vmul.f32 %v1653, 0.17677669
          %v1718 = vmul.f32 %v1654, 0.17677669
          %v1719 = vmul.f32 %v1655, 0.17677669
          %v1720 = vmul.f32 %v1656, 0.17677669
          %v1721 = vmul.f32 %v1657, 0.17677669
          %v1722 = vmul.f32 %v1658, 0.17677669
          %v1723 = vmul.f32 %v1659, 0.17677669
          %v1724 = vmul.f32 %v1660, 0.17677669
          %v1725 = vmul.f32 %v1661, 0.17677669
          %v1726 = vmul.f32 %v1662, 0.17677669
          %v1727 = vmul.f32 %v1663, 0.17677669
          %v1728 = vmul.f32 %v1664, 0.17677669
          %v1729 = vmul.f32 %v1665, 0.17677669
          %v1730 = vmul.f32 %v1666, 0.17677669
          %v1731 = vmul.f32 %v1667, 0.17677669
          %v1732 = vmul.f32 %v1668, 0.17677669
          %v1733 = vmul.f32 %v1669, 0.17677669
          %v1734 = vmul.f32 %v1670, 0.17677669
          %v1735 = vmul.f32 %v1671, 0.17677669
          %v1736 = vmul.f32 %v1672, 0.17677669
          %v1737 = vmul.f32 %v1673, 0.17677669
          %v1738 = vmul.f32 %v1674, 0.17677669
          %v1739 = vmul.f32 %v1675, 0.17677669
          %v1740 = vmul.f32 %v1676, 0.17677669
          %v1741 = vmul.f32 %v1677, 0.17677669
          %v1742 = vmul.f32 %v1678, 0.17677669
          %v1743 = vmul.f32 %v1679, 0.17677669
          %v1744 = vmul.f32 %v1680, 0.17677669
          %v1745 = vmul.f32 %v1681, 0.17677669
          %v1746 = vmul.f32 %v1682, 0.17677669
          %v1747 = vmul.f32 %v1683, 0.17677669
          %v1748 = vmul.f32 %v1684, 0.17677669
          %v1749 = vmul.f32 %v1685, 0.17677669
          %v1750 = vmul.f32 %v1686, 0.17677669
          %v1751 = vmul.f32 %v1687, 0.17677669
          %v1752 = vmul.f32 %v1688, 0.17677669
          %v1753 = vmul.f32 %v1689, 0.17677669
          %v1754 = vmul.f32 %v1690, 0.17677669
          %v1755 = vmul.f32 %v1691, 0.17677669
          %v1756 = vmul.f32 %v1692, 0.17677669
          %v1757 = vmul.f32 %v1693, 0.17677669
          %v1758 = vmul.f32 %v1694, 0.17677669
          %v1759 = vmul.f32 %v1695, 0.17677669
          %v1760 = vmul.f32 %v1696, 0.17677669
          %v1761 = vmul.f32 %v1697, 0.17677669
          %v1762 = vmul.f32 %v1698, 0.17677669
          %v1763 = vmul.f32 %v1699, 0.17677669
          %v1764 = vmul.f32 %v1700, 0.17677669
          %v1765 = vmul.f32 %v1701, 0.17677669
          %v1766 = vmul.f32 %v1702, 0.17677669
          %v1767 = vmul.f32 %v1703, 0.17677669
          %v1768 = vmul.f32 %v1704, 0.17677669
          %v1769 = vpack.c.bf16 %v1706, %v1705
          %v1770 = vpack.c.bf16 %v1708, %v1707
          %v1771 = vpack.c.bf16 %v1710, %v1709
          %v1772 = vpack.c.bf16 %v1712, %v1711
          %v1773 = vpack.c.bf16 %v1714, %v1713
          %v1774 = vpack.c.bf16 %v1716, %v1715
          %v1775 = vpack.c.bf16 %v1718, %v1717
          %v1776 = vpack.c.bf16 %v1720, %v1719
          %v1777 = vpack.c.bf16 %v1722, %v1721
          %v1778 = vpack.c.bf16 %v1724, %v1723
          %v1779 = vpack.c.bf16 %v1726, %v1725
          %v1780 = vpack.c.bf16 %v1728, %v1727
          %v1781 = vpack.c.bf16 %v1730, %v1729
          %v1782 = vpack.c.bf16 %v1732, %v1731
          %v1783 = vpack.c.bf16 %v1734, %v1733
          %v1784 = vpack.c.bf16 %v1736, %v1735
          %v1785 = vpack.c.bf16 %v1738, %v1737
          %v1786 = vpack.c.bf16 %v1740, %v1739
          %v1787 = vpack.c.bf16 %v1742, %v1741
          %v1788 = vpack.c.bf16 %v1744, %v1743
          %v1789 = vpack.c.bf16 %v1746, %v1745
          %v1790 = vpack.c.bf16 %v1748, %v1747
          %v1791 = vpack.c.bf16 %v1750, %v1749
          %v1792 = vpack.c.bf16 %v1752, %v1751
          %v1793 = vpack.c.bf16 %v1754, %v1753
          %v1794 = vpack.c.bf16 %v1756, %v1755
          %v1795 = vpack.c.bf16 %v1758, %v1757
          %v1796 = vpack.c.bf16 %v1760, %v1759
          %v1797 = vpack.c.bf16 %v1762, %v1761
          %v1798 = vpack.c.bf16 %v1764, %v1763
          %v1799 = vpack.c.bf16 %v1766, %v1765
          %v1800 = vpack.c.bf16 %v1768, %v1767
          %v1801 = vlaneseq
          %v1802 = vshrl.u32 %v1801, 7
          %v1803 = vadd.s32 %v1802, 8
          %v1804 = vadd.s32 %v1802, 16
          %v1805 = vadd.s32 %v1802, 24
          %v1806 = vadd.s32 %v1802, 32
          %v1807 = vadd.s32 %v1802, 40
          %v1808 = vadd.s32 %v1802, 48
          %v1809 = vadd.s32 %v1802, 56
          %v1810 = vadd.s32 %v1802, 64
          %v1811 = vadd.s32 %v1802, 72
          %v1812 = vadd.s32 %v1802, 80
          %v1813 = vadd.s32 %v1802, 88
          %v1814 = vadd.s32 %v1802, 96
          %v1815 = vadd.s32 %v1802, 104
          %v1816 = vadd.s32 %v1802, 112
          %v1817 = vadd.s32 %v1802, 120
          %v1818 = vstv %s1443
          %v1819 = vadd.s32 %v1818, %v1802
          %v1820 = vadd.s32 %v1818, %v1803
          %v1821 = vadd.s32 %v1818, %v1804
          %v1822 = vadd.s32 %v1818, %v1805
          %v1823 = vadd.s32 %v1818, %v1806
          %v1824 = vadd.s32 %v1818, %v1807
          %v1825 = vadd.s32 %v1818, %v1808
          %v1826 = vadd.s32 %v1818, %v1809
          %v1827 = vadd.s32 %v1818, %v1810
          %v1828 = vadd.s32 %v1818, %v1811
          %v1829 = vadd.s32 %v1818, %v1812
          %v1830 = vadd.s32 %v1818, %v1813
          %v1831 = vadd.s32 %v1818, %v1814
          %v1832 = vadd.s32 %v1818, %v1815
          %v1833 = vadd.s32 %v1818, %v1816
          %v1834 = vadd.s32 %v1818, %v1817
          %v1835 = vlaneseq
          %v1836 = vand.u32 %v1835, 127
          %v1837 = vstv %s1442
          %v1838 = vadd.s32 %v1837, %v1836
          %vm1839 = vcmp.le.s32.totalorder %v1838, %v1819
          %vm1840 = vcmp.le.s32.totalorder %v1838, %v1820
          %vm1841 = vcmp.le.s32.totalorder %v1838, %v1821
          %vm1842 = vcmp.le.s32.totalorder %v1838, %v1822
          %vm1843 = vcmp.le.s32.totalorder %v1838, %v1823
          %vm1844 = vcmp.le.s32.totalorder %v1838, %v1824
          %vm1845 = vcmp.le.s32.totalorder %v1838, %v1825
          %vm1846 = vcmp.le.s32.totalorder %v1838, %v1826
          %vm1847 = vcmp.le.s32.totalorder %v1838, %v1827
          %vm1848 = vcmp.le.s32.totalorder %v1838, %v1828
          %vm1849 = vcmp.le.s32.totalorder %v1838, %v1829
          %vm1850 = vcmp.le.s32.totalorder %v1838, %v1830
          %vm1851 = vcmp.le.s32.totalorder %v1838, %v1831
          %vm1852 = vcmp.le.s32.totalorder %v1838, %v1832
          %vm1853 = vcmp.le.s32.totalorder %v1838, %v1833
          %vm1854 = vcmp.le.s32.totalorder %v1838, %v1834
          %v1855 = vld [vmem:[%s1238] sm:$0x1]
          %vm1856 = vcmp.ne.f32.partialorder %v1855, 0.0
          %v1857 = vsel %vm1856, 1, 0
          %v1858 = vlaneseq
          %v1859 = vshrl.u32 %v1858, 7
          %v1860 = vsub.s32 0, %v1859
          %v1861 = vrot.slane %v1857, %v1860
          %vm1862 = vcmp.eq.s32.totalorder %v1861, 1
          %vm1863 = vmand %vm1839, %vm1862
          %vm1864 = vmand %vm1840, %vm1862
          %vm1865 = vmand %vm1841, %vm1862
          %vm1866 = vmand %vm1842, %vm1862
          %vm1867 = vmand %vm1843, %vm1862
          %vm1868 = vmand %vm1844, %vm1862
          %vm1869 = vmand %vm1845, %vm1862
          %vm1870 = vmand %vm1846, %vm1862
          %vm1871 = vmand %vm1847, %vm1862
          %vm1872 = vmand %vm1848, %vm1862
          %vm1873 = vmand %vm1849, %vm1862
          %vm1874 = vmand %vm1850, %vm1862
          %vm1875 = vmand %vm1851, %vm1862
          %vm1876 = vmand %vm1852, %vm1862
          %vm1877 = vmand %vm1853, %vm1862
          %vm1878 = vmand %vm1854, %vm1862
          %v1879 = vsel %vm1863, 0.0, -1e+30
          %v1880 = vsel %vm1864, 0.0, -1e+30
          %v1881 = vsel %vm1865, 0.0, -1e+30
          %v1882 = vsel %vm1866, 0.0, -1e+30
          %v1883 = vsel %vm1867, 0.0, -1e+30
          %v1884 = vsel %vm1868, 0.0, -1e+30
          %v1885 = vsel %vm1869, 0.0, -1e+30
          %v1886 = vsel %vm1870, 0.0, -1e+30
          %v1887 = vsel %vm1871, 0.0, -1e+30
          %v1888 = vsel %vm1872, 0.0, -1e+30
          %v1889 = vsel %vm1873, 0.0, -1e+30
          %v1890 = vsel %vm1874, 0.0, -1e+30
          %v1891 = vsel %vm1875, 0.0, -1e+30
          %v1892 = vsel %vm1876, 0.0, -1e+30
          %v1893 = vsel %vm1877, 0.0, -1e+30
          %v1894 = vsel %vm1878, 0.0, -1e+30
          %v1911 = vunpack.c.l.b16 %v1513
          %v1912 = vunpack.c.l.b16 %v1514
          %v1913 = vunpack.c.l.b16 %v1515
          %v1914 = vunpack.c.l.b16 %v1516
          %v1915 = vunpack.c.l.b16 %v1517
          %v1916 = vunpack.c.l.b16 %v1518
          %v1917 = vunpack.c.l.b16 %v1519
          %v1918 = vunpack.c.l.b16 %v1520
          %v1919 = vunpack.c.l.b16 %v1521
          %v1920 = vunpack.c.l.b16 %v1522
          %v1921 = vunpack.c.l.b16 %v1523
          %v1922 = vunpack.c.l.b16 %v1524
          %v1923 = vunpack.c.l.b16 %v1525
          %v1924 = vunpack.c.l.b16 %v1526
          %v1925 = vunpack.c.l.b16 %v1527
          %v1926 = vunpack.c.l.b16 %v1528
          %v1927 = vpack.c.b16 %v1912, %v1911
          %v1928 = vpack.c.b16 %v1914, %v1913
          %v1929 = vpack.c.b16 %v1916, %v1915
          %v1930 = vpack.c.b16 %v1918, %v1917
          %v1931 = vpack.c.b16 %v1920, %v1919
          %v1932 = vpack.c.b16 %v1922, %v1921
          %v1933 = vpack.c.b16 %v1924, %v1923
          %v1934 = vpack.c.b16 %v1926, %v1925
          %vm1935 = vcmask 261120
          %v1937 = vsel %vm1935, %v1769, 0
          %v1940 = vsel %vm1935, %v1770, 0
          %v1943 = vsel %vm1935, %v1771, 0
          %v1946 = vsel %vm1935, %v1772, 0
          %v1949 = vsel %vm1935, %v1773, 0
          %v1952 = vsel %vm1935, %v1774, 0
          %v1955 = vsel %vm1935, %v1775, 0
          %v1958 = vsel %vm1935, %v1776, 0
          %v1961 = vsel %vm1935, %v1927, 0
          %v1964 = vsel %vm1935, %v1928, 0
          %v1967 = vsel %vm1935, %v1929, 0
          %v1970 = vsel %vm1935, %v1930, 0
          %v1973 = vsel %vm1935, %v1931, 0
          %v1976 = vsel %vm1935, %v1932, 0
          %v1979 = vsel %vm1935, %v1933, 0
          %v1982 = vsel %vm1935, %v1934, 0
          %1984 = vmatprep.subr.bf16.mxu0 0
          %1985 = vmatpush1.bf16.xpose.msra.mxu0 %v1982
          %1986 = vmatprep.subr.bf16.mxu0 0
          %1987 = vmatpush1.bf16.xpose.msra.mxu0 %v1979
          %1988 = vmatprep.subr.bf16.mxu0 0
          %1989 = vmatpush1.bf16.xpose.msra.mxu0 %v1976
          %1990 = vmatprep.subr.bf16.mxu0 0
          %1991 = vmatpush1.bf16.xpose.msra.mxu0 %v1973
          %1992 = vmatprep.subr.bf16.mxu0 0
          %1993 = vmatpush1.bf16.xpose.msra.mxu0 %v1970
          %1994 = vmatprep.subr.bf16.mxu0 0
          %1995 = vmatpush1.bf16.xpose.msra.mxu0 %v1967
          %1996 = vmatprep.subr.bf16.mxu0 0
          %1997 = vmatpush1.bf16.xpose.msra.mxu0 %v1964
          %1998 = vmatprep.subr.bf16.mxu0 0
          %1999 = vmatpush1.bf16.xpose.msra.mxu0 %v1961
          %2000 = vmatprep.subr.bf16.mxu0 0
          %2001 = vmatpush2.bf16.xpose.msra.mxu0 0
          %2002 = vmatprep.subr.bf16.mxu0 0
          %2003 = vmatpush2.bf16.xpose.msra.mxu0 0
          %2004 = vmatprep.subr.bf16.mxu0 0
          %2005 = vmatpush2.bf16.xpose.msra.mxu0 0
          %2006 = vmatprep.subr.bf16.mxu0 0
          %2007 = vmatpush2.bf16.xpose.msra.mxu0 0
          %2008 = vmatprep.subr.bf16.mxu0 0
          %2009 = vmatpush2.bf16.xpose.msra.mxu0 0
          %2010 = vmatprep.subr.bf16.mxu0 0
          %2011 = vmatpush2.bf16.xpose.msra.mxu0 0
          %2012 = vmatprep.subr.bf16.mxu0 0
          %2013 = vmatpush2.bf16.xpose.msra.mxu0 0
          %2014 = vmatprep.subr.bf16.mxu0 0
          %2015 = vmatpush2.bf16.xpose.msra.mxu0 0
          %2016 = vmatprep.mubr.bf16.mxu0 0
          %2017 = vmatmul.mubr.bf16.gmra.mxu0 %v1937
          %v2018 = vpop.f32.mrf.mxu0
          %v2019 = vadd.f32 %v1879, %v2018
          %v2020 = vpop.f32.mrf.mxu0
          %v2021 = vpop.f32.mrf.mxu0
          %v2022 = vadd.f32 %v1880, %v2021
          %v2023 = vpop.f32.mrf.mxu0
          %2024 = vmatprep.mubr.bf16.mxu0 0
          %2025 = vmatmul.mubr.bf16.gmra.mxu0 %v1940
          %v2026 = vpop.f32.mrf.mxu0
          %v2027 = vadd.f32 %v1881, %v2026
          %v2028 = vpop.f32.mrf.mxu0
          %v2029 = vpop.f32.mrf.mxu0
          %v2030 = vadd.f32 %v1882, %v2029
          %v2031 = vpop.f32.mrf.mxu0
          %2032 = vmatprep.mubr.bf16.mxu0 0
          %2033 = vmatmul.mubr.bf16.gmra.mxu0 %v1943
          %v2034 = vpop.f32.mrf.mxu0
          %v2035 = vadd.f32 %v1883, %v2034
          %v2036 = vpop.f32.mrf.mxu0
          %v2037 = vpop.f32.mrf.mxu0
          %v2038 = vadd.f32 %v1884, %v2037
          %v2039 = vpop.f32.mrf.mxu0
          %2040 = vmatprep.mubr.bf16.mxu0 0
          %2041 = vmatmul.mubr.bf16.gmra.mxu0 %v1946
          %v2042 = vpop.f32.mrf.mxu0
          %v2043 = vadd.f32 %v1885, %v2042
          %v2044 = vpop.f32.mrf.mxu0
          %v2045 = vpop.f32.mrf.mxu0
          %v2046 = vadd.f32 %v1886, %v2045
          %v2047 = vpop.f32.mrf.mxu0
          %2048 = vmatprep.mubr.bf16.mxu0 0
          %2049 = vmatmul.mubr.bf16.gmra.mxu0 %v1949
          %v2050 = vpop.f32.mrf.mxu0
          %v2051 = vadd.f32 %v1887, %v2050
          %v2052 = vpop.f32.mrf.mxu0
          %v2053 = vpop.f32.mrf.mxu0
          %v2054 = vadd.f32 %v1888, %v2053
          %v2055 = vpop.f32.mrf.mxu0
          %2056 = vmatprep.mubr.bf16.mxu0 0
          %2057 = vmatmul.mubr.bf16.gmra.mxu0 %v1952
          %v2058 = vpop.f32.mrf.mxu0
          %v2059 = vadd.f32 %v1889, %v2058
          %v2060 = vpop.f32.mrf.mxu0
          %v2061 = vpop.f32.mrf.mxu0
          %v2062 = vadd.f32 %v1890, %v2061
          %v2063 = vpop.f32.mrf.mxu0
          %2064 = vmatprep.mubr.bf16.mxu0 0
          %2065 = vmatmul.mubr.bf16.gmra.mxu0 %v1955
          %v2066 = vpop.f32.mrf.mxu0
          %v2067 = vadd.f32 %v1891, %v2066
          %v2068 = vpop.f32.mrf.mxu0
          %v2069 = vpop.f32.mrf.mxu0
          %v2070 = vadd.f32 %v1892, %v2069
          %v2071 = vpop.f32.mrf.mxu0
          %2072 = vmatprep.mubr.bf16.mxu0 0
          %2073 = vmatmul.mubr.bf16.gmra.mxu0 %v1958
          %v2074 = vpop.f32.mrf.mxu0
          %v2075 = vadd.f32 %v1893, %v2074
          %v2076 = vpop.f32.mrf.mxu0
          %v2077 = vpop.f32.mrf.mxu0
          %v2078 = vadd.f32 %v1894, %v2077
          %v2079 = vpop.f32.mrf.mxu0
          %2080 = vdwg.mxu0
          %v2097 = vunpack.c.l.b16 %v1529
          %v2098 = vunpack.c.l.b16 %v1530
          %v2099 = vunpack.c.l.b16 %v1531
          %v2100 = vunpack.c.l.b16 %v1532
          %v2101 = vunpack.c.l.b16 %v1533
          %v2102 = vunpack.c.l.b16 %v1534
          %v2103 = vunpack.c.l.b16 %v1535
          %v2104 = vunpack.c.l.b16 %v1536
          %v2105 = vunpack.c.l.b16 %v1537
          %v2106 = vunpack.c.l.b16 %v1538
          %v2107 = vunpack.c.l.b16 %v1539
          %v2108 = vunpack.c.l.b16 %v1540
          %v2109 = vunpack.c.l.b16 %v1541
          %v2110 = vunpack.c.l.b16 %v1542
          %v2111 = vunpack.c.l.b16 %v1543
          %v2112 = vunpack.c.l.b16 %v1544
          %v2113 = vpack.c.b16 %v2098, %v2097
          %v2114 = vpack.c.b16 %v2100, %v2099
          %v2115 = vpack.c.b16 %v2102, %v2101
          %v2116 = vpack.c.b16 %v2104, %v2103
          %v2117 = vpack.c.b16 %v2106, %v2105
          %v2118 = vpack.c.b16 %v2108, %v2107
          %v2119 = vpack.c.b16 %v2110, %v2109
          %v2120 = vpack.c.b16 %v2112, %v2111
          %v2122 = vsel %vm1935, %v1777, 0
          %v2125 = vsel %vm1935, %v1778, 0
          %v2128 = vsel %vm1935, %v1779, 0
          %v2131 = vsel %vm1935, %v1780, 0
          %v2134 = vsel %vm1935, %v1781, 0
          %v2137 = vsel %vm1935, %v1782, 0
          %v2140 = vsel %vm1935, %v1783, 0
          %v2143 = vsel %vm1935, %v1784, 0
          %v2146 = vsel %vm1935, %v2113, 0
          %v2149 = vsel %vm1935, %v2114, 0
          %v2152 = vsel %vm1935, %v2115, 0
          %v2155 = vsel %vm1935, %v2116, 0
          %v2158 = vsel %vm1935, %v2117, 0
          %v2161 = vsel %vm1935, %v2118, 0
          %v2164 = vsel %vm1935, %v2119, 0
          %v2167 = vsel %vm1935, %v2120, 0
          %2169 = vmatprep.subr.bf16.mxu0 0
          %2170 = vmatpush1.bf16.xpose.msra.mxu0 %v2167
          %2171 = vmatprep.subr.bf16.mxu0 0
          %2172 = vmatpush1.bf16.xpose.msra.mxu0 %v2164
          %2173 = vmatprep.subr.bf16.mxu0 0
          %2174 = vmatpush1.bf16.xpose.msra.mxu0 %v2161
          %2175 = vmatprep.subr.bf16.mxu0 0
          %2176 = vmatpush1.bf16.xpose.msra.mxu0 %v2158
          %2177 = vmatprep.subr.bf16.mxu0 0
          %2178 = vmatpush1.bf16.xpose.msra.mxu0 %v2155
          %2179 = vmatprep.subr.bf16.mxu0 0
          %2180 = vmatpush1.bf16.xpose.msra.mxu0 %v2152
          %2181 = vmatprep.subr.bf16.mxu0 0
          %2182 = vmatpush1.bf16.xpose.msra.mxu0 %v2149
          %2183 = vmatprep.subr.bf16.mxu0 0
          %2184 = vmatpush1.bf16.xpose.msra.mxu0 %v2146
          %2185 = vmatprep.subr.bf16.mxu0 0
          %2186 = vmatpush2.bf16.xpose.msra.mxu0 0
          %2187 = vmatprep.subr.bf16.mxu0 0
          %2188 = vmatpush2.bf16.xpose.msra.mxu0 0
          %2189 = vmatprep.subr.bf16.mxu0 0
          %2190 = vmatpush2.bf16.xpose.msra.mxu0 0
          %2191 = vmatprep.subr.bf16.mxu0 0
          %2192 = vmatpush2.bf16.xpose.msra.mxu0 0
          %2193 = vmatprep.subr.bf16.mxu0 0
          %2194 = vmatpush2.bf16.xpose.msra.mxu0 0
          %2195 = vmatprep.subr.bf16.mxu0 0
          %2196 = vmatpush2.bf16.xpose.msra.mxu0 0
          %2197 = vmatprep.subr.bf16.mxu0 0
          %2198 = vmatpush2.bf16.xpose.msra.mxu0 0
          %2199 = vmatprep.subr.bf16.mxu0 0
          %2200 = vmatpush2.bf16.xpose.msra.mxu0 0
          %2201 = vmatprep.mubr.bf16.mxu0 0
          %2202 = vmatmul.mubr.bf16.gmra.mxu0 %v2122
          %v2203 = vpop.f32.mrf.mxu0
          %v2204 = vadd.f32 %v1879, %v2203
          %v2205 = vpop.f32.mrf.mxu0
          %v2206 = vpop.f32.mrf.mxu0
          %v2207 = vadd.f32 %v1880, %v2206
          %v2208 = vpop.f32.mrf.mxu0
          %2209 = vmatprep.mubr.bf16.mxu0 0
          %2210 = vmatmul.mubr.bf16.gmra.mxu0 %v2125
          %v2211 = vpop.f32.mrf.mxu0
          %v2212 = vadd.f32 %v1881, %v2211
          %v2213 = vpop.f32.mrf.mxu0
          %v2214 = vpop.f32.mrf.mxu0
          %v2215 = vadd.f32 %v1882, %v2214
          %v2216 = vpop.f32.mrf.mxu0
          %2217 = vmatprep.mubr.bf16.mxu0 0
          %2218 = vmatmul.mubr.bf16.gmra.mxu0 %v2128
          %v2219 = vpop.f32.mrf.mxu0
          %v2220 = vadd.f32 %v1883, %v2219
          %v2221 = vpop.f32.mrf.mxu0
          %v2222 = vpop.f32.mrf.mxu0
          %v2223 = vadd.f32 %v1884, %v2222
          %v2224 = vpop.f32.mrf.mxu0
          %2225 = vmatprep.mubr.bf16.mxu0 0
          %2226 = vmatmul.mubr.bf16.gmra.mxu0 %v2131
          %v2227 = vpop.f32.mrf.mxu0
          %v2228 = vadd.f32 %v1885, %v2227
          %v2229 = vpop.f32.mrf.mxu0
          %v2230 = vpop.f32.mrf.mxu0
          %v2231 = vadd.f32 %v1886, %v2230
          %v2232 = vpop.f32.mrf.mxu0
          %2233 = vmatprep.mubr.bf16.mxu0 0
          %2234 = vmatmul.mubr.bf16.gmra.mxu0 %v2134
          %v2235 = vpop.f32.mrf.mxu0
          %v2236 = vadd.f32 %v1887, %v2235
          %v2237 = vpop.f32.mrf.mxu0
          %v2238 = vpop.f32.mrf.mxu0
          %v2239 = vadd.f32 %v1888, %v2238
          %v2240 = vpop.f32.mrf.mxu0
          %2241 = vmatprep.mubr.bf16.mxu0 0
          %2242 = vmatmul.mubr.bf16.gmra.mxu0 %v2137
          %v2243 = vpop.f32.mrf.mxu0
          %v2244 = vadd.f32 %v1889, %v2243
          %v2245 = vpop.f32.mrf.mxu0
          %v2246 = vpop.f32.mrf.mxu0
          %v2247 = vadd.f32 %v1890, %v2246
          %v2248 = vpop.f32.mrf.mxu0
          %2249 = vmatprep.mubr.bf16.mxu0 0
          %2250 = vmatmul.mubr.bf16.gmra.mxu0 %v2140
          %v2251 = vpop.f32.mrf.mxu0
          %v2252 = vadd.f32 %v1891, %v2251
          %v2253 = vpop.f32.mrf.mxu0
          %v2254 = vpop.f32.mrf.mxu0
          %v2255 = vadd.f32 %v1892, %v2254
          %v2256 = vpop.f32.mrf.mxu0
          %2257 = vmatprep.mubr.bf16.mxu0 0
          %2258 = vmatmul.mubr.bf16.gmra.mxu0 %v2143
          %v2259 = vpop.f32.mrf.mxu0
          %v2260 = vadd.f32 %v1893, %v2259
          %v2261 = vpop.f32.mrf.mxu0
          %v2262 = vpop.f32.mrf.mxu0
          %v2263 = vadd.f32 %v1894, %v2262
          %v2264 = vpop.f32.mrf.mxu0
          %2265 = vdwg.mxu0
          %v2282 = vunpack.c.l.b16 %v1545
          %v2283 = vunpack.c.l.b16 %v1546
          %v2284 = vunpack.c.l.b16 %v1547
          %v2285 = vunpack.c.l.b16 %v1548
          %v2286 = vunpack.c.l.b16 %v1549
          %v2287 = vunpack.c.l.b16 %v1550
          %v2288 = vunpack.c.l.b16 %v1551
          %v2289 = vunpack.c.l.b16 %v1552
          %v2290 = vunpack.c.l.b16 %v1553
          %v2291 = vunpack.c.l.b16 %v1554
          %v2292 = vunpack.c.l.b16 %v1555
          %v2293 = vunpack.c.l.b16 %v1556
          %v2294 = vunpack.c.l.b16 %v1557
          %v2295 = vunpack.c.l.b16 %v1558
          %v2296 = vunpack.c.l.b16 %v1559
          %v2297 = vunpack.c.l.b16 %v1560
          %v2298 = vpack.c.b16 %v2283, %v2282
          %v2299 = vpack.c.b16 %v2285, %v2284
          %v2300 = vpack.c.b16 %v2287, %v2286
          %v2301 = vpack.c.b16 %v2289, %v2288
          %v2302 = vpack.c.b16 %v2291, %v2290
          %v2303 = vpack.c.b16 %v2293, %v2292
          %v2304 = vpack.c.b16 %v2295, %v2294
          %v2305 = vpack.c.b16 %v2297, %v2296
          %v2307 = vsel %vm1935, %v1785, 0
          %v2310 = vsel %vm1935, %v1786, 0
          %v2313 = vsel %vm1935, %v1787, 0
          %v2316 = vsel %vm1935, %v1788, 0
          %v2319 = vsel %vm1935, %v1789, 0
          %v2322 = vsel %vm1935, %v1790, 0
          %v2325 = vsel %vm1935, %v1791, 0
          %v2328 = vsel %vm1935, %v1792, 0
          %v2331 = vsel %vm1935, %v2298, 0
          %v2334 = vsel %vm1935, %v2299, 0
          %v2337 = vsel %vm1935, %v2300, 0
          %v2340 = vsel %vm1935, %v2301, 0
          %v2343 = vsel %vm1935, %v2302, 0
          %v2346 = vsel %vm1935, %v2303, 0
          %v2349 = vsel %vm1935, %v2304, 0
          %v2352 = vsel %vm1935, %v2305, 0
          %2354 = vmatprep.subr.bf16.mxu0 0
          %2355 = vmatpush1.bf16.xpose.msra.mxu0 %v2352
          %2356 = vmatprep.subr.bf16.mxu0 0
          %2357 = vmatpush1.bf16.xpose.msra.mxu0 %v2349
          %2358 = vmatprep.subr.bf16.mxu0 0
          %2359 = vmatpush1.bf16.xpose.msra.mxu0 %v2346
          %2360 = vmatprep.subr.bf16.mxu0 0
          %2361 = vmatpush1.bf16.xpose.msra.mxu0 %v2343
          %2362 = vmatprep.subr.bf16.mxu0 0
          %2363 = vmatpush1.bf16.xpose.msra.mxu0 %v2340
          %2364 = vmatprep.subr.bf16.mxu0 0
          %2365 = vmatpush1.bf16.xpose.msra.mxu0 %v2337
          %2366 = vmatprep.subr.bf16.mxu0 0
          %2367 = vmatpush1.bf16.xpose.msra.mxu0 %v2334
          %2368 = vmatprep.subr.bf16.mxu0 0
          %2369 = vmatpush1.bf16.xpose.msra.mxu0 %v2331
          %2370 = vmatprep.subr.bf16.mxu0 0
          %2371 = vmatpush2.bf16.xpose.msra.mxu0 0
          %2372 = vmatprep.subr.bf16.mxu0 0
          %2373 = vmatpush2.bf16.xpose.msra.mxu0 0
          %2374 = vmatprep.subr.bf16.mxu0 0
          %2375 = vmatpush2.bf16.xpose.msra.mxu0 0
          %2376 = vmatprep.subr.bf16.mxu0 0
          %2377 = vmatpush2.bf16.xpose.msra.mxu0 0
          %2378 = vmatprep.subr.bf16.mxu0 0
          %2379 = vmatpush2.bf16.xpose.msra.mxu0 0
          %2380 = vmatprep.subr.bf16.mxu0 0
          %2381 = vmatpush2.bf16.xpose.msra.mxu0 0
          %2382 = vmatprep.subr.bf16.mxu0 0
          %2383 = vmatpush2.bf16.xpose.msra.mxu0 0
          %2384 = vmatprep.subr.bf16.mxu0 0
          %2385 = vmatpush2.bf16.xpose.msra.mxu0 0
          %2386 = vmatprep.mubr.bf16.mxu0 0
          %2387 = vmatmul.mubr.bf16.gmra.mxu0 %v2307
          %v2388 = vpop.f32.mrf.mxu0
          %v2389 = vadd.f32 %v1879, %v2388
          %v2390 = vpop.f32.mrf.mxu0
          %v2391 = vpop.f32.mrf.mxu0
          %v2392 = vadd.f32 %v1880, %v2391
          %v2393 = vpop.f32.mrf.mxu0
          %2394 = vmatprep.mubr.bf16.mxu0 0
          %2395 = vmatmul.mubr.bf16.gmra.mxu0 %v2310
          %v2396 = vpop.f32.mrf.mxu0
          %v2397 = vadd.f32 %v1881, %v2396
          %v2398 = vpop.f32.mrf.mxu0
          %v2399 = vpop.f32.mrf.mxu0
          %v2400 = vadd.f32 %v1882, %v2399
          %v2401 = vpop.f32.mrf.mxu0
          %2402 = vmatprep.mubr.bf16.mxu0 0
          %2403 = vmatmul.mubr.bf16.gmra.mxu0 %v2313
          %v2404 = vpop.f32.mrf.mxu0
          %v2405 = vadd.f32 %v1883, %v2404
          %v2406 = vpop.f32.mrf.mxu0
          %v2407 = vpop.f32.mrf.mxu0
          %v2408 = vadd.f32 %v1884, %v2407
          %v2409 = vpop.f32.mrf.mxu0
          %2410 = vmatprep.mubr.bf16.mxu0 0
          %2411 = vmatmul.mubr.bf16.gmra.mxu0 %v2316
          %v2412 = vpop.f32.mrf.mxu0
          %v2413 = vadd.f32 %v1885, %v2412
          %v2414 = vpop.f32.mrf.mxu0
          %v2415 = vpop.f32.mrf.mxu0
          %v2416 = vadd.f32 %v1886, %v2415
          %v2417 = vpop.f32.mrf.mxu0
          %2418 = vmatprep.mubr.bf16.mxu0 0
          %2419 = vmatmul.mubr.bf16.gmra.mxu0 %v2319
          %v2420 = vpop.f32.mrf.mxu0
          %v2421 = vadd.f32 %v1887, %v2420
          %v2422 = vpop.f32.mrf.mxu0
          %v2423 = vpop.f32.mrf.mxu0
          %v2424 = vadd.f32 %v1888, %v2423
          %v2425 = vpop.f32.mrf.mxu0
          %2426 = vmatprep.mubr.bf16.mxu0 0
          %2427 = vmatmul.mubr.bf16.gmra.mxu0 %v2322
          %v2428 = vpop.f32.mrf.mxu0
          %v2429 = vadd.f32 %v1889, %v2428
          %v2430 = vpop.f32.mrf.mxu0
          %v2431 = vpop.f32.mrf.mxu0
          %v2432 = vadd.f32 %v1890, %v2431
          %v2433 = vpop.f32.mrf.mxu0
          %2434 = vmatprep.mubr.bf16.mxu0 0
          %2435 = vmatmul.mubr.bf16.gmra.mxu0 %v2325
          %v2436 = vpop.f32.mrf.mxu0
          %v2437 = vadd.f32 %v1891, %v2436
          %v2438 = vpop.f32.mrf.mxu0
          %v2439 = vpop.f32.mrf.mxu0
          %v2440 = vadd.f32 %v1892, %v2439
          %v2441 = vpop.f32.mrf.mxu0
          %2442 = vmatprep.mubr.bf16.mxu0 0
          %2443 = vmatmul.mubr.bf16.gmra.mxu0 %v2328
          %v2444 = vpop.f32.mrf.mxu0
          %v2445 = vadd.f32 %v1893, %v2444
          %v2446 = vpop.f32.mrf.mxu0
          %v2447 = vpop.f32.mrf.mxu0
          %v2448 = vadd.f32 %v1894, %v2447
          %v2449 = vpop.f32.mrf.mxu0
          %2450 = vdwg.mxu0
          %v2467 = vunpack.c.l.b16 %v1561
          %v2468 = vunpack.c.l.b16 %v1562
          %v2469 = vunpack.c.l.b16 %v1563
          %v2470 = vunpack.c.l.b16 %v1564
          %v2471 = vunpack.c.l.b16 %v1565
          %v2472 = vunpack.c.l.b16 %v1566
          %v2473 = vunpack.c.l.b16 %v1567
          %v2474 = vunpack.c.l.b16 %v1568
          %v2475 = vunpack.c.l.b16 %v1569
          %v2476 = vunpack.c.l.b16 %v1570
          %v2477 = vunpack.c.l.b16 %v1571
          %v2478 = vunpack.c.l.b16 %v1572
          %v2479 = vunpack.c.l.b16 %v1573
          %v2480 = vunpack.c.l.b16 %v1574
          %v2481 = vunpack.c.l.b16 %v1575
          %v2482 = vunpack.c.l.b16 %v1576
          %v2483 = vpack.c.b16 %v2468, %v2467
          %v2484 = vpack.c.b16 %v2470, %v2469
          %v2485 = vpack.c.b16 %v2472, %v2471
          %v2486 = vpack.c.b16 %v2474, %v2473
          %v2487 = vpack.c.b16 %v2476, %v2475
          %v2488 = vpack.c.b16 %v2478, %v2477
          %v2489 = vpack.c.b16 %v2480, %v2479
          %v2490 = vpack.c.b16 %v2482, %v2481
          %v2492 = vsel %vm1935, %v1793, 0
          %v2495 = vsel %vm1935, %v1794, 0
          %v2498 = vsel %vm1935, %v1795, 0
          %v2501 = vsel %vm1935, %v1796, 0
          %v2504 = vsel %vm1935, %v1797, 0
          %v2507 = vsel %vm1935, %v1798, 0
          %v2510 = vsel %vm1935, %v1799, 0
          %v2513 = vsel %vm1935, %v1800, 0
          %v2516 = vsel %vm1935, %v2483, 0
          %v2519 = vsel %vm1935, %v2484, 0
          %v2522 = vsel %vm1935, %v2485, 0
          %v2525 = vsel %vm1935, %v2486, 0
          %v2528 = vsel %vm1935, %v2487, 0
          %v2531 = vsel %vm1935, %v2488, 0
          %v2534 = vsel %vm1935, %v2489, 0
          %v2537 = vsel %vm1935, %v2490, 0
          %2539 = vmatprep.subr.bf16.mxu0 0
          %2540 = vmatpush1.bf16.xpose.msra.mxu0 %v2537
          %2541 = vmatprep.subr.bf16.mxu0 0
          %2542 = vmatpush1.bf16.xpose.msra.mxu0 %v2534
          %2543 = vmatprep.subr.bf16.mxu0 0
          %2544 = vmatpush1.bf16.xpose.msra.mxu0 %v2531
          %2545 = vmatprep.subr.bf16.mxu0 0
          %2546 = vmatpush1.bf16.xpose.msra.mxu0 %v2528
          %2547 = vmatprep.subr.bf16.mxu0 0
          %2548 = vmatpush1.bf16.xpose.msra.mxu0 %v2525
          %2549 = vmatprep.subr.bf16.mxu0 0
          %2550 = vmatpush1.bf16.xpose.msra.mxu0 %v2522
          %2551 = vmatprep.subr.bf16.mxu0 0
          %2552 = vmatpush1.bf16.xpose.msra.mxu0 %v2519
          %2553 = vmatprep.subr.bf16.mxu0 0
          %2554 = vmatpush1.bf16.xpose.msra.mxu0 %v2516
          %2555 = vmatprep.subr.bf16.mxu0 0
          %2556 = vmatpush2.bf16.xpose.msra.mxu0 0
          %2557 = vmatprep.subr.bf16.mxu0 0
          %2558 = vmatpush2.bf16.xpose.msra.mxu0 0
          %2559 = vmatprep.subr.bf16.mxu0 0
          %2560 = vmatpush2.bf16.xpose.msra.mxu0 0
          %2561 = vmatprep.subr.bf16.mxu0 0
          %2562 = vmatpush2.bf16.xpose.msra.mxu0 0
          %2563 = vmatprep.subr.bf16.mxu0 0
          %2564 = vmatpush2.bf16.xpose.msra.mxu0 0
          %2565 = vmatprep.subr.bf16.mxu0 0
          %2566 = vmatpush2.bf16.xpose.msra.mxu0 0
          %2567 = vmatprep.subr.bf16.mxu0 0
          %2568 = vmatpush2.bf16.xpose.msra.mxu0 0
          %2569 = vmatprep.subr.bf16.mxu0 0
          %2570 = vmatpush2.bf16.xpose.msra.mxu0 0
          %2571 = vmatprep.mubr.bf16.mxu0 0
          %2572 = vmatmul.mubr.bf16.gmra.mxu0 %v2492
          %v2573 = vpop.f32.mrf.mxu0
          %v2574 = vadd.f32 %v1879, %v2573
          %v2575 = vpop.f32.mrf.mxu0
          %v2576 = vpop.f32.mrf.mxu0
          %v2577 = vadd.f32 %v1880, %v2576
          %v2578 = vpop.f32.mrf.mxu0
          %2579 = vmatprep.mubr.bf16.mxu0 0
          %2580 = vmatmul.mubr.bf16.gmra.mxu0 %v2495
          %v2581 = vpop.f32.mrf.mxu0
          %v2582 = vadd.f32 %v1881, %v2581
          %v2583 = vpop.f32.mrf.mxu0
          %v2584 = vpop.f32.mrf.mxu0
          %v2585 = vadd.f32 %v1882, %v2584
          %v2586 = vpop.f32.mrf.mxu0
          %2587 = vmatprep.mubr.bf16.mxu0 0
          %2588 = vmatmul.mubr.bf16.gmra.mxu0 %v2498
          %v2589 = vpop.f32.mrf.mxu0
          %v2590 = vadd.f32 %v1883, %v2589
          %v2591 = vpop.f32.mrf.mxu0
          %v2592 = vpop.f32.mrf.mxu0
          %v2593 = vadd.f32 %v1884, %v2592
          %v2594 = vpop.f32.mrf.mxu0
          %2595 = vmatprep.mubr.bf16.mxu0 0
          %2596 = vmatmul.mubr.bf16.gmra.mxu0 %v2501
          %v2597 = vpop.f32.mrf.mxu0
          %v2598 = vadd.f32 %v1885, %v2597
          %v2599 = vpop.f32.mrf.mxu0
          %v2600 = vpop.f32.mrf.mxu0
          %v2601 = vadd.f32 %v1886, %v2600
          %v2602 = vpop.f32.mrf.mxu0
          %2603 = vmatprep.mubr.bf16.mxu0 0
          %2604 = vmatmul.mubr.bf16.gmra.mxu0 %v2504
          %v2605 = vpop.f32.mrf.mxu0
          %v2606 = vadd.f32 %v1887, %v2605
          %v2607 = vpop.f32.mrf.mxu0
          %v2608 = vpop.f32.mrf.mxu0
          %v2609 = vadd.f32 %v1888, %v2608
          %v2610 = vpop.f32.mrf.mxu0
          %2611 = vmatprep.mubr.bf16.mxu0 0
          %2612 = vmatmul.mubr.bf16.gmra.mxu0 %v2507
          %v2613 = vpop.f32.mrf.mxu0
          %v2614 = vadd.f32 %v1889, %v2613
          %v2615 = vpop.f32.mrf.mxu0
          %v2616 = vpop.f32.mrf.mxu0
          %v2617 = vadd.f32 %v1890, %v2616
          %v2618 = vpop.f32.mrf.mxu0
          %2619 = vmatprep.mubr.bf16.mxu0 0
          %2620 = vmatmul.mubr.bf16.gmra.mxu0 %v2510
          %v2621 = vpop.f32.mrf.mxu0
          %v2622 = vadd.f32 %v1891, %v2621
          %v2623 = vpop.f32.mrf.mxu0
          %v2624 = vpop.f32.mrf.mxu0
          %v2625 = vadd.f32 %v1892, %v2624
          %v2626 = vpop.f32.mrf.mxu0
          %2627 = vmatprep.mubr.bf16.mxu0 0
          %2628 = vmatmul.mubr.bf16.gmra.mxu0 %v2513
          %v2629 = vpop.f32.mrf.mxu0
          %v2630 = vadd.f32 %v1893, %v2629
          %v2631 = vpop.f32.mrf.mxu0
          %v2632 = vpop.f32.mrf.mxu0
          %v2633 = vadd.f32 %v1894, %v2632
          %v2634 = vpop.f32.mrf.mxu0
          %2635 = vdwg.mxu0
          %v2636 = vld [vmem:[#allocation2] sm:$0xff]
          %v2637 = vld [vmem:[#allocation2 + $0x8] sm:$0xff]
          %v2638 = vld [vmem:[#allocation2 + $0x10] sm:$0xff]
          %v2639 = vld [vmem:[#allocation2 + $0x18] sm:$0xff]
          %v2640 = vld [vmem:[#allocation2 + $0x20] sm:$0xff]
          %v2641 = vld [vmem:[#allocation2 + $0x28] sm:$0xff]
          %v2642 = vld [vmem:[#allocation2 + $0x30] sm:$0xff]
          %v2643 = vld [vmem:[#allocation2 + $0x38] sm:$0xff]
          %v2644 = vld [vmem:[#allocation2 + $0x40] sm:$0xff]
          %v2645 = vld [vmem:[#allocation2 + $0x48] sm:$0xff]
          %v2646 = vld [vmem:[#allocation2 + $0x50] sm:$0xff]
          %v2647 = vld [vmem:[#allocation2 + $0x58] sm:$0xff]
          %v2648 = vld [vmem:[#allocation2 + $0x60] sm:$0xff]
          %v2649 = vld [vmem:[#allocation2 + $0x68] sm:$0xff]
          %v2650 = vld [vmem:[#allocation2 + $0x70] sm:$0xff]
          %v2651 = vld [vmem:[#allocation2 + $0x78] sm:$0xff]
          %v2652 = vld [vmem:[#allocation2 + $0x80] sm:$0xff]
          %v2653 = vld [vmem:[#allocation2 + $0x88] sm:$0xff]
          %v2654 = vld [vmem:[#allocation2 + $0x90] sm:$0xff]
          %v2655 = vld [vmem:[#allocation2 + $0x98] sm:$0xff]
          %v2656 = vld [vmem:[#allocation2 + $0xa0] sm:$0xff]
          %v2657 = vld [vmem:[#allocation2 + $0xa8] sm:$0xff]
          %v2658 = vld [vmem:[#allocation2 + $0xb0] sm:$0xff]
          %v2659 = vld [vmem:[#allocation2 + $0xb8] sm:$0xff]
          %v2660 = vld [vmem:[#allocation2 + $0xc0] sm:$0xff]
          %v2661 = vld [vmem:[#allocation2 + $0xc8] sm:$0xff]
          %v2662 = vld [vmem:[#allocation2 + $0xd0] sm:$0xff]
          %v2663 = vld [vmem:[#allocation2 + $0xd8] sm:$0xff]
          %v2664 = vld [vmem:[#allocation2 + $0xe0] sm:$0xff]
          %v2665 = vld [vmem:[#allocation2 + $0xe8] sm:$0xff]
          %v2666 = vld [vmem:[#allocation2 + $0xf0] sm:$0xff]
          %v2667 = vld [vmem:[#allocation2 + $0xf8] sm:$0xff]
          %v2668 = vld [vmem:[#allocation2 + $0x100] sm:$0xff]
          %v2669 = vld [vmem:[#allocation2 + $0x108] sm:$0xff]
          %v2670 = vld [vmem:[#allocation2 + $0x110] sm:$0xff]
          %v2671 = vld [vmem:[#allocation2 + $0x118] sm:$0xff]
          %v2672 = vld [vmem:[#allocation2 + $0x120] sm:$0xff]
          %v2673 = vld [vmem:[#allocation2 + $0x128] sm:$0xff]
          %v2674 = vld [vmem:[#allocation2 + $0x130] sm:$0xff]
          %v2675 = vld [vmem:[#allocation2 + $0x138] sm:$0xff]
          %v2676 = vld [vmem:[#allocation2 + $0x140] sm:$0xff]
          %v2677 = vld [vmem:[#allocation2 + $0x148] sm:$0xff]
          %v2678 = vld [vmem:[#allocation2 + $0x150] sm:$0xff]
          %v2679 = vld [vmem:[#allocation2 + $0x158] sm:$0xff]
          %v2680 = vld [vmem:[#allocation2 + $0x160] sm:$0xff]
          %v2681 = vld [vmem:[#allocation2 + $0x168] sm:$0xff]
          %v2682 = vld [vmem:[#allocation2 + $0x170] sm:$0xff]
          %v2683 = vld [vmem:[#allocation2 + $0x178] sm:$0xff]
          %v2684 = vld [vmem:[#allocation2 + $0x180] sm:$0xff]
          %v2685 = vld [vmem:[#allocation2 + $0x188] sm:$0xff]
          %v2686 = vld [vmem:[#allocation2 + $0x190] sm:$0xff]
          %v2687 = vld [vmem:[#allocation2 + $0x198] sm:$0xff]
          %v2688 = vld [vmem:[#allocation2 + $0x1a0] sm:$0xff]
          %v2689 = vld [vmem:[#allocation2 + $0x1a8] sm:$0xff]
          %v2690 = vld [vmem:[#allocation2 + $0x1b0] sm:$0xff]
          %v2691 = vld [vmem:[#allocation2 + $0x1b8] sm:$0xff]
          %v2692 = vld [vmem:[#allocation2 + $0x1c0] sm:$0xff]
          %v2693 = vld [vmem:[#allocation2 + $0x1c8] sm:$0xff]
          %v2694 = vld [vmem:[#allocation2 + $0x1d0] sm:$0xff]
          %v2695 = vld [vmem:[#allocation2 + $0x1d8] sm:$0xff]
          %v2696 = vld [vmem:[#allocation2 + $0x1e0] sm:$0xff]
          %v2697 = vld [vmem:[#allocation2 + $0x1e8] sm:$0xff]
          %v2698 = vld [vmem:[#allocation2 + $0x1f0] sm:$0xff]
          %v2699 = vld [vmem:[#allocation2 + $0x1f8] sm:$0xff]
          %2700 = vmax.xlane.f32.xlu0 %v2019
          %v2701 = vpop.xlane.xlu0 %2700
          %2702 = vmax.xlane.f32.xlu0 %v2022
          %v2703 = vpop.xlane.xlu0 %2702
          %2704 = vmax.xlane.f32.xlu0 %v2027
          %v2705 = vpop.xlane.xlu0 %2704
          %2706 = vmax.xlane.f32.xlu0 %v2030
          %v2707 = vpop.xlane.xlu0 %2706
          %2708 = vmax.xlane.f32.xlu0 %v2035
          %v2709 = vpop.xlane.xlu0 %2708
          %2710 = vmax.xlane.f32.xlu0 %v2038
          %v2711 = vpop.xlane.xlu0 %2710
          %2712 = vmax.xlane.f32.xlu0 %v2043
          %v2713 = vpop.xlane.xlu0 %2712
          %2714 = vmax.xlane.f32.xlu0 %v2046
          %v2715 = vpop.xlane.xlu0 %2714
          %2716 = vmax.xlane.f32.xlu0 %v2051
          %v2717 = vpop.xlane.xlu0 %2716
          %2718 = vmax.xlane.f32.xlu0 %v2054
          %v2719 = vpop.xlane.xlu0 %2718
          %2720 = vmax.xlane.f32.xlu0 %v2059
          %v2721 = vpop.xlane.xlu0 %2720
          %2722 = vmax.xlane.f32.xlu0 %v2062
          %v2723 = vpop.xlane.xlu0 %2722
          %2724 = vmax.xlane.f32.xlu0 %v2067
          %v2725 = vpop.xlane.xlu0 %2724
          %2726 = vmax.xlane.f32.xlu0 %v2070
          %v2727 = vpop.xlane.xlu0 %2726
          %2728 = vmax.xlane.f32.xlu0 %v2075
          %v2729 = vpop.xlane.xlu0 %2728
          %2730 = vmax.xlane.f32.xlu0 %v2078
          %v2731 = vpop.xlane.xlu0 %2730
          %2732 = vmax.xlane.f32.xlu0 %v2204
          %v2733 = vpop.xlane.xlu0 %2732
          %2734 = vmax.xlane.f32.xlu0 %v2207
          %v2735 = vpop.xlane.xlu0 %2734
          %2736 = vmax.xlane.f32.xlu0 %v2212
          %v2737 = vpop.xlane.xlu0 %2736
          %2738 = vmax.xlane.f32.xlu0 %v2215
          %v2739 = vpop.xlane.xlu0 %2738
          %2740 = vmax.xlane.f32.xlu0 %v2220
          %v2741 = vpop.xlane.xlu0 %2740
          %2742 = vmax.xlane.f32.xlu0 %v2223
          %v2743 = vpop.xlane.xlu0 %2742
          %2744 = vmax.xlane.f32.xlu0 %v2228
          %v2745 = vpop.xlane.xlu0 %2744
          %2746 = vmax.xlane.f32.xlu0 %v2231
          %v2747 = vpop.xlane.xlu0 %2746
          %2748 = vmax.xlane.f32.xlu0 %v2236
          %v2749 = vpop.xlane.xlu0 %2748
          %2750 = vmax.xlane.f32.xlu0 %v2239
          %v2751 = vpop.xlane.xlu0 %2750
          %2752 = vmax.xlane.f32.xlu0 %v2244
          %v2753 = vpop.xlane.xlu0 %2752
          %2754 = vmax.xlane.f32.xlu0 %v2247
          %v2755 = vpop.xlane.xlu0 %2754
          %2756 = vmax.xlane.f32.xlu0 %v2252
          %v2757 = vpop.xlane.xlu0 %2756
          %2758 = vmax.xlane.f32.xlu0 %v2255
          %v2759 = vpop.xlane.xlu0 %2758
          %2760 = vmax.xlane.f32.xlu0 %v2260
          %v2761 = vpop.xlane.xlu0 %2760
          %2762 = vmax.xlane.f32.xlu0 %v2263
          %v2763 = vpop.xlane.xlu0 %2762
          %2764 = vmax.xlane.f32.xlu0 %v2389
          %v2765 = vpop.xlane.xlu0 %2764
          %2766 = vmax.xlane.f32.xlu0 %v2392
          %v2767 = vpop.xlane.xlu0 %2766
          %2768 = vmax.xlane.f32.xlu0 %v2397
          %v2769 = vpop.xlane.xlu0 %2768
          %2770 = vmax.xlane.f32.xlu0 %v2400
          %v2771 = vpop.xlane.xlu0 %2770
          %2772 = vmax.xlane.f32.xlu0 %v2405
          %v2773 = vpop.xlane.xlu0 %2772
          %2774 = vmax.xlane.f32.xlu0 %v2408
          %v2775 = vpop.xlane.xlu0 %2774
          %2776 = vmax.xlane.f32.xlu0 %v2413
          %v2777 = vpop.xlane.xlu0 %2776
          %2778 = vmax.xlane.f32.xlu0 %v2416
          %v2779 = vpop.xlane.xlu0 %2778
          %2780 = vmax.xlane.f32.xlu0 %v2421
          %v2781 = vpop.xlane.xlu0 %2780
          %2782 = vmax.xlane.f32.xlu0 %v2424
          %v2783 = vpop.xlane.xlu0 %2782
          %2784 = vmax.xlane.f32.xlu0 %v2429
          %v2785 = vpop.xlane.xlu0 %2784
          %2786 = vmax.xlane.f32.xlu0 %v2432
          %v2787 = vpop.xlane.xlu0 %2786
          %2788 = vmax.xlane.f32.xlu0 %v2437
          %v2789 = vpop.xlane.xlu0 %2788
          %2790 = vmax.xlane.f32.xlu0 %v2440
          %v2791 = vpop.xlane.xlu0 %2790
          %2792 = vmax.xlane.f32.xlu0 %v2445
          %v2793 = vpop.xlane.xlu0 %2792
          %2794 = vmax.xlane.f32.xlu0 %v2448
          %v2795 = vpop.xlane.xlu0 %2794
          %2796 = vmax.xlane.f32.xlu0 %v2574
          %v2797 = vpop.xlane.xlu0 %2796
          %2798 = vmax.xlane.f32.xlu0 %v2577
          %v2799 = vpop.xlane.xlu0 %2798
          %2800 = vmax.xlane.f32.xlu0 %v2582
          %v2801 = vpop.xlane.xlu0 %2800
          %2802 = vmax.xlane.f32.xlu0 %v2585
          %v2803 = vpop.xlane.xlu0 %2802
          %2804 = vmax.xlane.f32.xlu0 %v2590
          %v2805 = vpop.xlane.xlu0 %2804
          %2806 = vmax.xlane.f32.xlu0 %v2593
          %v2807 = vpop.xlane.xlu0 %2806
          %2808 = vmax.xlane.f32.xlu0 %v2598
          %v2809 = vpop.xlane.xlu0 %2808
          %2810 = vmax.xlane.f32.xlu0 %v2601
          %v2811 = vpop.xlane.xlu0 %2810
          %2812 = vmax.xlane.f32.xlu0 %v2606
          %v2813 = vpop.xlane.xlu0 %2812
          %2814 = vmax.xlane.f32.xlu0 %v2609
          %v2815 = vpop.xlane.xlu0 %2814
          %2816 = vmax.xlane.f32.xlu0 %v2614
          %v2817 = vpop.xlane.xlu0 %2816
          %2818 = vmax.xlane.f32.xlu0 %v2617
          %v2819 = vpop.xlane.xlu0 %2818
          %2820 = vmax.xlane.f32.xlu0 %v2622
          %v2821 = vpop.xlane.xlu0 %2820
          %2822 = vmax.xlane.f32.xlu0 %v2625
          %v2823 = vpop.xlane.xlu0 %2822
          %2824 = vmax.xlane.f32.xlu0 %v2630
          %v2825 = vpop.xlane.xlu0 %2824
          %2826 = vmax.xlane.f32.xlu0 %v2633
          %v2827 = vpop.xlane.xlu0 %2826
          %v2828 = vmax.f32 %v2636, %v2701
          %v2829 = vmax.f32 %v2637, %v2703
          %v2830 = vmax.f32 %v2638, %v2705
          %v2831 = vmax.f32 %v2639, %v2707
          %v2832 = vmax.f32 %v2640, %v2709
          %v2833 = vmax.f32 %v2641, %v2711
          %v2834 = vmax.f32 %v2642, %v2713
          %v2835 = vmax.f32 %v2643, %v2715
          %v2836 = vmax.f32 %v2644, %v2717
          %v2837 = vmax.f32 %v2645, %v2719
          %v2838 = vmax.f32 %v2646, %v2721
          %v2839 = vmax.f32 %v2647, %v2723
          %v2840 = vmax.f32 %v2648, %v2725
          %v2841 = vmax.f32 %v2649, %v2727
          %v2842 = vmax.f32 %v2650, %v2729
          %v2843 = vmax.f32 %v2651, %v2731
          %v2844 = vmax.f32 %v2652, %v2733
          %v2845 = vmax.f32 %v2653, %v2735
          %v2846 = vmax.f32 %v2654, %v2737
          %v2847 = vmax.f32 %v2655, %v2739
          %v2848 = vmax.f32 %v2656, %v2741
          %v2849 = vmax.f32 %v2657, %v2743
          %v2850 = vmax.f32 %v2658, %v2745
          %v2851 = vmax.f32 %v2659, %v2747
          %v2852 = vmax.f32 %v2660, %v2749
          %v2853 = vmax.f32 %v2661, %v2751
          %v2854 = vmax.f32 %v2662, %v2753
          %v2855 = vmax.f32 %v2663, %v2755
          %v2856 = vmax.f32 %v2664, %v2757
          %v2857 = vmax.f32 %v2665, %v2759
          %v2858 = vmax.f32 %v2666, %v2761
          %v2859 = vmax.f32 %v2667, %v2763
          %v2860 = vmax.f32 %v2668, %v2765
          %v2861 = vmax.f32 %v2669, %v2767
          %v2862 = vmax.f32 %v2670, %v2769
          %v2863 = vmax.f32 %v2671, %v2771
          %v2864 = vmax.f32 %v2672, %v2773
          %v2865 = vmax.f32 %v2673, %v2775
          %v2866 = vmax.f32 %v2674, %v2777
          %v2867 = vmax.f32 %v2675, %v2779
          %v2868 = vmax.f32 %v2676, %v2781
          %v2869 = vmax.f32 %v2677, %v2783
          %v2870 = vmax.f32 %v2678, %v2785
          %v2871 = vmax.f32 %v2679, %v2787
          %v2872 = vmax.f32 %v2680, %v2789
          %v2873 = vmax.f32 %v2681, %v2791
          %v2874 = vmax.f32 %v2682, %v2793
          %v2875 = vmax.f32 %v2683, %v2795
          %v2876 = vmax.f32 %v2684, %v2797
          %v2877 = vmax.f32 %v2685, %v2799
          %v2878 = vmax.f32 %v2686, %v2801
          %v2879 = vmax.f32 %v2687, %v2803
          %v2880 = vmax.f32 %v2688, %v2805
          %v2881 = vmax.f32 %v2689, %v2807
          %v2882 = vmax.f32 %v2690, %v2809
          %v2883 = vmax.f32 %v2691, %v2811
          %v2884 = vmax.f32 %v2692, %v2813
          %v2885 = vmax.f32 %v2693, %v2815
          %v2886 = vmax.f32 %v2694, %v2817
          %v2887 = vmax.f32 %v2695, %v2819
          %v2888 = vmax.f32 %v2696, %v2821
          %v2889 = vmax.f32 %v2697, %v2823
          %v2890 = vmax.f32 %v2698, %v2825
          %v2891 = vmax.f32 %v2699, %v2827
          %v2892 = vsub.f32 %v2636, %v2828
          %v2893 = vsub.f32 %v2637, %v2829
          %v2894 = vsub.f32 %v2638, %v2830
          %v2895 = vsub.f32 %v2639, %v2831
          %v2896 = vsub.f32 %v2640, %v2832
          %v2897 = vsub.f32 %v2641, %v2833
          %v2898 = vsub.f32 %v2642, %v2834
          %v2899 = vsub.f32 %v2643, %v2835
          %v2900 = vsub.f32 %v2644, %v2836
          %v2901 = vsub.f32 %v2645, %v2837
          %v2902 = vsub.f32 %v2646, %v2838
          %v2903 = vsub.f32 %v2647, %v2839
          %v2904 = vsub.f32 %v2648, %v2840
          %v2905 = vsub.f32 %v2649, %v2841
          %v2906 = vsub.f32 %v2650, %v2842
          %v2907 = vsub.f32 %v2651, %v2843
          %v2908 = vsub.f32 %v2652, %v2844
          %v2909 = vsub.f32 %v2653, %v2845
          %v2910 = vsub.f32 %v2654, %v2846
          %v2911 = vsub.f32 %v2655, %v2847
          %v2912 = vsub.f32 %v2656, %v2848
          %v2913 = vsub.f32 %v2657, %v2849
          %v2914 = vsub.f32 %v2658, %v2850
          %v2915 = vsub.f32 %v2659, %v2851
          %v2916 = vsub.f32 %v2660, %v2852
          %v2917 = vsub.f32 %v2661, %v2853
          %v2918 = vsub.f32 %v2662, %v2854
          %v2919 = vsub.f32 %v2663, %v2855
          %v2920 = vsub.f32 %v2664, %v2856
          %v2921 = vsub.f32 %v2665, %v2857
          %v2922 = vsub.f32 %v2666, %v2858
          %v2923 = vsub.f32 %v2667, %v2859
          %v2924 = vsub.f32 %v2668, %v2860
          %v2925 = vsub.f32 %v2669, %v2861
          %v2926 = vsub.f32 %v2670, %v2862
          %v2927 = vsub.f32 %v2671, %v2863
          %v2928 = vsub.f32 %v2672, %v2864
          %v2929 = vsub.f32 %v2673, %v2865
          %v2930 = vsub.f32 %v2674, %v2866
          %v2931 = vsub.f32 %v2675, %v2867
          %v2932 = vsub.f32 %v2676, %v2868
          %v2933 = vsub.f32 %v2677, %v2869
          %v2934 = vsub.f32 %v2678, %v2870
          %v2935 = vsub.f32 %v2679, %v2871
          %v2936 = vsub.f32 %v2680, %v2872
          %v2937 = vsub.f32 %v2681, %v2873
          %v2938 = vsub.f32 %v2682, %v2874
          %v2939 = vsub.f32 %v2683, %v2875
          %v2940 = vsub.f32 %v2684, %v2876
          %v2941 = vsub.f32 %v2685, %v2877
          %v2942 = vsub.f32 %v2686, %v2878
          %v2943 = vsub.f32 %v2687, %v2879
          %v2944 = vsub.f32 %v2688, %v2880
          %v2945 = vsub.f32 %v2689, %v2881
          %v2946 = vsub.f32 %v2690, %v2882
          %v2947 = vsub.f32 %v2691, %v2883
          %v2948 = vsub.f32 %v2692, %v2884
          %v2949 = vsub.f32 %v2693, %v2885
          %v2950 = vsub.f32 %v2694, %v2886
          %v2951 = vsub.f32 %v2695, %v2887
          %v2952 = vsub.f32 %v2696, %v2888
          %v2953 = vsub.f32 %v2697, %v2889
          %v2954 = vsub.f32 %v2698, %v2890
          %v2955 = vsub.f32 %v2699, %v2891
          %v2956 = vmul.f32 %v2892, 1.442695
          %v2957 = vpow.pop %v2956
          %v2958 = vmul.f32 %v2893, 1.442695
          %v2959 = vpow.pop %v2958
          %v2960 = vmul.f32 %v2894, 1.442695
          %v2961 = vpow.pop %v2960
          %v2962 = vmul.f32 %v2895, 1.442695
          %v2963 = vpow.pop %v2962
          %v2964 = vmul.f32 %v2896, 1.442695
          %v2965 = vpow.pop %v2964
          %v2966 = vmul.f32 %v2897, 1.442695
          %v2967 = vpow.pop %v2966
          %v2968 = vmul.f32 %v2898, 1.442695
          %v2969 = vpow.pop %v2968
          %v2970 = vmul.f32 %v2899, 1.442695
          %v2971 = vpow.pop %v2970
          %v2972 = vmul.f32 %v2900, 1.442695
          %v2973 = vpow.pop %v2972
          %v2974 = vmul.f32 %v2901, 1.442695
          %v2975 = vpow.pop %v2974
          %v2976 = vmul.f32 %v2902, 1.442695
          %v2977 = vpow.pop %v2976
          %v2978 = vmul.f32 %v2903, 1.442695
          %v2979 = vpow.pop %v2978
          %v2980 = vmul.f32 %v2904, 1.442695
          %v2981 = vpow.pop %v2980
          %v2982 = vmul.f32 %v2905, 1.442695
          %v2983 = vpow.pop %v2982
          %v2984 = vmul.f32 %v2906, 1.442695
          %v2985 = vpow.pop %v2984
          %v2986 = vmul.f32 %v2907, 1.442695
          %v2987 = vpow.pop %v2986
          %v2988 = vmul.f32 %v2908, 1.442695
          %v2989 = vpow.pop %v2988
          %v2990 = vmul.f32 %v2909, 1.442695
          %v2991 = vpow.pop %v2990
          %v2992 = vmul.f32 %v2910, 1.442695
          %v2993 = vpow.pop %v2992
          %v2994 = vmul.f32 %v2911, 1.442695
          %v2995 = vpow.pop %v2994
          %v2996 = vmul.f32 %v2912, 1.442695
          %v2997 = vpow.pop %v2996
          %v2998 = vmul.f32 %v2913, 1.442695
          %v2999 = vpow.pop %v2998
          %v3000 = vmul.f32 %v2914, 1.442695
          %v3001 = vpow.pop %v3000
          %v3002 = vmul.f32 %v2915, 1.442695
          %v3003 = vpow.pop %v3002
          %v3004 = vmul.f32 %v2916, 1.442695
          %v3005 = vpow.pop %v3004
          %v3006 = vmul.f32 %v2917, 1.442695
          %v3007 = vpow.pop %v3006
          %v3008 = vmul.f32 %v2918, 1.442695
          %v3009 = vpow.pop %v3008
          %v3010 = vmul.f32 %v2919, 1.442695
          %v3011 = vpow.pop %v3010
          %v3012 = vmul.f32 %v2920, 1.442695
          %v3013 = vpow.pop %v3012
          %v3014 = vmul.f32 %v2921, 1.442695
          %v3015 = vpow.pop %v3014
          %v3016 = vmul.f32 %v2922, 1.442695
          %v3017 = vpow.pop %v3016
          %v3018 = vmul.f32 %v2923, 1.442695
          %v3019 = vpow.pop %v3018
          %v3020 = vmul.f32 %v2924, 1.442695
          %v3021 = vpow.pop %v3020
          %v3022 = vmul.f32 %v2925, 1.442695
          %v3023 = vpow.pop %v3022
          %v3024 = vmul.f32 %v2926, 1.442695
          %v3025 = vpow.pop %v3024
          %v3026 = vmul.f32 %v2927, 1.442695
          %v3027 = vpow.pop %v3026
          %v3028 = vmul.f32 %v2928, 1.442695
          %v3029 = vpow.pop %v3028
          %v3030 = vmul.f32 %v2929, 1.442695
          %v3031 = vpow.pop %v3030
          %v3032 = vmul.f32 %v2930, 1.442695
          %v3033 = vpow.pop %v3032
          %v3034 = vmul.f32 %v2931, 1.442695
          %v3035 = vpow.pop %v3034
          %v3036 = vmul.f32 %v2932, 1.442695
          %v3037 = vpow.pop %v3036
          %v3038 = vmul.f32 %v2933, 1.442695
          %v3039 = vpow.pop %v3038
          %v3040 = vmul.f32 %v2934, 1.442695
          %v3041 = vpow.pop %v3040
          %v3042 = vmul.f32 %v2935, 1.442695
          %v3043 = vpow.pop %v3042
          %v3044 = vmul.f32 %v2936, 1.442695
          %v3045 = vpow.pop %v3044
          %v3046 = vmul.f32 %v2937, 1.442695
          %v3047 = vpow.pop %v3046
          %v3048 = vmul.f32 %v2938, 1.442695
          %v3049 = vpow.pop %v3048
          %v3050 = vmul.f32 %v2939, 1.442695
          %v3051 = vpow.pop %v3050
          %v3052 = vmul.f32 %v2940, 1.442695
          %v3053 = vpow.pop %v3052
          %v3054 = vmul.f32 %v2941, 1.442695
          %v3055 = vpow.pop %v3054
          %v3056 = vmul.f32 %v2942, 1.442695
          %v3057 = vpow.pop %v3056
          %v3058 = vmul.f32 %v2943, 1.442695
          %v3059 = vpow.pop %v3058
          %v3060 = vmul.f32 %v2944, 1.442695
          %v3061 = vpow.pop %v3060
          %v3062 = vmul.f32 %v2945, 1.442695
          %v3063 = vpow.pop %v3062
          %v3064 = vmul.f32 %v2946, 1.442695
          %v3065 = vpow.pop %v3064
          %v3066 = vmul.f32 %v2947, 1.442695
          %v3067 = vpow.pop %v3066
          %v3068 = vmul.f32 %v2948, 1.442695
          %v3069 = vpow.pop %v3068
          %v3070 = vmul.f32 %v2949, 1.442695
          %v3071 = vpow.pop %v3070
          %v3072 = vmul.f32 %v2950, 1.442695
          %v3073 = vpow.pop %v3072
          %v3074 = vmul.f32 %v2951, 1.442695
          %v3075 = vpow.pop %v3074
          %v3076 = vmul.f32 %v2952, 1.442695
          %v3077 = vpow.pop %v3076
          %v3078 = vmul.f32 %v2953, 1.442695
          %v3079 = vpow.pop %v3078
          %v3080 = vmul.f32 %v2954, 1.442695
          %v3081 = vpow.pop %v3080
          %v3082 = vmul.f32 %v2955, 1.442695
          %v3083 = vpow.pop %v3082
          %3085 = vset.pattern.permute.xlu0 0
          %3086 = vperm.xlu0 %3085, %v2828
          %v3087 = vpop.permute.xlu0 %3086
          %3090 = vset.pattern.permute.xlu0 0
          %3091 = vperm.xlu0 %3090, %v2829
          %v3092 = vpop.permute.xlu0 %3091
          %3095 = vset.pattern.permute.xlu0 0
          %3096 = vperm.xlu0 %3095, %v2830
          %v3097 = vpop.permute.xlu0 %3096
          %3100 = vset.pattern.permute.xlu0 0
          %3101 = vperm.xlu0 %3100, %v2831
          %v3102 = vpop.permute.xlu0 %3101
          %3105 = vset.pattern.permute.xlu0 0
          %3106 = vperm.xlu0 %3105, %v2832
          %v3107 = vpop.permute.xlu0 %3106
          %3110 = vset.pattern.permute.xlu0 0
          %3111 = vperm.xlu0 %3110, %v2833
          %v3112 = vpop.permute.xlu0 %3111
          %3115 = vset.pattern.permute.xlu0 0
          %3116 = vperm.xlu0 %3115, %v2834
          %v3117 = vpop.permute.xlu0 %3116
          %3120 = vset.pattern.permute.xlu0 0
          %3121 = vperm.xlu0 %3120, %v2835
          %v3122 = vpop.permute.xlu0 %3121
          %3125 = vset.pattern.permute.xlu0 0
          %3126 = vperm.xlu0 %3125, %v2836
          %v3127 = vpop.permute.xlu0 %3126
          %3130 = vset.pattern.permute.xlu0 0
          %3131 = vperm.xlu0 %3130, %v2837
          %v3132 = vpop.permute.xlu0 %3131
          %3135 = vset.pattern.permute.xlu0 0
          %3136 = vperm.xlu0 %3135, %v2838
          %v3137 = vpop.permute.xlu0 %3136
          %3140 = vset.pattern.permute.xlu0 0
          %3141 = vperm.xlu0 %3140, %v2839
          %v3142 = vpop.permute.xlu0 %3141
          %3145 = vset.pattern.permute.xlu0 0
          %3146 = vperm.xlu0 %3145, %v2840
          %v3147 = vpop.permute.xlu0 %3146
          %3150 = vset.pattern.permute.xlu0 0
          %3151 = vperm.xlu0 %3150, %v2841
          %v3152 = vpop.permute.xlu0 %3151
          %3155 = vset.pattern.permute.xlu0 0
          %3156 = vperm.xlu0 %3155, %v2842
          %v3157 = vpop.permute.xlu0 %3156
          %3160 = vset.pattern.permute.xlu0 0
          %3161 = vperm.xlu0 %3160, %v2843
          %v3162 = vpop.permute.xlu0 %3161
          %3165 = vset.pattern.permute.xlu0 0
          %3166 = vperm.xlu0 %3165, %v2844
          %v3167 = vpop.permute.xlu0 %3166
          %3170 = vset.pattern.permute.xlu0 0
          %3171 = vperm.xlu0 %3170, %v2845
          %v3172 = vpop.permute.xlu0 %3171
          %3175 = vset.pattern.permute.xlu0 0
          %3176 = vperm.xlu0 %3175, %v2846
          %v3177 = vpop.permute.xlu0 %3176
          %3180 = vset.pattern.permute.xlu0 0
          %3181 = vperm.xlu0 %3180, %v2847
          %v3182 = vpop.permute.xlu0 %3181
          %3185 = vset.pattern.permute.xlu0 0
          %3186 = vperm.xlu0 %3185, %v2848
          %v3187 = vpop.permute.xlu0 %3186
          %3190 = vset.pattern.permute.xlu0 0
          %3191 = vperm.xlu0 %3190, %v2849
          %v3192 = vpop.permute.xlu0 %3191
          %3195 = vset.pattern.permute.xlu0 0
          %3196 = vperm.xlu0 %3195, %v2850
          %v3197 = vpop.permute.xlu0 %3196
          %3200 = vset.pattern.permute.xlu0 0
          %3201 = vperm.xlu0 %3200, %v2851
          %v3202 = vpop.permute.xlu0 %3201
          %3205 = vset.pattern.permute.xlu0 0
          %3206 = vperm.xlu0 %3205, %v2852
          %v3207 = vpop.permute.xlu0 %3206
          %3210 = vset.pattern.permute.xlu0 0
          %3211 = vperm.xlu0 %3210, %v2853
          %v3212 = vpop.permute.xlu0 %3211
          %3215 = vset.pattern.permute.xlu0 0
          %3216 = vperm.xlu0 %3215, %v2854
          %v3217 = vpop.permute.xlu0 %3216
          %3220 = vset.pattern.permute.xlu0 0
          %3221 = vperm.xlu0 %3220, %v2855
          %v3222 = vpop.permute.xlu0 %3221
          %3225 = vset.pattern.permute.xlu0 0
          %3226 = vperm.xlu0 %3225, %v2856
          %v3227 = vpop.permute.xlu0 %3226
          %3230 = vset.pattern.permute.xlu0 0
          %3231 = vperm.xlu0 %3230, %v2857
          %v3232 = vpop.permute.xlu0 %3231
          %3235 = vset.pattern.permute.xlu0 0
          %3236 = vperm.xlu0 %3235, %v2858
          %v3237 = vpop.permute.xlu0 %3236
          %3240 = vset.pattern.permute.xlu0 0
          %3241 = vperm.xlu0 %3240, %v2859
          %v3242 = vpop.permute.xlu0 %3241
          %3245 = vset.pattern.permute.xlu0 0
          %3246 = vperm.xlu0 %3245, %v2860
          %v3247 = vpop.permute.xlu0 %3246
          %3250 = vset.pattern.permute.xlu0 0
          %3251 = vperm.xlu0 %3250, %v2861
          %v3252 = vpop.permute.xlu0 %3251
          %3255 = vset.pattern.permute.xlu0 0
          %3256 = vperm.xlu0 %3255, %v2862
          %v3257 = vpop.permute.xlu0 %3256
          %3260 = vset.pattern.permute.xlu0 0
          %3261 = vperm.xlu0 %3260, %v2863
          %v3262 = vpop.permute.xlu0 %3261
          %3265 = vset.pattern.permute.xlu0 0
          %3266 = vperm.xlu0 %3265, %v2864
          %v3267 = vpop.permute.xlu0 %3266
          %3270 = vset.pattern.permute.xlu0 0
          %3271 = vperm.xlu0 %3270, %v2865
          %v3272 = vpop.permute.xlu0 %3271
          %3275 = vset.pattern.permute.xlu0 0
          %3276 = vperm.xlu0 %3275, %v2866
          %v3277 = vpop.permute.xlu0 %3276
          %3280 = vset.pattern.permute.xlu0 0
          %3281 = vperm.xlu0 %3280, %v2867
          %v3282 = vpop.permute.xlu0 %3281
          %3285 = vset.pattern.permute.xlu0 0
          %3286 = vperm.xlu0 %3285, %v2868
          %v3287 = vpop.permute.xlu0 %3286
          %3290 = vset.pattern.permute.xlu0 0
          %3291 = vperm.xlu0 %3290, %v2869
          %v3292 = vpop.permute.xlu0 %3291
          %3295 = vset.pattern.permute.xlu0 0
          %3296 = vperm.xlu0 %3295, %v2870
          %v3297 = vpop.permute.xlu0 %3296
          %3300 = vset.pattern.permute.xlu0 0
          %3301 = vperm.xlu0 %3300, %v2871
          %v3302 = vpop.permute.xlu0 %3301
          %3305 = vset.pattern.permute.xlu0 0
          %3306 = vperm.xlu0 %3305, %v2872
          %v3307 = vpop.permute.xlu0 %3306
          %3310 = vset.pattern.permute.xlu0 0
          %3311 = vperm.xlu0 %3310, %v2873
          %v3312 = vpop.permute.xlu0 %3311
          %3315 = vset.pattern.permute.xlu0 0
          %3316 = vperm.xlu0 %3315, %v2874
          %v3317 = vpop.permute.xlu0 %3316
          %3320 = vset.pattern.permute.xlu0 0
          %3321 = vperm.xlu0 %3320, %v2875
          %v3322 = vpop.permute.xlu0 %3321
          %3325 = vset.pattern.permute.xlu0 0
          %3326 = vperm.xlu0 %3325, %v2876
          %v3327 = vpop.permute.xlu0 %3326
          %3330 = vset.pattern.permute.xlu0 0
          %3331 = vperm.xlu0 %3330, %v2877
          %v3332 = vpop.permute.xlu0 %3331
          %3335 = vset.pattern.permute.xlu0 0
          %3336 = vperm.xlu0 %3335, %v2878
          %v3337 = vpop.permute.xlu0 %3336
          %3340 = vset.pattern.permute.xlu0 0
          %3341 = vperm.xlu0 %3340, %v2879
          %v3342 = vpop.permute.xlu0 %3341
          %3345 = vset.pattern.permute.xlu0 0
          %3346 = vperm.xlu0 %3345, %v2880
          %v3347 = vpop.permute.xlu0 %3346
          %3350 = vset.pattern.permute.xlu0 0
          %3351 = vperm.xlu0 %3350, %v2881
          %v3352 = vpop.permute.xlu0 %3351
          %3355 = vset.pattern.permute.xlu0 0
          %3356 = vperm.xlu0 %3355, %v2882
          %v3357 = vpop.permute.xlu0 %3356
          %3360 = vset.pattern.permute.xlu0 0
          %3361 = vperm.xlu0 %3360, %v2883
          %v3362 = vpop.permute.xlu0 %3361
          %3365 = vset.pattern.permute.xlu0 0
          %3366 = vperm.xlu0 %3365, %v2884
          %v3367 = vpop.permute.xlu0 %3366
          %3370 = vset.pattern.permute.xlu0 0
          %3371 = vperm.xlu0 %3370, %v2885
          %v3372 = vpop.permute.xlu0 %3371
          %3375 = vset.pattern.permute.xlu0 0
          %3376 = vperm.xlu0 %3375, %v2886
          %v3377 = vpop.permute.xlu0 %3376
          %3380 = vset.pattern.permute.xlu0 0
          %3381 = vperm.xlu0 %3380, %v2887
          %v3382 = vpop.permute.xlu0 %3381
          %3385 = vset.pattern.permute.xlu0 0
          %3386 = vperm.xlu0 %3385, %v2888
          %v3387 = vpop.permute.xlu0 %3386
          %3390 = vset.pattern.permute.xlu0 0
          %3391 = vperm.xlu0 %3390, %v2889
          %v3392 = vpop.permute.xlu0 %3391
          %3395 = vset.pattern.permute.xlu0 0
          %3396 = vperm.xlu0 %3395, %v2890
          %v3397 = vpop.permute.xlu0 %3396
          %3400 = vset.pattern.permute.xlu0 0
          %3401 = vperm.xlu0 %3400, %v2891
          %v3402 = vpop.permute.xlu0 %3401
          %v3404 = vsub.f32 %v2019, %v3087
          %v3405 = vsub.f32 %v2022, %v3092
          %v3406 = vsub.f32 %v2027, %v3097
          %v3407 = vsub.f32 %v2030, %v3102
          %v3408 = vsub.f32 %v2035, %v3107
          %v3409 = vsub.f32 %v2038, %v3112
          %v3410 = vsub.f32 %v2043, %v3117
          %v3411 = vsub.f32 %v2046, %v3122
          %v3412 = vsub.f32 %v2051, %v3127
          %v3413 = vsub.f32 %v2054, %v3132
          %v3414 = vsub.f32 %v2059, %v3137
          %v3415 = vsub.f32 %v2062, %v3142
          %v3416 = vsub.f32 %v2067, %v3147
          %v3417 = vsub.f32 %v2070, %v3152
          %v3418 = vsub.f32 %v2075, %v3157
          %v3419 = vsub.f32 %v2078, %v3162
          %v3420 = vsub.f32 %v2204, %v3167
          %v3421 = vsub.f32 %v2207, %v3172
          %v3422 = vsub.f32 %v2212, %v3177
          %v3423 = vsub.f32 %v2215, %v3182
          %v3424 = vsub.f32 %v2220, %v3187
          %v3425 = vsub.f32 %v2223, %v3192
          %v3426 = vsub.f32 %v2228, %v3197
          %v3427 = vsub.f32 %v2231, %v3202
          %v3428 = vsub.f32 %v2236, %v3207
          %v3429 = vsub.f32 %v2239, %v3212
          %v3430 = vsub.f32 %v2244, %v3217
          %v3431 = vsub.f32 %v2247, %v3222
          %v3432 = vsub.f32 %v2252, %v3227
          %v3433 = vsub.f32 %v2255, %v3232
          %v3434 = vsub.f32 %v2260, %v3237
          %v3435 = vsub.f32 %v2263, %v3242
          %v3436 = vsub.f32 %v2389, %v3247
          %v3437 = vsub.f32 %v2392, %v3252
          %v3438 = vsub.f32 %v2397, %v3257
          %v3439 = vsub.f32 %v2400, %v3262
          %v3440 = vsub.f32 %v2405, %v3267
          %v3441 = vsub.f32 %v2408, %v3272
          %v3442 = vsub.f32 %v2413, %v3277
          %v3443 = vsub.f32 %v2416, %v3282
          %v3444 = vsub.f32 %v2421, %v3287
          %v3445 = vsub.f32 %v2424, %v3292
          %v3446 = vsub.f32 %v2429, %v3297
          %v3447 = vsub.f32 %v2432, %v3302
          %v3448 = vsub.f32 %v2437, %v3307
          %v3449 = vsub.f32 %v2440, %v3312
          %v3450 = vsub.f32 %v2445, %v3317
          %v3451 = vsub.f32 %v2448, %v3322
          %v3452 = vsub.f32 %v2574, %v3327
          %v3453 = vsub.f32 %v2577, %v3332
          %v3454 = vsub.f32 %v2582, %v3337
          %v3455 = vsub.f32 %v2585, %v3342
          %v3456 = vsub.f32 %v2590, %v3347
          %v3457 = vsub.f32 %v2593, %v3352
          %v3458 = vsub.f32 %v2598, %v3357
          %v3459 = vsub.f32 %v2601, %v3362
          %v3460 = vsub.f32 %v2606, %v3367
          %v3461 = vsub.f32 %v2609, %v3372
          %v3462 = vsub.f32 %v2614, %v3377
          %v3463 = vsub.f32 %v2617, %v3382
          %v3464 = vsub.f32 %v2622, %v3387
          %v3465 = vsub.f32 %v2625, %v3392
          %v3466 = vsub.f32 %v2630, %v3397
          %v3467 = vsub.f32 %v2633, %v3402
          %v3468 = vmul.f32 %v3404, 1.442695
          %v3469 = vpow.pop %v3468
          %v3470 = vmul.f32 %v3405, 1.442695
          %v3471 = vpow.pop %v3470
          %v3472 = vmul.f32 %v3406, 1.442695
          %v3473 = vpow.pop %v3472
          %v3474 = vmul.f32 %v3407, 1.442695
          %v3475 = vpow.pop %v3474
          %v3476 = vmul.f32 %v3408, 1.442695
          %v3477 = vpow.pop %v3476
          %v3478 = vmul.f32 %v3409, 1.442695
          %v3479 = vpow.pop %v3478
          %v3480 = vmul.f32 %v3410, 1.442695
          %v3481 = vpow.pop %v3480
          %v3482 = vmul.f32 %v3411, 1.442695
          %v3483 = vpow.pop %v3482
          %v3484 = vmul.f32 %v3412, 1.442695
          %v3485 = vpow.pop %v3484
          %v3486 = vmul.f32 %v3413, 1.442695
          %v3487 = vpow.pop %v3486
          %v3488 = vmul.f32 %v3414, 1.442695
          %v3489 = vpow.pop %v3488
          %v3490 = vmul.f32 %v3415, 1.442695
          %v3491 = vpow.pop %v3490
          %v3492 = vmul.f32 %v3416, 1.442695
          %v3493 = vpow.pop %v3492
          %v3494 = vmul.f32 %v3417, 1.442695
          %v3495 = vpow.pop %v3494
          %v3496 = vmul.f32 %v3418, 1.442695
          %v3497 = vpow.pop %v3496
          %v3498 = vmul.f32 %v3419, 1.442695
          %v3499 = vpow.pop %v3498
          %v3500 = vmul.f32 %v3420, 1.442695
          %v3501 = vpow.pop %v3500
          %v3502 = vmul.f32 %v3421, 1.442695
          %v3503 = vpow.pop %v3502
          %v3504 = vmul.f32 %v3422, 1.442695
          %v3505 = vpow.pop %v3504
          %v3506 = vmul.f32 %v3423, 1.442695
          %v3507 = vpow.pop %v3506
          %v3508 = vmul.f32 %v3424, 1.442695
          %v3509 = vpow.pop %v3508
          %v3510 = vmul.f32 %v3425, 1.442695
          %v3511 = vpow.pop %v3510
          %v3512 = vmul.f32 %v3426, 1.442695
          %v3513 = vpow.pop %v3512
          %v3514 = vmul.f32 %v3427, 1.442695
          %v3515 = vpow.pop %v3514
          %v3516 = vmul.f32 %v3428, 1.442695
          %v3517 = vpow.pop %v3516
          %v3518 = vmul.f32 %v3429, 1.442695
          %v3519 = vpow.pop %v3518
          %v3520 = vmul.f32 %v3430, 1.442695
          %v3521 = vpow.pop %v3520
          %v3522 = vmul.f32 %v3431, 1.442695
          %v3523 = vpow.pop %v3522
          %v3524 = vmul.f32 %v3432, 1.442695
          %v3525 = vpow.pop %v3524
          %v3526 = vmul.f32 %v3433, 1.442695
          %v3527 = vpow.pop %v3526
          %v3528 = vmul.f32 %v3434, 1.442695
          %v3529 = vpow.pop %v3528
          %v3530 = vmul.f32 %v3435, 1.442695
          %v3531 = vpow.pop %v3530
          %v3532 = vmul.f32 %v3436, 1.442695
          %v3533 = vpow.pop %v3532
          %v3534 = vmul.f32 %v3437, 1.442695
          %v3535 = vpow.pop %v3534
          %v3536 = vmul.f32 %v3438, 1.442695
          %v3537 = vpow.pop %v3536
          %v3538 = vmul.f32 %v3439, 1.442695
          %v3539 = vpow.pop %v3538
          %v3540 = vmul.f32 %v3440, 1.442695
          %v3541 = vpow.pop %v3540
          %v3542 = vmul.f32 %v3441, 1.442695
          %v3543 = vpow.pop %v3542
          %v3544 = vmul.f32 %v3442, 1.442695
          %v3545 = vpow.pop %v3544
          %v3546 = vmul.f32 %v3443, 1.442695
          %v3547 = vpow.pop %v3546
          %v3548 = vmul.f32 %v3444, 1.442695
          %v3549 = vpow.pop %v3548
          %v3550 = vmul.f32 %v3445, 1.442695
          %v3551 = vpow.pop %v3550
          %v3552 = vmul.f32 %v3446, 1.442695
          %v3553 = vpow.pop %v3552
          %v3554 = vmul.f32 %v3447, 1.442695
          %v3555 = vpow.pop %v3554
          %v3556 = vmul.f32 %v3448, 1.442695
          %v3557 = vpow.pop %v3556
          %v3558 = vmul.f32 %v3449, 1.442695
          %v3559 = vpow.pop %v3558
          %v3560 = vmul.f32 %v3450, 1.442695
          %v3561 = vpow.pop %v3560
          %v3562 = vmul.f32 %v3451, 1.442695
          %v3563 = vpow.pop %v3562
          %v3564 = vmul.f32 %v3452, 1.442695
          %v3565 = vpow.pop %v3564
          %v3566 = vmul.f32 %v3453, 1.442695
          %v3567 = vpow.pop %v3566
          %v3568 = vmul.f32 %v3454, 1.442695
          %v3569 = vpow.pop %v3568
          %v3570 = vmul.f32 %v3455, 1.442695
          %v3571 = vpow.pop %v3570
          %v3572 = vmul.f32 %v3456, 1.442695
          %v3573 = vpow.pop %v3572
          %v3574 = vmul.f32 %v3457, 1.442695
          %v3575 = vpow.pop %v3574
          %v3576 = vmul.f32 %v3458, 1.442695
          %v3577 = vpow.pop %v3576
          %v3578 = vmul.f32 %v3459, 1.442695
          %v3579 = vpow.pop %v3578
          %v3580 = vmul.f32 %v3460, 1.442695
          %v3581 = vpow.pop %v3580
          %v3582 = vmul.f32 %v3461, 1.442695
          %v3583 = vpow.pop %v3582
          %v3584 = vmul.f32 %v3462, 1.442695
          %v3585 = vpow.pop %v3584
          %v3586 = vmul.f32 %v3463, 1.442695
          %v3587 = vpow.pop %v3586
          %v3588 = vmul.f32 %v3464, 1.442695
          %v3589 = vpow.pop %v3588
          %v3590 = vmul.f32 %v3465, 1.442695
          %v3591 = vpow.pop %v3590
          %v3592 = vmul.f32 %v3466, 1.442695
          %v3593 = vpow.pop %v3592
          %v3594 = vmul.f32 %v3467, 1.442695
          %v3595 = vpow.pop %v3594
          %v3596 = vld [vmem:[#allocation3] sm:$0xff]
          %v3597 = vld [vmem:[#allocation3 + $0x8] sm:$0xff]
          %v3598 = vld [vmem:[#allocation3 + $0x10] sm:$0xff]
          %v3599 = vld [vmem:[#allocation3 + $0x18] sm:$0xff]
          %v3600 = vld [vmem:[#allocation3 + $0x20] sm:$0xff]
          %v3601 = vld [vmem:[#allocation3 + $0x28] sm:$0xff]
          %v3602 = vld [vmem:[#allocation3 + $0x30] sm:$0xff]
          %v3603 = vld [vmem:[#allocation3 + $0x38] sm:$0xff]
          %v3604 = vld [vmem:[#allocation3 + $0x40] sm:$0xff]
          %v3605 = vld [vmem:[#allocation3 + $0x48] sm:$0xff]
          %v3606 = vld [vmem:[#allocation3 + $0x50] sm:$0xff]
          %v3607 = vld [vmem:[#allocation3 + $0x58] sm:$0xff]
          %v3608 = vld [vmem:[#allocation3 + $0x60] sm:$0xff]
          %v3609 = vld [vmem:[#allocation3 + $0x68] sm:$0xff]
          %v3610 = vld [vmem:[#allocation3 + $0x70] sm:$0xff]
          %v3611 = vld [vmem:[#allocation3 + $0x78] sm:$0xff]
          %v3612 = vld [vmem:[#allocation3 + $0x80] sm:$0xff]
          %v3613 = vld [vmem:[#allocation3 + $0x88] sm:$0xff]
          %v3614 = vld [vmem:[#allocation3 + $0x90] sm:$0xff]
          %v3615 = vld [vmem:[#allocation3 + $0x98] sm:$0xff]
          %v3616 = vld [vmem:[#allocation3 + $0xa0] sm:$0xff]
          %v3617 = vld [vmem:[#allocation3 + $0xa8] sm:$0xff]
          %v3618 = vld [vmem:[#allocation3 + $0xb0] sm:$0xff]
          %v3619 = vld [vmem:[#allocation3 + $0xb8] sm:$0xff]
          %v3620 = vld [vmem:[#allocation3 + $0xc0] sm:$0xff]
          %v3621 = vld [vmem:[#allocation3 + $0xc8] sm:$0xff]
          %v3622 = vld [vmem:[#allocation3 + $0xd0] sm:$0xff]
          %v3623 = vld [vmem:[#allocation3 + $0xd8] sm:$0xff]
          %v3624 = vld [vmem:[#allocation3 + $0xe0] sm:$0xff]
          %v3625 = vld [vmem:[#allocation3 + $0xe8] sm:$0xff]
          %v3626 = vld [vmem:[#allocation3 + $0xf0] sm:$0xff]
          %v3627 = vld [vmem:[#allocation3 + $0xf8] sm:$0xff]
          %v3628 = vld [vmem:[#allocation3 + $0x100] sm:$0xff]
          %v3629 = vld [vmem:[#allocation3 + $0x108] sm:$0xff]
          %v3630 = vld [vmem:[#allocation3 + $0x110] sm:$0xff]
          %v3631 = vld [vmem:[#allocation3 + $0x118] sm:$0xff]
          %v3632 = vld [vmem:[#allocation3 + $0x120] sm:$0xff]
          %v3633 = vld [vmem:[#allocation3 + $0x128] sm:$0xff]
          %v3634 = vld [vmem:[#allocation3 + $0x130] sm:$0xff]
          %v3635 = vld [vmem:[#allocation3 + $0x138] sm:$0xff]
          %v3636 = vld [vmem:[#allocation3 + $0x140] sm:$0xff]
          %v3637 = vld [vmem:[#allocation3 + $0x148] sm:$0xff]
          %v3638 = vld [vmem:[#allocation3 + $0x150] sm:$0xff]
          %v3639 = vld [vmem:[#allocation3 + $0x158] sm:$0xff]
          %v3640 = vld [vmem:[#allocation3 + $0x160] sm:$0xff]
          %v3641 = vld [vmem:[#allocation3 + $0x168] sm:$0xff]
          %v3642 = vld [vmem:[#allocation3 + $0x170] sm:$0xff]
          %v3643 = vld [vmem:[#allocation3 + $0x178] sm:$0xff]
          %v3644 = vld [vmem:[#allocation3 + $0x180] sm:$0xff]
          %v3645 = vld [vmem:[#allocation3 + $0x188] sm:$0xff]
          %v3646 = vld [vmem:[#allocation3 + $0x190] sm:$0xff]
          %v3647 = vld [vmem:[#allocation3 + $0x198] sm:$0xff]
          %v3648 = vld [vmem:[#allocation3 + $0x1a0] sm:$0xff]
          %v3649 = vld [vmem:[#allocation3 + $0x1a8] sm:$0xff]
          %v3650 = vld [vmem:[#allocation3 + $0x1b0] sm:$0xff]
          %v3651 = vld [vmem:[#allocation3 + $0x1b8] sm:$0xff]
          %v3652 = vld [vmem:[#allocation3 + $0x1c0] sm:$0xff]
          %v3653 = vld [vmem:[#allocation3 + $0x1c8] sm:$0xff]
          %v3654 = vld [vmem:[#allocation3 + $0x1d0] sm:$0xff]
          %v3655 = vld [vmem:[#allocation3 + $0x1d8] sm:$0xff]
          %v3656 = vld [vmem:[#allocation3 + $0x1e0] sm:$0xff]
          %v3657 = vld [vmem:[#allocation3 + $0x1e8] sm:$0xff]
          %v3658 = vld [vmem:[#allocation3 + $0x1f0] sm:$0xff]
          %v3659 = vld [vmem:[#allocation3 + $0x1f8] sm:$0xff]
          %v3660 = vmul.f32 %v2957, %v3596
          %v3661 = vmul.f32 %v2959, %v3597
          %v3662 = vmul.f32 %v2961, %v3598
          %v3663 = vmul.f32 %v2963, %v3599
          %v3664 = vmul.f32 %v2965, %v3600
          %v3665 = vmul.f32 %v2967, %v3601
          %v3666 = vmul.f32 %v2969, %v3602
          %v3667 = vmul.f32 %v2971, %v3603
          %v3668 = vmul.f32 %v2973, %v3604
          %v3669 = vmul.f32 %v2975, %v3605
          %v3670 = vmul.f32 %v2977, %v3606
          %v3671 = vmul.f32 %v2979, %v3607
          %v3672 = vmul.f32 %v2981, %v3608
          %v3673 = vmul.f32 %v2983, %v3609
          %v3674 = vmul.f32 %v2985, %v3610
          %v3675 = vmul.f32 %v2987, %v3611
          %v3676 = vmul.f32 %v2989, %v3612
          %v3677 = vmul.f32 %v2991, %v3613
          %v3678 = vmul.f32 %v2993, %v3614
          %v3679 = vmul.f32 %v2995, %v3615
          %v3680 = vmul.f32 %v2997, %v3616
          %v3681 = vmul.f32 %v2999, %v3617
          %v3682 = vmul.f32 %v3001, %v3618
          %v3683 = vmul.f32 %v3003, %v3619
          %v3684 = vmul.f32 %v3005, %v3620
          %v3685 = vmul.f32 %v3007, %v3621
          %v3686 = vmul.f32 %v3009, %v3622
          %v3687 = vmul.f32 %v3011, %v3623
          %v3688 = vmul.f32 %v3013, %v3624
          %v3689 = vmul.f32 %v3015, %v3625
          %v3690 = vmul.f32 %v3017, %v3626
          %v3691 = vmul.f32 %v3019, %v3627
          %v3692 = vmul.f32 %v3021, %v3628
          %v3693 = vmul.f32 %v3023, %v3629
          %v3694 = vmul.f32 %v3025, %v3630
          %v3695 = vmul.f32 %v3027, %v3631
          %v3696 = vmul.f32 %v3029, %v3632
          %v3697 = vmul.f32 %v3031, %v3633
          %v3698 = vmul.f32 %v3033, %v3634
          %v3699 = vmul.f32 %v3035, %v3635
          %v3700 = vmul.f32 %v3037, %v3636
          %v3701 = vmul.f32 %v3039, %v3637
          %v3702 = vmul.f32 %v3041, %v3638
          %v3703 = vmul.f32 %v3043, %v3639
          %v3704 = vmul.f32 %v3045, %v3640
          %v3705 = vmul.f32 %v3047, %v3641
          %v3706 = vmul.f32 %v3049, %v3642
          %v3707 = vmul.f32 %v3051, %v3643
          %v3708 = vmul.f32 %v3053, %v3644
          %v3709 = vmul.f32 %v3055, %v3645
          %v3710 = vmul.f32 %v3057, %v3646
          %v3711 = vmul.f32 %v3059, %v3647
          %v3712 = vmul.f32 %v3061, %v3648
          %v3713 = vmul.f32 %v3063, %v3649
          %v3714 = vmul.f32 %v3065, %v3650
          %v3715 = vmul.f32 %v3067, %v3651
          %v3716 = vmul.f32 %v3069, %v3652
          %v3717 = vmul.f32 %v3071, %v3653
          %v3718 = vmul.f32 %v3073, %v3654
          %v3719 = vmul.f32 %v3075, %v3655
          %v3720 = vmul.f32 %v3077, %v3656
          %v3721 = vmul.f32 %v3079, %v3657
          %v3722 = vmul.f32 %v3081, %v3658
          %v3723 = vmul.f32 %v3083, %v3659
          %3724 = vadd.xlane.f32.xlu0 %v3469
          %v3725 = vpop.xlane.xlu0 %3724
          %3726 = vadd.xlane.f32.xlu0 %v3471
          %v3727 = vpop.xlane.xlu0 %3726
          %3728 = vadd.xlane.f32.xlu0 %v3473
          %v3729 = vpop.xlane.xlu0 %3728
          %3730 = vadd.xlane.f32.xlu0 %v3475
          %v3731 = vpop.xlane.xlu0 %3730
          %3732 = vadd.xlane.f32.xlu0 %v3477
          %v3733 = vpop.xlane.xlu0 %3732
          %3734 = vadd.xlane.f32.xlu0 %v3479
          %v3735 = vpop.xlane.xlu0 %3734
          %3736 = vadd.xlane.f32.xlu0 %v3481
          %v3737 = vpop.xlane.xlu0 %3736
          %3738 = vadd.xlane.f32.xlu0 %v3483
          %v3739 = vpop.xlane.xlu0 %3738
          %3740 = vadd.xlane.f32.xlu0 %v3485
          %v3741 = vpop.xlane.xlu0 %3740
          %3742 = vadd.xlane.f32.xlu0 %v3487
          %v3743 = vpop.xlane.xlu0 %3742
          %3744 = vadd.xlane.f32.xlu0 %v3489
          %v3745 = vpop.xlane.xlu0 %3744
          %3746 = vadd.xlane.f32.xlu0 %v3491
          %v3747 = vpop.xlane.xlu0 %3746
          %3748 = vadd.xlane.f32.xlu0 %v3493
          %v3749 = vpop.xlane.xlu0 %3748
          %3750 = vadd.xlane.f32.xlu0 %v3495
          %v3751 = vpop.xlane.xlu0 %3750
          %3752 = vadd.xlane.f32.xlu0 %v3497
          %v3753 = vpop.xlane.xlu0 %3752
          %3754 = vadd.xlane.f32.xlu0 %v3499
          %v3755 = vpop.xlane.xlu0 %3754
          %3756 = vadd.xlane.f32.xlu0 %v3501
          %v3757 = vpop.xlane.xlu0 %3756
          %3758 = vadd.xlane.f32.xlu0 %v3503
          %v3759 = vpop.xlane.xlu0 %3758
          %3760 = vadd.xlane.f32.xlu0 %v3505
          %v3761 = vpop.xlane.xlu0 %3760
          %3762 = vadd.xlane.f32.xlu0 %v3507
          %v3763 = vpop.xlane.xlu0 %3762
          %3764 = vadd.xlane.f32.xlu0 %v3509
          %v3765 = vpop.xlane.xlu0 %3764
          %3766 = vadd.xlane.f32.xlu0 %v3511
          %v3767 = vpop.xlane.xlu0 %3766
          %3768 = vadd.xlane.f32.xlu0 %v3513
          %v3769 = vpop.xlane.xlu0 %3768
          %3770 = vadd.xlane.f32.xlu0 %v3515
          %v3771 = vpop.xlane.xlu0 %3770
          %3772 = vadd.xlane.f32.xlu0 %v3517
          %v3773 = vpop.xlane.xlu0 %3772
          %3774 = vadd.xlane.f32.xlu0 %v3519
          %v3775 = vpop.xlane.xlu0 %3774
          %3776 = vadd.xlane.f32.xlu0 %v3521
          %v3777 = vpop.xlane.xlu0 %3776
          %3778 = vadd.xlane.f32.xlu0 %v3523
          %v3779 = vpop.xlane.xlu0 %3778
          %3780 = vadd.xlane.f32.xlu0 %v3525
          %v3781 = vpop.xlane.xlu0 %3780
          %3782 = vadd.xlane.f32.xlu0 %v3527
          %v3783 = vpop.xlane.xlu0 %3782
          %3784 = vadd.xlane.f32.xlu0 %v3529
          %v3785 = vpop.xlane.xlu0 %3784
          %3786 = vadd.xlane.f32.xlu0 %v3531
          %v3787 = vpop.xlane.xlu0 %3786
          %3788 = vadd.xlane.f32.xlu0 %v3533
          %v3789 = vpop.xlane.xlu0 %3788
          %3790 = vadd.xlane.f32.xlu0 %v3535
          %v3791 = vpop.xlane.xlu0 %3790
          %3792 = vadd.xlane.f32.xlu0 %v3537
          %v3793 = vpop.xlane.xlu0 %3792
          %3794 = vadd.xlane.f32.xlu0 %v3539
          %v3795 = vpop.xlane.xlu0 %3794
          %3796 = vadd.xlane.f32.xlu0 %v3541
          %v3797 = vpop.xlane.xlu0 %3796
          %3798 = vadd.xlane.f32.xlu0 %v3543
          %v3799 = vpop.xlane.xlu0 %3798
          %3800 = vadd.xlane.f32.xlu0 %v3545
          %v3801 = vpop.xlane.xlu0 %3800
          %3802 = vadd.xlane.f32.xlu0 %v3547
          %v3803 = vpop.xlane.xlu0 %3802
          %3804 = vadd.xlane.f32.xlu0 %v3549
          %v3805 = vpop.xlane.xlu0 %3804
          %3806 = vadd.xlane.f32.xlu0 %v3551
          %v3807 = vpop.xlane.xlu0 %3806
          %3808 = vadd.xlane.f32.xlu0 %v3553
          %v3809 = vpop.xlane.xlu0 %3808
          %3810 = vadd.xlane.f32.xlu0 %v3555
          %v3811 = vpop.xlane.xlu0 %3810
          %3812 = vadd.xlane.f32.xlu0 %v3557
          %v3813 = vpop.xlane.xlu0 %3812
          %3814 = vadd.xlane.f32.xlu0 %v3559
          %v3815 = vpop.xlane.xlu0 %3814
          %3816 = vadd.xlane.f32.xlu0 %v3561
          %v3817 = vpop.xlane.xlu0 %3816
          %3818 = vadd.xlane.f32.xlu0 %v3563
          %v3819 = vpop.xlane.xlu0 %3818
          %3820 = vadd.xlane.f32.xlu0 %v3565
          %v3821 = vpop.xlane.xlu0 %3820
          %3822 = vadd.xlane.f32.xlu0 %v3567
          %v3823 = vpop.xlane.xlu0 %3822
          %3824 = vadd.xlane.f32.xlu0 %v3569
          %v3825 = vpop.xlane.xlu0 %3824
          %3826 = vadd.xlane.f32.xlu0 %v3571
          %v3827 = vpop.xlane.xlu0 %3826
          %3828 = vadd.xlane.f32.xlu0 %v3573
          %v3829 = vpop.xlane.xlu0 %3828
          %3830 = vadd.xlane.f32.xlu0 %v3575
          %v3831 = vpop.xlane.xlu0 %3830
          %3832 = vadd.xlane.f32.xlu0 %v3577
          %v3833 = vpop.xlane.xlu0 %3832
          %3834 = vadd.xlane.f32.xlu0 %v3579
          %v3835 = vpop.xlane.xlu0 %3834
          %3836 = vadd.xlane.f32.xlu0 %v3581
          %v3837 = vpop.xlane.xlu0 %3836
          %3838 = vadd.xlane.f32.xlu0 %v3583
          %v3839 = vpop.xlane.xlu0 %3838
          %3840 = vadd.xlane.f32.xlu0 %v3585
          %v3841 = vpop.xlane.xlu0 %3840
          %3842 = vadd.xlane.f32.xlu0 %v3587
          %v3843 = vpop.xlane.xlu0 %3842
          %3844 = vadd.xlane.f32.xlu0 %v3589
          %v3845 = vpop.xlane.xlu0 %3844
          %3846 = vadd.xlane.f32.xlu0 %v3591
          %v3847 = vpop.xlane.xlu0 %3846
          %3848 = vadd.xlane.f32.xlu0 %v3593
          %v3849 = vpop.xlane.xlu0 %3848
          %3850 = vadd.xlane.f32.xlu0 %v3595
          %v3851 = vpop.xlane.xlu0 %3850
          %v3852 = vadd.f32 %v3660, %v3725
          %v3853 = vadd.f32 %v3661, %v3727
          %v3854 = vadd.f32 %v3662, %v3729
          %v3855 = vadd.f32 %v3663, %v3731
          %v3856 = vadd.f32 %v3664, %v3733
          %v3857 = vadd.f32 %v3665, %v3735
          %v3858 = vadd.f32 %v3666, %v3737
          %v3859 = vadd.f32 %v3667, %v3739
          %v3860 = vadd.f32 %v3668, %v3741
          %v3861 = vadd.f32 %v3669, %v3743
          %v3862 = vadd.f32 %v3670, %v3745
          %v3863 = vadd.f32 %v3671, %v3747
          %v3864 = vadd.f32 %v3672, %v3749
          %v3865 = vadd.f32 %v3673, %v3751
          %v3866 = vadd.f32 %v3674, %v3753
          %v3867 = vadd.f32 %v3675, %v3755
          %v3868 = vadd.f32 %v3676, %v3757
          %v3869 = vadd.f32 %v3677, %v3759
          %v3870 = vadd.f32 %v3678, %v3761
          %v3871 = vadd.f32 %v3679, %v3763
          %v3872 = vadd.f32 %v3680, %v3765
          %v3873 = vadd.f32 %v3681, %v3767
          %v3874 = vadd.f32 %v3682, %v3769
          %v3875 = vadd.f32 %v3683, %v3771
          %v3876 = vadd.f32 %v3684, %v3773
          %v3877 = vadd.f32 %v3685, %v3775
          %v3878 = vadd.f32 %v3686, %v3777
          %v3879 = vadd.f32 %v3687, %v3779
          %v3880 = vadd.f32 %v3688, %v3781
          %v3881 = vadd.f32 %v3689, %v3783
          %v3882 = vadd.f32 %v3690, %v3785
          %v3883 = vadd.f32 %v3691, %v3787
          %v3884 = vadd.f32 %v3692, %v3789
          %v3885 = vadd.f32 %v3693, %v3791
          %v3886 = vadd.f32 %v3694, %v3793
          %v3887 = vadd.f32 %v3695, %v3795
          %v3888 = vadd.f32 %v3696, %v3797
          %v3889 = vadd.f32 %v3697, %v3799
          %v3890 = vadd.f32 %v3698, %v3801
          %v3891 = vadd.f32 %v3699, %v3803
          %v3892 = vadd.f32 %v3700, %v3805
          %v3893 = vadd.f32 %v3701, %v3807
          %v3894 = vadd.f32 %v3702, %v3809
          %v3895 = vadd.f32 %v3703, %v3811
          %v3896 = vadd.f32 %v3704, %v3813
          %v3897 = vadd.f32 %v3705, %v3815
          %v3898 = vadd.f32 %v3706, %v3817
          %v3899 = vadd.f32 %v3707, %v3819
          %v3900 = vadd.f32 %v3708, %v3821
          %v3901 = vadd.f32 %v3709, %v3823
          %v3902 = vadd.f32 %v3710, %v3825
          %v3903 = vadd.f32 %v3711, %v3827
          %v3904 = vadd.f32 %v3712, %v3829
          %v3905 = vadd.f32 %v3713, %v3831
          %v3906 = vadd.f32 %v3714, %v3833
          %v3907 = vadd.f32 %v3715, %v3835
          %v3908 = vadd.f32 %v3716, %v3837
          %v3909 = vadd.f32 %v3717, %v3839
          %v3910 = vadd.f32 %v3718, %v3841
          %v3911 = vadd.f32 %v3719, %v3843
          %v3912 = vadd.f32 %v3720, %v3845
          %v3913 = vadd.f32 %v3721, %v3847
          %v3914 = vadd.f32 %v3722, %v3849
          %v3915 = vadd.f32 %v3723, %v3851
          %vm3916 = vcmask 7168
          %3917 = vst.msk [vmem:[#allocation3] sm:$0xff] %vm3916, %v3852
          %3918 = vst.msk [vmem:[#allocation3 + $0x8] sm:$0xff] %vm3916, %v3853
          %3919 = vst.msk [vmem:[#allocation3 + $0x10] sm:$0xff] %vm3916, %v3854
          %3920 = vst.msk [vmem:[#allocation3 + $0x18] sm:$0xff] %vm3916, %v3855
          %3921 = vst.msk [vmem:[#allocation3 + $0x20] sm:$0xff] %vm3916, %v3856
          %3922 = vst.msk [vmem:[#allocation3 + $0x28] sm:$0xff] %vm3916, %v3857
          %3923 = vst.msk [vmem:[#allocation3 + $0x30] sm:$0xff] %vm3916, %v3858
          %3924 = vst.msk [vmem:[#allocation3 + $0x38] sm:$0xff] %vm3916, %v3859
          %3925 = vst.msk [vmem:[#allocation3 + $0x40] sm:$0xff] %vm3916, %v3860
          %3926 = vst.msk [vmem:[#allocation3 + $0x48] sm:$0xff] %vm3916, %v3861
          %3927 = vst.msk [vmem:[#allocation3 + $0x50] sm:$0xff] %vm3916, %v3862
          %3928 = vst.msk [vmem:[#allocation3 + $0x58] sm:$0xff] %vm3916, %v3863
          %3929 = vst.msk [vmem:[#allocation3 + $0x60] sm:$0xff] %vm3916, %v3864
          %3930 = vst.msk [vmem:[#allocation3 + $0x68] sm:$0xff] %vm3916, %v3865
          %3931 = vst.msk [vmem:[#allocation3 + $0x70] sm:$0xff] %vm3916, %v3866
          %3932 = vst.msk [vmem:[#allocation3 + $0x78] sm:$0xff] %vm3916, %v3867
          %3933 = vst.msk [vmem:[#allocation3 + $0x80] sm:$0xff] %vm3916, %v3868
          %3934 = vst.msk [vmem:[#allocation3 + $0x88] sm:$0xff] %vm3916, %v3869
          %3935 = vst.msk [vmem:[#allocation3 + $0x90] sm:$0xff] %vm3916, %v3870
          %3936 = vst.msk [vmem:[#allocation3 + $0x98] sm:$0xff] %vm3916, %v3871
          %3937 = vst.msk [vmem:[#allocation3 + $0xa0] sm:$0xff] %vm3916, %v3872
          %3938 = vst.msk [vmem:[#allocation3 + $0xa8] sm:$0xff] %vm3916, %v3873
          %3939 = vst.msk [vmem:[#allocation3 + $0xb0] sm:$0xff] %vm3916, %v3874
          %3940 = vst.msk [vmem:[#allocation3 + $0xb8] sm:$0xff] %vm3916, %v3875
          %3941 = vst.msk [vmem:[#allocation3 + $0xc0] sm:$0xff] %vm3916, %v3876
          %3942 = vst.msk [vmem:[#allocation3 + $0xc8] sm:$0xff] %vm3916, %v3877
          %3943 = vst.msk [vmem:[#allocation3 + $0xd0] sm:$0xff] %vm3916, %v3878
          %3944 = vst.msk [vmem:[#allocation3 + $0xd8] sm:$0xff] %vm3916, %v3879
          %3945 = vst.msk [vmem:[#allocation3 + $0xe0] sm:$0xff] %vm3916, %v3880
          %3946 = vst.msk [vmem:[#allocation3 + $0xe8] sm:$0xff] %vm3916, %v3881
          %3947 = vst.msk [vmem:[#allocation3 + $0xf0] sm:$0xff] %vm3916, %v3882
          %3948 = vst.msk [vmem:[#allocation3 + $0xf8] sm:$0xff] %vm3916, %v3883
          %3949 = vst.msk [vmem:[#allocation3 + $0x100] sm:$0xff] %vm3916, %v3884
          %3950 = vst.msk [vmem:[#allocation3 + $0x108] sm:$0xff] %vm3916, %v3885
          %3951 = vst.msk [vmem:[#allocation3 + $0x110] sm:$0xff] %vm3916, %v3886
          %3952 = vst.msk [vmem:[#allocation3 + $0x118] sm:$0xff] %vm3916, %v3887
          %3953 = vst.msk [vmem:[#allocation3 + $0x120] sm:$0xff] %vm3916, %v3888
          %3954 = vst.msk [vmem:[#allocation3 + $0x128] sm:$0xff] %vm3916, %v3889
          %3955 = vst.msk [vmem:[#allocation3 + $0x130] sm:$0xff] %vm3916, %v3890
          %3956 = vst.msk [vmem:[#allocation3 + $0x138] sm:$0xff] %vm3916, %v3891
          %3957 = vst.msk [vmem:[#allocation3 + $0x140] sm:$0xff] %vm3916, %v3892
          %3958 = vst.msk [vmem:[#allocation3 + $0x148] sm:$0xff] %vm3916, %v3893
          %3959 = vst.msk [vmem:[#allocation3 + $0x150] sm:$0xff] %vm3916, %v3894
          %3960 = vst.msk [vmem:[#allocation3 + $0x158] sm:$0xff] %vm3916, %v3895
          %3961 = vst.msk [vmem:[#allocation3 + $0x160] sm:$0xff] %vm3916, %v3896
          %3962 = vst.msk [vmem:[#allocation3 + $0x168] sm:$0xff] %vm3916, %v3897
          %3963 = vst.msk [vmem:[#allocation3 + $0x170] sm:$0xff] %vm3916, %v3898
          %3964 = vst.msk [vmem:[#allocation3 + $0x178] sm:$0xff] %vm3916, %v3899
          %3965 = vst.msk [vmem:[#allocation3 + $0x180] sm:$0xff] %vm3916, %v3900
          %3966 = vst.msk [vmem:[#allocation3 + $0x188] sm:$0xff] %vm3916, %v3901
          %3967 = vst.msk [vmem:[#allocation3 + $0x190] sm:$0xff] %vm3916, %v3902
          %3968 = vst.msk [vmem:[#allocation3 + $0x198] sm:$0xff] %vm3916, %v3903
          %3969 = vst.msk [vmem:[#allocation3 + $0x1a0] sm:$0xff] %vm3916, %v3904
          %3970 = vst.msk [vmem:[#allocation3 + $0x1a8] sm:$0xff] %vm3916, %v3905
          %3971 = vst.msk [vmem:[#allocation3 + $0x1b0] sm:$0xff] %vm3916, %v3906
          %3972 = vst.msk [vmem:[#allocation3 + $0x1b8] sm:$0xff] %vm3916, %v3907
          %3973 = vst.msk [vmem:[#allocation3 + $0x1c0] sm:$0xff] %vm3916, %v3908
          %3974 = vst.msk [vmem:[#allocation3 + $0x1c8] sm:$0xff] %vm3916, %v3909
          %3975 = vst.msk [vmem:[#allocation3 + $0x1d0] sm:$0xff] %vm3916, %v3910
          %3976 = vst.msk [vmem:[#allocation3 + $0x1d8] sm:$0xff] %vm3916, %v3911
          %3977 = vst.msk [vmem:[#allocation3 + $0x1e0] sm:$0xff] %vm3916, %v3912
          %3978 = vst.msk [vmem:[#allocation3 + $0x1e8] sm:$0xff] %vm3916, %v3913
          %3979 = vst.msk [vmem:[#allocation3 + $0x1f0] sm:$0xff] %vm3916, %v3914
          %3980 = vst.msk [vmem:[#allocation3 + $0x1f8] sm:$0xff] %vm3916, %v3915
          %v3981 = vld [vmem:[#allocation4] sm:$0xff]
          %v3982 = vld [vmem:[#allocation4 + $0x8] sm:$0xff]
          %v3983 = vld [vmem:[#allocation4 + $0x10] sm:$0xff]
          %v3984 = vld [vmem:[#allocation4 + $0x18] sm:$0xff]
          %v3985 = vld [vmem:[#allocation4 + $0x20] sm:$0xff]
          %v3986 = vld [vmem:[#allocation4 + $0x28] sm:$0xff]
          %v3987 = vld [vmem:[#allocation4 + $0x30] sm:$0xff]
          %v3988 = vld [vmem:[#allocation4 + $0x38] sm:$0xff]
          %v3989 = vld [vmem:[#allocation4 + $0x40] sm:$0xff]
          %v3990 = vld [vmem:[#allocation4 + $0x48] sm:$0xff]
          %v3991 = vld [vmem:[#allocation4 + $0x50] sm:$0xff]
          %v3992 = vld [vmem:[#allocation4 + $0x58] sm:$0xff]
          %v3993 = vld [vmem:[#allocation4 + $0x60] sm:$0xff]
          %v3994 = vld [vmem:[#allocation4 + $0x68] sm:$0xff]
          %v3995 = vld [vmem:[#allocation4 + $0x70] sm:$0xff]
          %v3996 = vld [vmem:[#allocation4 + $0x78] sm:$0xff]
          %v3997 = vld [vmem:[#allocation4 + $0x80] sm:$0xff]
          %v3998 = vld [vmem:[#allocation4 + $0x88] sm:$0xff]
          %v3999 = vld [vmem:[#allocation4 + $0x90] sm:$0xff]
          %v4000 = vld [vmem:[#allocation4 + $0x98] sm:$0xff]
          %v4001 = vld [vmem:[#allocation4 + $0xa0] sm:$0xff]
          %v4002 = vld [vmem:[#allocation4 + $0xa8] sm:$0xff]
          %v4003 = vld [vmem:[#allocation4 + $0xb0] sm:$0xff]
          %v4004 = vld [vmem:[#allocation4 + $0xb8] sm:$0xff]
          %v4005 = vld [vmem:[#allocation4 + $0xc0] sm:$0xff]
          %v4006 = vld [vmem:[#allocation4 + $0xc8] sm:$0xff]
          %v4007 = vld [vmem:[#allocation4 + $0xd0] sm:$0xff]
          %v4008 = vld [vmem:[#allocation4 + $0xd8] sm:$0xff]
          %v4009 = vld [vmem:[#allocation4 + $0xe0] sm:$0xff]
          %v4010 = vld [vmem:[#allocation4 + $0xe8] sm:$0xff]
          %v4011 = vld [vmem:[#allocation4 + $0xf0] sm:$0xff]
          %v4012 = vld [vmem:[#allocation4 + $0xf8] sm:$0xff]
          %v4013 = vld [vmem:[#allocation4 + $0x100] sm:$0xff]
          %v4014 = vld [vmem:[#allocation4 + $0x108] sm:$0xff]
          %v4015 = vld [vmem:[#allocation4 + $0x110] sm:$0xff]
          %v4016 = vld [vmem:[#allocation4 + $0x118] sm:$0xff]
          %v4017 = vld [vmem:[#allocation4 + $0x120] sm:$0xff]
          %v4018 = vld [vmem:[#allocation4 + $0x128] sm:$0xff]
          %v4019 = vld [vmem:[#allocation4 + $0x130] sm:$0xff]
          %v4020 = vld [vmem:[#allocation4 + $0x138] sm:$0xff]
          %v4021 = vld [vmem:[#allocation4 + $0x140] sm:$0xff]
          %v4022 = vld [vmem:[#allocation4 + $0x148] sm:$0xff]
          %v4023 = vld [vmem:[#allocation4 + $0x150] sm:$0xff]
          %v4024 = vld [vmem:[#allocation4 + $0x158] sm:$0xff]
          %v4025 = vld [vmem:[#allocation4 + $0x160] sm:$0xff]
          %v4026 = vld [vmem:[#allocation4 + $0x168] sm:$0xff]
          %v4027 = vld [vmem:[#allocation4 + $0x170] sm:$0xff]
          %v4028 = vld [vmem:[#allocation4 + $0x178] sm:$0xff]
          %v4029 = vld [vmem:[#allocation4 + $0x180] sm:$0xff]
          %v4030 = vld [vmem:[#allocation4 + $0x188] sm:$0xff]
          %v4031 = vld [vmem:[#allocation4 + $0x190] sm:$0xff]
          %v4032 = vld [vmem:[#allocation4 + $0x198] sm:$0xff]
          %v4033 = vld [vmem:[#allocation4 + $0x1a0] sm:$0xff]
          %v4034 = vld [vmem:[#allocation4 + $0x1a8] sm:$0xff]
          %v4035 = vld [vmem:[#allocation4 + $0x1b0] sm:$0xff]
          %v4036 = vld [vmem:[#allocation4 + $0x1b8] sm:$0xff]
          %v4037 = vld [vmem:[#allocation4 + $0x1c0] sm:$0xff]
          %v4038 = vld [vmem:[#allocation4 + $0x1c8] sm:$0xff]
          %v4039 = vld [vmem:[#allocation4 + $0x1d0] sm:$0xff]
          %v4040 = vld [vmem:[#allocation4 + $0x1d8] sm:$0xff]
          %v4041 = vld [vmem:[#allocation4 + $0x1e0] sm:$0xff]
          %v4042 = vld [vmem:[#allocation4 + $0x1e8] sm:$0xff]
          %v4043 = vld [vmem:[#allocation4 + $0x1f0] sm:$0xff]
          %v4044 = vld [vmem:[#allocation4 + $0x1f8] sm:$0xff]
          %4046 = vset.pattern.permute.xlu0 0
          %4047 = vperm.xlu0 %4046, %v2957
          %v4048 = vpop.permute.xlu0 %4047
          %4051 = vset.pattern.permute.xlu0 0
          %4052 = vperm.xlu0 %4051, %v2959
          %v4053 = vpop.permute.xlu0 %4052
          %4056 = vset.pattern.permute.xlu0 0
          %4057 = vperm.xlu0 %4056, %v2961
          %v4058 = vpop.permute.xlu0 %4057
          %4061 = vset.pattern.permute.xlu0 0
          %4062 = vperm.xlu0 %4061, %v2963
          %v4063 = vpop.permute.xlu0 %4062
          %4066 = vset.pattern.permute.xlu0 0
          %4067 = vperm.xlu0 %4066, %v2965
          %v4068 = vpop.permute.xlu0 %4067
          %4071 = vset.pattern.permute.xlu0 0
          %4072 = vperm.xlu0 %4071, %v2967
          %v4073 = vpop.permute.xlu0 %4072
          %4076 = vset.pattern.permute.xlu0 0
          %4077 = vperm.xlu0 %4076, %v2969
          %v4078 = vpop.permute.xlu0 %4077
          %4081 = vset.pattern.permute.xlu0 0
          %4082 = vperm.xlu0 %4081, %v2971
          %v4083 = vpop.permute.xlu0 %4082
          %4086 = vset.pattern.permute.xlu0 0
          %4087 = vperm.xlu0 %4086, %v2973
          %v4088 = vpop.permute.xlu0 %4087
          %4091 = vset.pattern.permute.xlu0 0
          %4092 = vperm.xlu0 %4091, %v2975
          %v4093 = vpop.permute.xlu0 %4092
          %4096 = vset.pattern.permute.xlu0 0
          %4097 = vperm.xlu0 %4096, %v2977
          %v4098 = vpop.permute.xlu0 %4097
          %4101 = vset.pattern.permute.xlu0 0
          %4102 = vperm.xlu0 %4101, %v2979
          %v4103 = vpop.permute.xlu0 %4102
          %4106 = vset.pattern.permute.xlu0 0
          %4107 = vperm.xlu0 %4106, %v2981
          %v4108 = vpop.permute.xlu0 %4107
          %4111 = vset.pattern.permute.xlu0 0
          %4112 = vperm.xlu0 %4111, %v2983
          %v4113 = vpop.permute.xlu0 %4112
          %4116 = vset.pattern.permute.xlu0 0
          %4117 = vperm.xlu0 %4116, %v2985
          %v4118 = vpop.permute.xlu0 %4117
          %4121 = vset.pattern.permute.xlu0 0
          %4122 = vperm.xlu0 %4121, %v2987
          %v4123 = vpop.permute.xlu0 %4122
          %4126 = vset.pattern.permute.xlu0 0
          %4127 = vperm.xlu0 %4126, %v2989
          %v4128 = vpop.permute.xlu0 %4127
          %4131 = vset.pattern.permute.xlu0 0
          %4132 = vperm.xlu0 %4131, %v2991
          %v4133 = vpop.permute.xlu0 %4132
          %4136 = vset.pattern.permute.xlu0 0
          %4137 = vperm.xlu0 %4136, %v2993
          %v4138 = vpop.permute.xlu0 %4137
          %4141 = vset.pattern.permute.xlu0 0
          %4142 = vperm.xlu0 %4141, %v2995
          %v4143 = vpop.permute.xlu0 %4142
          %4146 = vset.pattern.permute.xlu0 0
          %4147 = vperm.xlu0 %4146, %v2997
          %v4148 = vpop.permute.xlu0 %4147
          %4151 = vset.pattern.permute.xlu0 0
          %4152 = vperm.xlu0 %4151, %v2999
          %v4153 = vpop.permute.xlu0 %4152
          %4156 = vset.pattern.permute.xlu0 0
          %4157 = vperm.xlu0 %4156, %v3001
          %v4158 = vpop.permute.xlu0 %4157
          %4161 = vset.pattern.permute.xlu0 0
          %4162 = vperm.xlu0 %4161, %v3003
          %v4163 = vpop.permute.xlu0 %4162
          %4166 = vset.pattern.permute.xlu0 0
          %4167 = vperm.xlu0 %4166, %v3005
          %v4168 = vpop.permute.xlu0 %4167
          %4171 = vset.pattern.permute.xlu0 0
          %4172 = vperm.xlu0 %4171, %v3007
          %v4173 = vpop.permute.xlu0 %4172
          %4176 = vset.pattern.permute.xlu0 0
          %4177 = vperm.xlu0 %4176, %v3009
          %v4178 = vpop.permute.xlu0 %4177
          %4181 = vset.pattern.permute.xlu0 0
          %4182 = vperm.xlu0 %4181, %v3011
          %v4183 = vpop.permute.xlu0 %4182
          %4186 = vset.pattern.permute.xlu0 0
          %4187 = vperm.xlu0 %4186, %v3013
          %v4188 = vpop.permute.xlu0 %4187
          %4191 = vset.pattern.permute.xlu0 0
          %4192 = vperm.xlu0 %4191, %v3015
          %v4193 = vpop.permute.xlu0 %4192
          %4196 = vset.pattern.permute.xlu0 0
          %4197 = vperm.xlu0 %4196, %v3017
          %v4198 = vpop.permute.xlu0 %4197
          %4201 = vset.pattern.permute.xlu0 0
          %4202 = vperm.xlu0 %4201, %v3019
          %v4203 = vpop.permute.xlu0 %4202
          %4206 = vset.pattern.permute.xlu0 0
          %4207 = vperm.xlu0 %4206, %v3021
          %v4208 = vpop.permute.xlu0 %4207
          %4211 = vset.pattern.permute.xlu0 0
          %4212 = vperm.xlu0 %4211, %v3023
          %v4213 = vpop.permute.xlu0 %4212
          %4216 = vset.pattern.permute.xlu0 0
          %4217 = vperm.xlu0 %4216, %v3025
          %v4218 = vpop.permute.xlu0 %4217
          %4221 = vset.pattern.permute.xlu0 0
          %4222 = vperm.xlu0 %4221, %v3027
          %v4223 = vpop.permute.xlu0 %4222
          %4226 = vset.pattern.permute.xlu0 0
          %4227 = vperm.xlu0 %4226, %v3029
          %v4228 = vpop.permute.xlu0 %4227
          %4231 = vset.pattern.permute.xlu0 0
          %4232 = vperm.xlu0 %4231, %v3031
          %v4233 = vpop.permute.xlu0 %4232
          %4236 = vset.pattern.permute.xlu0 0
          %4237 = vperm.xlu0 %4236, %v3033
          %v4238 = vpop.permute.xlu0 %4237
          %4241 = vset.pattern.permute.xlu0 0
          %4242 = vperm.xlu0 %4241, %v3035
          %v4243 = vpop.permute.xlu0 %4242
          %4246 = vset.pattern.permute.xlu0 0
          %4247 = vperm.xlu0 %4246, %v3037
          %v4248 = vpop.permute.xlu0 %4247
          %4251 = vset.pattern.permute.xlu0 0
          %4252 = vperm.xlu0 %4251, %v3039
          %v4253 = vpop.permute.xlu0 %4252
          %4256 = vset.pattern.permute.xlu0 0
          %4257 = vperm.xlu0 %4256, %v3041
          %v4258 = vpop.permute.xlu0 %4257
          %4261 = vset.pattern.permute.xlu0 0
          %4262 = vperm.xlu0 %4261, %v3043
          %v4263 = vpop.permute.xlu0 %4262
          %4266 = vset.pattern.permute.xlu0 0
          %4267 = vperm.xlu0 %4266, %v3045
          %v4268 = vpop.permute.xlu0 %4267
          %4271 = vset.pattern.permute.xlu0 0
          %4272 = vperm.xlu0 %4271, %v3047
          %v4273 = vpop.permute.xlu0 %4272
          %4276 = vset.pattern.permute.xlu0 0
          %4277 = vperm.xlu0 %4276, %v3049
          %v4278 = vpop.permute.xlu0 %4277
          %4281 = vset.pattern.permute.xlu0 0
          %4282 = vperm.xlu0 %4281, %v3051
          %v4283 = vpop.permute.xlu0 %4282
          %4286 = vset.pattern.permute.xlu0 0
          %4287 = vperm.xlu0 %4286, %v3053
          %v4288 = vpop.permute.xlu0 %4287
          %4291 = vset.pattern.permute.xlu0 0
          %4292 = vperm.xlu0 %4291, %v3055
          %v4293 = vpop.permute.xlu0 %4292
          %4296 = vset.pattern.permute.xlu0 0
          %4297 = vperm.xlu0 %4296, %v3057
          %v4298 = vpop.permute.xlu0 %4297
          %4301 = vset.pattern.permute.xlu0 0
          %4302 = vperm.xlu0 %4301, %v3059
          %v4303 = vpop.permute.xlu0 %4302
          %4306 = vset.pattern.permute.xlu0 0
          %4307 = vperm.xlu0 %4306, %v3061
          %v4308 = vpop.permute.xlu0 %4307
          %4311 = vset.pattern.permute.xlu0 0
          %4312 = vperm.xlu0 %4311, %v3063
          %v4313 = vpop.permute.xlu0 %4312
          %4316 = vset.pattern.permute.xlu0 0
          %4317 = vperm.xlu0 %4316, %v3065
          %v4318 = vpop.permute.xlu0 %4317
          %4321 = vset.pattern.permute.xlu0 0
          %4322 = vperm.xlu0 %4321, %v3067
          %v4323 = vpop.permute.xlu0 %4322
          %4326 = vset.pattern.permute.xlu0 0
          %4327 = vperm.xlu0 %4326, %v3069
          %v4328 = vpop.permute.xlu0 %4327
          %4331 = vset.pattern.permute.xlu0 0
          %4332 = vperm.xlu0 %4331, %v3071
          %v4333 = vpop.permute.xlu0 %4332
          %4336 = vset.pattern.permute.xlu0 0
          %4337 = vperm.xlu0 %4336, %v3073
          %v4338 = vpop.permute.xlu0 %4337
          %4341 = vset.pattern.permute.xlu0 0
          %4342 = vperm.xlu0 %4341, %v3075
          %v4343 = vpop.permute.xlu0 %4342
          %4346 = vset.pattern.permute.xlu0 0
          %4347 = vperm.xlu0 %4346, %v3077
          %v4348 = vpop.permute.xlu0 %4347
          %4351 = vset.pattern.permute.xlu0 0
          %4352 = vperm.xlu0 %4351, %v3079
          %v4353 = vpop.permute.xlu0 %4352
          %4356 = vset.pattern.permute.xlu0 0
          %4357 = vperm.xlu0 %4356, %v3081
          %v4358 = vpop.permute.xlu0 %4357
          %4361 = vset.pattern.permute.xlu0 0
          %4362 = vperm.xlu0 %4361, %v3083
          %v4363 = vpop.permute.xlu0 %4362
          %v4365 = vmul.f32 %v4048, %v3981
          %v4366 = vmul.f32 %v4053, %v3982
          %v4367 = vmul.f32 %v4058, %v3983
          %v4368 = vmul.f32 %v4063, %v3984
          %v4369 = vmul.f32 %v4068, %v3985
          %v4370 = vmul.f32 %v4073, %v3986
          %v4371 = vmul.f32 %v4078, %v3987
          %v4372 = vmul.f32 %v4083, %v3988
          %v4373 = vmul.f32 %v4088, %v3989
          %v4374 = vmul.f32 %v4093, %v3990
          %v4375 = vmul.f32 %v4098, %v3991
          %v4376 = vmul.f32 %v4103, %v3992
          %v4377 = vmul.f32 %v4108, %v3993
          %v4378 = vmul.f32 %v4113, %v3994
          %v4379 = vmul.f32 %v4118, %v3995
          %v4380 = vmul.f32 %v4123, %v3996
          %v4381 = vmul.f32 %v4128, %v3997
          %v4382 = vmul.f32 %v4133, %v3998
          %v4383 = vmul.f32 %v4138, %v3999
          %v4384 = vmul.f32 %v4143, %v4000
          %v4385 = vmul.f32 %v4148, %v4001
          %v4386 = vmul.f32 %v4153, %v4002
          %v4387 = vmul.f32 %v4158, %v4003
          %v4388 = vmul.f32 %v4163, %v4004
          %v4389 = vmul.f32 %v4168, %v4005
          %v4390 = vmul.f32 %v4173, %v4006
          %v4391 = vmul.f32 %v4178, %v4007
          %v4392 = vmul.f32 %v4183, %v4008
          %v4393 = vmul.f32 %v4188, %v4009
          %v4394 = vmul.f32 %v4193, %v4010
          %v4395 = vmul.f32 %v4198, %v4011
          %v4396 = vmul.f32 %v4203, %v4012
          %v4397 = vmul.f32 %v4208, %v4013
          %v4398 = vmul.f32 %v4213, %v4014
          %v4399 = vmul.f32 %v4218, %v4015
          %v4400 = vmul.f32 %v4223, %v4016
          %v4401 = vmul.f32 %v4228, %v4017
          %v4402 = vmul.f32 %v4233, %v4018
          %v4403 = vmul.f32 %v4238, %v4019
          %v4404 = vmul.f32 %v4243, %v4020
          %v4405 = vmul.f32 %v4248, %v4021
          %v4406 = vmul.f32 %v4253, %v4022
          %v4407 = vmul.f32 %v4258, %v4023
          %v4408 = vmul.f32 %v4263, %v4024
          %v4409 = vmul.f32 %v4268, %v4025
          %v4410 = vmul.f32 %v4273, %v4026
          %v4411 = vmul.f32 %v4278, %v4027
          %v4412 = vmul.f32 %v4283, %v4028
          %v4413 = vmul.f32 %v4288, %v4029
          %v4414 = vmul.f32 %v4293, %v4030
          %v4415 = vmul.f32 %v4298, %v4031
          %v4416 = vmul.f32 %v4303, %v4032
          %v4417 = vmul.f32 %v4308, %v4033
          %v4418 = vmul.f32 %v4313, %v4034
          %v4419 = vmul.f32 %v4318, %v4035
          %v4420 = vmul.f32 %v4323, %v4036
          %v4421 = vmul.f32 %v4328, %v4037
          %v4422 = vmul.f32 %v4333, %v4038
          %v4423 = vmul.f32 %v4338, %v4039
          %v4424 = vmul.f32 %v4343, %v4040
          %v4425 = vmul.f32 %v4348, %v4041
          %v4426 = vmul.f32 %v4353, %v4042
          %v4427 = vmul.f32 %v4358, %v4043
          %v4428 = vmul.f32 %v4363, %v4044
          %v4429 = vpack.c.bf16 %v3471, %v3469
          %v4430 = vpack.c.bf16 %v3475, %v3473
          %v4431 = vpack.c.bf16 %v3479, %v3477
          %v4432 = vpack.c.bf16 %v3483, %v3481
          %v4433 = vpack.c.bf16 %v3487, %v3485
          %v4434 = vpack.c.bf16 %v3491, %v3489
          %v4435 = vpack.c.bf16 %v3495, %v3493
          %v4436 = vpack.c.bf16 %v3499, %v3497
          %v4437 = vpack.c.bf16 %v3503, %v3501
          %v4438 = vpack.c.bf16 %v3507, %v3505
          %v4439 = vpack.c.bf16 %v3511, %v3509
          %v4440 = vpack.c.bf16 %v3515, %v3513
          %v4441 = vpack.c.bf16 %v3519, %v3517
          %v4442 = vpack.c.bf16 %v3523, %v3521
          %v4443 = vpack.c.bf16 %v3527, %v3525
          %v4444 = vpack.c.bf16 %v3531, %v3529
          %v4445 = vpack.c.bf16 %v3535, %v3533
          %v4446 = vpack.c.bf16 %v3539, %v3537
          %v4447 = vpack.c.bf16 %v3543, %v3541
          %v4448 = vpack.c.bf16 %v3547, %v3545
          %v4449 = vpack.c.bf16 %v3551, %v3549
          %v4450 = vpack.c.bf16 %v3555, %v3553
          %v4451 = vpack.c.bf16 %v3559, %v3557
          %v4452 = vpack.c.bf16 %v3563, %v3561
          %v4453 = vpack.c.bf16 %v3567, %v3565
          %v4454 = vpack.c.bf16 %v3571, %v3569
          %v4455 = vpack.c.bf16 %v3575, %v3573
          %v4456 = vpack.c.bf16 %v3579, %v3577
          %v4457 = vpack.c.bf16 %v3583, %v3581
          %v4458 = vpack.c.bf16 %v3587, %v3585
          %v4459 = vpack.c.bf16 %v3591, %v3589
          %v4460 = vpack.c.bf16 %v3595, %v3593
          %v4477 = vunpack.c.l.b16 %v1577
          %v4478 = vunpack.c.l.b16 %v1578
          %v4479 = vunpack.c.l.b16 %v1579
          %v4480 = vunpack.c.l.b16 %v1580
          %v4481 = vunpack.c.l.b16 %v1581
          %v4482 = vunpack.c.l.b16 %v1582
          %v4483 = vunpack.c.l.b16 %v1583
          %v4484 = vunpack.c.l.b16 %v1584
          %v4485 = vunpack.c.l.b16 %v1585
          %v4486 = vunpack.c.l.b16 %v1586
          %v4487 = vunpack.c.l.b16 %v1587
          %v4488 = vunpack.c.l.b16 %v1588
          %v4489 = vunpack.c.l.b16 %v1589
          %v4490 = vunpack.c.l.b16 %v1590
          %v4491 = vunpack.c.l.b16 %v1591
          %v4492 = vunpack.c.l.b16 %v1592
          %v4493 = vpack.c.b16 %v4478, %v4477
          %v4494 = vpack.c.b16 %v4480, %v4479
          %v4495 = vpack.c.b16 %v4482, %v4481
          %v4496 = vpack.c.b16 %v4484, %v4483
          %v4497 = vpack.c.b16 %v4486, %v4485
          %v4498 = vpack.c.b16 %v4488, %v4487
          %v4499 = vpack.c.b16 %v4490, %v4489
          %v4500 = vpack.c.b16 %v4492, %v4491
          %4509 = vmatprep.subr.bf16.mxu0 0
          %4510 = vmatpush1.bf16.msra.mxu0 %v4500
          %4511 = vmatprep.subr.bf16.mxu0 0
          %4512 = vmatpush1.bf16.msra.mxu0 %v4499
          %4513 = vmatprep.subr.bf16.mxu0 0
          %4514 = vmatpush1.bf16.msra.mxu0 %v4498
          %4515 = vmatprep.subr.bf16.mxu0 0
          %4516 = vmatpush1.bf16.msra.mxu0 %v4497
          %4517 = vmatprep.subr.bf16.mxu0 0
          %4518 = vmatpush1.bf16.msra.mxu0 %v4496
          %4519 = vmatprep.subr.bf16.mxu0 0
          %4520 = vmatpush1.bf16.msra.mxu0 %v4495
          %4521 = vmatprep.subr.bf16.mxu0 0
          %4522 = vmatpush1.bf16.msra.mxu0 %v4494
          %4523 = vmatprep.subr.bf16.mxu0 0
          %4524 = vmatpush1.bf16.msra.mxu0 %v4493
          %4525 = vmatprep.subr.bf16.mxu0 0
          %4526 = vmatpush2.bf16.msra.mxu0 0
          %4527 = vmatprep.subr.bf16.mxu0 0
          %4528 = vmatpush2.bf16.msra.mxu0 0
          %4529 = vmatprep.subr.bf16.mxu0 0
          %4530 = vmatpush2.bf16.msra.mxu0 0
          %4531 = vmatprep.subr.bf16.mxu0 0
          %4532 = vmatpush2.bf16.msra.mxu0 0
          %4533 = vmatprep.subr.bf16.mxu0 0
          %4534 = vmatpush2.bf16.msra.mxu0 0
          %4535 = vmatprep.subr.bf16.mxu0 0
          %4536 = vmatpush2.bf16.msra.mxu0 0
          %4537 = vmatprep.subr.bf16.mxu0 0
          %4538 = vmatpush2.bf16.msra.mxu0 0
          %4539 = vmatprep.subr.bf16.mxu0 0
          %4540 = vmatpush2.bf16.msra.mxu0 0
          %4541 = vmatprep.mubr.bf16.mxu0 0
          %4542 = vmatmul.mubr.bf16.gmra.mxu0 %v4429
          %v4543 = vpop.f32.mrf.mxu0
          %v4544 = vadd.f32 0.0, %v4543
          %v4545 = vpop.f32.mrf.mxu0
          %v4546 = vpop.f32.mrf.mxu0
          %v4547 = vadd.f32 0.0, %v4546
          %v4548 = vpop.f32.mrf.mxu0
          %4549 = vmatprep.mubr.bf16.mxu0 0
          %4550 = vmatmul.mubr.bf16.gmra.mxu0 %v4430
          %v4551 = vpop.f32.mrf.mxu0
          %v4552 = vadd.f32 0.0, %v4551
          %v4553 = vpop.f32.mrf.mxu0
          %v4554 = vpop.f32.mrf.mxu0
          %v4555 = vadd.f32 0.0, %v4554
          %v4556 = vpop.f32.mrf.mxu0
          %4557 = vmatprep.mubr.bf16.mxu0 0
          %4558 = vmatmul.mubr.bf16.gmra.mxu0 %v4431
          %v4559 = vpop.f32.mrf.mxu0
          %v4560 = vadd.f32 0.0, %v4559
          %v4561 = vpop.f32.mrf.mxu0
          %v4562 = vpop.f32.mrf.mxu0
          %v4563 = vadd.f32 0.0, %v4562
          %v4564 = vpop.f32.mrf.mxu0
          %4565 = vmatprep.mubr.bf16.mxu0 0
          %4566 = vmatmul.mubr.bf16.gmra.mxu0 %v4432
          %v4567 = vpop.f32.mrf.mxu0
          %v4568 = vadd.f32 0.0, %v4567
          %v4569 = vpop.f32.mrf.mxu0
          %v4570 = vpop.f32.mrf.mxu0
          %v4571 = vadd.f32 0.0, %v4570
          %v4572 = vpop.f32.mrf.mxu0
          %4573 = vmatprep.mubr.bf16.mxu0 0
          %4574 = vmatmul.mubr.bf16.gmra.mxu0 %v4433
          %v4575 = vpop.f32.mrf.mxu0
          %v4576 = vadd.f32 0.0, %v4575
          %v4577 = vpop.f32.mrf.mxu0
          %v4578 = vpop.f32.mrf.mxu0
          %v4579 = vadd.f32 0.0, %v4578
          %v4580 = vpop.f32.mrf.mxu0
          %4581 = vmatprep.mubr.bf16.mxu0 0
          %4582 = vmatmul.mubr.bf16.gmra.mxu0 %v4434
          %v4583 = vpop.f32.mrf.mxu0
          %v4584 = vadd.f32 0.0, %v4583
          %v4585 = vpop.f32.mrf.mxu0
          %v4586 = vpop.f32.mrf.mxu0
          %v4587 = vadd.f32 0.0, %v4586
          %v4588 = vpop.f32.mrf.mxu0
          %4589 = vmatprep.mubr.bf16.mxu0 0
          %4590 = vmatmul.mubr.bf16.gmra.mxu0 %v4435
          %v4591 = vpop.f32.mrf.mxu0
          %v4592 = vadd.f32 0.0, %v4591
          %v4593 = vpop.f32.mrf.mxu0
          %v4594 = vpop.f32.mrf.mxu0
          %v4595 = vadd.f32 0.0, %v4594
          %v4596 = vpop.f32.mrf.mxu0
          %4597 = vmatprep.mubr.bf16.mxu0 0
          %4598 = vmatmul.mubr.bf16.gmra.mxu0 %v4436
          %v4599 = vpop.f32.mrf.mxu0
          %v4600 = vadd.f32 0.0, %v4599
          %v4601 = vpop.f32.mrf.mxu0
          %v4602 = vpop.f32.mrf.mxu0
          %v4603 = vadd.f32 0.0, %v4602
          %v4604 = vpop.f32.mrf.mxu0
          %4605 = vdwg.mxu0
          %v4622 = vunpack.c.l.b16 %v1593
          %v4623 = vunpack.c.l.b16 %v1594
          %v4624 = vunpack.c.l.b16 %v1595
          %v4625 = vunpack.c.l.b16 %v1596
          %v4626 = vunpack.c.l.b16 %v1597
          %v4627 = vunpack.c.l.b16 %v1598
          %v4628 = vunpack.c.l.b16 %v1599
          %v4629 = vunpack.c.l.b16 %v1600
          %v4630 = vunpack.c.l.b16 %v1601
          %v4631 = vunpack.c.l.b16 %v1602
          %v4632 = vunpack.c.l.b16 %v1603
          %v4633 = vunpack.c.l.b16 %v1604
          %v4634 = vunpack.c.l.b16 %v1605
          %v4635 = vunpack.c.l.b16 %v1606
          %v4636 = vunpack.c.l.b16 %v1607
          %v4637 = vunpack.c.l.b16 %v1608
          %v4638 = vpack.c.b16 %v4623, %v4622
          %v4639 = vpack.c.b16 %v4625, %v4624
          %v4640 = vpack.c.b16 %v4627, %v4626
          %v4641 = vpack.c.b16 %v4629, %v4628
          %v4642 = vpack.c.b16 %v4631, %v4630
          %v4643 = vpack.c.b16 %v4633, %v4632
          %v4644 = vpack.c.b16 %v4635, %v4634
          %v4645 = vpack.c.b16 %v4637, %v4636
          %4654 = vmatprep.subr.bf16.mxu0 0
          %4655 = vmatpush1.bf16.msra.mxu0 %v4645
          %4656 = vmatprep.subr.bf16.mxu0 0
          %4657 = vmatpush1.bf16.msra.mxu0 %v4644
          %4658 = vmatprep.subr.bf16.mxu0 0
          %4659 = vmatpush1.bf16.msra.mxu0 %v4643
          %4660 = vmatprep.subr.bf16.mxu0 0
          %4661 = vmatpush1.bf16.msra.mxu0 %v4642
          %4662 = vmatprep.subr.bf16.mxu0 0
          %4663 = vmatpush1.bf16.msra.mxu0 %v4641
          %4664 = vmatprep.subr.bf16.mxu0 0
          %4665 = vmatpush1.bf16.msra.mxu0 %v4640
          %4666 = vmatprep.subr.bf16.mxu0 0
          %4667 = vmatpush1.bf16.msra.mxu0 %v4639
          %4668 = vmatprep.subr.bf16.mxu0 0
          %4669 = vmatpush1.bf16.msra.mxu0 %v4638
          %4670 = vmatprep.subr.bf16.mxu0 0
          %4671 = vmatpush2.bf16.msra.mxu0 0
          %4672 = vmatprep.subr.bf16.mxu0 0
          %4673 = vmatpush2.bf16.msra.mxu0 0
          %4674 = vmatprep.subr.bf16.mxu0 0
          %4675 = vmatpush2.bf16.msra.mxu0 0
          %4676 = vmatprep.subr.bf16.mxu0 0
          %4677 = vmatpush2.bf16.msra.mxu0 0
          %4678 = vmatprep.subr.bf16.mxu0 0
          %4679 = vmatpush2.bf16.msra.mxu0 0
          %4680 = vmatprep.subr.bf16.mxu0 0
          %4681 = vmatpush2.bf16.msra.mxu0 0
          %4682 = vmatprep.subr.bf16.mxu0 0
          %4683 = vmatpush2.bf16.msra.mxu0 0
          %4684 = vmatprep.subr.bf16.mxu0 0
          %4685 = vmatpush2.bf16.msra.mxu0 0
          %4686 = vmatprep.mubr.bf16.mxu0 0
          %4687 = vmatmul.mubr.bf16.gmra.mxu0 %v4437
          %v4688 = vpop.f32.mrf.mxu0
          %v4689 = vadd.f32 0.0, %v4688
          %v4690 = vpop.f32.mrf.mxu0
          %v4691 = vpop.f32.mrf.mxu0
          %v4692 = vadd.f32 0.0, %v4691
          %v4693 = vpop.f32.mrf.mxu0
          %4694 = vmatprep.mubr.bf16.mxu0 0
          %4695 = vmatmul.mubr.bf16.gmra.mxu0 %v4438
          %v4696 = vpop.f32.mrf.mxu0
          %v4697 = vadd.f32 0.0, %v4696
          %v4698 = vpop.f32.mrf.mxu0
          %v4699 = vpop.f32.mrf.mxu0
          %v4700 = vadd.f32 0.0, %v4699
          %v4701 = vpop.f32.mrf.mxu0
          %4702 = vmatprep.mubr.bf16.mxu0 0
          %4703 = vmatmul.mubr.bf16.gmra.mxu0 %v4439
          %v4704 = vpop.f32.mrf.mxu0
          %v4705 = vadd.f32 0.0, %v4704
          %v4706 = vpop.f32.mrf.mxu0
          %v4707 = vpop.f32.mrf.mxu0
          %v4708 = vadd.f32 0.0, %v4707
          %v4709 = vpop.f32.mrf.mxu0
          %4710 = vmatprep.mubr.bf16.mxu0 0
          %4711 = vmatmul.mubr.bf16.gmra.mxu0 %v4440
          %v4712 = vpop.f32.mrf.mxu0
          %v4713 = vadd.f32 0.0, %v4712
          %v4714 = vpop.f32.mrf.mxu0
          %v4715 = vpop.f32.mrf.mxu0
          %v4716 = vadd.f32 0.0, %v4715
          %v4717 = vpop.f32.mrf.mxu0
          %4718 = vmatprep.mubr.bf16.mxu0 0
          %4719 = vmatmul.mubr.bf16.gmra.mxu0 %v4441
          %v4720 = vpop.f32.mrf.mxu0
          %v4721 = vadd.f32 0.0, %v4720
          %v4722 = vpop.f32.mrf.mxu0
          %v4723 = vpop.f32.mrf.mxu0
          %v4724 = vadd.f32 0.0, %v4723
          %v4725 = vpop.f32.mrf.mxu0
          %4726 = vmatprep.mubr.bf16.mxu0 0
          %4727 = vmatmul.mubr.bf16.gmra.mxu0 %v4442
          %v4728 = vpop.f32.mrf.mxu0
          %v4729 = vadd.f32 0.0, %v4728
          %v4730 = vpop.f32.mrf.mxu0
          %v4731 = vpop.f32.mrf.mxu0
          %v4732 = vadd.f32 0.0, %v4731
          %v4733 = vpop.f32.mrf.mxu0
          %4734 = vmatprep.mubr.bf16.mxu0 0
          %4735 = vmatmul.mubr.bf16.gmra.mxu0 %v4443
          %v4736 = vpop.f32.mrf.mxu0
          %v4737 = vadd.f32 0.0, %v4736
          %v4738 = vpop.f32.mrf.mxu0
          %v4739 = vpop.f32.mrf.mxu0
          %v4740 = vadd.f32 0.0, %v4739
          %v4741 = vpop.f32.mrf.mxu0
          %4742 = vmatprep.mubr.bf16.mxu0 0
          %4743 = vmatmul.mubr.bf16.gmra.mxu0 %v4444
          %v4744 = vpop.f32.mrf.mxu0
          %v4745 = vadd.f32 0.0, %v4744
          %v4746 = vpop.f32.mrf.mxu0
          %v4747 = vpop.f32.mrf.mxu0
          %v4748 = vadd.f32 0.0, %v4747
          %v4749 = vpop.f32.mrf.mxu0
          %4750 = vdwg.mxu0
          %v4767 = vunpack.c.l.b16 %v1609
          %v4768 = vunpack.c.l.b16 %v1610
          %v4769 = vunpack.c.l.b16 %v1611
          %v4770 = vunpack.c.l.b16 %v1612
          %v4771 = vunpack.c.l.b16 %v1613
          %v4772 = vunpack.c.l.b16 %v1614
          %v4773 = vunpack.c.l.b16 %v1615
          %v4774 = vunpack.c.l.b16 %v1616
          %v4775 = vunpack.c.l.b16 %v1617
          %v4776 = vunpack.c.l.b16 %v1618
          %v4777 = vunpack.c.l.b16 %v1619
          %v4778 = vunpack.c.l.b16 %v1620
          %v4779 = vunpack.c.l.b16 %v1621
          %v4780 = vunpack.c.l.b16 %v1622
          %v4781 = vunpack.c.l.b16 %v1623
          %v4782 = vunpack.c.l.b16 %v1624
          %v4783 = vpack.c.b16 %v4768, %v4767
          %v4784 = vpack.c.b16 %v4770, %v4769
          %v4785 = vpack.c.b16 %v4772, %v4771
          %v4786 = vpack.c.b16 %v4774, %v4773
          %v4787 = vpack.c.b16 %v4776, %v4775
          %v4788 = vpack.c.b16 %v4778, %v4777
          %v4789 = vpack.c.b16 %v4780, %v4779
          %v4790 = vpack.c.b16 %v4782, %v4781
          %4799 = vmatprep.subr.bf16.mxu0 0
          %4800 = vmatpush1.bf16.msra.mxu0 %v4790
          %4801 = vmatprep.subr.bf16.mxu0 0
          %4802 = vmatpush1.bf16.msra.mxu0 %v4789
          %4803 = vmatprep.subr.bf16.mxu0 0
          %4804 = vmatpush1.bf16.msra.mxu0 %v4788
          %4805 = vmatprep.subr.bf16.mxu0 0
          %4806 = vmatpush1.bf16.msra.mxu0 %v4787
          %4807 = vmatprep.subr.bf16.mxu0 0
          %4808 = vmatpush1.bf16.msra.mxu0 %v4786
          %4809 = vmatprep.subr.bf16.mxu0 0
          %4810 = vmatpush1.bf16.msra.mxu0 %v4785
          %4811 = vmatprep.subr.bf16.mxu0 0
          %4812 = vmatpush1.bf16.msra.mxu0 %v4784
          %4813 = vmatprep.subr.bf16.mxu0 0
          %4814 = vmatpush1.bf16.msra.mxu0 %v4783
          %4815 = vmatprep.subr.bf16.mxu0 0
          %4816 = vmatpush2.bf16.msra.mxu0 0
          %4817 = vmatprep.subr.bf16.mxu0 0
          %4818 = vmatpush2.bf16.msra.mxu0 0
          %4819 = vmatprep.subr.bf16.mxu0 0
          %4820 = vmatpush2.bf16.msra.mxu0 0
          %4821 = vmatprep.subr.bf16.mxu0 0
          %4822 = vmatpush2.bf16.msra.mxu0 0
          %4823 = vmatprep.subr.bf16.mxu0 0
          %4824 = vmatpush2.bf16.msra.mxu0 0
          %4825 = vmatprep.subr.bf16.mxu0 0
          %4826 = vmatpush2.bf16.msra.mxu0 0
          %4827 = vmatprep.subr.bf16.mxu0 0
          %4828 = vmatpush2.bf16.msra.mxu0 0
          %4829 = vmatprep.subr.bf16.mxu0 0
          %4830 = vmatpush2.bf16.msra.mxu0 0
          %4831 = vmatprep.mubr.bf16.mxu0 0
          %4832 = vmatmul.mubr.bf16.gmra.mxu0 %v4445
          %v4833 = vpop.f32.mrf.mxu0
          %v4834 = vadd.f32 0.0, %v4833
          %v4835 = vpop.f32.mrf.mxu0
          %v4836 = vpop.f32.mrf.mxu0
          %v4837 = vadd.f32 0.0, %v4836
          %v4838 = vpop.f32.mrf.mxu0
          %4839 = vmatprep.mubr.bf16.mxu0 0
          %4840 = vmatmul.mubr.bf16.gmra.mxu0 %v4446
          %v4841 = vpop.f32.mrf.mxu0
          %v4842 = vadd.f32 0.0, %v4841
          %v4843 = vpop.f32.mrf.mxu0
          %v4844 = vpop.f32.mrf.mxu0
          %v4845 = vadd.f32 0.0, %v4844
          %v4846 = vpop.f32.mrf.mxu0
          %4847 = vmatprep.mubr.bf16.mxu0 0
          %4848 = vmatmul.mubr.bf16.gmra.mxu0 %v4447
          %v4849 = vpop.f32.mrf.mxu0
          %v4850 = vadd.f32 0.0, %v4849
          %v4851 = vpop.f32.mrf.mxu0
          %v4852 = vpop.f32.mrf.mxu0
          %v4853 = vadd.f32 0.0, %v4852
          %v4854 = vpop.f32.mrf.mxu0
          %4855 = vmatprep.mubr.bf16.mxu0 0
          %4856 = vmatmul.mubr.bf16.gmra.mxu0 %v4448
          %v4857 = vpop.f32.mrf.mxu0
          %v4858 = vadd.f32 0.0, %v4857
          %v4859 = vpop.f32.mrf.mxu0
          %v4860 = vpop.f32.mrf.mxu0
          %v4861 = vadd.f32 0.0, %v4860
          %v4862 = vpop.f32.mrf.mxu0
          %4863 = vmatprep.mubr.bf16.mxu0 0
          %4864 = vmatmul.mubr.bf16.gmra.mxu0 %v4449
          %v4865 = vpop.f32.mrf.mxu0
          %v4866 = vadd.f32 0.0, %v4865
          %v4867 = vpop.f32.mrf.mxu0
          %v4868 = vpop.f32.mrf.mxu0
          %v4869 = vadd.f32 0.0, %v4868
          %v4870 = vpop.f32.mrf.mxu0
          %4871 = vmatprep.mubr.bf16.mxu0 0
          %4872 = vmatmul.mubr.bf16.gmra.mxu0 %v4450
          %v4873 = vpop.f32.mrf.mxu0
          %v4874 = vadd.f32 0.0, %v4873
          %v4875 = vpop.f32.mrf.mxu0
          %v4876 = vpop.f32.mrf.mxu0
          %v4877 = vadd.f32 0.0, %v4876
          %v4878 = vpop.f32.mrf.mxu0
          %4879 = vmatprep.mubr.bf16.mxu0 0
          %4880 = vmatmul.mubr.bf16.gmra.mxu0 %v4451
          %v4881 = vpop.f32.mrf.mxu0
          %v4882 = vadd.f32 0.0, %v4881
          %v4883 = vpop.f32.mrf.mxu0
          %v4884 = vpop.f32.mrf.mxu0
          %v4885 = vadd.f32 0.0, %v4884
          %v4886 = vpop.f32.mrf.mxu0
          %4887 = vmatprep.mubr.bf16.mxu0 0
          %4888 = vmatmul.mubr.bf16.gmra.mxu0 %v4452
          %v4889 = vpop.f32.mrf.mxu0
          %v4890 = vadd.f32 0.0, %v4889
          %v4891 = vpop.f32.mrf.mxu0
          %v4892 = vpop.f32.mrf.mxu0
          %v4893 = vadd.f32 0.0, %v4892
          %v4894 = vpop.f32.mrf.mxu0
          %4895 = vdwg.mxu0
          %v4912 = vunpack.c.l.b16 %v1625
          %v4913 = vunpack.c.l.b16 %v1626
          %v4914 = vunpack.c.l.b16 %v1627
          %v4915 = vunpack.c.l.b16 %v1628
          %v4916 = vunpack.c.l.b16 %v1629
          %v4917 = vunpack.c.l.b16 %v1630
          %v4918 = vunpack.c.l.b16 %v1631
          %v4919 = vunpack.c.l.b16 %v1632
          %v4920 = vunpack.c.l.b16 %v1633
          %v4921 = vunpack.c.l.b16 %v1634
          %v4922 = vunpack.c.l.b16 %v1635
          %v4923 = vunpack.c.l.b16 %v1636
          %v4924 = vunpack.c.l.b16 %v1637
          %v4925 = vunpack.c.l.b16 %v1638
          %v4926 = vunpack.c.l.b16 %v1639
          %v4927 = vunpack.c.l.b16 %v1640
          %v4928 = vpack.c.b16 %v4913, %v4912
          %v4929 = vpack.c.b16 %v4915, %v4914
          %v4930 = vpack.c.b16 %v4917, %v4916
          %v4931 = vpack.c.b16 %v4919, %v4918
          %v4932 = vpack.c.b16 %v4921, %v4920
          %v4933 = vpack.c.b16 %v4923, %v4922
          %v4934 = vpack.c.b16 %v4925, %v4924
          %v4935 = vpack.c.b16 %v4927, %v4926
          %4944 = vmatprep.subr.bf16.mxu0 0
          %4945 = vmatpush1.bf16.msra.mxu0 %v4935
          %4946 = vmatprep.subr.bf16.mxu0 0
          %4947 = vmatpush1.bf16.msra.mxu0 %v4934
          %4948 = vmatprep.subr.bf16.mxu0 0
          %4949 = vmatpush1.bf16.msra.mxu0 %v4933
          %4950 = vmatprep.subr.bf16.mxu0 0
          %4951 = vmatpush1.bf16.msra.mxu0 %v4932
          %4952 = vmatprep.subr.bf16.mxu0 0
          %4953 = vmatpush1.bf16.msra.mxu0 %v4931
          %4954 = vmatprep.subr.bf16.mxu0 0
          %4955 = vmatpush1.bf16.msra.mxu0 %v4930
          %4956 = vmatprep.subr.bf16.mxu0 0
          %4957 = vmatpush1.bf16.msra.mxu0 %v4929
          %4958 = vmatprep.subr.bf16.mxu0 0
          %4959 = vmatpush1.bf16.msra.mxu0 %v4928
          %4960 = vmatprep.subr.bf16.mxu0 0
          %4961 = vmatpush2.bf16.msra.mxu0 0
          %4962 = vmatprep.subr.bf16.mxu0 0
          %4963 = vmatpush2.bf16.msra.mxu0 0
          %4964 = vmatprep.subr.bf16.mxu0 0
          %4965 = vmatpush2.bf16.msra.mxu0 0
          %4966 = vmatprep.subr.bf16.mxu0 0
          %4967 = vmatpush2.bf16.msra.mxu0 0
          %4968 = vmatprep.subr.bf16.mxu0 0
          %4969 = vmatpush2.bf16.msra.mxu0 0
          %4970 = vmatprep.subr.bf16.mxu0 0
          %4971 = vmatpush2.bf16.msra.mxu0 0
          %4972 = vmatprep.subr.bf16.mxu0 0
          %4973 = vmatpush2.bf16.msra.mxu0 0
          %4974 = vmatprep.subr.bf16.mxu0 0
          %4975 = vmatpush2.bf16.msra.mxu0 0
          %4976 = vmatprep.mubr.bf16.mxu0 0
          %4977 = vmatmul.mubr.bf16.gmra.mxu0 %v4453
          %v4978 = vpop.f32.mrf.mxu0
          %v4979 = vadd.f32 0.0, %v4978
          %v4980 = vpop.f32.mrf.mxu0
          %v4981 = vpop.f32.mrf.mxu0
          %v4982 = vadd.f32 0.0, %v4981
          %v4983 = vpop.f32.mrf.mxu0
          %4984 = vmatprep.mubr.bf16.mxu0 0
          %4985 = vmatmul.mubr.bf16.gmra.mxu0 %v4454
          %v4986 = vpop.f32.mrf.mxu0
          %v4987 = vadd.f32 0.0, %v4986
          %v4988 = vpop.f32.mrf.mxu0
          %v4989 = vpop.f32.mrf.mxu0
          %v4990 = vadd.f32 0.0, %v4989
          %v4991 = vpop.f32.mrf.mxu0
          %4992 = vmatprep.mubr.bf16.mxu0 0
          %4993 = vmatmul.mubr.bf16.gmra.mxu0 %v4455
          %v4994 = vpop.f32.mrf.mxu0
          %v4995 = vadd.f32 0.0, %v4994
          %v4996 = vpop.f32.mrf.mxu0
          %v4997 = vpop.f32.mrf.mxu0
          %v4998 = vadd.f32 0.0, %v4997
          %v4999 = vpop.f32.mrf.mxu0
          %5000 = vmatprep.mubr.bf16.mxu0 0
          %5001 = vmatmul.mubr.bf16.gmra.mxu0 %v4456
          %v5002 = vpop.f32.mrf.mxu0
          %v5003 = vadd.f32 0.0, %v5002
          %v5004 = vpop.f32.mrf.mxu0
          %v5005 = vpop.f32.mrf.mxu0
          %v5006 = vadd.f32 0.0, %v5005
          %v5007 = vpop.f32.mrf.mxu0
          %5008 = vmatprep.mubr.bf16.mxu0 0
          %5009 = vmatmul.mubr.bf16.gmra.mxu0 %v4457
          %v5010 = vpop.f32.mrf.mxu0
          %v5011 = vadd.f32 0.0, %v5010
          %v5012 = vpop.f32.mrf.mxu0
          %v5013 = vpop.f32.mrf.mxu0
          %v5014 = vadd.f32 0.0, %v5013
          %v5015 = vpop.f32.mrf.mxu0
          %5016 = vmatprep.mubr.bf16.mxu0 0
          %5017 = vmatmul.mubr.bf16.gmra.mxu0 %v4458
          %v5018 = vpop.f32.mrf.mxu0
          %v5019 = vadd.f32 0.0, %v5018
          %v5020 = vpop.f32.mrf.mxu0
          %v5021 = vpop.f32.mrf.mxu0
          %v5022 = vadd.f32 0.0, %v5021
          %v5023 = vpop.f32.mrf.mxu0
          %5024 = vmatprep.mubr.bf16.mxu0 0
          %5025 = vmatmul.mubr.bf16.gmra.mxu0 %v4459
          %v5026 = vpop.f32.mrf.mxu0
          %v5027 = vadd.f32 0.0, %v5026
          %v5028 = vpop.f32.mrf.mxu0
          %v5029 = vpop.f32.mrf.mxu0
          %v5030 = vadd.f32 0.0, %v5029
          %v5031 = vpop.f32.mrf.mxu0
          %5032 = vmatprep.mubr.bf16.mxu0 0
          %5033 = vmatmul.mubr.bf16.gmra.mxu0 %v4460
          %v5034 = vpop.f32.mrf.mxu0
          %v5035 = vadd.f32 0.0, %v5034
          %v5036 = vpop.f32.mrf.mxu0
          %v5037 = vpop.f32.mrf.mxu0
          %v5038 = vadd.f32 0.0, %v5037
          %v5039 = vpop.f32.mrf.mxu0
          %5040 = vdwg.mxu0
          %v5041 = vadd.f32 %v4365, %v4544
          %v5042 = vadd.f32 %v4366, %v4547
          %v5043 = vadd.f32 %v4367, %v4552
          %v5044 = vadd.f32 %v4368, %v4555
          %v5045 = vadd.f32 %v4369, %v4560
          %v5046 = vadd.f32 %v4370, %v4563
          %v5047 = vadd.f32 %v4371, %v4568
          %v5048 = vadd.f32 %v4372, %v4571
          %v5049 = vadd.f32 %v4373, %v4576
          %v5050 = vadd.f32 %v4374, %v4579
          %v5051 = vadd.f32 %v4375, %v4584
          %v5052 = vadd.f32 %v4376, %v4587
          %v5053 = vadd.f32 %v4377, %v4592
          %v5054 = vadd.f32 %v4378, %v4595
          %v5055 = vadd.f32 %v4379, %v4600
          %v5056 = vadd.f32 %v4380, %v4603
          %v5057 = vadd.f32 %v4381, %v4689
          %v5058 = vadd.f32 %v4382, %v4692
          %v5059 = vadd.f32 %v4383, %v4697
          %v5060 = vadd.f32 %v4384, %v4700
          %v5061 = vadd.f32 %v4385, %v4705
          %v5062 = vadd.f32 %v4386, %v4708
          %v5063 = vadd.f32 %v4387, %v4713
          %v5064 = vadd.f32 %v4388, %v4716
          %v5065 = vadd.f32 %v4389, %v4721
          %v5066 = vadd.f32 %v4390, %v4724
          %v5067 = vadd.f32 %v4391, %v4729
          %v5068 = vadd.f32 %v4392, %v4732
          %v5069 = vadd.f32 %v4393, %v4737
          %v5070 = vadd.f32 %v4394, %v4740
          %v5071 = vadd.f32 %v4395, %v4745
          %v5072 = vadd.f32 %v4396, %v4748
          %v5073 = vadd.f32 %v4397, %v4834
          %v5074 = vadd.f32 %v4398, %v4837
          %v5075 = vadd.f32 %v4399, %v4842
          %v5076 = vadd.f32 %v4400, %v4845
          %v5077 = vadd.f32 %v4401, %v4850
          %v5078 = vadd.f32 %v4402, %v4853
          %v5079 = vadd.f32 %v4403, %v4858
          %v5080 = vadd.f32 %v4404, %v4861
          %v5081 = vadd.f32 %v4405, %v4866
          %v5082 = vadd.f32 %v4406, %v4869
          %v5083 = vadd.f32 %v4407, %v4874
          %v5084 = vadd.f32 %v4408, %v4877
          %v5085 = vadd.f32 %v4409, %v4882
          %v5086 = vadd.f32 %v4410, %v4885
          %v5087 = vadd.f32 %v4411, %v4890
          %v5088 = vadd.f32 %v4412, %v4893
          %v5089 = vadd.f32 %v4413, %v4979
          %v5090 = vadd.f32 %v4414, %v4982
          %v5091 = vadd.f32 %v4415, %v4987
          %v5092 = vadd.f32 %v4416, %v4990
          %v5093 = vadd.f32 %v4417, %v4995
          %v5094 = vadd.f32 %v4418, %v4998
          %v5095 = vadd.f32 %v4419, %v5003
          %v5096 = vadd.f32 %v4420, %v5006
          %v5097 = vadd.f32 %v4421, %v5011
          %v5098 = vadd.f32 %v4422, %v5014
          %v5099 = vadd.f32 %v4423, %v5019
          %v5100 = vadd.f32 %v4424, %v5022
          %v5101 = vadd.f32 %v4425, %v5027
          %v5102 = vadd.f32 %v4426, %v5030
          %v5103 = vadd.f32 %v4427, %v5035
          %v5104 = vadd.f32 %v4428, %v5038
          %5105 = vst.msk [vmem:[#allocation4] sm:$0xff] %vm1935, %v5041
          %5106 = vst.msk [vmem:[#allocation4 + $0x8] sm:$0xff] %vm1935, %v5042
          %5107 = vst.msk [vmem:[#allocation4 + $0x10] sm:$0xff] %vm1935, %v5043
          %5108 = vst.msk [vmem:[#allocation4 + $0x18] sm:$0xff] %vm1935, %v5044
          %5109 = vst.msk [vmem:[#allocation4 + $0x20] sm:$0xff] %vm1935, %v5045
          %5110 = vst.msk [vmem:[#allocation4 + $0x28] sm:$0xff] %vm1935, %v5046
          %5111 = vst.msk [vmem:[#allocation4 + $0x30] sm:$0xff] %vm1935, %v5047
          %5112 = vst.msk [vmem:[#allocation4 + $0x38] sm:$0xff] %vm1935, %v5048
          %5113 = vst.msk [vmem:[#allocation4 + $0x40] sm:$0xff] %vm1935, %v5049
          %5114 = vst.msk [vmem:[#allocation4 + $0x48] sm:$0xff] %vm1935, %v5050
          %5115 = vst.msk [vmem:[#allocation4 + $0x50] sm:$0xff] %vm1935, %v5051
          %5116 = vst.msk [vmem:[#allocation4 + $0x58] sm:$0xff] %vm1935, %v5052
          %5117 = vst.msk [vmem:[#allocation4 + $0x60] sm:$0xff] %vm1935, %v5053
          %5118 = vst.msk [vmem:[#allocation4 + $0x68] sm:$0xff] %vm1935, %v5054
          %5119 = vst.msk [vmem:[#allocation4 + $0x70] sm:$0xff] %vm1935, %v5055
          %5120 = vst.msk [vmem:[#allocation4 + $0x78] sm:$0xff] %vm1935, %v5056
          %5121 = vst.msk [vmem:[#allocation4 + $0x80] sm:$0xff] %vm1935, %v5057
          %5122 = vst.msk [vmem:[#allocation4 + $0x88] sm:$0xff] %vm1935, %v5058
          %5123 = vst.msk [vmem:[#allocation4 + $0x90] sm:$0xff] %vm1935, %v5059
          %5124 = vst.msk [vmem:[#allocation4 + $0x98] sm:$0xff] %vm1935, %v5060
          %5125 = vst.msk [vmem:[#allocation4 + $0xa0] sm:$0xff] %vm1935, %v5061
          %5126 = vst.msk [vmem:[#allocation4 + $0xa8] sm:$0xff] %vm1935, %v5062
          %5127 = vst.msk [vmem:[#allocation4 + $0xb0] sm:$0xff] %vm1935, %v5063
          %5128 = vst.msk [vmem:[#allocation4 + $0xb8] sm:$0xff] %vm1935, %v5064
          %5129 = vst.msk [vmem:[#allocation4 + $0xc0] sm:$0xff] %vm1935, %v5065
          %5130 = vst.msk [vmem:[#allocation4 + $0xc8] sm:$0xff] %vm1935, %v5066
          %5131 = vst.msk [vmem:[#allocation4 + $0xd0] sm:$0xff] %vm1935, %v5067
          %5132 = vst.msk [vmem:[#allocation4 + $0xd8] sm:$0xff] %vm1935, %v5068
          %5133 = vst.msk [vmem:[#allocation4 + $0xe0] sm:$0xff] %vm1935, %v5069
          %5134 = vst.msk [vmem:[#allocation4 + $0xe8] sm:$0xff] %vm1935, %v5070
          %5135 = vst.msk [vmem:[#allocation4 + $0xf0] sm:$0xff] %vm1935, %v5071
          %5136 = vst.msk [vmem:[#allocation4 + $0xf8] sm:$0xff] %vm1935, %v5072
          %5137 = vst.msk [vmem:[#allocation4 + $0x100] sm:$0xff] %vm1935, %v5073
          %5138 = vst.msk [vmem:[#allocation4 + $0x108] sm:$0xff] %vm1935, %v5074
          %5139 = vst.msk [vmem:[#allocation4 + $0x110] sm:$0xff] %vm1935, %v5075
          %5140 = vst.msk [vmem:[#allocation4 + $0x118] sm:$0xff] %vm1935, %v5076
          %5141 = vst.msk [vmem:[#allocation4 + $0x120] sm:$0xff] %vm1935, %v5077
          %5142 = vst.msk [vmem:[#allocation4 + $0x128] sm:$0xff] %vm1935, %v5078
          %5143 = vst.msk [vmem:[#allocation4 + $0x130] sm:$0xff] %vm1935, %v5079
          %5144 = vst.msk [vmem:[#allocation4 + $0x138] sm:$0xff] %vm1935, %v5080
          %5145 = vst.msk [vmem:[#allocation4 + $0x140] sm:$0xff] %vm1935, %v5081
          %5146 = vst.msk [vmem:[#allocation4 + $0x148] sm:$0xff] %vm1935, %v5082
          %5147 = vst.msk [vmem:[#allocation4 + $0x150] sm:$0xff] %vm1935, %v5083
          %5148 = vst.msk [vmem:[#allocation4 + $0x158] sm:$0xff] %vm1935, %v5084
          %5149 = vst.msk [vmem:[#allocation4 + $0x160] sm:$0xff] %vm1935, %v5085
          %5150 = vst.msk [vmem:[#allocation4 + $0x168] sm:$0xff] %vm1935, %v5086
          %5151 = vst.msk [vmem:[#allocation4 + $0x170] sm:$0xff] %vm1935, %v5087
          %5152 = vst.msk [vmem:[#allocation4 + $0x178] sm:$0xff] %vm1935, %v5088
          %5153 = vst.msk [vmem:[#allocation4 + $0x180] sm:$0xff] %vm1935, %v5089
          %5154 = vst.msk [vmem:[#allocation4 + $0x188] sm:$0xff] %vm1935, %v5090
          %5155 = vst.msk [vmem:[#allocation4 + $0x190] sm:$0xff] %vm1935, %v5091
          %5156 = vst.msk [vmem:[#allocation4 + $0x198] sm:$0xff] %vm1935, %v5092
          %5157 = vst.msk [vmem:[#allocation4 + $0x1a0] sm:$0xff] %vm1935, %v5093
          %5158 = vst.msk [vmem:[#allocation4 + $0x1a8] sm:$0xff] %vm1935, %v5094
          %5159 = vst.msk [vmem:[#allocation4 + $0x1b0] sm:$0xff] %vm1935, %v5095
          %5160 = vst.msk [vmem:[#allocation4 + $0x1b8] sm:$0xff] %vm1935, %v5096
          %5161 = vst.msk [vmem:[#allocation4 + $0x1c0] sm:$0xff] %vm1935, %v5097
          %5162 = vst.msk [vmem:[#allocation4 + $0x1c8] sm:$0xff] %vm1935, %v5098
          %5163 = vst.msk [vmem:[#allocation4 + $0x1d0] sm:$0xff] %vm1935, %v5099
          %5164 = vst.msk [vmem:[#allocation4 + $0x1d8] sm:$0xff] %vm1935, %v5100
          %5165 = vst.msk [vmem:[#allocation4 + $0x1e0] sm:$0xff] %vm1935, %v5101
          %5166 = vst.msk [vmem:[#allocation4 + $0x1e8] sm:$0xff] %vm1935, %v5102
          %5167 = vst.msk [vmem:[#allocation4 + $0x1f0] sm:$0xff] %vm1935, %v5103
          %5168 = vst.msk [vmem:[#allocation4 + $0x1f8] sm:$0xff] %vm1935, %v5104
          %5169 = vst.msk [vmem:[#allocation2] sm:$0xff] %vm3916, %v2828
          %5170 = vst.msk [vmem:[#allocation2 + $0x8] sm:$0xff] %vm3916, %v2829
          %5171 = vst.msk [vmem:[#allocation2 + $0x10] sm:$0xff] %vm3916, %v2830
          %5172 = vst.msk [vmem:[#allocation2 + $0x18] sm:$0xff] %vm3916, %v2831
          %5173 = vst.msk [vmem:[#allocation2 + $0x20] sm:$0xff] %vm3916, %v2832
          %5174 = vst.msk [vmem:[#allocation2 + $0x28] sm:$0xff] %vm3916, %v2833
          %5175 = vst.msk [vmem:[#allocation2 + $0x30] sm:$0xff] %vm3916, %v2834
          %5176 = vst.msk [vmem:[#allocation2 + $0x38] sm:$0xff] %vm3916, %v2835
          %5177 = vst.msk [vmem:[#allocation2 + $0x40] sm:$0xff] %vm3916, %v2836
          %5178 = vst.msk [vmem:[#allocation2 + $0x48] sm:$0xff] %vm3916, %v2837
          %5179 = vst.msk [vmem:[#allocation2 + $0x50] sm:$0xff] %vm3916, %v2838
          %5180 = vst.msk [vmem:[#allocation2 + $0x58] sm:$0xff] %vm3916, %v2839
          %5181 = vst.msk [vmem:[#allocation2 + $0x60] sm:$0xff] %vm3916, %v2840
          %5182 = vst.msk [vmem:[#allocation2 + $0x68] sm:$0xff] %vm3916, %v2841
          %5183 = vst.msk [vmem:[#allocation2 + $0x70] sm:$0xff] %vm3916, %v2842
          %5184 = vst.msk [vmem:[#allocation2 + $0x78] sm:$0xff] %vm3916, %v2843
          %5185 = vst.msk [vmem:[#allocation2 + $0x80] sm:$0xff] %vm3916, %v2844
          %5186 = vst.msk [vmem:[#allocation2 + $0x88] sm:$0xff] %vm3916, %v2845
          %5187 = vst.msk [vmem:[#allocation2 + $0x90] sm:$0xff] %vm3916, %v2846
          %5188 = vst.msk [vmem:[#allocation2 + $0x98] sm:$0xff] %vm3916, %v2847
          %5189 = vst.msk [vmem:[#allocation2 + $0xa0] sm:$0xff] %vm3916, %v2848
          %5190 = vst.msk [vmem:[#allocation2 + $0xa8] sm:$0xff] %vm3916, %v2849
          %5191 = vst.msk [vmem:[#allocation2 + $0xb0] sm:$0xff] %vm3916, %v2850
          %5192 = vst.msk [vmem:[#allocation2 + $0xb8] sm:$0xff] %vm3916, %v2851
          %5193 = vst.msk [vmem:[#allocation2 + $0xc0] sm:$0xff] %vm3916, %v2852
          %5194 = vst.msk [vmem:[#allocation2 + $0xc8] sm:$0xff] %vm3916, %v2853
          %5195 = vst.msk [vmem:[#allocation2 + $0xd0] sm:$0xff] %vm3916, %v2854
          %5196 = vst.msk [vmem:[#allocation2 + $0xd8] sm:$0xff] %vm3916, %v2855
          %5197 = vst.msk [vmem:[#allocation2 + $0xe0] sm:$0xff] %vm3916, %v2856
          %5198 = vst.msk [vmem:[#allocation2 + $0xe8] sm:$0xff] %vm3916, %v2857
          %5199 = vst.msk [vmem:[#allocation2 + $0xf0] sm:$0xff] %vm3916, %v2858
          %5200 = vst.msk [vmem:[#allocation2 + $0xf8] sm:$0xff] %vm3916, %v2859
          %5201 = vst.msk [vmem:[#allocation2 + $0x100] sm:$0xff] %vm3916, %v2860
          %5202 = vst.msk [vmem:[#allocation2 + $0x108] sm:$0xff] %vm3916, %v2861
          %5203 = vst.msk [vmem:[#allocation2 + $0x110] sm:$0xff] %vm3916, %v2862
          %5204 = vst.msk [vmem:[#allocation2 + $0x118] sm:$0xff] %vm3916, %v2863
          %5205 = vst.msk [vmem:[#allocation2 + $0x120] sm:$0xff] %vm3916, %v2864
          %5206 = vst.msk [vmem:[#allocation2 + $0x128] sm:$0xff] %vm3916, %v2865
          %5207 = vst.msk [vmem:[#allocation2 + $0x130] sm:$0xff] %vm3916, %v2866
          %5208 = vst.msk [vmem:[#allocation2 + $0x138] sm:$0xff] %vm3916, %v2867
          %5209 = vst.msk [vmem:[#allocation2 + $0x140] sm:$0xff] %vm3916, %v2868
          %5210 = vst.msk [vmem:[#allocation2 + $0x148] sm:$0xff] %vm3916, %v2869
          %5211 = vst.msk [vmem:[#allocation2 + $0x150] sm:$0xff] %vm3916, %v2870
          %5212 = vst.msk [vmem:[#allocation2 + $0x158] sm:$0xff] %vm3916, %v2871
          %5213 = vst.msk [vmem:[#allocation2 + $0x160] sm:$0xff] %vm3916, %v2872
          %5214 = vst.msk [vmem:[#allocation2 + $0x168] sm:$0xff] %vm3916, %v2873
          %5215 = vst.msk [vmem:[#allocation2 + $0x170] sm:$0xff] %vm3916, %v2874
          %5216 = vst.msk [vmem:[#allocation2 + $0x178] sm:$0xff] %vm3916, %v2875
          %5217 = vst.msk [vmem:[#allocation2 + $0x180] sm:$0xff] %vm3916, %v2876
          %5218 = vst.msk [vmem:[#allocation2 + $0x188] sm:$0xff] %vm3916, %v2877
          %5219 = vst.msk [vmem:[#allocation2 + $0x190] sm:$0xff] %vm3916, %v2878
          %5220 = vst.msk [vmem:[#allocation2 + $0x198] sm:$0xff] %vm3916, %v2879
          %5221 = vst.msk [vmem:[#allocation2 + $0x1a0] sm:$0xff] %vm3916, %v2880
          %5222 = vst.msk [vmem:[#allocation2 + $0x1a8] sm:$0xff] %vm3916, %v2881
          %5223 = vst.msk [vmem:[#allocation2 + $0x1b0] sm:$0xff] %vm3916, %v2882
          %5224 = vst.msk [vmem:[#allocation2 + $0x1b8] sm:$0xff] %vm3916, %v2883
          %5225 = vst.msk [vmem:[#allocation2 + $0x1c0] sm:$0xff] %vm3916, %v2884
          %5226 = vst.msk [vmem:[#allocation2 + $0x1c8] sm:$0xff] %vm3916, %v2885
          %5227 = vst.msk [vmem:[#allocation2 + $0x1d0] sm:$0xff] %vm3916, %v2886
          %5228 = vst.msk [vmem:[#allocation2 + $0x1d8] sm:$0xff] %vm3916, %v2887
          %5229 = vst.msk [vmem:[#allocation2 + $0x1e0] sm:$0xff] %vm3916, %v2888
          %5230 = vst.msk [vmem:[#allocation2 + $0x1e8] sm:$0xff] %vm3916, %v2889
          %5231 = vst.msk [vmem:[#allocation2 + $0x1f0] sm:$0xff] %vm3916, %v2890
          %5232 = vst.msk [vmem:[#allocation2 + $0x1f8] sm:$0xff] %vm3916, %v2891
        $region175: #{multi_head_attention.3} parent=154 // pred_fallthru
          _
        %p5233 = scmp.eq.s32.totalorder %s27, 1
        // Predicated region
        $region176: #{multi_head_attention.3} parent=154 // pred_check
          %p5234 = pneg %p5233
        $region177: #{multi_head_attention.3} parent=154 // pred_check_branch
          %5236 = sbr.rel (%p5234) target = $region179
        $region178: #{multi_head_attention.3} parent=154 // pred_region
          %v5237 = vld [vmem:[#allocation3] sm:$0xff]
          %v5238 = vld [vmem:[#allocation3 + $0x8] sm:$0xff]
          %v5239 = vld [vmem:[#allocation3 + $0x10] sm:$0xff]
          %v5240 = vld [vmem:[#allocation3 + $0x18] sm:$0xff]
          %v5241 = vld [vmem:[#allocation3 + $0x20] sm:$0xff]
          %v5242 = vld [vmem:[#allocation3 + $0x28] sm:$0xff]
          %v5243 = vld [vmem:[#allocation3 + $0x30] sm:$0xff]
          %v5244 = vld [vmem:[#allocation3 + $0x38] sm:$0xff]
          %v5245 = vld [vmem:[#allocation3 + $0x40] sm:$0xff]
          %v5246 = vld [vmem:[#allocation3 + $0x48] sm:$0xff]
          %v5247 = vld [vmem:[#allocation3 + $0x50] sm:$0xff]
          %v5248 = vld [vmem:[#allocation3 + $0x58] sm:$0xff]
          %v5249 = vld [vmem:[#allocation3 + $0x60] sm:$0xff]
          %v5250 = vld [vmem:[#allocation3 + $0x68] sm:$0xff]
          %v5251 = vld [vmem:[#allocation3 + $0x70] sm:$0xff]
          %v5252 = vld [vmem:[#allocation3 + $0x78] sm:$0xff]
          %v5253 = vld [vmem:[#allocation3 + $0x80] sm:$0xff]
          %v5254 = vld [vmem:[#allocation3 + $0x88] sm:$0xff]
          %v5255 = vld [vmem:[#allocation3 + $0x90] sm:$0xff]
          %v5256 = vld [vmem:[#allocation3 + $0x98] sm:$0xff]
          %v5257 = vld [vmem:[#allocation3 + $0xa0] sm:$0xff]
          %v5258 = vld [vmem:[#allocation3 + $0xa8] sm:$0xff]
          %v5259 = vld [vmem:[#allocation3 + $0xb0] sm:$0xff]
          %v5260 = vld [vmem:[#allocation3 + $0xb8] sm:$0xff]
          %v5261 = vld [vmem:[#allocation3 + $0xc0] sm:$0xff]
          %v5262 = vld [vmem:[#allocation3 + $0xc8] sm:$0xff]
          %v5263 = vld [vmem:[#allocation3 + $0xd0] sm:$0xff]
          %v5264 = vld [vmem:[#allocation3 + $0xd8] sm:$0xff]
          %v5265 = vld [vmem:[#allocation3 + $0xe0] sm:$0xff]
          %v5266 = vld [vmem:[#allocation3 + $0xe8] sm:$0xff]
          %v5267 = vld [vmem:[#allocation3 + $0xf0] sm:$0xff]
          %v5268 = vld [vmem:[#allocation3 + $0xf8] sm:$0xff]
          %v5269 = vld [vmem:[#allocation3 + $0x100] sm:$0xff]
          %v5270 = vld [vmem:[#allocation3 + $0x108] sm:$0xff]
          %v5271 = vld [vmem:[#allocation3 + $0x110] sm:$0xff]
          %v5272 = vld [vmem:[#allocation3 + $0x118] sm:$0xff]
          %v5273 = vld [vmem:[#allocation3 + $0x120] sm:$0xff]
          %v5274 = vld [vmem:[#allocation3 + $0x128] sm:$0xff]
          %v5275 = vld [vmem:[#allocation3 + $0x130] sm:$0xff]
          %v5276 = vld [vmem:[#allocation3 + $0x138] sm:$0xff]
          %v5277 = vld [vmem:[#allocation3 + $0x140] sm:$0xff]
          %v5278 = vld [vmem:[#allocation3 + $0x148] sm:$0xff]
          %v5279 = vld [vmem:[#allocation3 + $0x150] sm:$0xff]
          %v5280 = vld [vmem:[#allocation3 + $0x158] sm:$0xff]
          %v5281 = vld [vmem:[#allocation3 + $0x160] sm:$0xff]
          %v5282 = vld [vmem:[#allocation3 + $0x168] sm:$0xff]
          %v5283 = vld [vmem:[#allocation3 + $0x170] sm:$0xff]
          %v5284 = vld [vmem:[#allocation3 + $0x178] sm:$0xff]
          %v5285 = vld [vmem:[#allocation3 + $0x180] sm:$0xff]
          %v5286 = vld [vmem:[#allocation3 + $0x188] sm:$0xff]
          %v5287 = vld [vmem:[#allocation3 + $0x190] sm:$0xff]
          %v5288 = vld [vmem:[#allocation3 + $0x198] sm:$0xff]
          %v5289 = vld [vmem:[#allocation3 + $0x1a0] sm:$0xff]
          %v5290 = vld [vmem:[#allocation3 + $0x1a8] sm:$0xff]
          %v5291 = vld [vmem:[#allocation3 + $0x1b0] sm:$0xff]
          %v5292 = vld [vmem:[#allocation3 + $0x1b8] sm:$0xff]
          %v5293 = vld [vmem:[#allocation3 + $0x1c0] sm:$0xff]
          %v5294 = vld [vmem:[#allocation3 + $0x1c8] sm:$0xff]
          %v5295 = vld [vmem:[#allocation3 + $0x1d0] sm:$0xff]
          %v5296 = vld [vmem:[#allocation3 + $0x1d8] sm:$0xff]
          %v5297 = vld [vmem:[#allocation3 + $0x1e0] sm:$0xff]
          %v5298 = vld [vmem:[#allocation3 + $0x1e8] sm:$0xff]
          %v5299 = vld [vmem:[#allocation3 + $0x1f0] sm:$0xff]
          %v5300 = vld [vmem:[#allocation3 + $0x1f8] sm:$0xff]
          %v5301 = vrcp.pop %v5237
          %v5302 = vrcp.pop %v5238
          %v5303 = vrcp.pop %v5239
          %v5304 = vrcp.pop %v5240
          %v5305 = vrcp.pop %v5241
          %v5306 = vrcp.pop %v5242
          %v5307 = vrcp.pop %v5243
          %v5308 = vrcp.pop %v5244
          %v5309 = vrcp.pop %v5245
          %v5310 = vrcp.pop %v5246
          %v5311 = vrcp.pop %v5247
          %v5312 = vrcp.pop %v5248
          %v5313 = vrcp.pop %v5249
          %v5314 = vrcp.pop %v5250
          %v5315 = vrcp.pop %v5251
          %v5316 = vrcp.pop %v5252
          %v5317 = vrcp.pop %v5253
          %v5318 = vrcp.pop %v5254
          %v5319 = vrcp.pop %v5255
          %v5320 = vrcp.pop %v5256
          %v5321 = vrcp.pop %v5257
          %v5322 = vrcp.pop %v5258
          %v5323 = vrcp.pop %v5259
          %v5324 = vrcp.pop %v5260
          %v5325 = vrcp.pop %v5261
          %v5326 = vrcp.pop %v5262
          %v5327 = vrcp.pop %v5263
          %v5328 = vrcp.pop %v5264
          %v5329 = vrcp.pop %v5265
          %v5330 = vrcp.pop %v5266
          %v5331 = vrcp.pop %v5267
          %v5332 = vrcp.pop %v5268
          %v5333 = vrcp.pop %v5269
          %v5334 = vrcp.pop %v5270
          %v5335 = vrcp.pop %v5271
          %v5336 = vrcp.pop %v5272
          %v5337 = vrcp.pop %v5273
          %v5338 = vrcp.pop %v5274
          %v5339 = vrcp.pop %v5275
          %v5340 = vrcp.pop %v5276
          %v5341 = vrcp.pop %v5277
          %v5342 = vrcp.pop %v5278
          %v5343 = vrcp.pop %v5279
          %v5344 = vrcp.pop %v5280
          %v5345 = vrcp.pop %v5281
          %v5346 = vrcp.pop %v5282
          %v5347 = vrcp.pop %v5283
          %v5348 = vrcp.pop %v5284
          %v5349 = vrcp.pop %v5285
          %v5350 = vrcp.pop %v5286
          %v5351 = vrcp.pop %v5287
          %v5352 = vrcp.pop %v5288
          %v5353 = vrcp.pop %v5289
          %v5354 = vrcp.pop %v5290
          %v5355 = vrcp.pop %v5291
          %v5356 = vrcp.pop %v5292
          %v5357 = vrcp.pop %v5293
          %v5358 = vrcp.pop %v5294
          %v5359 = vrcp.pop %v5295
          %v5360 = vrcp.pop %v5296
          %v5361 = vrcp.pop %v5297
          %v5362 = vrcp.pop %v5298
          %v5363 = vrcp.pop %v5299
          %v5364 = vrcp.pop %v5300
          %v5365 = vld [vmem:[#allocation4] sm:$0xff]
          %v5366 = vld [vmem:[#allocation4 + $0x8] sm:$0xff]
          %v5367 = vld [vmem:[#allocation4 + $0x10] sm:$0xff]
          %v5368 = vld [vmem:[#allocation4 + $0x18] sm:$0xff]
          %v5369 = vld [vmem:[#allocation4 + $0x20] sm:$0xff]
          %v5370 = vld [vmem:[#allocation4 + $0x28] sm:$0xff]
          %v5371 = vld [vmem:[#allocation4 + $0x30] sm:$0xff]
          %v5372 = vld [vmem:[#allocation4 + $0x38] sm:$0xff]
          %v5373 = vld [vmem:[#allocation4 + $0x40] sm:$0xff]
          %v5374 = vld [vmem:[#allocation4 + $0x48] sm:$0xff]
          %v5375 = vld [vmem:[#allocation4 + $0x50] sm:$0xff]
          %v5376 = vld [vmem:[#allocation4 + $0x58] sm:$0xff]
          %v5377 = vld [vmem:[#allocation4 + $0x60] sm:$0xff]
          %v5378 = vld [vmem:[#allocation4 + $0x68] sm:$0xff]
          %v5379 = vld [vmem:[#allocation4 + $0x70] sm:$0xff]
          %v5380 = vld [vmem:[#allocation4 + $0x78] sm:$0xff]
          %v5381 = vld [vmem:[#allocation4 + $0x80] sm:$0xff]
          %v5382 = vld [vmem:[#allocation4 + $0x88] sm:$0xff]
          %v5383 = vld [vmem:[#allocation4 + $0x90] sm:$0xff]
          %v5384 = vld [vmem:[#allocation4 + $0x98] sm:$0xff]
          %v5385 = vld [vmem:[#allocation4 + $0xa0] sm:$0xff]
          %v5386 = vld [vmem:[#allocation4 + $0xa8] sm:$0xff]
          %v5387 = vld [vmem:[#allocation4 + $0xb0] sm:$0xff]
          %v5388 = vld [vmem:[#allocation4 + $0xb8] sm:$0xff]
          %v5389 = vld [vmem:[#allocation4 + $0xc0] sm:$0xff]
          %v5390 = vld [vmem:[#allocation4 + $0xc8] sm:$0xff]
          %v5391 = vld [vmem:[#allocation4 + $0xd0] sm:$0xff]
          %v5392 = vld [vmem:[#allocation4 + $0xd8] sm:$0xff]
          %v5393 = vld [vmem:[#allocation4 + $0xe0] sm:$0xff]
          %v5394 = vld [vmem:[#allocation4 + $0xe8] sm:$0xff]
          %v5395 = vld [vmem:[#allocation4 + $0xf0] sm:$0xff]
          %v5396 = vld [vmem:[#allocation4 + $0xf8] sm:$0xff]
          %v5397 = vld [vmem:[#allocation4 + $0x100] sm:$0xff]
          %v5398 = vld [vmem:[#allocation4 + $0x108] sm:$0xff]
          %v5399 = vld [vmem:[#allocation4 + $0x110] sm:$0xff]
          %v5400 = vld [vmem:[#allocation4 + $0x118] sm:$0xff]
          %v5401 = vld [vmem:[#allocation4 + $0x120] sm:$0xff]
          %v5402 = vld [vmem:[#allocation4 + $0x128] sm:$0xff]
          %v5403 = vld [vmem:[#allocation4 + $0x130] sm:$0xff]
          %v5404 = vld [vmem:[#allocation4 + $0x138] sm:$0xff]
          %v5405 = vld [vmem:[#allocation4 + $0x140] sm:$0xff]
          %v5406 = vld [vmem:[#allocation4 + $0x148] sm:$0xff]
          %v5407 = vld [vmem:[#allocation4 + $0x150] sm:$0xff]
          %v5408 = vld [vmem:[#allocation4 + $0x158] sm:$0xff]
          %v5409 = vld [vmem:[#allocation4 + $0x160] sm:$0xff]
          %v5410 = vld [vmem:[#allocation4 + $0x168] sm:$0xff]
          %v5411 = vld [vmem:[#allocation4 + $0x170] sm:$0xff]
          %v5412 = vld [vmem:[#allocation4 + $0x178] sm:$0xff]
          %v5413 = vld [vmem:[#allocation4 + $0x180] sm:$0xff]
          %v5414 = vld [vmem:[#allocation4 + $0x188] sm:$0xff]
          %v5415 = vld [vmem:[#allocation4 + $0x190] sm:$0xff]
          %v5416 = vld [vmem:[#allocation4 + $0x198] sm:$0xff]
          %v5417 = vld [vmem:[#allocation4 + $0x1a0] sm:$0xff]
          %v5418 = vld [vmem:[#allocation4 + $0x1a8] sm:$0xff]
          %v5419 = vld [vmem:[#allocation4 + $0x1b0] sm:$0xff]
          %v5420 = vld [vmem:[#allocation4 + $0x1b8] sm:$0xff]
          %v5421 = vld [vmem:[#allocation4 + $0x1c0] sm:$0xff]
          %v5422 = vld [vmem:[#allocation4 + $0x1c8] sm:$0xff]
          %v5423 = vld [vmem:[#allocation4 + $0x1d0] sm:$0xff]
          %v5424 = vld [vmem:[#allocation4 + $0x1d8] sm:$0xff]
          %v5425 = vld [vmem:[#allocation4 + $0x1e0] sm:$0xff]
          %v5426 = vld [vmem:[#allocation4 + $0x1e8] sm:$0xff]
          %v5427 = vld [vmem:[#allocation4 + $0x1f0] sm:$0xff]
          %v5428 = vld [vmem:[#allocation4 + $0x1f8] sm:$0xff]
          %5430 = vset.pattern.permute.xlu0 0
          %5431 = vperm.xlu0 %5430, %v5301
          %v5432 = vpop.permute.xlu0 %5431
          %5435 = vset.pattern.permute.xlu0 0
          %5436 = vperm.xlu0 %5435, %v5302
          %v5437 = vpop.permute.xlu0 %5436
          %5440 = vset.pattern.permute.xlu0 0
          %5441 = vperm.xlu0 %5440, %v5303
          %v5442 = vpop.permute.xlu0 %5441
          %5445 = vset.pattern.permute.xlu0 0
          %5446 = vperm.xlu0 %5445, %v5304
          %v5447 = vpop.permute.xlu0 %5446
          %5450 = vset.pattern.permute.xlu0 0
          %5451 = vperm.xlu0 %5450, %v5305
          %v5452 = vpop.permute.xlu0 %5451
          %5455 = vset.pattern.permute.xlu0 0
          %5456 = vperm.xlu0 %5455, %v5306
          %v5457 = vpop.permute.xlu0 %5456
          %5460 = vset.pattern.permute.xlu0 0
          %5461 = vperm.xlu0 %5460, %v5307
          %v5462 = vpop.permute.xlu0 %5461
          %5465 = vset.pattern.permute.xlu0 0
          %5466 = vperm.xlu0 %5465, %v5308
          %v5467 = vpop.permute.xlu0 %5466
          %5470 = vset.pattern.permute.xlu0 0
          %5471 = vperm.xlu0 %5470, %v5309
          %v5472 = vpop.permute.xlu0 %5471
          %5475 = vset.pattern.permute.xlu0 0
          %5476 = vperm.xlu0 %5475, %v5310
          %v5477 = vpop.permute.xlu0 %5476
          %5480 = vset.pattern.permute.xlu0 0
          %5481 = vperm.xlu0 %5480, %v5311
          %v5482 = vpop.permute.xlu0 %5481
          %5485 = vset.pattern.permute.xlu0 0
          %5486 = vperm.xlu0 %5485, %v5312
          %v5487 = vpop.permute.xlu0 %5486
          %5490 = vset.pattern.permute.xlu0 0
          %5491 = vperm.xlu0 %5490, %v5313
          %v5492 = vpop.permute.xlu0 %5491
          %5495 = vset.pattern.permute.xlu0 0
          %5496 = vperm.xlu0 %5495, %v5314
          %v5497 = vpop.permute.xlu0 %5496
          %5500 = vset.pattern.permute.xlu0 0
          %5501 = vperm.xlu0 %5500, %v5315
          %v5502 = vpop.permute.xlu0 %5501
          %5505 = vset.pattern.permute.xlu0 0
          %5506 = vperm.xlu0 %5505, %v5316
          %v5507 = vpop.permute.xlu0 %5506
          %5510 = vset.pattern.permute.xlu0 0
          %5511 = vperm.xlu0 %5510, %v5317
          %v5512 = vpop.permute.xlu0 %5511
          %5515 = vset.pattern.permute.xlu0 0
          %5516 = vperm.xlu0 %5515, %v5318
          %v5517 = vpop.permute.xlu0 %5516
          %5520 = vset.pattern.permute.xlu0 0
          %5521 = vperm.xlu0 %5520, %v5319
          %v5522 = vpop.permute.xlu0 %5521
          %5525 = vset.pattern.permute.xlu0 0
          %5526 = vperm.xlu0 %5525, %v5320
          %v5527 = vpop.permute.xlu0 %5526
          %5530 = vset.pattern.permute.xlu0 0
          %5531 = vperm.xlu0 %5530, %v5321
          %v5532 = vpop.permute.xlu0 %5531
          %5535 = vset.pattern.permute.xlu0 0
          %5536 = vperm.xlu0 %5535, %v5322
          %v5537 = vpop.permute.xlu0 %5536
          %5540 = vset.pattern.permute.xlu0 0
          %5541 = vperm.xlu0 %5540, %v5323
          %v5542 = vpop.permute.xlu0 %5541
          %5545 = vset.pattern.permute.xlu0 0
          %5546 = vperm.xlu0 %5545, %v5324
          %v5547 = vpop.permute.xlu0 %5546
          %5550 = vset.pattern.permute.xlu0 0
          %5551 = vperm.xlu0 %5550, %v5325
          %v5552 = vpop.permute.xlu0 %5551
          %5555 = vset.pattern.permute.xlu0 0
          %5556 = vperm.xlu0 %5555, %v5326
          %v5557 = vpop.permute.xlu0 %5556
          %5560 = vset.pattern.permute.xlu0 0
          %5561 = vperm.xlu0 %5560, %v5327
          %v5562 = vpop.permute.xlu0 %5561
          %5565 = vset.pattern.permute.xlu0 0
          %5566 = vperm.xlu0 %5565, %v5328
          %v5567 = vpop.permute.xlu0 %5566
          %5570 = vset.pattern.permute.xlu0 0
          %5571 = vperm.xlu0 %5570, %v5329
          %v5572 = vpop.permute.xlu0 %5571
          %5575 = vset.pattern.permute.xlu0 0
          %5576 = vperm.xlu0 %5575, %v5330
          %v5577 = vpop.permute.xlu0 %5576
          %5580 = vset.pattern.permute.xlu0 0
          %5581 = vperm.xlu0 %5580, %v5331
          %v5582 = vpop.permute.xlu0 %5581
          %5585 = vset.pattern.permute.xlu0 0
          %5586 = vperm.xlu0 %5585, %v5332
          %v5587 = vpop.permute.xlu0 %5586
          %5590 = vset.pattern.permute.xlu0 0
          %5591 = vperm.xlu0 %5590, %v5333
          %v5592 = vpop.permute.xlu0 %5591
          %5595 = vset.pattern.permute.xlu0 0
          %5596 = vperm.xlu0 %5595, %v5334
          %v5597 = vpop.permute.xlu0 %5596
          %5600 = vset.pattern.permute.xlu0 0
          %5601 = vperm.xlu0 %5600, %v5335
          %v5602 = vpop.permute.xlu0 %5601
          %5605 = vset.pattern.permute.xlu0 0
          %5606 = vperm.xlu0 %5605, %v5336
          %v5607 = vpop.permute.xlu0 %5606
          %5610 = vset.pattern.permute.xlu0 0
          %5611 = vperm.xlu0 %5610, %v5337
          %v5612 = vpop.permute.xlu0 %5611
          %5615 = vset.pattern.permute.xlu0 0
          %5616 = vperm.xlu0 %5615, %v5338
          %v5617 = vpop.permute.xlu0 %5616
          %5620 = vset.pattern.permute.xlu0 0
          %5621 = vperm.xlu0 %5620, %v5339
          %v5622 = vpop.permute.xlu0 %5621
          %5625 = vset.pattern.permute.xlu0 0
          %5626 = vperm.xlu0 %5625, %v5340
          %v5627 = vpop.permute.xlu0 %5626
          %5630 = vset.pattern.permute.xlu0 0
          %5631 = vperm.xlu0 %5630, %v5341
          %v5632 = vpop.permute.xlu0 %5631
          %5635 = vset.pattern.permute.xlu0 0
          %5636 = vperm.xlu0 %5635, %v5342
          %v5637 = vpop.permute.xlu0 %5636
          %5640 = vset.pattern.permute.xlu0 0
          %5641 = vperm.xlu0 %5640, %v5343
          %v5642 = vpop.permute.xlu0 %5641
          %5645 = vset.pattern.permute.xlu0 0
          %5646 = vperm.xlu0 %5645, %v5344
          %v5647 = vpop.permute.xlu0 %5646
          %5650 = vset.pattern.permute.xlu0 0
          %5651 = vperm.xlu0 %5650, %v5345
          %v5652 = vpop.permute.xlu0 %5651
          %5655 = vset.pattern.permute.xlu0 0
          %5656 = vperm.xlu0 %5655, %v5346
          %v5657 = vpop.permute.xlu0 %5656
          %5660 = vset.pattern.permute.xlu0 0
          %5661 = vperm.xlu0 %5660, %v5347
          %v5662 = vpop.permute.xlu0 %5661
          %5665 = vset.pattern.permute.xlu0 0
          %5666 = vperm.xlu0 %5665, %v5348
          %v5667 = vpop.permute.xlu0 %5666
          %5670 = vset.pattern.permute.xlu0 0
          %5671 = vperm.xlu0 %5670, %v5349
          %v5672 = vpop.permute.xlu0 %5671
          %5675 = vset.pattern.permute.xlu0 0
          %5676 = vperm.xlu0 %5675, %v5350
          %v5677 = vpop.permute.xlu0 %5676
          %5680 = vset.pattern.permute.xlu0 0
          %5681 = vperm.xlu0 %5680, %v5351
          %v5682 = vpop.permute.xlu0 %5681
          %5685 = vset.pattern.permute.xlu0 0
          %5686 = vperm.xlu0 %5685, %v5352
          %v5687 = vpop.permute.xlu0 %5686
          %5690 = vset.pattern.permute.xlu0 0
          %5691 = vperm.xlu0 %5690, %v5353
          %v5692 = vpop.permute.xlu0 %5691
          %5695 = vset.pattern.permute.xlu0 0
          %5696 = vperm.xlu0 %5695, %v5354
          %v5697 = vpop.permute.xlu0 %5696
          %5700 = vset.pattern.permute.xlu0 0
          %5701 = vperm.xlu0 %5700, %v5355
          %v5702 = vpop.permute.xlu0 %5701
          %5705 = vset.pattern.permute.xlu0 0
          %5706 = vperm.xlu0 %5705, %v5356
          %v5707 = vpop.permute.xlu0 %5706
          %5710 = vset.pattern.permute.xlu0 0
          %5711 = vperm.xlu0 %5710, %v5357
          %v5712 = vpop.permute.xlu0 %5711
          %5715 = vset.pattern.permute.xlu0 0
          %5716 = vperm.xlu0 %5715, %v5358
          %v5717 = vpop.permute.xlu0 %5716
          %5720 = vset.pattern.permute.xlu0 0
          %5721 = vperm.xlu0 %5720, %v5359
          %v5722 = vpop.permute.xlu0 %5721
          %5725 = vset.pattern.permute.xlu0 0
          %5726 = vperm.xlu0 %5725, %v5360
          %v5727 = vpop.permute.xlu0 %5726
          %5730 = vset.pattern.permute.xlu0 0
          %5731 = vperm.xlu0 %5730, %v5361
          %v5732 = vpop.permute.xlu0 %5731
          %5735 = vset.pattern.permute.xlu0 0
          %5736 = vperm.xlu0 %5735, %v5362
          %v5737 = vpop.permute.xlu0 %5736
          %5740 = vset.pattern.permute.xlu0 0
          %5741 = vperm.xlu0 %5740, %v5363
          %v5742 = vpop.permute.xlu0 %5741
          %5745 = vset.pattern.permute.xlu0 0
          %5746 = vperm.xlu0 %5745, %v5364
          %v5747 = vpop.permute.xlu0 %5746
          %v5749 = vmul.f32 %v5365, %v5432
          %v5750 = vmul.f32 %v5366, %v5437
          %v5751 = vmul.f32 %v5367, %v5442
          %v5752 = vmul.f32 %v5368, %v5447
          %v5753 = vmul.f32 %v5369, %v5452
          %v5754 = vmul.f32 %v5370, %v5457
          %v5755 = vmul.f32 %v5371, %v5462
          %v5756 = vmul.f32 %v5372, %v5467
          %v5757 = vmul.f32 %v5373, %v5472
          %v5758 = vmul.f32 %v5374, %v5477
          %v5759 = vmul.f32 %v5375, %v5482
          %v5760 = vmul.f32 %v5376, %v5487
          %v5761 = vmul.f32 %v5377, %v5492
          %v5762 = vmul.f32 %v5378, %v5497
          %v5763 = vmul.f32 %v5379, %v5502
          %v5764 = vmul.f32 %v5380, %v5507
          %v5765 = vmul.f32 %v5381, %v5512
          %v5766 = vmul.f32 %v5382, %v5517
          %v5767 = vmul.f32 %v5383, %v5522
          %v5768 = vmul.f32 %v5384, %v5527
          %v5769 = vmul.f32 %v5385, %v5532
          %v5770 = vmul.f32 %v5386, %v5537
          %v5771 = vmul.f32 %v5387, %v5542
          %v5772 = vmul.f32 %v5388, %v5547
          %v5773 = vmul.f32 %v5389, %v5552
          %v5774 = vmul.f32 %v5390, %v5557
          %v5775 = vmul.f32 %v5391, %v5562
          %v5776 = vmul.f32 %v5392, %v5567
          %v5777 = vmul.f32 %v5393, %v5572
          %v5778 = vmul.f32 %v5394, %v5577
          %v5779 = vmul.f32 %v5395, %v5582
          %v5780 = vmul.f32 %v5396, %v5587
          %v5781 = vmul.f32 %v5397, %v5592
          %v5782 = vmul.f32 %v5398, %v5597
          %v5783 = vmul.f32 %v5399, %v5602
          %v5784 = vmul.f32 %v5400, %v5607
          %v5785 = vmul.f32 %v5401, %v5612
          %v5786 = vmul.f32 %v5402, %v5617
          %v5787 = vmul.f32 %v5403, %v5622
          %v5788 = vmul.f32 %v5404, %v5627
          %v5789 = vmul.f32 %v5405, %v5632
          %v5790 = vmul.f32 %v5406, %v5637
          %v5791 = vmul.f32 %v5407, %v5642
          %v5792 = vmul.f32 %v5408, %v5647
          %v5793 = vmul.f32 %v5409, %v5652
          %v5794 = vmul.f32 %v5410, %v5657
          %v5795 = vmul.f32 %v5411, %v5662
          %v5796 = vmul.f32 %v5412, %v5667
          %v5797 = vmul.f32 %v5413, %v5672
          %v5798 = vmul.f32 %v5414, %v5677
          %v5799 = vmul.f32 %v5415, %v5682
          %v5800 = vmul.f32 %v5416, %v5687
          %v5801 = vmul.f32 %v5417, %v5692
          %v5802 = vmul.f32 %v5418, %v5697
          %v5803 = vmul.f32 %v5419, %v5702
          %v5804 = vmul.f32 %v5420, %v5707
          %v5805 = vmul.f32 %v5421, %v5712
          %v5806 = vmul.f32 %v5422, %v5717
          %v5807 = vmul.f32 %v5423, %v5722
          %v5808 = vmul.f32 %v5424, %v5727
          %v5809 = vmul.f32 %v5425, %v5732
          %v5810 = vmul.f32 %v5426, %v5737
          %v5811 = vmul.f32 %v5427, %v5742
          %v5812 = vmul.f32 %v5428, %v5747
          %v5813 = vpack.c.bf16 %v5750, %v5749
          %v5814 = vpack.c.bf16 %v5752, %v5751
          %v5815 = vpack.c.bf16 %v5754, %v5753
          %v5816 = vpack.c.bf16 %v5756, %v5755
          %v5817 = vpack.c.bf16 %v5758, %v5757
          %v5818 = vpack.c.bf16 %v5760, %v5759
          %v5819 = vpack.c.bf16 %v5762, %v5761
          %v5820 = vpack.c.bf16 %v5764, %v5763
          %v5821 = vpack.c.bf16 %v5766, %v5765
          %v5822 = vpack.c.bf16 %v5768, %v5767
          %v5823 = vpack.c.bf16 %v5770, %v5769
          %v5824 = vpack.c.bf16 %v5772, %v5771
          %v5825 = vpack.c.bf16 %v5774, %v5773
          %v5826 = vpack.c.bf16 %v5776, %v5775
          %v5827 = vpack.c.bf16 %v5778, %v5777
          %v5828 = vpack.c.bf16 %v5780, %v5779
          %v5829 = vpack.c.bf16 %v5782, %v5781
          %v5830 = vpack.c.bf16 %v5784, %v5783
          %v5831 = vpack.c.bf16 %v5786, %v5785
          %v5832 = vpack.c.bf16 %v5788, %v5787
          %v5833 = vpack.c.bf16 %v5790, %v5789
          %v5834 = vpack.c.bf16 %v5792, %v5791
          %v5835 = vpack.c.bf16 %v5794, %v5793
          %v5836 = vpack.c.bf16 %v5796, %v5795
          %v5837 = vpack.c.bf16 %v5798, %v5797
          %v5838 = vpack.c.bf16 %v5800, %v5799
          %v5839 = vpack.c.bf16 %v5802, %v5801
          %v5840 = vpack.c.bf16 %v5804, %v5803
          %v5841 = vpack.c.bf16 %v5806, %v5805
          %v5842 = vpack.c.bf16 %v5808, %v5807
          %v5843 = vpack.c.bf16 %v5810, %v5809
          %v5844 = vpack.c.bf16 %v5812, %v5811
          %v5845 = vld [vmem:[%s4] sm:$0xf]
          %v5846 = vld [vmem:[%s4 + $0x4] sm:$0xf]
          %v5847 = vld [vmem:[%s4 + $0x8] sm:$0xf]
          %v5848 = vld [vmem:[%s4 + $0xc] sm:$0xf]
          %v5849 = vld [vmem:[%s4 + $0x10] sm:$0xf]
          %v5850 = vld [vmem:[%s4 + $0x14] sm:$0xf]
          %v5851 = vld [vmem:[%s4 + $0x18] sm:$0xf]
          %v5852 = vld [vmem:[%s4 + $0x1c] sm:$0xf]
          %v5853 = vld [vmem:[%s4 + $0x20] sm:$0xf]
          %v5854 = vld [vmem:[%s4 + $0x24] sm:$0xf]
          %v5855 = vld [vmem:[%s4 + $0x28] sm:$0xf]
          %v5856 = vld [vmem:[%s4 + $0x2c] sm:$0xf]
          %v5857 = vld [vmem:[%s4 + $0x30] sm:$0xf]
          %v5858 = vld [vmem:[%s4 + $0x34] sm:$0xf]
          %v5859 = vld [vmem:[%s4 + $0x38] sm:$0xf]
          %v5860 = vld [vmem:[%s4 + $0x3c] sm:$0xf]
          %v5865 = vunpack.c.l.b16 %v5845
          %v5866 = vunpack.c.l.b16 %v5846
          %v5867 = vunpack.c.l.b16 %v5847
          %v5868 = vunpack.c.l.b16 %v5848
          %v5869 = vpack.c.b16 %v5866, %v5865
          %v5870 = vpack.c.b16 %v5868, %v5867
          %vm5873 = vcmask 261120
          %v5875 = vsel %vm5873, %v5813, 0
          %v5878 = vsel %vm5873, %v5814, 0
          %v5881 = vsel %vm5873, %v5815, 0
          %v5884 = vsel %vm5873, %v5816, 0
          %v5887 = vsel %vm5873, %v5817, 0
          %v5890 = vsel %vm5873, %v5818, 0
          %v5893 = vsel %vm5873, %v5819, 0
          %v5896 = vsel %vm5873, %v5820, 0
          %5898 = vmatprep.subr.bf16.mxu0 0
          %5899 = vmatpush1.bf16.msra.mxu0 0
          %5900 = vmatprep.subr.bf16.mxu0 0
          %5901 = vmatpush1.bf16.msra.mxu0 0
          %5902 = vmatprep.subr.bf16.mxu0 0
          %5903 = vmatpush1.bf16.msra.mxu0 0
          %5904 = vmatprep.subr.bf16.mxu0 0
          %5905 = vmatpush1.bf16.msra.mxu0 0
          %5906 = vmatprep.subr.bf16.mxu0 0
          %5907 = vmatpush1.bf16.msra.mxu0 0
          %5908 = vmatprep.subr.bf16.mxu0 0
          %5909 = vmatpush1.bf16.msra.mxu0 0
          %5910 = vmatprep.subr.bf16.mxu0 0
          %5911 = vmatpush1.bf16.msra.mxu0 %v5870
          %5912 = vmatprep.subr.bf16.mxu0 0
          %5913 = vmatpush1.bf16.msra.mxu0 %v5869
          %5914 = vmatprep.subr.bf16.mxu0 0
          %5915 = vmatpush2.bf16.msra.mxu0 0
          %5916 = vmatprep.subr.bf16.mxu0 0
          %5917 = vmatpush2.bf16.msra.mxu0 0
          %5918 = vmatprep.subr.bf16.mxu0 0
          %5919 = vmatpush2.bf16.msra.mxu0 0
          %5920 = vmatprep.subr.bf16.mxu0 0
          %5921 = vmatpush2.bf16.msra.mxu0 0
          %5922 = vmatprep.subr.bf16.mxu0 0
          %5923 = vmatpush2.bf16.msra.mxu0 0
          %5924 = vmatprep.subr.bf16.mxu0 0
          %5925 = vmatpush2.bf16.msra.mxu0 0
          %5926 = vmatprep.subr.bf16.mxu0 0
          %5927 = vmatpush2.bf16.msra.mxu0 0
          %5928 = vmatprep.subr.bf16.mxu0 0
          %5929 = vmatpush2.bf16.msra.mxu0 0
          %5930 = vmatprep.mubr.bf16.mxu0 0
          %5931 = vmatmul.mubr.bf16.gmra.mxu0 %v5875
          %v5932 = vpop.f32.mrf.mxu0
          %v5933 = vadd.f32 0.0, %v5932
          %v5934 = vpop.f32.mrf.mxu0
          %v5935 = vpop.f32.mrf.mxu0
          %v5936 = vadd.f32 0.0, %v5935
          %v5937 = vpop.f32.mrf.mxu0
          %5938 = vmatprep.mubr.bf16.mxu0 0
          %5939 = vmatmul.mubr.bf16.gmra.mxu0 %v5878
          %v5940 = vpop.f32.mrf.mxu0
          %v5941 = vadd.f32 0.0, %v5940
          %v5942 = vpop.f32.mrf.mxu0
          %v5943 = vpop.f32.mrf.mxu0
          %v5944 = vadd.f32 0.0, %v5943
          %v5945 = vpop.f32.mrf.mxu0
          %5946 = vmatprep.mubr.bf16.mxu0 0
          %5947 = vmatmul.mubr.bf16.gmra.mxu0 %v5881
          %v5948 = vpop.f32.mrf.mxu0
          %v5949 = vadd.f32 0.0, %v5948
          %v5950 = vpop.f32.mrf.mxu0
          %v5951 = vpop.f32.mrf.mxu0
          %v5952 = vadd.f32 0.0, %v5951
          %v5953 = vpop.f32.mrf.mxu0
          %5954 = vmatprep.mubr.bf16.mxu0 0
          %5955 = vmatmul.mubr.bf16.gmra.mxu0 %v5884
          %v5956 = vpop.f32.mrf.mxu0
          %v5957 = vadd.f32 0.0, %v5956
          %v5958 = vpop.f32.mrf.mxu0
          %v5959 = vpop.f32.mrf.mxu0
          %v5960 = vadd.f32 0.0, %v5959
          %v5961 = vpop.f32.mrf.mxu0
          %5962 = vmatprep.mubr.bf16.mxu0 0
          %5963 = vmatmul.mubr.bf16.gmra.mxu0 %v5887
          %v5964 = vpop.f32.mrf.mxu0
          %v5965 = vadd.f32 0.0, %v5964
          %v5966 = vpop.f32.mrf.mxu0
          %v5967 = vpop.f32.mrf.mxu0
          %v5968 = vadd.f32 0.0, %v5967
          %v5969 = vpop.f32.mrf.mxu0
          %5970 = vmatprep.mubr.bf16.mxu0 0
          %5971 = vmatmul.mubr.bf16.gmra.mxu0 %v5890
          %v5972 = vpop.f32.mrf.mxu0
          %v5973 = vadd.f32 0.0, %v5972
          %v5974 = vpop.f32.mrf.mxu0
          %v5975 = vpop.f32.mrf.mxu0
          %v5976 = vadd.f32 0.0, %v5975
          %v5977 = vpop.f32.mrf.mxu0
          %5978 = vmatprep.mubr.bf16.mxu0 0
          %5979 = vmatmul.mubr.bf16.gmra.mxu0 %v5893
          %v5980 = vpop.f32.mrf.mxu0
          %v5981 = vadd.f32 0.0, %v5980
          %v5982 = vpop.f32.mrf.mxu0
          %v5983 = vpop.f32.mrf.mxu0
          %v5984 = vadd.f32 0.0, %v5983
          %v5985 = vpop.f32.mrf.mxu0
          %5986 = vmatprep.mubr.bf16.mxu0 0
          %5987 = vmatmul.mubr.bf16.gmra.mxu0 %v5896
          %v5988 = vpop.f32.mrf.mxu0
          %v5989 = vadd.f32 0.0, %v5988
          %v5990 = vpop.f32.mrf.mxu0
          %v5991 = vpop.f32.mrf.mxu0
          %v5992 = vadd.f32 0.0, %v5991
          %v5993 = vpop.f32.mrf.mxu0
          %5994 = vdwg.mxu0
          %v5999 = vunpack.c.l.b16 %v5849
          %v6000 = vunpack.c.l.b16 %v5850
          %v6001 = vunpack.c.l.b16 %v5851
          %v6002 = vunpack.c.l.b16 %v5852
          %v6003 = vpack.c.b16 %v6000, %v5999
          %v6004 = vpack.c.b16 %v6002, %v6001
          %v6008 = vsel %vm5873, %v5821, 0
          %v6011 = vsel %vm5873, %v5822, 0
          %v6014 = vsel %vm5873, %v5823, 0
          %v6017 = vsel %vm5873, %v5824, 0
          %v6020 = vsel %vm5873, %v5825, 0
          %v6023 = vsel %vm5873, %v5826, 0
          %v6026 = vsel %vm5873, %v5827, 0
          %v6029 = vsel %vm5873, %v5828, 0
          %6031 = vmatprep.subr.bf16.mxu0 0
          %6032 = vmatpush1.bf16.msra.mxu0 0
          %6033 = vmatprep.subr.bf16.mxu0 0
          %6034 = vmatpush1.bf16.msra.mxu0 0
          %6035 = vmatprep.subr.bf16.mxu0 0
          %6036 = vmatpush1.bf16.msra.mxu0 0
          %6037 = vmatprep.subr.bf16.mxu0 0
          %6038 = vmatpush1.bf16.msra.mxu0 0
          %6039 = vmatprep.subr.bf16.mxu0 0
          %6040 = vmatpush1.bf16.msra.mxu0 0
          %6041 = vmatprep.subr.bf16.mxu0 0
          %6042 = vmatpush1.bf16.msra.mxu0 0
          %6043 = vmatprep.subr.bf16.mxu0 0
          %6044 = vmatpush1.bf16.msra.mxu0 %v6004
          %6045 = vmatprep.subr.bf16.mxu0 0
          %6046 = vmatpush1.bf16.msra.mxu0 %v6003
          %6047 = vmatprep.subr.bf16.mxu0 0
          %6048 = vmatpush2.bf16.msra.mxu0 0
          %6049 = vmatprep.subr.bf16.mxu0 0
          %6050 = vmatpush2.bf16.msra.mxu0 0
          %6051 = vmatprep.subr.bf16.mxu0 0
          %6052 = vmatpush2.bf16.msra.mxu0 0
          %6053 = vmatprep.subr.bf16.mxu0 0
          %6054 = vmatpush2.bf16.msra.mxu0 0
          %6055 = vmatprep.subr.bf16.mxu0 0
          %6056 = vmatpush2.bf16.msra.mxu0 0
          %6057 = vmatprep.subr.bf16.mxu0 0
          %6058 = vmatpush2.bf16.msra.mxu0 0
          %6059 = vmatprep.subr.bf16.mxu0 0
          %6060 = vmatpush2.bf16.msra.mxu0 0
          %6061 = vmatprep.subr.bf16.mxu0 0
          %6062 = vmatpush2.bf16.msra.mxu0 0
          %6063 = vmatprep.mubr.bf16.mxu0 0
          %6064 = vmatmul.mubr.bf16.gmra.mxu0 %v6008
          %v6065 = vpop.f32.mrf.mxu0
          %v6066 = vadd.f32 0.0, %v6065
          %v6067 = vpop.f32.mrf.mxu0
          %v6068 = vpop.f32.mrf.mxu0
          %v6069 = vadd.f32 0.0, %v6068
          %v6070 = vpop.f32.mrf.mxu0
          %6071 = vmatprep.mubr.bf16.mxu0 0
          %6072 = vmatmul.mubr.bf16.gmra.mxu0 %v6011
          %v6073 = vpop.f32.mrf.mxu0
          %v6074 = vadd.f32 0.0, %v6073
          %v6075 = vpop.f32.mrf.mxu0
          %v6076 = vpop.f32.mrf.mxu0
          %v6077 = vadd.f32 0.0, %v6076
          %v6078 = vpop.f32.mrf.mxu0
          %6079 = vmatprep.mubr.bf16.mxu0 0
          %6080 = vmatmul.mubr.bf16.gmra.mxu0 %v6014
          %v6081 = vpop.f32.mrf.mxu0
          %v6082 = vadd.f32 0.0, %v6081
          %v6083 = vpop.f32.mrf.mxu0
          %v6084 = vpop.f32.mrf.mxu0
          %v6085 = vadd.f32 0.0, %v6084
          %v6086 = vpop.f32.mrf.mxu0
          %6087 = vmatprep.mubr.bf16.mxu0 0
          %6088 = vmatmul.mubr.bf16.gmra.mxu0 %v6017
          %v6089 = vpop.f32.mrf.mxu0
          %v6090 = vadd.f32 0.0, %v6089
          %v6091 = vpop.f32.mrf.mxu0
          %v6092 = vpop.f32.mrf.mxu0
          %v6093 = vadd.f32 0.0, %v6092
          %v6094 = vpop.f32.mrf.mxu0
          %6095 = vmatprep.mubr.bf16.mxu0 0
          %6096 = vmatmul.mubr.bf16.gmra.mxu0 %v6020
          %v6097 = vpop.f32.mrf.mxu0
          %v6098 = vadd.f32 0.0, %v6097
          %v6099 = vpop.f32.mrf.mxu0
          %v6100 = vpop.f32.mrf.mxu0
          %v6101 = vadd.f32 0.0, %v6100
          %v6102 = vpop.f32.mrf.mxu0
          %6103 = vmatprep.mubr.bf16.mxu0 0
          %6104 = vmatmul.mubr.bf16.gmra.mxu0 %v6023
          %v6105 = vpop.f32.mrf.mxu0
          %v6106 = vadd.f32 0.0, %v6105
          %v6107 = vpop.f32.mrf.mxu0
          %v6108 = vpop.f32.mrf.mxu0
          %v6109 = vadd.f32 0.0, %v6108
          %v6110 = vpop.f32.mrf.mxu0
          %6111 = vmatprep.mubr.bf16.mxu0 0
          %6112 = vmatmul.mubr.bf16.gmra.mxu0 %v6026
          %v6113 = vpop.f32.mrf.mxu0
          %v6114 = vadd.f32 0.0, %v6113
          %v6115 = vpop.f32.mrf.mxu0
          %v6116 = vpop.f32.mrf.mxu0
          %v6117 = vadd.f32 0.0, %v6116
          %v6118 = vpop.f32.mrf.mxu0
          %6119 = vmatprep.mubr.bf16.mxu0 0
          %6120 = vmatmul.mubr.bf16.gmra.mxu0 %v6029
          %v6121 = vpop.f32.mrf.mxu0
          %v6122 = vadd.f32 0.0, %v6121
          %v6123 = vpop.f32.mrf.mxu0
          %v6124 = vpop.f32.mrf.mxu0
          %v6125 = vadd.f32 0.0, %v6124
          %v6126 = vpop.f32.mrf.mxu0
          %6127 = vdwg.mxu0
          %v6132 = vunpack.c.l.b16 %v5853
          %v6133 = vunpack.c.l.b16 %v5854
          %v6134 = vunpack.c.l.b16 %v5855
          %v6135 = vunpack.c.l.b16 %v5856
          %v6136 = vpack.c.b16 %v6133, %v6132
          %v6137 = vpack.c.b16 %v6135, %v6134
          %v6141 = vsel %vm5873, %v5829, 0
          %v6144 = vsel %vm5873, %v5830, 0
          %v6147 = vsel %vm5873, %v5831, 0
          %v6150 = vsel %vm5873, %v5832, 0
          %v6153 = vsel %vm5873, %v5833, 0
          %v6156 = vsel %vm5873, %v5834, 0
          %v6159 = vsel %vm5873, %v5835, 0
          %v6162 = vsel %vm5873, %v5836, 0
          %6164 = vmatprep.subr.bf16.mxu0 0
          %6165 = vmatpush1.bf16.msra.mxu0 0
          %6166 = vmatprep.subr.bf16.mxu0 0
          %6167 = vmatpush1.bf16.msra.mxu0 0
          %6168 = vmatprep.subr.bf16.mxu0 0
          %6169 = vmatpush1.bf16.msra.mxu0 0
          %6170 = vmatprep.subr.bf16.mxu0 0
          %6171 = vmatpush1.bf16.msra.mxu0 0
          %6172 = vmatprep.subr.bf16.mxu0 0
          %6173 = vmatpush1.bf16.msra.mxu0 0
          %6174 = vmatprep.subr.bf16.mxu0 0
          %6175 = vmatpush1.bf16.msra.mxu0 0
          %6176 = vmatprep.subr.bf16.mxu0 0
          %6177 = vmatpush1.bf16.msra.mxu0 %v6137
          %6178 = vmatprep.subr.bf16.mxu0 0
          %6179 = vmatpush1.bf16.msra.mxu0 %v6136
          %6180 = vmatprep.subr.bf16.mxu0 0
          %6181 = vmatpush2.bf16.msra.mxu0 0
          %6182 = vmatprep.subr.bf16.mxu0 0
          %6183 = vmatpush2.bf16.msra.mxu0 0
          %6184 = vmatprep.subr.bf16.mxu0 0
          %6185 = vmatpush2.bf16.msra.mxu0 0
          %6186 = vmatprep.subr.bf16.mxu0 0
          %6187 = vmatpush2.bf16.msra.mxu0 0
          %6188 = vmatprep.subr.bf16.mxu0 0
          %6189 = vmatpush2.bf16.msra.mxu0 0
          %6190 = vmatprep.subr.bf16.mxu0 0
          %6191 = vmatpush2.bf16.msra.mxu0 0
          %6192 = vmatprep.subr.bf16.mxu0 0
          %6193 = vmatpush2.bf16.msra.mxu0 0
          %6194 = vmatprep.subr.bf16.mxu0 0
          %6195 = vmatpush2.bf16.msra.mxu0 0
          %6196 = vmatprep.mubr.bf16.mxu0 0
          %6197 = vmatmul.mubr.bf16.gmra.mxu0 %v6141
          %v6198 = vpop.f32.mrf.mxu0
          %v6199 = vadd.f32 0.0, %v6198
          %v6200 = vpop.f32.mrf.mxu0
          %v6201 = vpop.f32.mrf.mxu0
          %v6202 = vadd.f32 0.0, %v6201
          %v6203 = vpop.f32.mrf.mxu0
          %6204 = vmatprep.mubr.bf16.mxu0 0
          %6205 = vmatmul.mubr.bf16.gmra.mxu0 %v6144
          %v6206 = vpop.f32.mrf.mxu0
          %v6207 = vadd.f32 0.0, %v6206
          %v6208 = vpop.f32.mrf.mxu0
          %v6209 = vpop.f32.mrf.mxu0
          %v6210 = vadd.f32 0.0, %v6209
          %v6211 = vpop.f32.mrf.mxu0
          %6212 = vmatprep.mubr.bf16.mxu0 0
          %6213 = vmatmul.mubr.bf16.gmra.mxu0 %v6147
          %v6214 = vpop.f32.mrf.mxu0
          %v6215 = vadd.f32 0.0, %v6214
          %v6216 = vpop.f32.mrf.mxu0
          %v6217 = vpop.f32.mrf.mxu0
          %v6218 = vadd.f32 0.0, %v6217
          %v6219 = vpop.f32.mrf.mxu0
          %6220 = vmatprep.mubr.bf16.mxu0 0
          %6221 = vmatmul.mubr.bf16.gmra.mxu0 %v6150
          %v6222 = vpop.f32.mrf.mxu0
          %v6223 = vadd.f32 0.0, %v6222
          %v6224 = vpop.f32.mrf.mxu0
          %v6225 = vpop.f32.mrf.mxu0
          %v6226 = vadd.f32 0.0, %v6225
          %v6227 = vpop.f32.mrf.mxu0
          %6228 = vmatprep.mubr.bf16.mxu0 0
          %6229 = vmatmul.mubr.bf16.gmra.mxu0 %v6153
          %v6230 = vpop.f32.mrf.mxu0
          %v6231 = vadd.f32 0.0, %v6230
          %v6232 = vpop.f32.mrf.mxu0
          %v6233 = vpop.f32.mrf.mxu0
          %v6234 = vadd.f32 0.0, %v6233
          %v6235 = vpop.f32.mrf.mxu0
          %6236 = vmatprep.mubr.bf16.mxu0 0
          %6237 = vmatmul.mubr.bf16.gmra.mxu0 %v6156
          %v6238 = vpop.f32.mrf.mxu0
          %v6239 = vadd.f32 0.0, %v6238
          %v6240 = vpop.f32.mrf.mxu0
          %v6241 = vpop.f32.mrf.mxu0
          %v6242 = vadd.f32 0.0, %v6241
          %v6243 = vpop.f32.mrf.mxu0
          %6244 = vmatprep.mubr.bf16.mxu0 0
          %6245 = vmatmul.mubr.bf16.gmra.mxu0 %v6159
          %v6246 = vpop.f32.mrf.mxu0
          %v6247 = vadd.f32 0.0, %v6246
          %v6248 = vpop.f32.mrf.mxu0
          %v6249 = vpop.f32.mrf.mxu0
          %v6250 = vadd.f32 0.0, %v6249
          %v6251 = vpop.f32.mrf.mxu0
          %6252 = vmatprep.mubr.bf16.mxu0 0
          %6253 = vmatmul.mubr.bf16.gmra.mxu0 %v6162
          %v6254 = vpop.f32.mrf.mxu0
          %v6255 = vadd.f32 0.0, %v6254
          %v6256 = vpop.f32.mrf.mxu0
          %v6257 = vpop.f32.mrf.mxu0
          %v6258 = vadd.f32 0.0, %v6257
          %v6259 = vpop.f32.mrf.mxu0
          %6260 = vdwg.mxu0
          %v6265 = vunpack.c.l.b16 %v5857
          %v6266 = vunpack.c.l.b16 %v5858
          %v6267 = vunpack.c.l.b16 %v5859
          %v6268 = vunpack.c.l.b16 %v5860
          %v6269 = vpack.c.b16 %v6266, %v6265
          %v6270 = vpack.c.b16 %v6268, %v6267
          %v6274 = vsel %vm5873, %v5837, 0
          %v6277 = vsel %vm5873, %v5838, 0
          %v6280 = vsel %vm5873, %v5839, 0
          %v6283 = vsel %vm5873, %v5840, 0
          %v6286 = vsel %vm5873, %v5841, 0
          %v6289 = vsel %vm5873, %v5842, 0
          %v6292 = vsel %vm5873, %v5843, 0
          %v6295 = vsel %vm5873, %v5844, 0
          %6297 = vmatprep.subr.bf16.mxu0 0
          %6298 = vmatpush1.bf16.msra.mxu0 0
          %6299 = vmatprep.subr.bf16.mxu0 0
          %6300 = vmatpush1.bf16.msra.mxu0 0
          %6301 = vmatprep.subr.bf16.mxu0 0
          %6302 = vmatpush1.bf16.msra.mxu0 0
          %6303 = vmatprep.subr.bf16.mxu0 0
          %6304 = vmatpush1.bf16.msra.mxu0 0
          %6305 = vmatprep.subr.bf16.mxu0 0
          %6306 = vmatpush1.bf16.msra.mxu0 0
          %6307 = vmatprep.subr.bf16.mxu0 0
          %6308 = vmatpush1.bf16.msra.mxu0 0
          %6309 = vmatprep.subr.bf16.mxu0 0
          %6310 = vmatpush1.bf16.msra.mxu0 %v6270
          %6311 = vmatprep.subr.bf16.mxu0 0
          %6312 = vmatpush1.bf16.msra.mxu0 %v6269
          %6313 = vmatprep.subr.bf16.mxu0 0
          %6314 = vmatpush2.bf16.msra.mxu0 0
          %6315 = vmatprep.subr.bf16.mxu0 0
          %6316 = vmatpush2.bf16.msra.mxu0 0
          %6317 = vmatprep.subr.bf16.mxu0 0
          %6318 = vmatpush2.bf16.msra.mxu0 0
          %6319 = vmatprep.subr.bf16.mxu0 0
          %6320 = vmatpush2.bf16.msra.mxu0 0
          %6321 = vmatprep.subr.bf16.mxu0 0
          %6322 = vmatpush2.bf16.msra.mxu0 0
          %6323 = vmatprep.subr.bf16.mxu0 0
          %6324 = vmatpush2.bf16.msra.mxu0 0
          %6325 = vmatprep.subr.bf16.mxu0 0
          %6326 = vmatpush2.bf16.msra.mxu0 0
          %6327 = vmatprep.subr.bf16.mxu0 0
          %6328 = vmatpush2.bf16.msra.mxu0 0
          %6329 = vmatprep.mubr.bf16.mxu0 0
          %6330 = vmatmul.mubr.bf16.gmra.mxu0 %v6274
          %v6331 = vpop.f32.mrf.mxu0
          %v6332 = vadd.f32 0.0, %v6331
          %v6333 = vpop.f32.mrf.mxu0
          %v6334 = vpop.f32.mrf.mxu0
          %v6335 = vadd.f32 0.0, %v6334
          %v6336 = vpop.f32.mrf.mxu0
          %6337 = vmatprep.mubr.bf16.mxu0 0
          %6338 = vmatmul.mubr.bf16.gmra.mxu0 %v6277
          %v6339 = vpop.f32.mrf.mxu0
          %v6340 = vadd.f32 0.0, %v6339
          %v6341 = vpop.f32.mrf.mxu0
          %v6342 = vpop.f32.mrf.mxu0
          %v6343 = vadd.f32 0.0, %v6342
          %v6344 = vpop.f32.mrf.mxu0
          %6345 = vmatprep.mubr.bf16.mxu0 0
          %6346 = vmatmul.mubr.bf16.gmra.mxu0 %v6280
          %v6347 = vpop.f32.mrf.mxu0
          %v6348 = vadd.f32 0.0, %v6347
          %v6349 = vpop.f32.mrf.mxu0
          %v6350 = vpop.f32.mrf.mxu0
          %v6351 = vadd.f32 0.0, %v6350
          %v6352 = vpop.f32.mrf.mxu0
          %6353 = vmatprep.mubr.bf16.mxu0 0
          %6354 = vmatmul.mubr.bf16.gmra.mxu0 %v6283
          %v6355 = vpop.f32.mrf.mxu0
          %v6356 = vadd.f32 0.0, %v6355
          %v6357 = vpop.f32.mrf.mxu0
          %v6358 = vpop.f32.mrf.mxu0
          %v6359 = vadd.f32 0.0, %v6358
          %v6360 = vpop.f32.mrf.mxu0
          %6361 = vmatprep.mubr.bf16.mxu0 0
          %6362 = vmatmul.mubr.bf16.gmra.mxu0 %v6286
          %v6363 = vpop.f32.mrf.mxu0
          %v6364 = vadd.f32 0.0, %v6363
          %v6365 = vpop.f32.mrf.mxu0
          %v6366 = vpop.f32.mrf.mxu0
          %v6367 = vadd.f32 0.0, %v6366
          %v6368 = vpop.f32.mrf.mxu0
          %6369 = vmatprep.mubr.bf16.mxu0 0
          %6370 = vmatmul.mubr.bf16.gmra.mxu0 %v6289
          %v6371 = vpop.f32.mrf.mxu0
          %v6372 = vadd.f32 0.0, %v6371
          %v6373 = vpop.f32.mrf.mxu0
          %v6374 = vpop.f32.mrf.mxu0
          %v6375 = vadd.f32 0.0, %v6374
          %v6376 = vpop.f32.mrf.mxu0
          %6377 = vmatprep.mubr.bf16.mxu0 0
          %6378 = vmatmul.mubr.bf16.gmra.mxu0 %v6292
          %v6379 = vpop.f32.mrf.mxu0
          %v6380 = vadd.f32 0.0, %v6379
          %v6381 = vpop.f32.mrf.mxu0
          %v6382 = vpop.f32.mrf.mxu0
          %v6383 = vadd.f32 0.0, %v6382
          %v6384 = vpop.f32.mrf.mxu0
          %6385 = vmatprep.mubr.bf16.mxu0 0
          %6386 = vmatmul.mubr.bf16.gmra.mxu0 %v6295
          %v6387 = vpop.f32.mrf.mxu0
          %v6388 = vadd.f32 0.0, %v6387
          %v6389 = vpop.f32.mrf.mxu0
          %v6390 = vpop.f32.mrf.mxu0
          %v6391 = vadd.f32 0.0, %v6390
          %v6392 = vpop.f32.mrf.mxu0
          %6393 = vdwg.mxu0
          %v6394 = vadd.f32 %v5933, %v6066
          %v6395 = vadd.f32 %v6394, %v6199
          %v6396 = vadd.f32 %v6395, %v6332
          %v6397 = vadd.f32 %v5936, %v6069
          %v6398 = vadd.f32 %v6397, %v6202
          %v6399 = vadd.f32 %v6398, %v6335
          %v6400 = vadd.f32 %v5941, %v6074
          %v6401 = vadd.f32 %v6400, %v6207
          %v6402 = vadd.f32 %v6401, %v6340
          %v6403 = vadd.f32 %v5944, %v6077
          %v6404 = vadd.f32 %v6403, %v6210
          %v6405 = vadd.f32 %v6404, %v6343
          %v6406 = vadd.f32 %v5949, %v6082
          %v6407 = vadd.f32 %v6406, %v6215
          %v6408 = vadd.f32 %v6407, %v6348
          %v6409 = vadd.f32 %v5952, %v6085
          %v6410 = vadd.f32 %v6409, %v6218
          %v6411 = vadd.f32 %v6410, %v6351
          %v6412 = vadd.f32 %v5957, %v6090
          %v6413 = vadd.f32 %v6412, %v6223
          %v6414 = vadd.f32 %v6413, %v6356
          %v6415 = vadd.f32 %v5960, %v6093
          %v6416 = vadd.f32 %v6415, %v6226
          %v6417 = vadd.f32 %v6416, %v6359
          %v6418 = vadd.f32 %v5965, %v6098
          %v6419 = vadd.f32 %v6418, %v6231
          %v6420 = vadd.f32 %v6419, %v6364
          %v6421 = vadd.f32 %v5968, %v6101
          %v6422 = vadd.f32 %v6421, %v6234
          %v6423 = vadd.f32 %v6422, %v6367
          %v6424 = vadd.f32 %v5973, %v6106
          %v6425 = vadd.f32 %v6424, %v6239
          %v6426 = vadd.f32 %v6425, %v6372
          %v6427 = vadd.f32 %v5976, %v6109
          %v6428 = vadd.f32 %v6427, %v6242
          %v6429 = vadd.f32 %v6428, %v6375
          %v6430 = vadd.f32 %v5981, %v6114
          %v6431 = vadd.f32 %v6430, %v6247
          %v6432 = vadd.f32 %v6431, %v6380
          %v6433 = vadd.f32 %v5984, %v6117
          %v6434 = vadd.f32 %v6433, %v6250
          %v6435 = vadd.f32 %v6434, %v6383
          %v6436 = vadd.f32 %v5989, %v6122
          %v6437 = vadd.f32 %v6436, %v6255
          %v6438 = vadd.f32 %v6437, %v6388
          %v6439 = vadd.f32 %v5992, %v6125
          %v6440 = vadd.f32 %v6439, %v6258
          %v6441 = vadd.f32 %v6440, %v6391
          %v6442 = vld [vmem:[%s5] sm:$0x1]
          %v6444 = vlaneseq
          %v6445 = vshrl.u32 %v6444, 7
          %v6446 = vsub.s32 0, %v6445
          %v6447 = vrot.slane %v6442, %v6446
          %v6449 = vadd.f32 %v6396, %v6447
          %v6450 = vadd.f32 %v6399, %v6447
          %v6451 = vadd.f32 %v6402, %v6447
          %v6452 = vadd.f32 %v6405, %v6447
          %v6453 = vadd.f32 %v6408, %v6447
          %v6454 = vadd.f32 %v6411, %v6447
          %v6455 = vadd.f32 %v6414, %v6447
          %v6456 = vadd.f32 %v6417, %v6447
          %v6457 = vadd.f32 %v6420, %v6447
          %v6458 = vadd.f32 %v6423, %v6447
          %v6459 = vadd.f32 %v6426, %v6447
          %v6460 = vadd.f32 %v6429, %v6447
          %v6461 = vadd.f32 %v6432, %v6447
          %v6462 = vadd.f32 %v6435, %v6447
          %v6463 = vadd.f32 %v6438, %v6447
          %v6464 = vadd.f32 %v6441, %v6447
          %6465 = vst [vmem:[%s1231] sm:$0xff] %v6449
          %6466 = vst [vmem:[%s1231 + $0x8] sm:$0xff] %v6450
          %6467 = vst [vmem:[%s1231 + $0x10] sm:$0xff] %v6451
          %6468 = vst [vmem:[%s1231 + $0x18] sm:$0xff] %v6452
          %6469 = vst [vmem:[%s1231 + $0x20] sm:$0xff] %v6453
          %6470 = vst [vmem:[%s1231 + $0x28] sm:$0xff] %v6454
          %6471 = vst [vmem:[%s1231 + $0x30] sm:$0xff] %v6455
          %6472 = vst [vmem:[%s1231 + $0x38] sm:$0xff] %v6456
          %6473 = vst [vmem:[%s1231 + $0x40] sm:$0xff] %v6457
          %6474 = vst [vmem:[%s1231 + $0x48] sm:$0xff] %v6458
          %6475 = vst [vmem:[%s1231 + $0x50] sm:$0xff] %v6459
          %6476 = vst [vmem:[%s1231 + $0x58] sm:$0xff] %v6460
          %6477 = vst [vmem:[%s1231 + $0x60] sm:$0xff] %v6461
          %6478 = vst [vmem:[%s1231 + $0x68] sm:$0xff] %v6462
          %6479 = vst [vmem:[%s1231 + $0x70] sm:$0xff] %v6463
          %6480 = vst [vmem:[%s1231 + $0x78] sm:$0xff] %v6464
        $region179: #{multi_head_attention.3} parent=154 // pred_fallthru
          _
        %s6481 = sand.u32 %s203, 1
        %s6482 = scalar_lea.sflag [#allocation9], %s6481
        %s6483 = sand.u32 %s203, 1
        %s6484 = smul.addr %s6483, 128
        %s6485 = scalar_lea.vmem [#allocation8], %s6484
        // Predicated region
        $region180: #{multi_head_attention.3} parent=154 // pred_check
          %p6486 = pneg %p213
        $region181: #{multi_head_attention.3} parent=154 // pred_check_branch
          %6488 = sbr.rel (%p6486) target = $region183
        $region182: #{multi_head_attention.3} parent=154 // pred_region
          %s6489 = smul.u32 16, %s26
          %s6491 = ssub.s32 2048, 2048
          %6492 = vsyncadd %s6482, %s6491
          %s6493 = smul.addr %s25, 32
          %s6494 = sadd.s32 %s6489, %s6493
          %s6495 = smul.addr %s6494, 128
          %s6496 = scalar_lea.hbm %s6, %s6495
          %s6497 = sshll.u32 %s6485, 4
          %s6498 = int_to_ptr.vmem [resolvable:$true] %s6497
          %6503 = dma.vmem_to_hbm [thread:$0]  %s6498, 2048, %s6496, %s6482, 128, 128, 8
        $region183: #{multi_head_attention.3} parent=154 // pred_fallthru
          _
      $region155: #{multi_head_attention.3} parent=5 // pred_fallthru
        _
      %p6504 = scmp.le.s32.totalorder 2, %s15
      // Predicated region
      $region184: #{multi_head_attention.3} parent=5 // pred_check
        %p6505 = pneg %p6504
      $region185: #{multi_head_attention.3} parent=5 // pred_check_branch
        %6507 = sbr.rel (%p6505) target = $region187
      $region186: #{multi_head_attention.3} parent=5 // pred_region
        %s6508 = ssub.s32 %s15, 2
        // Predicated region
        $region188: #{multi_head_attention.3} parent=186 // pred_check
          %p6509 = pneg %p219
        $region189: #{multi_head_attention.3} parent=186 // pred_check_branch
          %6511 = sbr.rel (%p6509) target = $region191
        $region190: #{multi_head_attention.3} parent=186 // pred_region
          %s6512 = sand.u32 %s204, 1
          %s6513 = scalar_lea.sflag [#allocation9], %s6512
          %s6514 = sand.u32 %s204, 1
          %s6515 = smul.addr %s6514, 128
          %s6516 = scalar_lea.vmem [#allocation8], %s6515
          %6517 = dma.done %s6513, 2048
        $region191: #{multi_head_attention.3} parent=186 // pred_fallthru
          _
      $region187: #{multi_head_attention.3} parent=5 // pred_fallthru
        _
    $region6: #{multi_head_attention.3} parent=1 // loop_footer
      %s19 = sadd.s32 1, %s15
    $region7: #{multi_head_attention.3} parent=1 // loop_footer_branch
      %14 = sbr.rel target = $region3
    $region8: #{multi_head_attention.3} parent=1 // loop_exit
      _
    %6518 = vsyncpa [#allocation9], 1
    %s6519 = scalar_lea.sflag [#allocation9], 1
    %6520 = vsyncpa %s6519, 1

</llo_original>
